<compile_context>
chip_gen: v5e
topology: v5e:2x2
jax: 0.10.0
libtpu: 0.0.40
codegen_flags: <defaults>
</compile_context>

<pallas_src>
import jax
import jax.numpy as jnp
from jax import lax
from jax.experimental import pallas as pl
from jax.experimental.pallas import tpu as pltpu

SQRT2 = 2.0 ** 0.5
OUT_LANES = 128          # lane-dense per-sample output row


# ----------------------------------------------------------------------------
# In-kernel conv: im2col + a single MXU matmul, stride applied during gather.
# ----------------------------------------------------------------------------
def _conv3x3(z, w_mat, stride, pad):
    """3x3 conv + ReLU*sqrt(2) on one (H, W, Cin) VMEM-resident activation.

    w_mat: pre-scaled weight in im2col layout (9*Cin, Cout), rows ordered
           (kh, kw, cin).
    """
    H, W, Cin = z.shape
    Hp, Wp = H + 2 * pad, W + 2 * pad
    Ho = (Hp - 3) // stride + 1
    Wo = (Wp - 3) // stride + 1
    Cout = w_mat.shape[-1]

    # Extended zero padding so every tap's strided window reshapes cleanly.
    # (extra rows/cols are zeros and never selected by the subsampling)
    Hp_ext = 2 + stride * Ho
    Wp_ext = 2 + stride * Wo
    top, left = pad, pad
    bot, right = Hp_ext - H - top, Wp_ext - W - left

    parts = []
    if top:
        parts.append(jnp.zeros((top, W, Cin), jnp.float32))
    parts.append(z)
    if bot:
        parts.append(jnp.zeros((bot, W, Cin), jnp.float32))
    zp = jnp.concatenate(parts, axis=0) if len(parts) > 1 else z

    parts = []
    if left:
        parts.append(jnp.zeros((Hp_ext, left, Cin), jnp.float32))
    parts.append(zp)
    if right:
        parts.append(jnp.zeros((Hp_ext, right, Cin), jnp.float32))
    zp = jnp.concatenate(parts, axis=1) if len(parts) > 1 else zp
    # zp: (Hp_ext, Wp_ext, Cin), zero outside the original image.

    taps = []
    for kh in range(3):
        rows = zp[kh:kh + stride * Ho]                       # (s*Ho, Wp_ext, Cin)
        if stride > 1:
            rows = rows.reshape(Ho, stride, Wp_ext, Cin)[:, 0]
        for kw in range(3):
            col = rows[:, kw:kw + stride * Wo]               # (Ho, s*Wo, Cin)
            if stride > 1:
                col = col.reshape(Ho, Wo, stride, Cin)[:, :, 0]
            taps.append(col.reshape(Ho * Wo, Cin))
    patches = jnp.concatenate(taps, axis=-1)                 # (Ho*Wo, 9*Cin)

    out = jnp.dot(patches, w_mat, preferred_element_type=jnp.float32)
    out = jnp.maximum(out, 0.0) * SQRT2
    return out.reshape(Ho, Wo, Cout)


# ----------------------------------------------------------------------------
# Fused whole-network kernel (one batch element per grid step).
# ----------------------------------------------------------------------------
def _make_fused_kernel(conv_specs, n_layers1):
    n_conv = len(conv_specs)

    def kernel(*refs):
        vis_ref, jyh_ref = refs[0], refs[1]
        w_refs = refs[2:2 + n_conv]
        w2_ref = refs[2 + n_conv]
        o_ref = refs[3 + n_conv]

        z = vis_ref[0].astype(jnp.float32)                   # (H, W, 1)
        for li, (stride, pad) in enumerate(conv_specs):
            z = _conv3x3(z, w_refs[li][...], stride, pad)
            if li == n_layers1:                              # right after W1 conv
                z = jnp.concatenate([z, jyh_ref[0].astype(jnp.float32)], axis=-1)

        Hf, Wf, C = z.shape
        m = jnp.sum(z.reshape(Hf * Wf, C), axis=0, keepdims=True)
        m = m * (1.0 / (Hf * Wf))                            # (1, C) spatial mean
        val = jnp.sum(m * w2_ref[...], axis=-1, keepdims=True)   # (1, 1)
        o_ref[...] = jnp.broadcast_to(val.reshape(1, 1, 1), o_ref.shape)

    return kernel


# ----------------------------------------------------------------------------
# Wrappers (glue)
# ----------------------------------------------------------------------------
def _prepare_weights(conv_ws, W2):
    """One-time prep: OIHW -> im2col (9*Cin, Cout), pre-scaled by 1/sqrt(Cin)."""
    w_mats = []
    for Wc in conv_ws:
        cout, cin = Wc.shape[0], Wc.shape[1]
        wk = jnp.transpose(Wc, (2, 3, 1, 0)).reshape(9 * cin, cout)
        w_mats.append((wk / (cin ** 0.5)).astype(jnp.float32))
    h = W2.shape[0]
    w2_row = (W2 / (h ** 0.5)).reshape(1, h).astype(jnp.float32)
    return w_mats, w2_row


@jax.jit
def forward(vis_nchw, jyh_nchw, layers1, W1, layers2, W2):
    """Mirrors Model.forward (PyTorch NCHW / OIHW parameter layout)."""
    n_layers1 = len(layers1)
    conv_ws = list(layers1) + [W1] + list(layers2)
    conv_specs = [(1, 1)] * n_layers1 + [(3, 0)]
    conv_specs += [(1 if l % 2 == 0 else 2, 1) for l in range(len(layers2))]

    vis = jnp.transpose(vis_nchw, (0, 2, 3, 1)).astype(jnp.float32)   # NHWC
    jyh = jnp.transpose(jyh_nchw, (0, 2, 3, 1)).astype(jnp.float32)
    w_mats, w2_row = _prepare_weights(conv_ws, W2)

    N, H, W, Cin0 = vis.shape
    _, Hj, Wj, Cj = jyh.shape

    kernel = _make_fused_kernel(tuple(conv_specs), n_layers1)

    in_specs = [
        pl.BlockSpec((1, H, W, Cin0), lambda i: (i, 0, 0, 0)),
        pl.BlockSpec((1, Hj, Wj, Cj), lambda i: (i, 0, 0, 0)),
    ]
    for wm in w_mats:
        in_specs.append(pl.BlockSpec(wm.shape, lambda i: (0, 0)))
    in_specs.append(pl.BlockSpec(w2_row.shape, lambda i: (0, 0)))

    # Advisory cost estimate for the whole fused call.
    flops = 0
    h_cur, w_cur = H, W
    for (s, p), wm in zip(conv_specs, w_mats):
        hp, wp = h_cur + 2 * p, w_cur + 2 * p
        ho, wo = (hp - 3) // s + 1, (wp - 3) // s + 1
        k_dim, cout = wm.shape
        flops += 2 * N * ho * wo * k_dim * cout
        h_cur, w_cur = ho, wo
    flops += 2 * N * int(w2_row.size)
    bytes_accessed = 4 * (int(vis.size) + int(jyh.size)
                          + sum(int(w.size) for w in w_mats)
                          + int(w2_row.size) + N * OUT_LANES)
    cost = pl.CostEstimate(flops=flops, transcendentals=0,
                           bytes_accessed=bytes_accessed)

    out = pl.pallas_call(
        kernel,
        out_shape=jax.ShapeDtypeStruct((N, 1, OUT_LANES), jnp.float32),
        grid=(N,),
        in_specs=in_specs,
        out_specs=pl.BlockSpec((1, 1, OUT_LANES), lambda i: (i, 0, 0)),
        compiler_params=pltpu.CompilerParams(dimension_semantics=("parallel",)),
        cost_estimate=cost,
    )(vis, jyh, *w_mats, w2_row)

    return out[:, 0, 0]


# ----------------------------------------------------------------------------
# Deterministic parameter init (matches shapes in Model.__init__)
# ----------------------------------------------------------------------------
def init_params(key, L1, L2, h):
    layers1 = []
    cin = 1
    for _ in range(L1):
        key, k = jax.random.split(key)
        layers1.append(jax.random.normal(k, (h, cin, 3, 3), jnp.float32))
        cin = h
    key, k = jax.random.split(key)
    W1 = jax.random.normal(k, (h, h, 3, 3), jnp.float32)
    layers2 = []
    cin = h + 3
    for _ in range(2 * L2):
        key, k = jax.random.split(key)
        layers2.append(jax.random.normal(k, (h, cin, 3, 3), jnp.float32))
        cin = h
    key, k = jax.random.split(key)
    W2 = jax.random.normal(k, (h,), jnp.float32)
    return layers1, W1, layers2, W2


# ----------------------------------------------------------------------------
# Pure-JAX reference (NCHW, same math as the PyTorch module)
# ----------------------------------------------------------------------------
def reference_forward(vis, jyh, layers1, W1, layers2, W2):
    def conv(x, w, stride, padding):
        return lax.conv_general_dilated(
            x, w, (stride, stride), [(padding, padding)] * 2,
            dimension_numbers=("NCHW", "OIHW", "NCHW"),
            precision=lax.Precision.HIGHEST)

    z = vis
    for Wc in layers1:
        z = conv(z, Wc / (z.shape[1] ** 0.5), 1, 1)
        z = jnp.maximum(z, 0.0) * SQRT2
    z = conv(z, W1 / (z.shape[1] ** 0.5), 3, 0)
    z = jnp.maximum(z, 0.0) * SQRT2
    z = jnp.concatenate([z, jyh], axis=1)
    for l, Wc in enumerate(layers2):
        stride = 1 if l % 2 == 0 else 2
        z = conv(z, Wc / (z.shape[1] ** 0.5), stride, 1)
        z = jnp.maximum(z, 0.0) * SQRT2
    z = jnp.mean(z, axis=(2, 3))
    return z @ (W2 / (z.shape[1] ** 0.5))


if __name__ == "__main__":
    L1, L2, h = 2, 2, 8
    N, H, W = 2, 12, 12

    key = jax.random.PRNGKey(0)
    kp, kv, kj = jax.random.split(key, 3)
    layers1, W1, layers2, W2 = init_params(kp, L1, L2, h)

    vis = jax.random.normal(kv, (N, 1, H, W), jnp.float32)
    H1 = (H - 3) // 3 + 1   # spatial size after the stride-3 conv (W1)
    jyh = jax.random.normal(kj, (N, 3, H1, H1), jnp.float32)

    out = forward(vis, jyh, layers1, W1, layers2, W2)
    out = jax.block_until_ready(out)

    ref = reference_forward(vis, jyh, layers1, W1, layers2, W2)
    assert out.shape == (N,)
    assert jnp.allclose(out, ref, rtol=2e-2, atol=2e-2), (out, ref)
    print("KERNEL_OK")
</pallas_src>

<mosaic_0001>
module attributes {stable_mosaic.version = 11 : i64} {
  func.func @kernel(%arg0: i32, %arg1: memref<1x12x12x1xf32, #tpu.memory_space<vmem>>, %arg2: memref<1x4x4x3xf32, #tpu.memory_space<vmem>>, %arg3: memref<9x8xf32, #tpu.memory_space<vmem>>, %arg4: memref<72x8xf32, #tpu.memory_space<vmem>>, %arg5: memref<72x8xf32, #tpu.memory_space<vmem>>, %arg6: memref<99x8xf32, #tpu.memory_space<vmem>>, %arg7: memref<72x8xf32, #tpu.memory_space<vmem>>, %arg8: memref<72x8xf32, #tpu.memory_space<vmem>>, %arg9: memref<72x8xf32, #tpu.memory_space<vmem>>, %arg10: memref<1x8xf32, #tpu.memory_space<vmem>>, %arg11: memref<1x1x128xf32, #tpu.memory_space<vmem>>) attributes {dimension_semantics = [#tpu.dimension_semantics<parallel>], iteration_bounds = array<i64: 2>, scalar_prefetch = 0 : i64, scratch_operands = 0 : i64, tpu.core_type = #tpu.core_type<tc>, window_params = [{transform_indices = @transform_0, window_bounds = array<i64: 1, 12, 12, 1>}, {transform_indices = @transform_1, window_bounds = array<i64: 1, 4, 4, 3>}, {pipeline_mode = #tpu.pipeline_mode<synchronous>, transform_indices = @transform_2, window_bounds = array<i64: 9, 8>}, {pipeline_mode = #tpu.pipeline_mode<synchronous>, transform_indices = @transform_3, window_bounds = array<i64: 72, 8>}, {pipeline_mode = #tpu.pipeline_mode<synchronous>, transform_indices = @transform_4, window_bounds = array<i64: 72, 8>}, {pipeline_mode = #tpu.pipeline_mode<synchronous>, transform_indices = @transform_5, window_bounds = array<i64: 99, 8>}, {pipeline_mode = #tpu.pipeline_mode<synchronous>, transform_indices = @transform_6, window_bounds = array<i64: 72, 8>}, {pipeline_mode = #tpu.pipeline_mode<synchronous>, transform_indices = @transform_7, window_bounds = array<i64: 72, 8>}, {pipeline_mode = #tpu.pipeline_mode<synchronous>, transform_indices = @transform_8, window_bounds = array<i64: 72, 8>}, {pipeline_mode = #tpu.pipeline_mode<synchronous>, transform_indices = @transform_9, window_bounds = array<i64: 1, 8>}, {transform_indices = @transform_10, window_bounds = array<i64: 1, 1, 128>}]} {
    %c0 = arith.constant 0 : index
    %c0_0 = arith.constant 0 : index
    %c0_1 = arith.constant 0 : index
    %c0_2 = arith.constant 0 : index
    %0 = vector.load %arg1[%c0, %c0_0, %c0_1, %c0_2] : memref<1x12x12x1xf32, #tpu.memory_space<vmem>>, vector<1x12x12x1xf32>
    %1 = vector.shape_cast %0 : vector<1x12x12x1xf32> to vector<12x12x1xf32>
    %c0_3 = arith.constant 0 : index
    %c0_4 = arith.constant 0 : index
    %2 = vector.load %arg3[%c0_3, %c0_4] : memref<9x8xf32, #tpu.memory_space<vmem>>, vector<9x8xf32>
    %cst = arith.constant 0.000000e+00 : f32
    %3 = vector.broadcast %cst : f32 to vector<1x12x1xf32>
    %cst_5 = arith.constant 0.000000e+00 : f32
    %4 = vector.broadcast %cst_5 : f32 to vector<1x12x1xf32>
    %5 = tpu.concatenate %3, %1, %4 in 0 : vector<1x12x1xf32>, vector<12x12x1xf32>, vector<1x12x1xf32> -> vector<14x12x1xf32>
    %cst_6 = arith.constant 0.000000e+00 : f32
    %6 = vector.broadcast %cst_6 : f32 to vector<14x1x1xf32>
    %cst_7 = arith.constant 0.000000e+00 : f32
    %7 = vector.broadcast %cst_7 : f32 to vector<14x1x1xf32>
    %8 = tpu.concatenate %6, %5, %7 in 1 : vector<14x1x1xf32>, vector<14x12x1xf32>, vector<14x1x1xf32> -> vector<14x14x1xf32>
    %9 = vector.extract_strided_slice %8 {offsets = [0, 0, 0], sizes = [12, 14, 1], strides = [1, 1, 1]} : vector<14x14x1xf32> to vector<12x14x1xf32>
    %10 = vector.extract_strided_slice %9 {offsets = [0, 0, 0], sizes = [12, 12, 1], strides = [1, 1, 1]} : vector<12x14x1xf32> to vector<12x12x1xf32>
    %11 = vector.shape_cast %10 : vector<12x12x1xf32> to vector<144x1xf32>
    %12 = vector.extract_strided_slice %9 {offsets = [0, 1, 0], sizes = [12, 12, 1], strides = [1, 1, 1]} : vector<12x14x1xf32> to vector<12x12x1xf32>
    %13 = vector.shape_cast %12 : vector<12x12x1xf32> to vector<144x1xf32>
    %14 = vector.extract_strided_slice %9 {offsets = [0, 2, 0], sizes = [12, 12, 1], strides = [1, 1, 1]} : vector<12x14x1xf32> to vector<12x12x1xf32>
    %15 = vector.shape_cast %14 : vector<12x12x1xf32> to vector<144x1xf32>
    %16 = vector.extract_strided_slice %8 {offsets = [1, 0, 0], sizes = [12, 14, 1], strides = [1, 1, 1]} : vector<14x14x1xf32> to vector<12x14x1xf32>
    %17 = vector.extract_strided_slice %16 {offsets = [0, 0, 0], sizes = [12, 12, 1], strides = [1, 1, 1]} : vector<12x14x1xf32> to vector<12x12x1xf32>
    %18 = vector.shape_cast %17 : vector<12x12x1xf32> to vector<144x1xf32>
    %19 = vector.extract_strided_slice %16 {offsets = [0, 1, 0], sizes = [12, 12, 1], strides = [1, 1, 1]} : vector<12x14x1xf32> to vector<12x12x1xf32>
    %20 = vector.shape_cast %19 : vector<12x12x1xf32> to vector<144x1xf32>
    %21 = vector.extract_strided_slice %16 {offsets = [0, 2, 0], sizes = [12, 12, 1], strides = [1, 1, 1]} : vector<12x14x1xf32> to vector<12x12x1xf32>
    %22 = vector.shape_cast %21 : vector<12x12x1xf32> to vector<144x1xf32>
    %23 = vector.extract_strided_slice %8 {offsets = [2, 0, 0], sizes = [12, 14, 1], strides = [1, 1, 1]} : vector<14x14x1xf32> to vector<12x14x1xf32>
    %24 = vector.extract_strided_slice %23 {offsets = [0, 0, 0], sizes = [12, 12, 1], strides = [1, 1, 1]} : vector<12x14x1xf32> to vector<12x12x1xf32>
    %25 = vector.shape_cast %24 : vector<12x12x1xf32> to vector<144x1xf32>
    %26 = vector.extract_strided_slice %23 {offsets = [0, 1, 0], sizes = [12, 12, 1], strides = [1, 1, 1]} : vector<12x14x1xf32> to vector<12x12x1xf32>
    %27 = vector.shape_cast %26 : vector<12x12x1xf32> to vector<144x1xf32>
    %28 = vector.extract_strided_slice %23 {offsets = [0, 2, 0], sizes = [12, 12, 1], strides = [1, 1, 1]} : vector<12x14x1xf32> to vector<12x12x1xf32>
    %29 = vector.shape_cast %28 : vector<12x12x1xf32> to vector<144x1xf32>
    %30 = tpu.concatenate %11, %13, %15, %18, %20, %22, %25, %27, %29 in 1 : vector<144x1xf32>, vector<144x1xf32>, vector<144x1xf32>, vector<144x1xf32>, vector<144x1xf32>, vector<144x1xf32>, vector<144x1xf32>, vector<144x1xf32>, vector<144x1xf32> -> vector<144x9xf32>
    %cst_8 = arith.constant dense<0.000000e+00> : vector<144x8xf32>
    %31 = tpu.matmul %30, %2, %cst_8 {dimension_numbers = #tpu.dot_dimension_numbers<[1], [0], [0], [1], [0, 0, 1, 1], [], []>} : vector<144x9xf32>, vector<9x8xf32>, vector<144x8xf32> -> vector<144x8xf32>
    %cst_9 = arith.constant 0.000000e+00 : f32
    %32 = vector.broadcast %cst_9 : f32 to vector<144x8xf32>
    %33 = arith.maximumf %31, %32 : vector<144x8xf32>
    %cst_10 = arith.constant 1.41421354 : f32
    %34 = vector.broadcast %cst_10 : f32 to vector<144x8xf32>
    %35 = arith.mulf %33, %34 : vector<144x8xf32>
    %36 = vector.shape_cast %35 : vector<144x8xf32> to vector<12x12x8xf32>
    %c0_11 = arith.constant 0 : index
    %c0_12 = arith.constant 0 : index
    %37 = vector.load %arg4[%c0_11, %c0_12] : memref<72x8xf32, #tpu.memory_space<vmem>>, vector<72x8xf32>
    %cst_13 = arith.constant 0.000000e+00 : f32
    %38 = vector.broadcast %cst_13 : f32 to vector<1x12x8xf32>
    %cst_14 = arith.constant 0.000000e+00 : f32
    %39 = vector.broadcast %cst_14 : f32 to vector<1x12x8xf32>
    %40 = tpu.concatenate %38, %36, %39 in 0 : vector<1x12x8xf32>, vector<12x12x8xf32>, vector<1x12x8xf32> -> vector<14x12x8xf32>
    %cst_15 = arith.constant 0.000000e+00 : f32
    %41 = vector.broadcast %cst_15 : f32 to vector<14x1x8xf32>
    %cst_16 = arith.constant 0.000000e+00 : f32
    %42 = vector.broadcast %cst_16 : f32 to vector<14x1x8xf32>
    %43 = tpu.concatenate %41, %40, %42 in 1 : vector<14x1x8xf32>, vector<14x12x8xf32>, vector<14x1x8xf32> -> vector<14x14x8xf32>
    %44 = vector.extract_strided_slice %43 {offsets = [0, 0, 0], sizes = [12, 14, 8], strides = [1, 1, 1]} : vector<14x14x8xf32> to vector<12x14x8xf32>
    %45 = vector.extract_strided_slice %44 {offsets = [0, 0, 0], sizes = [12, 12, 8], strides = [1, 1, 1]} : vector<12x14x8xf32> to vector<12x12x8xf32>
    %46 = vector.shape_cast %45 : vector<12x12x8xf32> to vector<144x8xf32>
    %47 = vector.extract_strided_slice %44 {offsets = [0, 1, 0], sizes = [12, 12, 8], strides = [1, 1, 1]} : vector<12x14x8xf32> to vector<12x12x8xf32>
    %48 = vector.shape_cast %47 : vector<12x12x8xf32> to vector<144x8xf32>
    %49 = vector.extract_strided_slice %44 {offsets = [0, 2, 0], sizes = [12, 12, 8], strides = [1, 1, 1]} : vector<12x14x8xf32> to vector<12x12x8xf32>
    %50 = vector.shape_cast %49 : vector<12x12x8xf32> to vector<144x8xf32>
    %51 = vector.extract_strided_slice %43 {offsets = [1, 0, 0], sizes = [12, 14, 8], strides = [1, 1, 1]} : vector<14x14x8xf32> to vector<12x14x8xf32>
    %52 = vector.extract_strided_slice %51 {offsets = [0, 0, 0], sizes = [12, 12, 8], strides = [1, 1, 1]} : vector<12x14x8xf32> to vector<12x12x8xf32>
    %53 = vector.shape_cast %52 : vector<12x12x8xf32> to vector<144x8xf32>
    %54 = vector.extract_strided_slice %51 {offsets = [0, 1, 0], sizes = [12, 12, 8], strides = [1, 1, 1]} : vector<12x14x8xf32> to vector<12x12x8xf32>
    %55 = vector.shape_cast %54 : vector<12x12x8xf32> to vector<144x8xf32>
    %56 = vector.extract_strided_slice %51 {offsets = [0, 2, 0], sizes = [12, 12, 8], strides = [1, 1, 1]} : vector<12x14x8xf32> to vector<12x12x8xf32>
    %57 = vector.shape_cast %56 : vector<12x12x8xf32> to vector<144x8xf32>
    %58 = vector.extract_strided_slice %43 {offsets = [2, 0, 0], sizes = [12, 14, 8], strides = [1, 1, 1]} : vector<14x14x8xf32> to vector<12x14x8xf32>
    %59 = vector.extract_strided_slice %58 {offsets = [0, 0, 0], sizes = [12, 12, 8], strides = [1, 1, 1]} : vector<12x14x8xf32> to vector<12x12x8xf32>
    %60 = vector.shape_cast %59 : vector<12x12x8xf32> to vector<144x8xf32>
    %61 = vector.extract_strided_slice %58 {offsets = [0, 1, 0], sizes = [12, 12, 8], strides = [1, 1, 1]} : vector<12x14x8xf32> to vector<12x12x8xf32>
    %62 = vector.shape_cast %61 : vector<12x12x8xf32> to vector<144x8xf32>
    %63 = vector.extract_strided_slice %58 {offsets = [0, 2, 0], sizes = [12, 12, 8], strides = [1, 1, 1]} : vector<12x14x8xf32> to vector<12x12x8xf32>
    %64 = vector.shape_cast %63 : vector<12x12x8xf32> to vector<144x8xf32>
    %65 = tpu.concatenate %46, %48, %50, %53, %55, %57, %60, %62, %64 in 1 : vector<144x8xf32>, vector<144x8xf32>, vector<144x8xf32>, vector<144x8xf32>, vector<144x8xf32>, vector<144x8xf32>, vector<144x8xf32>, vector<144x8xf32>, vector<144x8xf32> -> vector<144x72xf32>
    %cst_17 = arith.constant dense<0.000000e+00> : vector<144x8xf32>
    %66 = tpu.matmul %65, %37, %cst_17 {dimension_numbers = #tpu.dot_dimension_numbers<[1], [0], [0], [1], [0, 0, 1, 1], [], []>} : vector<144x72xf32>, vector<72x8xf32>, vector<144x8xf32> -> vector<144x8xf32>
    %cst_18 = arith.constant 0.000000e+00 : f32
    %67 = vector.broadcast %cst_18 : f32 to vector<144x8xf32>
    %68 = arith.maximumf %66, %67 : vector<144x8xf32>
    %cst_19 = arith.constant 1.41421354 : f32
    %69 = vector.broadcast %cst_19 : f32 to vector<144x8xf32>
    %70 = arith.mulf %68, %69 : vector<144x8xf32>
    %71 = vector.shape_cast %70 : vector<144x8xf32> to vector<12x12x8xf32>
    %c0_20 = arith.constant 0 : index
    %c0_21 = arith.constant 0 : index
    %72 = vector.load %arg5[%c0_20, %c0_21] : memref<72x8xf32, #tpu.memory_space<vmem>>, vector<72x8xf32>
    %cst_22 = arith.constant 0.000000e+00 : f32
    %73 = vector.broadcast %cst_22 : f32 to vector<2x12x8xf32>
    %74 = tpu.concatenate %71, %73 in 0 : vector<12x12x8xf32>, vector<2x12x8xf32> -> vector<14x12x8xf32>
    %cst_23 = arith.constant 0.000000e+00 : f32
    %75 = vector.broadcast %cst_23 : f32 to vector<14x2x8xf32>
    %76 = tpu.concatenate %74, %75 in 1 : vector<14x12x8xf32>, vector<14x2x8xf32> -> vector<14x14x8xf32>
    %77 = vector.extract_strided_slice %76 {offsets = [0, 0, 0], sizes = [12, 14, 8], strides = [1, 1, 1]} : vector<14x14x8xf32> to vector<12x14x8xf32>
    %78 = vector.shape_cast %77 : vector<12x14x8xf32> to vector<4x3x14x8xf32>
    %79 = vector.extract_strided_slice %78 {offsets = [0, 0, 0, 0], sizes = [4, 1, 14, 8], strides = [1, 1, 1, 1]} : vector<4x3x14x8xf32> to vector<4x1x14x8xf32>
    %80 = vector.shape_cast %79 : vector<4x1x14x8xf32> to vector<4x14x8xf32>
    %81 = vector.extract_strided_slice %80 {offsets = [0, 0, 0], sizes = [4, 12, 8], strides = [1, 1, 1]} : vector<4x14x8xf32> to vector<4x12x8xf32>
    %82 = vector.shape_cast %81 : vector<4x12x8xf32> to vector<4x4x3x8xf32>
    %83 = vector.extract_strided_slice %82 {offsets = [0, 0, 0, 0], sizes = [4, 4, 1, 8], strides = [1, 1, 1, 1]} : vector<4x4x3x8xf32> to vector<4x4x1x8xf32>
    %84 = vector.shape_cast %83 : vector<4x4x1x8xf32> to vector<4x4x8xf32>
    %85 = vector.shape_cast %84 : vector<4x4x8xf32> to vector<16x8xf32>
    %86 = vector.extract_strided_slice %80 {offsets = [0, 1, 0], sizes = [4, 12, 8], strides = [1, 1, 1]} : vector<4x14x8xf32> to vector<4x12x8xf32>
    %87 = vector.shape_cast %86 : vector<4x12x8xf32> to vector<4x4x3x8xf32>
    %88 = vector.extract_strided_slice %87 {offsets = [0, 0, 0, 0], sizes = [4, 4, 1, 8], strides = [1, 1, 1, 1]} : vector<4x4x3x8xf32> to vector<4x4x1x8xf32>
    %89 = vector.shape_cast %88 : vector<4x4x1x8xf32> to vector<4x4x8xf32>
    %90 = vector.shape_cast %89 : vector<4x4x8xf32> to vector<16x8xf32>
    %91 = vector.extract_strided_slice %80 {offsets = [0, 2, 0], sizes = [4, 12, 8], strides = [1, 1, 1]} : vector<4x14x8xf32> to vector<4x12x8xf32>
    %92 = vector.shape_cast %91 : vector<4x12x8xf32> to vector<4x4x3x8xf32>
    %93 = vector.extract_strided_slice %92 {offsets = [0, 0, 0, 0], sizes = [4, 4, 1, 8], strides = [1, 1, 1, 1]} : vector<4x4x3x8xf32> to vector<4x4x1x8xf32>
    %94 = vector.shape_cast %93 : vector<4x4x1x8xf32> to vector<4x4x8xf32>
    %95 = vector.shape_cast %94 : vector<4x4x8xf32> to vector<16x8xf32>
    %96 = vector.extract_strided_slice %76 {offsets = [1, 0, 0], sizes = [12, 14, 8], strides = [1, 1, 1]} : vector<14x14x8xf32> to vector<12x14x8xf32>
    %97 = vector.shape_cast %96 : vector<12x14x8xf32> to vector<4x3x14x8xf32>
    %98 = vector.extract_strided_slice %97 {offsets = [0, 0, 0, 0], sizes = [4, 1, 14, 8], strides = [1, 1, 1, 1]} : vector<4x3x14x8xf32> to vector<4x1x14x8xf32>
    %99 = vector.shape_cast %98 : vector<4x1x14x8xf32> to vector<4x14x8xf32>
    %100 = vector.extract_strided_slice %99 {offsets = [0, 0, 0], sizes = [4, 12, 8], strides = [1, 1, 1]} : vector<4x14x8xf32> to vector<4x12x8xf32>
    %101 = vector.shape_cast %100 : vector<4x12x8xf32> to vector<4x4x3x8xf32>
    %102 = vector.extract_strided_slice %101 {offsets = [0, 0, 0, 0], sizes = [4, 4, 1, 8], strides = [1, 1, 1, 1]} : vector<4x4x3x8xf32> to vector<4x4x1x8xf32>
    %103 = vector.shape_cast %102 : vector<4x4x1x8xf32> to vector<4x4x8xf32>
    %104 = vector.shape_cast %103 : vector<4x4x8xf32> to vector<16x8xf32>
    %105 = vector.extract_strided_slice %99 {offsets = [0, 1, 0], sizes = [4, 12, 8], strides = [1, 1, 1]} : vector<4x14x8xf32> to vector<4x12x8xf32>
    %106 = vector.shape_cast %105 : vector<4x12x8xf32> to vector<4x4x3x8xf32>
    %107 = vector.extract_strided_slice %106 {offsets = [0, 0, 0, 0], sizes = [4, 4, 1, 8], strides = [1, 1, 1, 1]} : vector<4x4x3x8xf32> to vector<4x4x1x8xf32>
    %108 = vector.shape_cast %107 : vector<4x4x1x8xf32> to vector<4x4x8xf32>
    %109 = vector.shape_cast %108 : vector<4x4x8xf32> to vector<16x8xf32>
    %110 = vector.extract_strided_slice %99 {offsets = [0, 2, 0], sizes = [4, 12, 8], strides = [1, 1, 1]} : vector<4x14x8xf32> to vector<4x12x8xf32>
    %111 = vector.shape_cast %110 : vector<4x12x8xf32> to vector<4x4x3x8xf32>
    %112 = vector.extract_strided_slice %111 {offsets = [0, 0, 0, 0], sizes = [4, 4, 1, 8], strides = [1, 1, 1, 1]} : vector<4x4x3x8xf32> to vector<4x4x1x8xf32>
    %113 = vector.shape_cast %112 : vector<4x4x1x8xf32> to vector<4x4x8xf32>
    %114 = vector.shape_cast %113 : vector<4x4x8xf32> to vector<16x8xf32>
    %115 = vector.extract_strided_slice %76 {offsets = [2, 0, 0], sizes = [12, 14, 8], strides = [1, 1, 1]} : vector<14x14x8xf32> to vector<12x14x8xf32>
    %116 = vector.shape_cast %115 : vector<12x14x8xf32> to vector<4x3x14x8xf32>
    %117 = vector.extract_strided_slice %116 {offsets = [0, 0, 0, 0], sizes = [4, 1, 14, 8], strides = [1, 1, 1, 1]} : vector<4x3x14x8xf32> to vector<4x1x14x8xf32>
    %118 = vector.shape_cast %117 : vector<4x1x14x8xf32> to vector<4x14x8xf32>
    %119 = vector.extract_strided_slice %118 {offsets = [0, 0, 0], sizes = [4, 12, 8], strides = [1, 1, 1]} : vector<4x14x8xf32> to vector<4x12x8xf32>
    %120 = vector.shape_cast %119 : vector<4x12x8xf32> to vector<4x4x3x8xf32>
    %121 = vector.extract_strided_slice %120 {offsets = [0, 0, 0, 0], sizes = [4, 4, 1, 8], strides = [1, 1, 1, 1]} : vector<4x4x3x8xf32> to vector<4x4x1x8xf32>
    %122 = vector.shape_cast %121 : vector<4x4x1x8xf32> to vector<4x4x8xf32>
    %123 = vector.shape_cast %122 : vector<4x4x8xf32> to vector<16x8xf32>
    %124 = vector.extract_strided_slice %118 {offsets = [0, 1, 0], sizes = [4, 12, 8], strides = [1, 1, 1]} : vector<4x14x8xf32> to vector<4x12x8xf32>
    %125 = vector.shape_cast %124 : vector<4x12x8xf32> to vector<4x4x3x8xf32>
    %126 = vector.extract_strided_slice %125 {offsets = [0, 0, 0, 0], sizes = [4, 4, 1, 8], strides = [1, 1, 1, 1]} : vector<4x4x3x8xf32> to vector<4x4x1x8xf32>
    %127 = vector.shape_cast %126 : vector<4x4x1x8xf32> to vector<4x4x8xf32>
    %128 = vector.shape_cast %127 : vector<4x4x8xf32> to vector<16x8xf32>
    %129 = vector.extract_strided_slice %118 {offsets = [0, 2, 0], sizes = [4, 12, 8], strides = [1, 1, 1]} : vector<4x14x8xf32> to vector<4x12x8xf32>
    %130 = vector.shape_cast %129 : vector<4x12x8xf32> to vector<4x4x3x8xf32>
    %131 = vector.extract_strided_slice %130 {offsets = [0, 0, 0, 0], sizes = [4, 4, 1, 8], strides = [1, 1, 1, 1]} : vector<4x4x3x8xf32> to vector<4x4x1x8xf32>
    %132 = vector.shape_cast %131 : vector<4x4x1x8xf32> to vector<4x4x8xf32>
    %133 = vector.shape_cast %132 : vector<4x4x8xf32> to vector<16x8xf32>
    %134 = tpu.concatenate %85, %90, %95, %104, %109, %114, %123, %128, %133 in 1 : vector<16x8xf32>, vector<16x8xf32>, vector<16x8xf32>, vector<16x8xf32>, vector<16x8xf32>, vector<16x8xf32>, vector<16x8xf32>, vector<16x8xf32>, vector<16x8xf32> -> vector<16x72xf32>
    %cst_24 = arith.constant dense<0.000000e+00> : vector<16x8xf32>
    %135 = tpu.matmul %134, %72, %cst_24 {dimension_numbers = #tpu.dot_dimension_numbers<[1], [0], [0], [1], [0, 0, 1, 1], [], []>} : vector<16x72xf32>, vector<72x8xf32>, vector<16x8xf32> -> vector<16x8xf32>
    %cst_25 = arith.constant 0.000000e+00 : f32
    %136 = vector.broadcast %cst_25 : f32 to vector<16x8xf32>
    %137 = arith.maximumf %135, %136 : vector<16x8xf32>
    %cst_26 = arith.constant 1.41421354 : f32
    %138 = vector.broadcast %cst_26 : f32 to vector<16x8xf32>
    %139 = arith.mulf %137, %138 : vector<16x8xf32>
    %140 = vector.shape_cast %139 : vector<16x8xf32> to vector<4x4x8xf32>
    %c0_27 = arith.constant 0 : index
    %c0_28 = arith.constant 0 : index
    %c0_29 = arith.constant 0 : index
    %c0_30 = arith.constant 0 : index
    %141 = vector.load %arg2[%c0_27, %c0_28, %c0_29, %c0_30] : memref<1x4x4x3xf32, #tpu.memory_space<vmem>>, vector<1x4x4x3xf32>
    %142 = vector.shape_cast %141 : vector<1x4x4x3xf32> to vector<4x4x3xf32>
    %143 = tpu.concatenate %140, %142 in 2 : vector<4x4x8xf32>, vector<4x4x3xf32> -> vector<4x4x11xf32>
    %c0_31 = arith.constant 0 : index
    %c0_32 = arith.constant 0 : index
    %144 = vector.load %arg6[%c0_31, %c0_32] : memref<99x8xf32, #tpu.memory_space<vmem>>, vector<99x8xf32>
    %cst_33 = arith.constant 0.000000e+00 : f32
    %145 = vector.broadcast %cst_33 : f32 to vector<1x4x11xf32>
    %cst_34 = arith.constant 0.000000e+00 : f32
    %146 = vector.broadcast %cst_34 : f32 to vector<1x4x11xf32>
    %147 = tpu.concatenate %145, %143, %146 in 0 : vector<1x4x11xf32>, vector<4x4x11xf32>, vector<1x4x11xf32> -> vector<6x4x11xf32>
    %cst_35 = arith.constant 0.000000e+00 : f32
    %148 = vector.broadcast %cst_35 : f32 to vector<6x1x11xf32>
    %cst_36 = arith.constant 0.000000e+00 : f32
    %149 = vector.broadcast %cst_36 : f32 to vector<6x1x11xf32>
    %150 = tpu.concatenate %148, %147, %149 in 1 : vector<6x1x11xf32>, vector<6x4x11xf32>, vector<6x1x11xf32> -> vector<6x6x11xf32>
    %151 = vector.extract_strided_slice %150 {offsets = [0, 0, 0], sizes = [4, 6, 11], strides = [1, 1, 1]} : vector<6x6x11xf32> to vector<4x6x11xf32>
    %152 = vector.extract_strided_slice %151 {offsets = [0, 0, 0], sizes = [4, 4, 11], strides = [1, 1, 1]} : vector<4x6x11xf32> to vector<4x4x11xf32>
    %153 = vector.shape_cast %152 : vector<4x4x11xf32> to vector<16x11xf32>
    %154 = vector.extract_strided_slice %151 {offsets = [0, 1, 0], sizes = [4, 4, 11], strides = [1, 1, 1]} : vector<4x6x11xf32> to vector<4x4x11xf32>
    %155 = vector.shape_cast %154 : vector<4x4x11xf32> to vector<16x11xf32>
    %156 = vector.extract_strided_slice %151 {offsets = [0, 2, 0], sizes = [4, 4, 11], strides = [1, 1, 1]} : vector<4x6x11xf32> to vector<4x4x11xf32>
    %157 = vector.shape_cast %156 : vector<4x4x11xf32> to vector<16x11xf32>
    %158 = vector.extract_strided_slice %150 {offsets = [1, 0, 0], sizes = [4, 6, 11], strides = [1, 1, 1]} : vector<6x6x11xf32> to vector<4x6x11xf32>
    %159 = vector.extract_strided_slice %158 {offsets = [0, 0, 0], sizes = [4, 4, 11], strides = [1, 1, 1]} : vector<4x6x11xf32> to vector<4x4x11xf32>
    %160 = vector.shape_cast %159 : vector<4x4x11xf32> to vector<16x11xf32>
    %161 = vector.extract_strided_slice %158 {offsets = [0, 1, 0], sizes = [4, 4, 11], strides = [1, 1, 1]} : vector<4x6x11xf32> to vector<4x4x11xf32>
    %162 = vector.shape_cast %161 : vector<4x4x11xf32> to vector<16x11xf32>
    %163 = vector.extract_strided_slice %158 {offsets = [0, 2, 0], sizes = [4, 4, 11], strides = [1, 1, 1]} : vector<4x6x11xf32> to vector<4x4x11xf32>
    %164 = vector.shape_cast %163 : vector<4x4x11xf32> to vector<16x11xf32>
    %165 = vector.extract_strided_slice %150 {offsets = [2, 0, 0], sizes = [4, 6, 11], strides = [1, 1, 1]} : vector<6x6x11xf32> to vector<4x6x11xf32>
    %166 = vector.extract_strided_slice %165 {offsets = [0, 0, 0], sizes = [4, 4, 11], strides = [1, 1, 1]} : vector<4x6x11xf32> to vector<4x4x11xf32>
    %167 = vector.shape_cast %166 : vector<4x4x11xf32> to vector<16x11xf32>
    %168 = vector.extract_strided_slice %165 {offsets = [0, 1, 0], sizes = [4, 4, 11], strides = [1, 1, 1]} : vector<4x6x11xf32> to vector<4x4x11xf32>
    %169 = vector.shape_cast %168 : vector<4x4x11xf32> to vector<16x11xf32>
    %170 = vector.extract_strided_slice %165 {offsets = [0, 2, 0], sizes = [4, 4, 11], strides = [1, 1, 1]} : vector<4x6x11xf32> to vector<4x4x11xf32>
    %171 = vector.shape_cast %170 : vector<4x4x11xf32> to vector<16x11xf32>
    %172 = tpu.concatenate %153, %155, %157, %160, %162, %164, %167, %169, %171 in 1 : vector<16x11xf32>, vector<16x11xf32>, vector<16x11xf32>, vector<16x11xf32>, vector<16x11xf32>, vector<16x11xf32>, vector<16x11xf32>, vector<16x11xf32>, vector<16x11xf32> -> vector<16x99xf32>
    %cst_37 = arith.constant dense<0.000000e+00> : vector<16x8xf32>
    %173 = tpu.matmul %172, %144, %cst_37 {dimension_numbers = #tpu.dot_dimension_numbers<[1], [0], [0], [1], [0, 0, 1, 1], [], []>} : vector<16x99xf32>, vector<99x8xf32>, vector<16x8xf32> -> vector<16x8xf32>
    %cst_38 = arith.constant 0.000000e+00 : f32
    %174 = vector.broadcast %cst_38 : f32 to vector<16x8xf32>
    %175 = arith.maximumf %173, %174 : vector<16x8xf32>
    %cst_39 = arith.constant 1.41421354 : f32
    %176 = vector.broadcast %cst_39 : f32 to vector<16x8xf32>
    %177 = arith.mulf %175, %176 : vector<16x8xf32>
    %178 = vector.shape_cast %177 : vector<16x8xf32> to vector<4x4x8xf32>
    %c0_40 = arith.constant 0 : index
    %c0_41 = arith.constant 0 : index
    %179 = vector.load %arg7[%c0_40, %c0_41] : memref<72x8xf32, #tpu.memory_space<vmem>>, vector<72x8xf32>
    %cst_42 = arith.constant 0.000000e+00 : f32
    %180 = vector.broadcast %cst_42 : f32 to vector<1x4x8xf32>
    %cst_43 = arith.constant 0.000000e+00 : f32
    %181 = vector.broadcast %cst_43 : f32 to vector<1x4x8xf32>
    %182 = tpu.concatenate %180, %178, %181 in 0 : vector<1x4x8xf32>, vector<4x4x8xf32>, vector<1x4x8xf32> -> vector<6x4x8xf32>
    %cst_44 = arith.constant 0.000000e+00 : f32
    %183 = vector.broadcast %cst_44 : f32 to vector<6x1x8xf32>
    %cst_45 = arith.constant 0.000000e+00 : f32
    %184 = vector.broadcast %cst_45 : f32 to vector<6x1x8xf32>
    %185 = tpu.concatenate %183, %182, %184 in 1 : vector<6x1x8xf32>, vector<6x4x8xf32>, vector<6x1x8xf32> -> vector<6x6x8xf32>
    %186 = vector.extract_strided_slice %185 {offsets = [0, 0, 0], sizes = [4, 6, 8], strides = [1, 1, 1]} : vector<6x6x8xf32> to vector<4x6x8xf32>
    %187 = vector.shape_cast %186 : vector<4x6x8xf32> to vector<2x2x6x8xf32>
    %188 = vector.extract_strided_slice %187 {offsets = [0, 0, 0, 0], sizes = [2, 1, 6, 8], strides = [1, 1, 1, 1]} : vector<2x2x6x8xf32> to vector<2x1x6x8xf32>
    %189 = vector.shape_cast %188 : vector<2x1x6x8xf32> to vector<2x6x8xf32>
    %190 = vector.extract_strided_slice %189 {offsets = [0, 0, 0], sizes = [2, 4, 8], strides = [1, 1, 1]} : vector<2x6x8xf32> to vector<2x4x8xf32>
    %191 = vector.shape_cast %190 : vector<2x4x8xf32> to vector<2x2x2x8xf32>
    %192 = vector.extract_strided_slice %191 {offsets = [0, 0, 0, 0], sizes = [2, 2, 1, 8], strides = [1, 1, 1, 1]} : vector<2x2x2x8xf32> to vector<2x2x1x8xf32>
    %193 = vector.shape_cast %192 : vector<2x2x1x8xf32> to vector<2x2x8xf32>
    %194 = vector.shape_cast %193 : vector<2x2x8xf32> to vector<4x8xf32>
    %195 = vector.extract_strided_slice %189 {offsets = [0, 1, 0], sizes = [2, 4, 8], strides = [1, 1, 1]} : vector<2x6x8xf32> to vector<2x4x8xf32>
    %196 = vector.shape_cast %195 : vector<2x4x8xf32> to vector<2x2x2x8xf32>
    %197 = vector.extract_strided_slice %196 {offsets = [0, 0, 0, 0], sizes = [2, 2, 1, 8], strides = [1, 1, 1, 1]} : vector<2x2x2x8xf32> to vector<2x2x1x8xf32>
    %198 = vector.shape_cast %197 : vector<2x2x1x8xf32> to vector<2x2x8xf32>
    %199 = vector.shape_cast %198 : vector<2x2x8xf32> to vector<4x8xf32>
    %200 = vector.extract_strided_slice %189 {offsets = [0, 2, 0], sizes = [2, 4, 8], strides = [1, 1, 1]} : vector<2x6x8xf32> to vector<2x4x8xf32>
    %201 = vector.shape_cast %200 : vector<2x4x8xf32> to vector<2x2x2x8xf32>
    %202 = vector.extract_strided_slice %201 {offsets = [0, 0, 0, 0], sizes = [2, 2, 1, 8], strides = [1, 1, 1, 1]} : vector<2x2x2x8xf32> to vector<2x2x1x8xf32>
    %203 = vector.shape_cast %202 : vector<2x2x1x8xf32> to vector<2x2x8xf32>
    %204 = vector.shape_cast %203 : vector<2x2x8xf32> to vector<4x8xf32>
    %205 = vector.extract_strided_slice %185 {offsets = [1, 0, 0], sizes = [4, 6, 8], strides = [1, 1, 1]} : vector<6x6x8xf32> to vector<4x6x8xf32>
    %206 = vector.shape_cast %205 : vector<4x6x8xf32> to vector<2x2x6x8xf32>
    %207 = vector.extract_strided_slice %206 {offsets = [0, 0, 0, 0], sizes = [2, 1, 6, 8], strides = [1, 1, 1, 1]} : vector<2x2x6x8xf32> to vector<2x1x6x8xf32>
    %208 = vector.shape_cast %207 : vector<2x1x6x8xf32> to vector<2x6x8xf32>
    %209 = vector.extract_strided_slice %208 {offsets = [0, 0, 0], sizes = [2, 4, 8], strides = [1, 1, 1]} : vector<2x6x8xf32> to vector<2x4x8xf32>
    %210 = vector.shape_cast %209 : vector<2x4x8xf32> to vector<2x2x2x8xf32>
    %211 = vector.extract_strided_slice %210 {offsets = [0, 0, 0, 0], sizes = [2, 2, 1, 8], strides = [1, 1, 1, 1]} : vector<2x2x2x8xf32> to vector<2x2x1x8xf32>
    %212 = vector.shape_cast %211 : vector<2x2x1x8xf32> to vector<2x2x8xf32>
    %213 = vector.shape_cast %212 : vector<2x2x8xf32> to vector<4x8xf32>
    %214 = vector.extract_strided_slice %208 {offsets = [0, 1, 0], sizes = [2, 4, 8], strides = [1, 1, 1]} : vector<2x6x8xf32> to vector<2x4x8xf32>
    %215 = vector.shape_cast %214 : vector<2x4x8xf32> to vector<2x2x2x8xf32>
    %216 = vector.extract_strided_slice %215 {offsets = [0, 0, 0, 0], sizes = [2, 2, 1, 8], strides = [1, 1, 1, 1]} : vector<2x2x2x8xf32> to vector<2x2x1x8xf32>
    %217 = vector.shape_cast %216 : vector<2x2x1x8xf32> to vector<2x2x8xf32>
    %218 = vector.shape_cast %217 : vector<2x2x8xf32> to vector<4x8xf32>
    %219 = vector.extract_strided_slice %208 {offsets = [0, 2, 0], sizes = [2, 4, 8], strides = [1, 1, 1]} : vector<2x6x8xf32> to vector<2x4x8xf32>
    %220 = vector.shape_cast %219 : vector<2x4x8xf32> to vector<2x2x2x8xf32>
    %221 = vector.extract_strided_slice %220 {offsets = [0, 0, 0, 0], sizes = [2, 2, 1, 8], strides = [1, 1, 1, 1]} : vector<2x2x2x8xf32> to vector<2x2x1x8xf32>
    %222 = vector.shape_cast %221 : vector<2x2x1x8xf32> to vector<2x2x8xf32>
    %223 = vector.shape_cast %222 : vector<2x2x8xf32> to vector<4x8xf32>
    %224 = vector.extract_strided_slice %185 {offsets = [2, 0, 0], sizes = [4, 6, 8], strides = [1, 1, 1]} : vector<6x6x8xf32> to vector<4x6x8xf32>
    %225 = vector.shape_cast %224 : vector<4x6x8xf32> to vector<2x2x6x8xf32>
    %226 = vector.extract_strided_slice %225 {offsets = [0, 0, 0, 0], sizes = [2, 1, 6, 8], strides = [1, 1, 1, 1]} : vector<2x2x6x8xf32> to vector<2x1x6x8xf32>
    %227 = vector.shape_cast %226 : vector<2x1x6x8xf32> to vector<2x6x8xf32>
    %228 = vector.extract_strided_slice %227 {offsets = [0, 0, 0], sizes = [2, 4, 8], strides = [1, 1, 1]} : vector<2x6x8xf32> to vector<2x4x8xf32>
    %229 = vector.shape_cast %228 : vector<2x4x8xf32> to vector<2x2x2x8xf32>
    %230 = vector.extract_strided_slice %229 {offsets = [0, 0, 0, 0], sizes = [2, 2, 1, 8], strides = [1, 1, 1, 1]} : vector<2x2x2x8xf32> to vector<2x2x1x8xf32>
    %231 = vector.shape_cast %230 : vector<2x2x1x8xf32> to vector<2x2x8xf32>
    %232 = vector.shape_cast %231 : vector<2x2x8xf32> to vector<4x8xf32>
    %233 = vector.extract_strided_slice %227 {offsets = [0, 1, 0], sizes = [2, 4, 8], strides = [1, 1, 1]} : vector<2x6x8xf32> to vector<2x4x8xf32>
    %234 = vector.shape_cast %233 : vector<2x4x8xf32> to vector<2x2x2x8xf32>
    %235 = vector.extract_strided_slice %234 {offsets = [0, 0, 0, 0], sizes = [2, 2, 1, 8], strides = [1, 1, 1, 1]} : vector<2x2x2x8xf32> to vector<2x2x1x8xf32>
    %236 = vector.shape_cast %235 : vector<2x2x1x8xf32> to vector<2x2x8xf32>
    %237 = vector.shape_cast %236 : vector<2x2x8xf32> to vector<4x8xf32>
    %238 = vector.extract_strided_slice %227 {offsets = [0, 2, 0], sizes = [2, 4, 8], strides = [1, 1, 1]} : vector<2x6x8xf32> to vector<2x4x8xf32>
    %239 = vector.shape_cast %238 : vector<2x4x8xf32> to vector<2x2x2x8xf32>
    %240 = vector.extract_strided_slice %239 {offsets = [0, 0, 0, 0], sizes = [2, 2, 1, 8], strides = [1, 1, 1, 1]} : vector<2x2x2x8xf32> to vector<2x2x1x8xf32>
    %241 = vector.shape_cast %240 : vector<2x2x1x8xf32> to vector<2x2x8xf32>
    %242 = vector.shape_cast %241 : vector<2x2x8xf32> to vector<4x8xf32>
    %243 = tpu.concatenate %194, %199, %204, %213, %218, %223, %232, %237, %242 in 1 : vector<4x8xf32>, vector<4x8xf32>, vector<4x8xf32>, vector<4x8xf32>, vector<4x8xf32>, vector<4x8xf32>, vector<4x8xf32>, vector<4x8xf32>, vector<4x8xf32> -> vector<4x72xf32>
    %cst_46 = arith.constant dense<0.000000e+00> : vector<4x8xf32>
    %244 = tpu.matmul %243, %179, %cst_46 {dimension_numbers = #tpu.dot_dimension_numbers<[1], [0], [0], [1], [0, 0, 1, 1], [], []>} : vector<4x72xf32>, vector<72x8xf32>, vector<4x8xf32> -> vector<4x8xf32>
    %cst_47 = arith.constant 0.000000e+00 : f32
    %245 = vector.broadcast %cst_47 : f32 to vector<4x8xf32>
    %246 = arith.maximumf %244, %245 : vector<4x8xf32>
    %cst_48 = arith.constant 1.41421354 : f32
    %247 = vector.broadcast %cst_48 : f32 to vector<4x8xf32>
    %248 = arith.mulf %246, %247 : vector<4x8xf32>
    %249 = vector.shape_cast %248 : vector<4x8xf32> to vector<2x2x8xf32>
    %c0_49 = arith.constant 0 : index
    %c0_50 = arith.constant 0 : index
    %250 = vector.load %arg8[%c0_49, %c0_50] : memref<72x8xf32, #tpu.memory_space<vmem>>, vector<72x8xf32>
    %cst_51 = arith.constant 0.000000e+00 : f32
    %251 = vector.broadcast %cst_51 : f32 to vector<1x2x8xf32>
    %cst_52 = arith.constant 0.000000e+00 : f32
    %252 = vector.broadcast %cst_52 : f32 to vector<1x2x8xf32>
    %253 = tpu.concatenate %251, %249, %252 in 0 : vector<1x2x8xf32>, vector<2x2x8xf32>, vector<1x2x8xf32> -> vector<4x2x8xf32>
    %cst_53 = arith.constant 0.000000e+00 : f32
    %254 = vector.broadcast %cst_53 : f32 to vector<4x1x8xf32>
    %cst_54 = arith.constant 0.000000e+00 : f32
    %255 = vector.broadcast %cst_54 : f32 to vector<4x1x8xf32>
    %256 = tpu.concatenate %254, %253, %255 in 1 : vector<4x1x8xf32>, vector<4x2x8xf32>, vector<4x1x8xf32> -> vector<4x4x8xf32>
    %257 = vector.extract_strided_slice %256 {offsets = [0, 0, 0], sizes = [2, 4, 8], strides = [1, 1, 1]} : vector<4x4x8xf32> to vector<2x4x8xf32>
    %258 = vector.extract_strided_slice %257 {offsets = [0, 0, 0], sizes = [2, 2, 8], strides = [1, 1, 1]} : vector<2x4x8xf32> to vector<2x2x8xf32>
    %259 = vector.shape_cast %258 : vector<2x2x8xf32> to vector<4x8xf32>
    %260 = vector.extract_strided_slice %257 {offsets = [0, 1, 0], sizes = [2, 2, 8], strides = [1, 1, 1]} : vector<2x4x8xf32> to vector<2x2x8xf32>
    %261 = vector.shape_cast %260 : vector<2x2x8xf32> to vector<4x8xf32>
    %262 = vector.extract_strided_slice %257 {offsets = [0, 2, 0], sizes = [2, 2, 8], strides = [1, 1, 1]} : vector<2x4x8xf32> to vector<2x2x8xf32>
    %263 = vector.shape_cast %262 : vector<2x2x8xf32> to vector<4x8xf32>
    %264 = vector.extract_strided_slice %256 {offsets = [1, 0, 0], sizes = [2, 4, 8], strides = [1, 1, 1]} : vector<4x4x8xf32> to vector<2x4x8xf32>
    %265 = vector.extract_strided_slice %264 {offsets = [0, 0, 0], sizes = [2, 2, 8], strides = [1, 1, 1]} : vector<2x4x8xf32> to vector<2x2x8xf32>
    %266 = vector.shape_cast %265 : vector<2x2x8xf32> to vector<4x8xf32>
    %267 = vector.extract_strided_slice %264 {offsets = [0, 1, 0], sizes = [2, 2, 8], strides = [1, 1, 1]} : vector<2x4x8xf32> to vector<2x2x8xf32>
    %268 = vector.shape_cast %267 : vector<2x2x8xf32> to vector<4x8xf32>
    %269 = vector.extract_strided_slice %264 {offsets = [0, 2, 0], sizes = [2, 2, 8], strides = [1, 1, 1]} : vector<2x4x8xf32> to vector<2x2x8xf32>
    %270 = vector.shape_cast %269 : vector<2x2x8xf32> to vector<4x8xf32>
    %271 = vector.extract_strided_slice %256 {offsets = [2, 0, 0], sizes = [2, 4, 8], strides = [1, 1, 1]} : vector<4x4x8xf32> to vector<2x4x8xf32>
    %272 = vector.extract_strided_slice %271 {offsets = [0, 0, 0], sizes = [2, 2, 8], strides = [1, 1, 1]} : vector<2x4x8xf32> to vector<2x2x8xf32>
    %273 = vector.shape_cast %272 : vector<2x2x8xf32> to vector<4x8xf32>
    %274 = vector.extract_strided_slice %271 {offsets = [0, 1, 0], sizes = [2, 2, 8], strides = [1, 1, 1]} : vector<2x4x8xf32> to vector<2x2x8xf32>
    %275 = vector.shape_cast %274 : vector<2x2x8xf32> to vector<4x8xf32>
    %276 = vector.extract_strided_slice %271 {offsets = [0, 2, 0], sizes = [2, 2, 8], strides = [1, 1, 1]} : vector<2x4x8xf32> to vector<2x2x8xf32>
    %277 = vector.shape_cast %276 : vector<2x2x8xf32> to vector<4x8xf32>
    %278 = tpu.concatenate %259, %261, %263, %266, %268, %270, %273, %275, %277 in 1 : vector<4x8xf32>, vector<4x8xf32>, vector<4x8xf32>, vector<4x8xf32>, vector<4x8xf32>, vector<4x8xf32>, vector<4x8xf32>, vector<4x8xf32>, vector<4x8xf32> -> vector<4x72xf32>
    %cst_55 = arith.constant dense<0.000000e+00> : vector<4x8xf32>
    %279 = tpu.matmul %278, %250, %cst_55 {dimension_numbers = #tpu.dot_dimension_numbers<[1], [0], [0], [1], [0, 0, 1, 1], [], []>} : vector<4x72xf32>, vector<72x8xf32>, vector<4x8xf32> -> vector<4x8xf32>
    %cst_56 = arith.constant 0.000000e+00 : f32
    %280 = vector.broadcast %cst_56 : f32 to vector<4x8xf32>
    %281 = arith.maximumf %279, %280 : vector<4x8xf32>
    %cst_57 = arith.constant 1.41421354 : f32
    %282 = vector.broadcast %cst_57 : f32 to vector<4x8xf32>
    %283 = arith.mulf %281, %282 : vector<4x8xf32>
    %284 = vector.shape_cast %283 : vector<4x8xf32> to vector<2x2x8xf32>
    %c0_58 = arith.constant 0 : index
    %c0_59 = arith.constant 0 : index
    %285 = vector.load %arg9[%c0_58, %c0_59] : memref<72x8xf32, #tpu.memory_space<vmem>>, vector<72x8xf32>
    %cst_60 = arith.constant 0.000000e+00 : f32
    %286 = vector.broadcast %cst_60 : f32 to vector<1x2x8xf32>
    %cst_61 = arith.constant 0.000000e+00 : f32
    %287 = vector.broadcast %cst_61 : f32 to vector<1x2x8xf32>
    %288 = tpu.concatenate %286, %284, %287 in 0 : vector<1x2x8xf32>, vector<2x2x8xf32>, vector<1x2x8xf32> -> vector<4x2x8xf32>
    %cst_62 = arith.constant 0.000000e+00 : f32
    %289 = vector.broadcast %cst_62 : f32 to vector<4x1x8xf32>
    %cst_63 = arith.constant 0.000000e+00 : f32
    %290 = vector.broadcast %cst_63 : f32 to vector<4x1x8xf32>
    %291 = tpu.concatenate %289, %288, %290 in 1 : vector<4x1x8xf32>, vector<4x2x8xf32>, vector<4x1x8xf32> -> vector<4x4x8xf32>
    %292 = vector.extract_strided_slice %291 {offsets = [0, 0, 0], sizes = [2, 4, 8], strides = [1, 1, 1]} : vector<4x4x8xf32> to vector<2x4x8xf32>
    %293 = vector.shape_cast %292 : vector<2x4x8xf32> to vector<1x2x4x8xf32>
    %294 = vector.extract_strided_slice %293 {offsets = [0, 0, 0, 0], sizes = [1, 1, 4, 8], strides = [1, 1, 1, 1]} : vector<1x2x4x8xf32> to vector<1x1x4x8xf32>
    %295 = vector.shape_cast %294 : vector<1x1x4x8xf32> to vector<1x4x8xf32>
    %296 = vector.extract_strided_slice %295 {offsets = [0, 0, 0], sizes = [1, 2, 8], strides = [1, 1, 1]} : vector<1x4x8xf32> to vector<1x2x8xf32>
    %297 = vector.shape_cast %296 : vector<1x2x8xf32> to vector<1x1x2x8xf32>
    %298 = vector.extract_strided_slice %297 {offsets = [0, 0, 0, 0], sizes = [1, 1, 1, 8], strides = [1, 1, 1, 1]} : vector<1x1x2x8xf32> to vector<1x1x1x8xf32>
    %299 = vector.shape_cast %298 : vector<1x1x1x8xf32> to vector<1x1x8xf32>
    %300 = vector.shape_cast %299 : vector<1x1x8xf32> to vector<1x8xf32>
    %301 = vector.extract_strided_slice %295 {offsets = [0, 1, 0], sizes = [1, 2, 8], strides = [1, 1, 1]} : vector<1x4x8xf32> to vector<1x2x8xf32>
    %302 = vector.shape_cast %301 : vector<1x2x8xf32> to vector<1x1x2x8xf32>
    %303 = vector.extract_strided_slice %302 {offsets = [0, 0, 0, 0], sizes = [1, 1, 1, 8], strides = [1, 1, 1, 1]} : vector<1x1x2x8xf32> to vector<1x1x1x8xf32>
    %304 = vector.shape_cast %303 : vector<1x1x1x8xf32> to vector<1x1x8xf32>
    %305 = vector.shape_cast %304 : vector<1x1x8xf32> to vector<1x8xf32>
    %306 = vector.extract_strided_slice %295 {offsets = [0, 2, 0], sizes = [1, 2, 8], strides = [1, 1, 1]} : vector<1x4x8xf32> to vector<1x2x8xf32>
    %307 = vector.shape_cast %306 : vector<1x2x8xf32> to vector<1x1x2x8xf32>
    %308 = vector.extract_strided_slice %307 {offsets = [0, 0, 0, 0], sizes = [1, 1, 1, 8], strides = [1, 1, 1, 1]} : vector<1x1x2x8xf32> to vector<1x1x1x8xf32>
    %309 = vector.shape_cast %308 : vector<1x1x1x8xf32> to vector<1x1x8xf32>
    %310 = vector.shape_cast %309 : vector<1x1x8xf32> to vector<1x8xf32>
    %311 = vector.extract_strided_slice %291 {offsets = [1, 0, 0], sizes = [2, 4, 8], strides = [1, 1, 1]} : vector<4x4x8xf32> to vector<2x4x8xf32>
    %312 = vector.shape_cast %311 : vector<2x4x8xf32> to vector<1x2x4x8xf32>
    %313 = vector.extract_strided_slice %312 {offsets = [0, 0, 0, 0], sizes = [1, 1, 4, 8], strides = [1, 1, 1, 1]} : vector<1x2x4x8xf32> to vector<1x1x4x8xf32>
    %314 = vector.shape_cast %313 : vector<1x1x4x8xf32> to vector<1x4x8xf32>
    %315 = vector.extract_strided_slice %314 {offsets = [0, 0, 0], sizes = [1, 2, 8], strides = [1, 1, 1]} : vector<1x4x8xf32> to vector<1x2x8xf32>
    %316 = vector.shape_cast %315 : vector<1x2x8xf32> to vector<1x1x2x8xf32>
    %317 = vector.extract_strided_slice %316 {offsets = [0, 0, 0, 0], sizes = [1, 1, 1, 8], strides = [1, 1, 1, 1]} : vector<1x1x2x8xf32> to vector<1x1x1x8xf32>
    %318 = vector.shape_cast %317 : vector<1x1x1x8xf32> to vector<1x1x8xf32>
    %319 = vector.shape_cast %318 : vector<1x1x8xf32> to vector<1x8xf32>
    %320 = vector.extract_strided_slice %314 {offsets = [0, 1, 0], sizes = [1, 2, 8], strides = [1, 1, 1]} : vector<1x4x8xf32> to vector<1x2x8xf32>
    %321 = vector.shape_cast %320 : vector<1x2x8xf32> to vector<1x1x2x8xf32>
    %322 = vector.extract_strided_slice %321 {offsets = [0, 0, 0, 0], sizes = [1, 1, 1, 8], strides = [1, 1, 1, 1]} : vector<1x1x2x8xf32> to vector<1x1x1x8xf32>
    %323 = vector.shape_cast %322 : vector<1x1x1x8xf32> to vector<1x1x8xf32>
    %324 = vector.shape_cast %323 : vector<1x1x8xf32> to vector<1x8xf32>
    %325 = vector.extract_strided_slice %314 {offsets = [0, 2, 0], sizes = [1, 2, 8], strides = [1, 1, 1]} : vector<1x4x8xf32> to vector<1x2x8xf32>
    %326 = vector.shape_cast %325 : vector<1x2x8xf32> to vector<1x1x2x8xf32>
    %327 = vector.extract_strided_slice %326 {offsets = [0, 0, 0, 0], sizes = [1, 1, 1, 8], strides = [1, 1, 1, 1]} : vector<1x1x2x8xf32> to vector<1x1x1x8xf32>
    %328 = vector.shape_cast %327 : vector<1x1x1x8xf32> to vector<1x1x8xf32>
    %329 = vector.shape_cast %328 : vector<1x1x8xf32> to vector<1x8xf32>
    %330 = vector.extract_strided_slice %291 {offsets = [2, 0, 0], sizes = [2, 4, 8], strides = [1, 1, 1]} : vector<4x4x8xf32> to vector<2x4x8xf32>
    %331 = vector.shape_cast %330 : vector<2x4x8xf32> to vector<1x2x4x8xf32>
    %332 = vector.extract_strided_slice %331 {offsets = [0, 0, 0, 0], sizes = [1, 1, 4, 8], strides = [1, 1, 1, 1]} : vector<1x2x4x8xf32> to vector<1x1x4x8xf32>
    %333 = vector.shape_cast %332 : vector<1x1x4x8xf32> to vector<1x4x8xf32>
    %334 = vector.extract_strided_slice %333 {offsets = [0, 0, 0], sizes = [1, 2, 8], strides = [1, 1, 1]} : vector<1x4x8xf32> to vector<1x2x8xf32>
    %335 = vector.shape_cast %334 : vector<1x2x8xf32> to vector<1x1x2x8xf32>
    %336 = vector.extract_strided_slice %335 {offsets = [0, 0, 0, 0], sizes = [1, 1, 1, 8], strides = [1, 1, 1, 1]} : vector<1x1x2x8xf32> to vector<1x1x1x8xf32>
    %337 = vector.shape_cast %336 : vector<1x1x1x8xf32> to vector<1x1x8xf32>
    %338 = vector.shape_cast %337 : vector<1x1x8xf32> to vector<1x8xf32>
    %339 = vector.extract_strided_slice %333 {offsets = [0, 1, 0], sizes = [1, 2, 8], strides = [1, 1, 1]} : vector<1x4x8xf32> to vector<1x2x8xf32>
    %340 = vector.shape_cast %339 : vector<1x2x8xf32> to vector<1x1x2x8xf32>
    %341 = vector.extract_strided_slice %340 {offsets = [0, 0, 0, 0], sizes = [1, 1, 1, 8], strides = [1, 1, 1, 1]} : vector<1x1x2x8xf32> to vector<1x1x1x8xf32>
    %342 = vector.shape_cast %341 : vector<1x1x1x8xf32> to vector<1x1x8xf32>
    %343 = vector.shape_cast %342 : vector<1x1x8xf32> to vector<1x8xf32>
    %344 = vector.extract_strided_slice %333 {offsets = [0, 2, 0], sizes = [1, 2, 8], strides = [1, 1, 1]} : vector<1x4x8xf32> to vector<1x2x8xf32>
    %345 = vector.shape_cast %344 : vector<1x2x8xf32> to vector<1x1x2x8xf32>
    %346 = vector.extract_strided_slice %345 {offsets = [0, 0, 0, 0], sizes = [1, 1, 1, 8], strides = [1, 1, 1, 1]} : vector<1x1x2x8xf32> to vector<1x1x1x8xf32>
    %347 = vector.shape_cast %346 : vector<1x1x1x8xf32> to vector<1x1x8xf32>
    %348 = vector.shape_cast %347 : vector<1x1x8xf32> to vector<1x8xf32>
    %349 = tpu.concatenate %300, %305, %310, %319, %324, %329, %338, %343, %348 in 1 : vector<1x8xf32>, vector<1x8xf32>, vector<1x8xf32>, vector<1x8xf32>, vector<1x8xf32>, vector<1x8xf32>, vector<1x8xf32>, vector<1x8xf32>, vector<1x8xf32> -> vector<1x72xf32>
    %cst_64 = arith.constant dense<0.000000e+00> : vector<1x8xf32>
    %350 = tpu.matmul %349, %285, %cst_64 {dimension_numbers = #tpu.dot_dimension_numbers<[1], [0], [0], [1], [0, 0, 1, 1], [], []>} : vector<1x72xf32>, vector<72x8xf32>, vector<1x8xf32> -> vector<1x8xf32>
    %cst_65 = arith.constant 0.000000e+00 : f32
    %351 = vector.broadcast %cst_65 : f32 to vector<1x8xf32>
    %352 = arith.maximumf %350, %351 : vector<1x8xf32>
    %cst_66 = arith.constant 1.41421354 : f32
    %353 = vector.broadcast %cst_66 : f32 to vector<1x8xf32>
    %354 = arith.mulf %352, %353 : vector<1x8xf32>
    %355 = vector.shape_cast %354 : vector<1x8xf32> to vector<1x1x8xf32>
    %356 = vector.shape_cast %355 : vector<1x1x8xf32> to vector<1x8xf32>
    %cst_67 = arith.constant dense<0.000000e+00> : vector<8xf32>
    %357 = vector.multi_reduction <add>, %356, %cst_67 [0] : vector<1x8xf32> to vector<8xf32>
    %358 = vector.shape_cast %357 : vector<8xf32> to vector<1x8xf32>
    %cst_68 = arith.constant 1.000000e+00 : f32
    %359 = vector.broadcast %cst_68 : f32 to vector<1x8xf32>
    %360 = arith.mulf %358, %359 : vector<1x8xf32>
    %c0_69 = arith.constant 0 : index
    %c0_70 = arith.constant 0 : index
    %361 = vector.load %arg10[%c0_69, %c0_70] : memref<1x8xf32, #tpu.memory_space<vmem>>, vector<1x8xf32>
    %362 = arith.mulf %360, %361 : vector<1x8xf32>
    %cst_71 = arith.constant dense<0.000000e+00> : vector<1xf32>
    %363 = vector.multi_reduction <add>, %362, %cst_71 [1] : vector<1x8xf32> to vector<1xf32>
    %364 = vector.shape_cast %363 : vector<1xf32> to vector<1x1xf32>
    %365 = vector.shape_cast %364 : vector<1x1xf32> to vector<1x1x1xf32>
    %366 = vector.shape_cast %365 : vector<1x1x1xf32> to vector<1x1x1xf32>
    %367 = vector.broadcast %366 : vector<1x1x1xf32> to vector<1x1x128xf32>
    %c0_72 = arith.constant 0 : index
    %c0_73 = arith.constant 0 : index
    %c0_74 = arith.constant 0 : index
    %368 = vector.load %arg11[%c0_72, %c0_73, %c0_74] : memref<1x1x128xf32, #tpu.memory_space<vmem>>, vector<1x1x128xf32>
    tpu.vector_store %arg11[%c0_72, %c0_73, %c0_74], %367 {strides = array<i32>} : memref<1x1x128xf32, #tpu.memory_space<vmem>>, vector<1x1x128xf32>,
    return
  }
  func.func @transform_0(%arg0: i32) -> (i32, i32, i32, i32) {
    %c0_i32 = arith.constant 0 : i32
    %c0_i32_0 = arith.constant 0 : i32
    %c0_i32_1 = arith.constant 0 : i32
    %c0_i32_2 = arith.constant 0 : i32
    return %arg0, %c0_i32, %c0_i32_0, %c0_i32_1 : i32, i32, i32, i32
  }
  func.func @transform_1(%arg0: i32) -> (i32, i32, i32, i32) {
    %c0_i32 = arith.constant 0 : i32
    %c0_i32_0 = arith.constant 0 : i32
    %c0_i32_1 = arith.constant 0 : i32
    %c0_i32_2 = arith.constant 0 : i32
    return %arg0, %c0_i32, %c0_i32_0, %c0_i32_1 : i32, i32, i32, i32
  }
  func.func @transform_2(%arg0: i32) -> (i32, i32) {
    %c0_i32 = arith.constant 0 : i32
    %c0_i32_0 = arith.constant 0 : i32
    %c0_i32_1 = arith.constant 0 : i32
    return %c0_i32, %c0_i32_0 : i32, i32
  }
  func.func @transform_3(%arg0: i32) -> (i32, i32) {
    %c0_i32 = arith.constant 0 : i32
    %c0_i32_0 = arith.constant 0 : i32
    %c0_i32_1 = arith.constant 0 : i32
    return %c0_i32, %c0_i32_0 : i32, i32
  }
  func.func @transform_4(%arg0: i32) -> (i32, i32) {
    %c0_i32 = arith.constant 0 : i32
    %c0_i32_0 = arith.constant 0 : i32
    %c0_i32_1 = arith.constant 0 : i32
    return %c0_i32, %c0_i32_0 : i32, i32
  }
  func.func @transform_5(%arg0: i32) -> (i32, i32) {
    %c0_i32 = arith.constant 0 : i32
    %c0_i32_0 = arith.constant 0 : i32
    %c0_i32_1 = arith.constant 0 : i32
    return %c0_i32, %c0_i32_0 : i32, i32
  }
  func.func @transform_6(%arg0: i32) -> (i32, i32) {
    %c0_i32 = arith.constant 0 : i32
    %c0_i32_0 = arith.constant 0 : i32
    %c0_i32_1 = arith.constant 0 : i32
    return %c0_i32, %c0_i32_0 : i32, i32
  }
  func.func @transform_7(%arg0: i32) -> (i32, i32) {
    %c0_i32 = arith.constant 0 : i32
    %c0_i32_0 = arith.constant 0 : i32
    %c0_i32_1 = arith.constant 0 : i32
    return %c0_i32, %c0_i32_0 : i32, i32
  }
  func.func @transform_8(%arg0: i32) -> (i32, i32) {
    %c0_i32 = arith.constant 0 : i32
    %c0_i32_0 = arith.constant 0 : i32
    %c0_i32_1 = arith.constant 0 : i32
    return %c0_i32, %c0_i32_0 : i32, i32
  }
  func.func @transform_9(%arg0: i32) -> (i32, i32) {
    %c0_i32 = arith.constant 0 : i32
    %c0_i32_0 = arith.constant 0 : i32
    %c0_i32_1 = arith.constant 0 : i32
    return %c0_i32, %c0_i32_0 : i32, i32
  }
  func.func @transform_10(%arg0: i32) -> (i32, i32, i32) {
    %c0_i32 = arith.constant 0 : i32
    %c0_i32_0 = arith.constant 0 : i32
    %c0_i32_1 = arith.constant 0 : i32
    return %arg0, %c0_i32, %c0_i32_0 : i32, i32, i32
  }
}

</mosaic_0001>

<llo_original>
// kernel: forward.1
$region0: #{forward.1}
  #allocation0 [shape = 'u32[]', space=smem, size = 0x4, offset = 0x4, fixed_abs, tag = 'smem constant byte address 0x4 - core index']
  #allocation1 [shape = 'u32[72,128]{1,0:T(1,128)}', space=vmem, size = 0x9000, scoped, tag = 'internal scratch']
  %s0 = inlined_call_operand.vmem [shape: f32[2,12,12,1], index: 0, kind: input, shape index: {}]
  %s1 = inlined_call_operand.vmem [shape: f32[2,4,4,3], index: 1, kind: input, shape index: {}]
  %s2 = inlined_call_operand.vmem [shape: f32[9,8], index: 2, kind: input, shape index: {}]
  %s3 = inlined_call_operand.vmem [shape: f32[72,8], index: 3, kind: input, shape index: {}]
  %s4 = inlined_call_operand.vmem [shape: f32[72,8], index: 4, kind: input, shape index: {}]
  %s5 = inlined_call_operand.vmem [shape: f32[99,8], index: 5, kind: input, shape index: {}]
  %s6 = inlined_call_operand.vmem [shape: f32[72,8], index: 6, kind: input, shape index: {}]
  %s7 = inlined_call_operand.vmem [shape: f32[72,8], index: 7, kind: input, shape index: {}]
  %s8 = inlined_call_operand.vmem [shape: f32[72,8], index: 8, kind: input, shape index: {}]
  %s9 = inlined_call_operand.vmem [shape: f32[1,8], index: 9, kind: input, shape index: {}]
  %s10 = inlined_call_operand.vmem [shape: f32[2,1,128], index: 10, kind: output, shape index: {}]
  %s11 = sld [smem:[#allocation0]]
  $region73: #{forward.1} parent=0
    _
  %s13 = ssub.s32 1, %s11
  %s14 = scalar_select 0, %s13, %s11
  loop: start=0, step=1, limit=4
  $region2: #{forward.1} parent=0 // loop_pre_header
    _
  $region3: #{forward.1} parent=0 // loop_header
    %s16 = sphi 0, %s20
    %p17 = scmp.ge.s32.totalorder %s16, 4
    %s26 = sphi 0, %s28
    %s29 = sphi 0, %s26
    %s30 = sphi 0, %s29
    %s46 = sphi 0, %s30
    %s52 = sphi 0, %s54
    %s55 = sphi 0, %s52
    %s56 = sphi 0, %s55
    %s72 = sphi 0, %s56
    %s76 = sphi 0, %s76
    %s78 = sphi 0, %s76
    %s79 = sphi 0, %s78
    %s93 = sphi 0, %s79
    %s97 = sphi 0, %s97
    %s99 = sphi 0, %s97
    %s100 = sphi 0, %s99
    %s114 = sphi 0, %s100
    %s118 = sphi 0, %s118
    %s120 = sphi 0, %s118
    %s121 = sphi 0, %s120
    %s135 = sphi 0, %s121
    %s139 = sphi 0, %s139
    %s141 = sphi 0, %s139
    %s142 = sphi 0, %s141
    %s156 = sphi 0, %s142
    %s160 = sphi 0, %s160
    %s162 = sphi 0, %s160
    %s163 = sphi 0, %s162
    %s177 = sphi 0, %s163
    %s181 = sphi 0, %s181
    %s183 = sphi 0, %s181
    %s184 = sphi 0, %s183
    %s198 = sphi 0, %s184
    %s202 = sphi 0, %s202
    %s204 = sphi 0, %s202
    %s205 = sphi 0, %s204
    %s219 = sphi 0, %s205
    %s223 = sphi 0, %s223
    %s225 = sphi 0, %s223
    %s226 = sphi 0, %s225
    %s240 = sphi 0, %s226
    %s246 = sphi 0, %s248
    %s249 = sphi 0, %s246
    %s250 = sphi 0, %s249
    %s266 = sphi 0, %s250
  $region4: #{forward.1} parent=0 // loop_header_branch
    %19 = sbr.rel (%p17) target = $region8
  $region5: #{forward.1} parent=0 // loop_body
    %s21 = ssub.s32 %s16, 1
    %s22 = ssub.s32 %s16, 2
    %s23 = sadd.s32 %s16, 1
    %s24 = ssub.s32 %s16, %s23
    %p25 = scmp.eq.s32.totalorder %s24, 0
    %s27 = sadd.s32 %s26, 1
    %s28 = scalar_select %p25, %s26, %s27
    %p31 = pneg %p25
    %p32 = scmp.eq.s32.totalorder %s16, 1
    %p33 = por %p31, %p32
    %p34 = scmp.ne.s32.totalorder %s26, %s29
    %p35 = scmp.eq.s32.totalorder %s16, 0
    %p36 = por %p34, %p35
    %p37 = scmp.ne.s32.totalorder %s26, %s29
    %p38 = scmp.eq.s32.totalorder %s21, 1
    %p39 = por %p37, %p38
    %p40 = scmp.ne.s32.totalorder %s29, %s30
    %p41 = scmp.eq.s32.totalorder %s21, 0
    %p42 = por %p40, %p41
    %p43 = scmp.ne.s32.totalorder %s29, %s30
    %p44 = scmp.eq.s32.totalorder %s22, 1
    %p45 = por %p43, %p44
    %p47 = scmp.ne.s32.totalorder %s30, %s46
    %p48 = scmp.eq.s32.totalorder %s22, 0
    %p49 = por %p47, %p48
    %s50 = ssub.s32 %s16, %s23
    %p51 = scmp.eq.s32.totalorder %s50, 0
    %s53 = sadd.s32 %s52, 1
    %s54 = scalar_select %p51, %s52, %s53
    %p57 = pneg %p51
    %p58 = scmp.eq.s32.totalorder %s16, 1
    %p59 = por %p57, %p58
    %p60 = scmp.ne.s32.totalorder %s52, %s55
    %p61 = scmp.eq.s32.totalorder %s16, 0
    %p62 = por %p60, %p61
    %p63 = scmp.ne.s32.totalorder %s52, %s55
    %p64 = scmp.eq.s32.totalorder %s21, 1
    %p65 = por %p63, %p64
    %p66 = scmp.ne.s32.totalorder %s55, %s56
    %p67 = scmp.eq.s32.totalorder %s21, 0
    %p68 = por %p66, %p67
    %p69 = scmp.ne.s32.totalorder %s55, %s56
    %p70 = scmp.eq.s32.totalorder %s22, 1
    %p71 = por %p69, %p70
    %p73 = scmp.ne.s32.totalorder %s56, %s72
    %p74 = scmp.eq.s32.totalorder %s22, 0
    %p75 = por %p73, %p74
    %s77 = sadd.s32 %s76, 1
    %p80 = scmp.eq.s32.totalorder %s16, 1
    %p81 = scmp.ne.s32.totalorder %s76, %s78
    %p82 = scmp.eq.s32.totalorder %s16, 0
    %p83 = por %p81, %p82
    %p84 = scmp.ne.s32.totalorder %s76, %s78
    %p85 = scmp.eq.s32.totalorder %s21, 1
    %p86 = por %p84, %p85
    %p87 = scmp.ne.s32.totalorder %s78, %s79
    %p88 = scmp.eq.s32.totalorder %s21, 0
    %p89 = por %p87, %p88
    %p90 = scmp.ne.s32.totalorder %s78, %s79
    %p91 = scmp.eq.s32.totalorder %s22, 1
    %p92 = por %p90, %p91
    %p94 = scmp.ne.s32.totalorder %s79, %s93
    %p95 = scmp.eq.s32.totalorder %s22, 0
    %p96 = por %p94, %p95
    %s98 = sadd.s32 %s97, 1
    %p101 = scmp.eq.s32.totalorder %s16, 1
    %p102 = scmp.ne.s32.totalorder %s97, %s99
    %p103 = scmp.eq.s32.totalorder %s16, 0
    %p104 = por %p102, %p103
    %p105 = scmp.ne.s32.totalorder %s97, %s99
    %p106 = scmp.eq.s32.totalorder %s21, 1
    %p107 = por %p105, %p106
    %p108 = scmp.ne.s32.totalorder %s99, %s100
    %p109 = scmp.eq.s32.totalorder %s21, 0
    %p110 = por %p108, %p109
    %p111 = scmp.ne.s32.totalorder %s99, %s100
    %p112 = scmp.eq.s32.totalorder %s22, 1
    %p113 = por %p111, %p112
    %p115 = scmp.ne.s32.totalorder %s100, %s114
    %p116 = scmp.eq.s32.totalorder %s22, 0
    %p117 = por %p115, %p116
    %s119 = sadd.s32 %s118, 1
    %p122 = scmp.eq.s32.totalorder %s16, 1
    %p123 = scmp.ne.s32.totalorder %s118, %s120
    %p124 = scmp.eq.s32.totalorder %s16, 0
    %p125 = por %p123, %p124
    %p126 = scmp.ne.s32.totalorder %s118, %s120
    %p127 = scmp.eq.s32.totalorder %s21, 1
    %p128 = por %p126, %p127
    %p129 = scmp.ne.s32.totalorder %s120, %s121
    %p130 = scmp.eq.s32.totalorder %s21, 0
    %p131 = por %p129, %p130
    %p132 = scmp.ne.s32.totalorder %s120, %s121
    %p133 = scmp.eq.s32.totalorder %s22, 1
    %p134 = por %p132, %p133
    %p136 = scmp.ne.s32.totalorder %s121, %s135
    %p137 = scmp.eq.s32.totalorder %s22, 0
    %p138 = por %p136, %p137
    %s140 = sadd.s32 %s139, 1
    %p143 = scmp.eq.s32.totalorder %s16, 1
    %p144 = scmp.ne.s32.totalorder %s139, %s141
    %p145 = scmp.eq.s32.totalorder %s16, 0
    %p146 = por %p144, %p145
    %p147 = scmp.ne.s32.totalorder %s139, %s141
    %p148 = scmp.eq.s32.totalorder %s21, 1
    %p149 = por %p147, %p148
    %p150 = scmp.ne.s32.totalorder %s141, %s142
    %p151 = scmp.eq.s32.totalorder %s21, 0
    %p152 = por %p150, %p151
    %p153 = scmp.ne.s32.totalorder %s141, %s142
    %p154 = scmp.eq.s32.totalorder %s22, 1
    %p155 = por %p153, %p154
    %p157 = scmp.ne.s32.totalorder %s142, %s156
    %p158 = scmp.eq.s32.totalorder %s22, 0
    %p159 = por %p157, %p158
    %s161 = sadd.s32 %s160, 1
    %p164 = scmp.eq.s32.totalorder %s16, 1
    %p165 = scmp.ne.s32.totalorder %s160, %s162
    %p166 = scmp.eq.s32.totalorder %s16, 0
    %p167 = por %p165, %p166
    %p168 = scmp.ne.s32.totalorder %s160, %s162
    %p169 = scmp.eq.s32.totalorder %s21, 1
    %p170 = por %p168, %p169
    %p171 = scmp.ne.s32.totalorder %s162, %s163
    %p172 = scmp.eq.s32.totalorder %s21, 0
    %p173 = por %p171, %p172
    %p174 = scmp.ne.s32.totalorder %s162, %s163
    %p175 = scmp.eq.s32.totalorder %s22, 1
    %p176 = por %p174, %p175
    %p178 = scmp.ne.s32.totalorder %s163, %s177
    %p179 = scmp.eq.s32.totalorder %s22, 0
    %p180 = por %p178, %p179
    %s182 = sadd.s32 %s181, 1
    %p185 = scmp.eq.s32.totalorder %s16, 1
    %p186 = scmp.ne.s32.totalorder %s181, %s183
    %p187 = scmp.eq.s32.totalorder %s16, 0
    %p188 = por %p186, %p187
    %p189 = scmp.ne.s32.totalorder %s181, %s183
    %p190 = scmp.eq.s32.totalorder %s21, 1
    %p191 = por %p189, %p190
    %p192 = scmp.ne.s32.totalorder %s183, %s184
    %p193 = scmp.eq.s32.totalorder %s21, 0
    %p194 = por %p192, %p193
    %p195 = scmp.ne.s32.totalorder %s183, %s184
    %p196 = scmp.eq.s32.totalorder %s22, 1
    %p197 = por %p195, %p196
    %p199 = scmp.ne.s32.totalorder %s184, %s198
    %p200 = scmp.eq.s32.totalorder %s22, 0
    %p201 = por %p199, %p200
    %s203 = sadd.s32 %s202, 1
    %p206 = scmp.eq.s32.totalorder %s16, 1
    %p207 = scmp.ne.s32.totalorder %s202, %s204
    %p208 = scmp.eq.s32.totalorder %s16, 0
    %p209 = por %p207, %p208
    %p210 = scmp.ne.s32.totalorder %s202, %s204
    %p211 = scmp.eq.s32.totalorder %s21, 1
    %p212 = por %p210, %p211
    %p213 = scmp.ne.s32.totalorder %s204, %s205
    %p214 = scmp.eq.s32.totalorder %s21, 0
    %p215 = por %p213, %p214
    %p216 = scmp.ne.s32.totalorder %s204, %s205
    %p217 = scmp.eq.s32.totalorder %s22, 1
    %p218 = por %p216, %p217
    %p220 = scmp.ne.s32.totalorder %s205, %s219
    %p221 = scmp.eq.s32.totalorder %s22, 0
    %p222 = por %p220, %p221
    %s224 = sadd.s32 %s223, 1
    %p227 = scmp.eq.s32.totalorder %s16, 1
    %p228 = scmp.ne.s32.totalorder %s223, %s225
    %p229 = scmp.eq.s32.totalorder %s16, 0
    %p230 = por %p228, %p229
    %p231 = scmp.ne.s32.totalorder %s223, %s225
    %p232 = scmp.eq.s32.totalorder %s21, 1
    %p233 = por %p231, %p232
    %p234 = scmp.ne.s32.totalorder %s225, %s226
    %p235 = scmp.eq.s32.totalorder %s21, 0
    %p236 = por %p234, %p235
    %p237 = scmp.ne.s32.totalorder %s225, %s226
    %p238 = scmp.eq.s32.totalorder %s22, 1
    %p239 = por %p237, %p238
    %p241 = scmp.ne.s32.totalorder %s226, %s240
    %p242 = scmp.eq.s32.totalorder %s22, 0
    %p243 = por %p241, %p242
    %s244 = ssub.s32 %s16, %s23
    %p245 = scmp.eq.s32.totalorder %s244, 0
    %s247 = sadd.s32 %s246, 1
    %s248 = scalar_select %p245, %s246, %s247
    %p251 = pneg %p245
    %p252 = scmp.eq.s32.totalorder %s16, 1
    %p253 = por %p251, %p252
    %p254 = scmp.ne.s32.totalorder %s246, %s249
    %p255 = scmp.eq.s32.totalorder %s16, 0
    %p256 = por %p254, %p255
    %p257 = scmp.ne.s32.totalorder %s246, %s249
    %p258 = scmp.eq.s32.totalorder %s21, 1
    %p259 = por %p257, %p258
    %p260 = scmp.ne.s32.totalorder %s249, %s250
    %p261 = scmp.eq.s32.totalorder %s21, 0
    %p262 = por %p260, %p261
    %p263 = scmp.ne.s32.totalorder %s249, %s250
    %p264 = scmp.eq.s32.totalorder %s22, 1
    %p265 = por %p263, %p264
    %p267 = scmp.ne.s32.totalorder %s250, %s266
    %p268 = scmp.eq.s32.totalorder %s22, 0
    %p269 = por %p267, %p268
    %p270 = scmp.le.s32.totalorder 1, %s16
    %p271 = scmp.lt.s32.totalorder %s16, 3
    %p272 = pnand %p270, %p271
    %p273 = pneg %p272
    // Predicated region
    $region9: #{forward.1} parent=5 // pred_check
      _
    $region10: #{forward.1} parent=5 // pred_check_branch
      %275 = sbr.rel (%p272) target = $region12
    $region11: #{forward.1} parent=5 // pred_region
      %s276 = ssub.s32 %s16, 1
      // Predicated region
      $region13: #{forward.1} parent=11 // pred_check
        %p277 = pneg %p89
      $region14: #{forward.1} parent=11 // pred_check_branch
        %279 = sbr.rel (%p277) target = $region16
      $region15: #{forward.1} parent=11 // pred_region
        _
      $region16: #{forward.1} parent=11 // pred_fallthru
        _
      // Predicated region
      $region17: #{forward.1} parent=11 // pred_check
        %p280 = pneg %p110
      $region18: #{forward.1} parent=11 // pred_check_branch
        %282 = sbr.rel (%p280) target = $region20
      $region19: #{forward.1} parent=11 // pred_region
        _
      $region20: #{forward.1} parent=11 // pred_fallthru
        _
      // Predicated region
      $region21: #{forward.1} parent=11 // pred_check
        %p283 = pneg %p131
      $region22: #{forward.1} parent=11 // pred_check_branch
        %285 = sbr.rel (%p283) target = $region24
      $region23: #{forward.1} parent=11 // pred_region
        _
      $region24: #{forward.1} parent=11 // pred_fallthru
        _
      // Predicated region
      $region25: #{forward.1} parent=11 // pred_check
        %p286 = pneg %p152
      $region26: #{forward.1} parent=11 // pred_check_branch
        %288 = sbr.rel (%p286) target = $region28
      $region27: #{forward.1} parent=11 // pred_region
        _
      $region28: #{forward.1} parent=11 // pred_fallthru
        _
      // Predicated region
      $region29: #{forward.1} parent=11 // pred_check
        %p289 = pneg %p173
      $region30: #{forward.1} parent=11 // pred_check_branch
        %291 = sbr.rel (%p289) target = $region32
      $region31: #{forward.1} parent=11 // pred_region
        _
      $region32: #{forward.1} parent=11 // pred_fallthru
        _
      // Predicated region
      $region33: #{forward.1} parent=11 // pred_check
        %p292 = pneg %p194
      $region34: #{forward.1} parent=11 // pred_check_branch
        %294 = sbr.rel (%p292) target = $region36
      $region35: #{forward.1} parent=11 // pred_region
        _
      $region36: #{forward.1} parent=11 // pred_fallthru
        _
      // Predicated region
      $region37: #{forward.1} parent=11 // pred_check
        %p295 = pneg %p215
      $region38: #{forward.1} parent=11 // pred_check_branch
        %297 = sbr.rel (%p295) target = $region40
      $region39: #{forward.1} parent=11 // pred_region
        _
      $region40: #{forward.1} parent=11 // pred_fallthru
        _
      // Predicated region
      $region41: #{forward.1} parent=11 // pred_check
        %p298 = pneg %p236
      $region42: #{forward.1} parent=11 // pred_check_branch
        %300 = sbr.rel (%p298) target = $region44
      $region43: #{forward.1} parent=11 // pred_region
        _
      $region44: #{forward.1} parent=11 // pred_fallthru
        _
    $region12: #{forward.1} parent=5 // pred_fallthru
      _
    %p301 = scmp.lt.s32.totalorder %s16, 2
    // Predicated region
    $region45: #{forward.1} parent=5 // pred_check
      %p302 = pneg %p301
    $region46: #{forward.1} parent=5 // pred_check_branch
      %304 = sbr.rel (%p302) target = $region48
    $region47: #{forward.1} parent=5 // pred_region
      // Predicated region
      $region49: #{forward.1} parent=47 // pred_check
        %p305 = pneg %p36
      $region50: #{forward.1} parent=47 // pred_check_branch
        %307 = sbr.rel (%p305) target = $region52
      $region51: #{forward.1} parent=47 // pred_region
        %p308 = scmp.lt.s32.totalorder %s16, 1
        %s309 = scalar_select %p308, %s16, 1
        %s310 = smul.addr %s309, 24
        %s311 = smul.addr %s310, 8
        %s312 = scalar_lea.vmem %s0, %s311
      $region52: #{forward.1} parent=47 // pred_fallthru
        _
      // Predicated region
      $region53: #{forward.1} parent=47 // pred_check
        %p313 = pneg %p62
      $region54: #{forward.1} parent=47 // pred_check_branch
        %315 = sbr.rel (%p313) target = $region56
      $region55: #{forward.1} parent=47 // pred_region
        %p316 = scmp.lt.s32.totalorder %s16, 1
        %s317 = scalar_select %p316, %s16, 1
        %s318 = smul.addr %s317, 4
        %s319 = smul.addr %s318, 4
        %s320 = scalar_lea.vmem %s1, %s319
      $region56: #{forward.1} parent=47 // pred_fallthru
        _
    $region48: #{forward.1} parent=5 // pred_fallthru
      _
    %p321 = scmp.le.s32.totalorder 1, %s16
    %p322 = scmp.lt.s32.totalorder %s16, 3
    %p323 = pnand %p321, %p322
    %p324 = pneg %p323
    // Predicated region
    $region57: #{forward.1} parent=5 // pred_check
      _
    $region58: #{forward.1} parent=5 // pred_check_branch
      %326 = sbr.rel (%p323) target = $region60
    $region59: #{forward.1} parent=5 // pred_region
      %s327 = ssub.s32 %s16, 1
      %p328 = scmp.lt.s32.totalorder %s21, 1
      %s329 = scalar_select %p328, %s21, 1
      %s330 = smul.addr %s329, 24
      %s331 = smul.addr %s330, 8
      %s332 = scalar_lea.vmem %s0, %s331
      %p333 = pneg %p42
      %p334 = pneg %p39
      %p335 = scmp.lt.s32.totalorder %s21, 1
      %s336 = scalar_select %p335, %s21, 1
      %s337 = smul.addr %s336, 4
      %s338 = smul.addr %s337, 4
      %s339 = scalar_lea.vmem %s1, %s338
      %p340 = pneg %p68
      %p341 = pneg %p65
      %p342 = pneg %p89
      %p343 = pneg %p86
      %p344 = pneg %p110
      %p345 = pneg %p107
      %p346 = pneg %p131
      %p347 = pneg %p128
      %p348 = pneg %p152
      %p349 = pneg %p149
      %p350 = pneg %p173
      %p351 = pneg %p170
      %p352 = pneg %p194
      %p353 = pneg %p191
      %p354 = pneg %p215
      %p355 = pneg %p212
      %p356 = pneg %p236
      %p357 = pneg %p233
      %p358 = pneg %p262
      %p359 = pneg %p259
      %p360 = scmp.lt.s32.totalorder %s21, 1
      %s361 = scalar_select %p360, %s21, 1
      %s362 = scalar_lea.vmem %s10, %s361
      %p363 = scmp.lt.s32.totalorder %s21, 1
      %s364 = scalar_select %p363, %s21, 1
      %s365 = smul.addr %s364, 24
      %s366 = smul.addr %s365, 8
      %s367 = scalar_lea.vmem %s0, %s366
      %p368 = scmp.lt.s32.totalorder %s21, 1
      %s369 = scalar_select %p368, %s21, 1
      %s370 = smul.addr %s369, 4
      %s371 = smul.addr %s370, 4
      %s372 = scalar_lea.vmem %s1, %s371
      %p373 = scmp.lt.s32.totalorder %s21, 1
      %s374 = scalar_select %p373, %s21, 1
      %s375 = scalar_lea.vmem %s10, %s374
      %v376 = vld [vmem:[%s367] sm:$0xff]
      %v377 = vld [vmem:[%s367 + $0x8] sm:$0xf]
      %v378 = vld [vmem:[%s367 + $0x10] sm:$0xff]
      %v379 = vld [vmem:[%s367 + $0x18] sm:$0xf]
      %v380 = vld [vmem:[%s367 + $0x20] sm:$0xff]
      %v381 = vld [vmem:[%s367 + $0x28] sm:$0xf]
      %v382 = vld [vmem:[%s367 + $0x30] sm:$0xff]
      %v383 = vld [vmem:[%s367 + $0x38] sm:$0xf]
      %v384 = vld [vmem:[%s367 + $0x40] sm:$0xff]
      %v385 = vld [vmem:[%s367 + $0x48] sm:$0xf]
      %v386 = vld [vmem:[%s367 + $0x50] sm:$0xff]
      %v387 = vld [vmem:[%s367 + $0x58] sm:$0xf]
      %v388 = vld [vmem:[%s367 + $0x60] sm:$0xff]
      %v389 = vld [vmem:[%s367 + $0x68] sm:$0xf]
      %v390 = vld [vmem:[%s367 + $0x70] sm:$0xff]
      %v391 = vld [vmem:[%s367 + $0x78] sm:$0xf]
      %v392 = vld [vmem:[%s367 + $0x80] sm:$0xff]
      %v393 = vld [vmem:[%s367 + $0x88] sm:$0xf]
      %v394 = vld [vmem:[%s367 + $0x90] sm:$0xff]
      %v395 = vld [vmem:[%s367 + $0x98] sm:$0xf]
      %v396 = vld [vmem:[%s367 + $0xa0] sm:$0xff]
      %v397 = vld [vmem:[%s367 + $0xa8] sm:$0xf]
      %v398 = vld [vmem:[%s367 + $0xb0] sm:$0xff]
      %v399 = vld [vmem:[%s367 + $0xb8] sm:$0xf]
      %v400 = vld [vmem:[%s2] sm:$0xff]
      %v401 = vld [vmem:[%s2 + $0x8] sm:$0x1]
      %vm427 = vcmask 1040384
      %v428 = vrot.slane 0.0, 7
      %v429 = vsel %vm427, %v428, %v428
      %v430 = vrot.slane %v376, 7
      %v431 = vrot.slane %v377, 7
      %v432 = vsel %vm427, %v430, %v431
      %v433 = vrot.slane %v378, 7
      %v434 = vrot.slane %v379, 7
      %v435 = vsel %vm427, %v433, %v434
      %v436 = vrot.slane %v380, 7
      %v437 = vrot.slane %v381, 7
      %v438 = vsel %vm427, %v436, %v437
      %v439 = vrot.slane %v382, 7
      %v440 = vrot.slane %v383, 7
      %v441 = vsel %vm427, %v439, %v440
      %v442 = vrot.slane %v384, 7
      %v443 = vrot.slane %v385, 7
      %v444 = vsel %vm427, %v442, %v443
      %v445 = vrot.slane %v386, 7
      %v446 = vrot.slane %v387, 7
      %v447 = vsel %vm427, %v445, %v446
      %v448 = vrot.slane %v388, 7
      %v449 = vrot.slane %v389, 7
      %v450 = vsel %vm427, %v448, %v449
      %v451 = vrot.slane %v390, 7
      %v452 = vrot.slane %v391, 7
      %v453 = vsel %vm427, %v451, %v452
      %v454 = vrot.slane %v392, 7
      %v455 = vrot.slane %v393, 7
      %v456 = vsel %vm427, %v454, %v455
      %v457 = vrot.slane %v394, 7
      %v458 = vrot.slane %v395, 7
      %v459 = vsel %vm427, %v457, %v458
      %v460 = vrot.slane %v396, 7
      %v461 = vrot.slane %v397, 7
      %v462 = vsel %vm427, %v460, %v461
      %v463 = vrot.slane %v398, 7
      %v464 = vrot.slane %v399, 7
      %v465 = vsel %vm427, %v463, %v464
      %v492 = vsel %vm427, 0.0, %v428
      %v493 = vsel %vm427, 0.0, %v430
      %v494 = vsel %vm427, 0.0, %v433
      %v495 = vsel %vm427, 0.0, %v436
      %v496 = vsel %vm427, 0.0, %v439
      %v497 = vsel %vm427, 0.0, %v442
      %v498 = vsel %vm427, 0.0, %v445
      %v499 = vsel %vm427, 0.0, %v448
      %v500 = vsel %vm427, 0.0, %v451
      %v501 = vsel %vm427, 0.0, %v454
      %v502 = vsel %vm427, 0.0, %v457
      %v503 = vsel %vm427, 0.0, %v460
      %v504 = vsel %vm427, 0.0, %v463
      %vm505 = vcmask 1044480
      %v506 = vsel %vm505, %v429, 0.0
      %v507 = vsel %vm505, %v432, 0.0
      %v508 = vsel %vm505, %v435, 0.0
      %v509 = vsel %vm505, %v438, 0.0
      %v510 = vsel %vm505, %v441, 0.0
      %v511 = vsel %vm505, %v444, 0.0
      %v512 = vsel %vm505, %v447, 0.0
      %v513 = vsel %vm505, %v450, 0.0
      %v514 = vsel %vm505, %v453, 0.0
      %v515 = vsel %vm505, %v456, 0.0
      %v516 = vsel %vm505, %v459, 0.0
      %v517 = vsel %vm505, %v462, 0.0
      %v518 = vsel %vm505, %v465, 0.0
      %v543 = vrot.slane %v492, 4
      %v544 = vrot.slane %v493, 4
      %v545 = vrot.slane %v494, 4
      %v546 = vrot.slane %v495, 4
      %v547 = vrot.slane %v496, 4
      %v548 = vrot.slane %v497, 4
      %v549 = vrot.slane %v498, 4
      %v550 = vrot.slane %v499, 4
      %v551 = vrot.slane %v500, 4
      %v552 = vrot.slane %v501, 4
      %v553 = vrot.slane %v502, 4
      %v554 = vrot.slane %v503, 4
      %v555 = vrot.slane %v506, 4
      %v556 = vrot.slane %v507, 4
      %v557 = vrot.slane %v508, 4
      %v558 = vrot.slane %v509, 4
      %v559 = vrot.slane %v510, 4
      %v560 = vrot.slane %v511, 4
      %v561 = vrot.slane %v512, 4
      %v562 = vrot.slane %v513, 4
      %v563 = vrot.slane %v514, 4
      %v564 = vrot.slane %v515, 4
      %v565 = vrot.slane %v516, 4
      %v566 = vrot.slane %v517, 4
      %vm567 = vcmask 1042432
      %vm568 = vcmask 1046532
      %vm569 = vmor %vm567, %vm568
      %v570 = vrot.slane %v492, 5
      %v571 = vrot.slane %v570, 4
      %v572 = vrot.slane %v543, 5
      %v573 = vsel %vm569, %v571, %v572
      %v574 = vrot.slane %v572, 4
      %v575 = vrot.slane %v506, 5
      %v576 = vsel %vm569, %v574, %v575
      %v577 = vrot.slane %v575, 4
      %v578 = vrot.slane %v555, 5
      %v579 = vsel %vm569, %v577, %v578
      %v580 = vrot.slane %v493, 5
      %v581 = vrot.slane %v580, 4
      %v582 = vrot.slane %v544, 5
      %v583 = vsel %vm569, %v581, %v582
      %v584 = vrot.slane %v582, 4
      %v585 = vrot.slane %v507, 5
      %v586 = vsel %vm569, %v584, %v585
      %v587 = vrot.slane %v585, 4
      %v588 = vrot.slane %v556, 5
      %v589 = vsel %vm569, %v587, %v588
      %v590 = vrot.slane %v494, 5
      %v591 = vrot.slane %v590, 4
      %v592 = vrot.slane %v545, 5
      %v593 = vsel %vm569, %v591, %v592
      %v594 = vrot.slane %v592, 4
      %v595 = vrot.slane %v508, 5
      %v596 = vsel %vm569, %v594, %v595
      %v597 = vrot.slane %v595, 4
      %v598 = vrot.slane %v557, 5
      %v599 = vsel %vm569, %v597, %v598
      %v600 = vrot.slane %v495, 5
      %v601 = vrot.slane %v600, 4
      %v602 = vrot.slane %v546, 5
      %v603 = vsel %vm569, %v601, %v602
      %v604 = vrot.slane %v602, 4
      %v605 = vrot.slane %v509, 5
      %v606 = vsel %vm569, %v604, %v605
      %v607 = vrot.slane %v605, 4
      %v608 = vrot.slane %v558, 5
      %v609 = vsel %vm569, %v607, %v608
      %v610 = vrot.slane %v496, 5
      %v611 = vrot.slane %v610, 4
      %v612 = vrot.slane %v547, 5
      %v613 = vsel %vm569, %v611, %v612
      %v614 = vrot.slane %v612, 4
      %v615 = vrot.slane %v510, 5
      %v616 = vsel %vm569, %v614, %v615
      %v617 = vrot.slane %v615, 4
      %v618 = vrot.slane %v559, 5
      %v619 = vsel %vm569, %v617, %v618
      %v620 = vrot.slane %v497, 5
      %v621 = vrot.slane %v620, 4
      %v622 = vrot.slane %v548, 5
      %v623 = vsel %vm569, %v621, %v622
      %v624 = vrot.slane %v622, 4
      %v625 = vrot.slane %v511, 5
      %v626 = vsel %vm569, %v624, %v625
      %v627 = vrot.slane %v625, 4
      %v628 = vrot.slane %v560, 5
      %v629 = vsel %vm569, %v627, %v628
      %v630 = vrot.slane %v498, 5
      %v631 = vrot.slane %v630, 4
      %v632 = vrot.slane %v549, 5
      %v633 = vsel %vm569, %v631, %v632
      %v634 = vrot.slane %v632, 4
      %v635 = vrot.slane %v512, 5
      %v636 = vsel %vm569, %v634, %v635
      %v637 = vrot.slane %v635, 4
      %v638 = vrot.slane %v561, 5
      %v639 = vsel %vm569, %v637, %v638
      %v640 = vrot.slane %v499, 5
      %v641 = vrot.slane %v640, 4
      %v642 = vrot.slane %v550, 5
      %v643 = vsel %vm569, %v641, %v642
      %v644 = vrot.slane %v642, 4
      %v645 = vrot.slane %v513, 5
      %v646 = vsel %vm569, %v644, %v645
      %v647 = vrot.slane %v645, 4
      %v648 = vrot.slane %v562, 5
      %v649 = vsel %vm569, %v647, %v648
      %v650 = vrot.slane %v500, 5
      %v651 = vrot.slane %v650, 4
      %v652 = vrot.slane %v551, 5
      %v653 = vsel %vm569, %v651, %v652
      %v654 = vrot.slane %v652, 4
      %v655 = vrot.slane %v514, 5
      %v656 = vsel %vm569, %v654, %v655
      %v657 = vrot.slane %v655, 4
      %v658 = vrot.slane %v563, 5
      %v659 = vsel %vm569, %v657, %v658
      %v660 = vrot.slane %v501, 5
      %v661 = vrot.slane %v660, 4
      %v662 = vrot.slane %v552, 5
      %v663 = vsel %vm569, %v661, %v662
      %v664 = vrot.slane %v662, 4
      %v665 = vrot.slane %v515, 5
      %v666 = vsel %vm569, %v664, %v665
      %v667 = vrot.slane %v665, 4
      %v668 = vrot.slane %v564, 5
      %v669 = vsel %vm569, %v667, %v668
      %v670 = vrot.slane %v502, 5
      %v671 = vrot.slane %v670, 4
      %v672 = vrot.slane %v553, 5
      %v673 = vsel %vm569, %v671, %v672
      %v674 = vrot.slane %v672, 4
      %v675 = vrot.slane %v516, 5
      %v676 = vsel %vm569, %v674, %v675
      %v677 = vrot.slane %v675, 4
      %v678 = vrot.slane %v565, 5
      %v679 = vsel %vm569, %v677, %v678
      %v680 = vrot.slane %v503, 5
      %v681 = vrot.slane %v680, 4
      %v682 = vrot.slane %v554, 5
      %v683 = vsel %vm569, %v681, %v682
      %v684 = vrot.slane %v682, 4
      %v685 = vrot.slane %v517, 5
      %v686 = vsel %vm569, %v684, %v685
      %v687 = vrot.slane %v685, 4
      %v688 = vrot.slane %v566, 5
      %v689 = vsel %vm569, %v687, %v688
      %vm690 = vcmask 1041408
      %vm691 = vcmask 1045508
      %vm692 = vmor %vm690, %vm691
      %v693 = vrot.slane %v492, 6
      %v694 = vrot.slane %v693, 4
      %v695 = vrot.slane %v543, 6
      %v696 = vsel %vm692, %v694, %v695
      %v697 = vrot.slane %v695, 4
      %v698 = vrot.slane %v506, 6
      %v699 = vsel %vm692, %v697, %v698
      %v700 = vrot.slane %v698, 4
      %v701 = vrot.slane %v555, 6
      %v702 = vsel %vm692, %v700, %v701
      %v703 = vrot.slane %v493, 6
      %v704 = vrot.slane %v703, 4
      %v705 = vrot.slane %v544, 6
      %v706 = vsel %vm692, %v704, %v705
      %v707 = vrot.slane %v705, 4
      %v708 = vrot.slane %v507, 6
      %v709 = vsel %vm692, %v707, %v708
      %v710 = vrot.slane %v708, 4
      %v711 = vrot.slane %v556, 6
      %v712 = vsel %vm692, %v710, %v711
      %v713 = vrot.slane %v494, 6
      %v714 = vrot.slane %v713, 4
      %v715 = vrot.slane %v545, 6
      %v716 = vsel %vm692, %v714, %v715
      %v717 = vrot.slane %v715, 4
      %v718 = vrot.slane %v508, 6
      %v719 = vsel %vm692, %v717, %v718
      %v720 = vrot.slane %v718, 4
      %v721 = vrot.slane %v557, 6
      %v722 = vsel %vm692, %v720, %v721
      %v723 = vrot.slane %v495, 6
      %v724 = vrot.slane %v723, 4
      %v725 = vrot.slane %v546, 6
      %v726 = vsel %vm692, %v724, %v725
      %v727 = vrot.slane %v725, 4
      %v728 = vrot.slane %v509, 6
      %v729 = vsel %vm692, %v727, %v728
      %v730 = vrot.slane %v728, 4
      %v731 = vrot.slane %v558, 6
      %v732 = vsel %vm692, %v730, %v731
      %v733 = vrot.slane %v496, 6
      %v734 = vrot.slane %v733, 4
      %v735 = vrot.slane %v547, 6
      %v736 = vsel %vm692, %v734, %v735
      %v737 = vrot.slane %v735, 4
      %v738 = vrot.slane %v510, 6
      %v739 = vsel %vm692, %v737, %v738
      %v740 = vrot.slane %v738, 4
      %v741 = vrot.slane %v559, 6
      %v742 = vsel %vm692, %v740, %v741
      %v743 = vrot.slane %v497, 6
      %v744 = vrot.slane %v743, 4
      %v745 = vrot.slane %v548, 6
      %v746 = vsel %vm692, %v744, %v745
      %v747 = vrot.slane %v745, 4
      %v748 = vrot.slane %v511, 6
      %v749 = vsel %vm692, %v747, %v748
      %v750 = vrot.slane %v748, 4
      %v751 = vrot.slane %v560, 6
      %v752 = vsel %vm692, %v750, %v751
      %v753 = vrot.slane %v498, 6
      %v754 = vrot.slane %v753, 4
      %v755 = vrot.slane %v549, 6
      %v756 = vsel %vm692, %v754, %v755
      %v757 = vrot.slane %v755, 4
      %v758 = vrot.slane %v512, 6
      %v759 = vsel %vm692, %v757, %v758
      %v760 = vrot.slane %v758, 4
      %v761 = vrot.slane %v561, 6
      %v762 = vsel %vm692, %v760, %v761
      %v763 = vrot.slane %v499, 6
      %v764 = vrot.slane %v763, 4
      %v765 = vrot.slane %v550, 6
      %v766 = vsel %vm692, %v764, %v765
      %v767 = vrot.slane %v765, 4
      %v768 = vrot.slane %v513, 6
      %v769 = vsel %vm692, %v767, %v768
      %v770 = vrot.slane %v768, 4
      %v771 = vrot.slane %v562, 6
      %v772 = vsel %vm692, %v770, %v771
      %v773 = vrot.slane %v500, 6
      %v774 = vrot.slane %v773, 4
      %v775 = vrot.slane %v551, 6
      %v776 = vsel %vm692, %v774, %v775
      %v777 = vrot.slane %v775, 4
      %v778 = vrot.slane %v514, 6
      %v779 = vsel %vm692, %v777, %v778
      %v780 = vrot.slane %v778, 4
      %v781 = vrot.slane %v563, 6
      %v782 = vsel %vm692, %v780, %v781
      %v783 = vrot.slane %v501, 6
      %v784 = vrot.slane %v783, 4
      %v785 = vrot.slane %v552, 6
      %v786 = vsel %vm692, %v784, %v785
      %v787 = vrot.slane %v785, 4
      %v788 = vrot.slane %v515, 6
      %v789 = vsel %vm692, %v787, %v788
      %v790 = vrot.slane %v788, 4
      %v791 = vrot.slane %v564, 6
      %v792 = vsel %vm692, %v790, %v791
      %v793 = vrot.slane %v502, 6
      %v794 = vrot.slane %v793, 4
      %v795 = vrot.slane %v553, 6
      %v796 = vsel %vm692, %v794, %v795
      %v797 = vrot.slane %v795, 4
      %v798 = vrot.slane %v516, 6
      %v799 = vsel %vm692, %v797, %v798
      %v800 = vrot.slane %v798, 4
      %v801 = vrot.slane %v565, 6
      %v802 = vsel %vm692, %v800, %v801
      %v803 = vrot.slane %v503, 6
      %v804 = vrot.slane %v803, 4
      %v805 = vrot.slane %v554, 6
      %v806 = vsel %vm692, %v804, %v805
      %v807 = vrot.slane %v805, 4
      %v808 = vrot.slane %v517, 6
      %v809 = vsel %vm692, %v807, %v808
      %v810 = vrot.slane %v808, 4
      %v811 = vrot.slane %v566, 6
      %v812 = vsel %vm692, %v810, %v811
      %v815 = vrot.slane %v504, 4
      %v816 = vrot.slane %v518, 4
      %v817 = vrot.slane %v504, 5
      %v818 = vrot.slane %v817, 4
      %v819 = vrot.slane %v815, 5
      %v820 = vsel %vm569, %v818, %v819
      %v821 = vrot.slane %v819, 4
      %v822 = vrot.slane %v518, 5
      %v823 = vsel %vm569, %v821, %v822
      %v824 = vrot.slane %v822, 4
      %v825 = vrot.slane %v816, 5
      %v826 = vsel %vm569, %v824, %v825
      %v827 = vrot.slane %v504, 6
      %v828 = vrot.slane %v827, 4
      %v829 = vrot.slane %v815, 6
      %v830 = vsel %vm692, %v828, %v829
      %v831 = vrot.slane %v829, 4
      %v832 = vrot.slane %v518, 6
      %v833 = vsel %vm692, %v831, %v832
      %v834 = vrot.slane %v832, 4
      %v835 = vrot.slane %v816, 6
      %v836 = vsel %vm692, %v834, %v835
      %837 = vst [vmem:[#allocation1] ss:$2 sm:$0xff] %v492
      %s838 = scalar_lea.vmem [#allocation1], 1
      %839 = vst [vmem:[%s838] ss:$2 sm:$0xff] %v543
      %s840 = scalar_lea.vmem [#allocation1], 16
      %841 = vst [vmem:[%s840] ss:$2 sm:$0xff] %v506
      %s842 = scalar_lea.vmem [#allocation1], 17
      %843 = vst [vmem:[%s842] ss:$2 sm:$0xff] %v493
      %s844 = scalar_lea.vmem [#allocation1], 32
      %845 = vst [vmem:[%s844] ss:$2 sm:$0xff] %v544
      %s846 = scalar_lea.vmem [#allocation1], 33
      %847 = vst [vmem:[%s846] ss:$2 sm:$0xff] %v507
      %s848 = scalar_lea.vmem [#allocation1], 48
      %849 = vst [vmem:[%s848] ss:$2 sm:$0xff] %v494
      %s850 = scalar_lea.vmem [#allocation1], 49
      %851 = vst [vmem:[%s850] ss:$2 sm:$0xff] %v545
      %v852 = vld.sshfl [vmem:[#allocation1] sm:$0xff pattern:$0x75316420]
      %v853 = vld.sshfl [vmem:[#allocation1 + $0x10] sm:$0xff pattern:$0x75316420]
      %v854 = vld.sshfl [vmem:[#allocation1 + $0x20] sm:$0xff pattern:$0x75316420]
      %v855 = vld.sshfl [vmem:[#allocation1 + $0x30] sm:$0xff pattern:$0x75316420]
      %856 = vst [vmem:[#allocation1] ss:$2 sm:$0xff] %v508
      %857 = vst [vmem:[%s838] ss:$2 sm:$0xff] %v495
      %858 = vst [vmem:[%s840] ss:$2 sm:$0xff] %v546
      %859 = vst [vmem:[%s842] ss:$2 sm:$0xff] %v509
      %860 = vst [vmem:[%s844] ss:$2 sm:$0xff] %v496
      %861 = vst [vmem:[%s846] ss:$2 sm:$0xff] %v547
      %862 = vst [vmem:[%s848] ss:$2 sm:$0xff] %v510
      %863 = vst [vmem:[%s850] ss:$2 sm:$0xff] %v497
      %v864 = vld.sshfl [vmem:[#allocation1] sm:$0xff pattern:$0x75316420]
      %v865 = vld.sshfl [vmem:[#allocation1 + $0x10] sm:$0xff pattern:$0x75316420]
      %v866 = vld.sshfl [vmem:[#allocation1 + $0x20] sm:$0xff pattern:$0x75316420]
      %v867 = vld.sshfl [vmem:[#allocation1 + $0x30] sm:$0xff pattern:$0x75316420]
      %868 = vst [vmem:[#allocation1] ss:$2 sm:$0xff] %v548
      %869 = vst [vmem:[%s838] ss:$2 sm:$0xff] %v511
      %870 = vst [vmem:[%s840] ss:$2 sm:$0xff] %v498
      %871 = vst [vmem:[%s842] ss:$2 sm:$0xff] %v549
      %872 = vst [vmem:[%s844] ss:$2 sm:$0xff] %v512
      %873 = vst [vmem:[%s846] ss:$2 sm:$0xff] %v499
      %874 = vst [vmem:[%s848] ss:$2 sm:$0xff] %v550
      %875 = vst [vmem:[%s850] ss:$2 sm:$0xff] %v513
      %v876 = vld.sshfl [vmem:[#allocation1] sm:$0xff pattern:$0x75316420]
      %v877 = vld.sshfl [vmem:[#allocation1 + $0x10] sm:$0xff pattern:$0x75316420]
      %v878 = vld.sshfl [vmem:[#allocation1 + $0x20] sm:$0xff pattern:$0x75316420]
      %v879 = vld.sshfl [vmem:[#allocation1 + $0x30] sm:$0xff pattern:$0x75316420]
      %880 = vst [vmem:[#allocation1] ss:$2 sm:$0xff] %v500
      %881 = vst [vmem:[%s838] ss:$2 sm:$0xff] %v551
      %882 = vst [vmem:[%s840] ss:$2 sm:$0xff] %v514
      %883 = vst [vmem:[%s842] ss:$2 sm:$0xff] %v501
      %884 = vst [vmem:[%s844] ss:$2 sm:$0xff] %v552
      %885 = vst [vmem:[%s846] ss:$2 sm:$0xff] %v515
      %886 = vst [vmem:[%s848] ss:$2 sm:$0xff] %v502
      %887 = vst [vmem:[%s850] ss:$2 sm:$0xff] %v553
      %v888 = vld.sshfl [vmem:[#allocation1] sm:$0xff pattern:$0x75316420]
      %v889 = vld.sshfl [vmem:[#allocation1 + $0x10] sm:$0xff pattern:$0x75316420]
      %v890 = vld.sshfl [vmem:[#allocation1 + $0x20] sm:$0xff pattern:$0x75316420]
      %v891 = vld.sshfl [vmem:[#allocation1 + $0x30] sm:$0xff pattern:$0x75316420]
      %892 = vst [vmem:[#allocation1] ss:$2 sm:$0xff] %v516
      %893 = vst [vmem:[%s838] ss:$2 sm:$0xff] %v503
      %894 = vst [vmem:[%s840] ss:$2 sm:$0xff] %v554
      %895 = vst [vmem:[%s842] ss:$2 sm:$0xff] %v517
      %v896 = vld.sshfl [vmem:[#allocation1] sm:$0xff pattern:$0x75316420]
      %v897 = vld.sshfl [vmem:[#allocation1 + $0x10] sm:$0xff pattern:$0x75316420]
      %916 = vst [vmem:[#allocation1] ss:$2 sm:$0xff] %v573
      %s917 = scalar_lea.vmem [#allocation1], 1
      %918 = vst [vmem:[%s917] ss:$2 sm:$0xff] %v576
      %s919 = scalar_lea.vmem [#allocation1], 16
      %920 = vst [vmem:[%s919] ss:$2 sm:$0xff] %v579
      %s921 = scalar_lea.vmem [#allocation1], 17
      %922 = vst [vmem:[%s921] ss:$2 sm:$0xff] %v583
      %s923 = scalar_lea.vmem [#allocation1], 32
      %924 = vst [vmem:[%s923] ss:$2 sm:$0xff] %v586
      %s925 = scalar_lea.vmem [#allocation1], 33
      %926 = vst [vmem:[%s925] ss:$2 sm:$0xff] %v589
      %s927 = scalar_lea.vmem [#allocation1], 48
      %928 = vst [vmem:[%s927] ss:$2 sm:$0xff] %v593
      %s929 = scalar_lea.vmem [#allocation1], 49
      %930 = vst [vmem:[%s929] ss:$2 sm:$0xff] %v596
      %v931 = vld.sshfl [vmem:[#allocation1] sm:$0xff pattern:$0x75316420]
      %v932 = vld.sshfl [vmem:[#allocation1 + $0x10] sm:$0xff pattern:$0x75316420]
      %v933 = vld.sshfl [vmem:[#allocation1 + $0x20] sm:$0xff pattern:$0x75316420]
      %v934 = vld.sshfl [vmem:[#allocation1 + $0x30] sm:$0xff pattern:$0x75316420]
      %935 = vst [vmem:[#allocation1] ss:$2 sm:$0xff] %v599
      %936 = vst [vmem:[%s917] ss:$2 sm:$0xff] %v603
      %937 = vst [vmem:[%s919] ss:$2 sm:$0xff] %v606
      %938 = vst [vmem:[%s921] ss:$2 sm:$0xff] %v609
      %939 = vst [vmem:[%s923] ss:$2 sm:$0xff] %v613
      %940 = vst [vmem:[%s925] ss:$2 sm:$0xff] %v616
      %941 = vst [vmem:[%s927] ss:$2 sm:$0xff] %v619
      %942 = vst [vmem:[%s929] ss:$2 sm:$0xff] %v623
      %v943 = vld.sshfl [vmem:[#allocation1] sm:$0xff pattern:$0x75316420]
      %v944 = vld.sshfl [vmem:[#allocation1 + $0x10] sm:$0xff pattern:$0x75316420]
      %v945 = vld.sshfl [vmem:[#allocation1 + $0x20] sm:$0xff pattern:$0x75316420]
      %v946 = vld.sshfl [vmem:[#allocation1 + $0x30] sm:$0xff pattern:$0x75316420]
      %947 = vst [vmem:[#allocation1] ss:$2 sm:$0xff] %v626
      %948 = vst [vmem:[%s917] ss:$2 sm:$0xff] %v629
      %949 = vst [vmem:[%s919] ss:$2 sm:$0xff] %v633
      %950 = vst [vmem:[%s921] ss:$2 sm:$0xff] %v636
      %951 = vst [vmem:[%s923] ss:$2 sm:$0xff] %v639
      %952 = vst [vmem:[%s925] ss:$2 sm:$0xff] %v643
      %953 = vst [vmem:[%s927] ss:$2 sm:$0xff] %v646
      %954 = vst [vmem:[%s929] ss:$2 sm:$0xff] %v649
      %v955 = vld.sshfl [vmem:[#allocation1] sm:$0xff pattern:$0x75316420]
      %v956 = vld.sshfl [vmem:[#allocation1 + $0x10] sm:$0xff pattern:$0x75316420]
      %v957 = vld.sshfl [vmem:[#allocation1 + $0x20] sm:$0xff pattern:$0x75316420]
      %v958 = vld.sshfl [vmem:[#allocation1 + $0x30] sm:$0xff pattern:$0x75316420]
      %959 = vst [vmem:[#allocation1] ss:$2 sm:$0xff] %v653
      %960 = vst [vmem:[%s917] ss:$2 sm:$0xff] %v656
      %961 = vst [vmem:[%s919] ss:$2 sm:$0xff] %v659
      %962 = vst [vmem:[%s921] ss:$2 sm:$0xff] %v663
      %963 = vst [vmem:[%s923] ss:$2 sm:$0xff] %v666
      %964 = vst [vmem:[%s925] ss:$2 sm:$0xff] %v669
      %965 = vst [vmem:[%s927] ss:$2 sm:$0xff] %v673
      %966 = vst [vmem:[%s929] ss:$2 sm:$0xff] %v676
      %v967 = vld.sshfl [vmem:[#allocation1] sm:$0xff pattern:$0x75316420]
      %v968 = vld.sshfl [vmem:[#allocation1 + $0x10] sm:$0xff pattern:$0x75316420]
      %v969 = vld.sshfl [vmem:[#allocation1 + $0x20] sm:$0xff pattern:$0x75316420]
      %v970 = vld.sshfl [vmem:[#allocation1 + $0x30] sm:$0xff pattern:$0x75316420]
      %971 = vst [vmem:[#allocation1] ss:$2 sm:$0xff] %v679
      %972 = vst [vmem:[%s917] ss:$2 sm:$0xff] %v683
      %973 = vst [vmem:[%s919] ss:$2 sm:$0xff] %v686
      %974 = vst [vmem:[%s921] ss:$2 sm:$0xff] %v689
      %v975 = vld.sshfl [vmem:[#allocation1] sm:$0xff pattern:$0x75316420]
      %v976 = vld.sshfl [vmem:[#allocation1 + $0x10] sm:$0xff pattern:$0x75316420]
      %977 = vrot.lane.b32.xlu0 %v931, 1
      %v978 = vpop.permute.xlu0 %977
      %979 = vrot.lane.b32.xlu0 %v932, 1
      %v980 = vpop.permute.xlu0 %979
      %981 = vrot.lane.b32.xlu0 %v933, 1
      %v982 = vpop.permute.xlu0 %981
      %983 = vrot.lane.b32.xlu0 %v934, 1
      %v984 = vpop.permute.xlu0 %983
      %985 = vrot.lane.b32.xlu0 %v943, 1
      %v986 = vpop.permute.xlu0 %985
      %987 = vrot.lane.b32.xlu0 %v944, 1
      %v988 = vpop.permute.xlu0 %987
      %989 = vrot.lane.b32.xlu0 %v945, 1
      %v990 = vpop.permute.xlu0 %989
      %991 = vrot.lane.b32.xlu0 %v946, 1
      %v992 = vpop.permute.xlu0 %991
      %993 = vrot.lane.b32.xlu0 %v955, 1
      %v994 = vpop.permute.xlu0 %993
      %995 = vrot.lane.b32.xlu0 %v956, 1
      %v996 = vpop.permute.xlu0 %995
      %997 = vrot.lane.b32.xlu0 %v957, 1
      %v998 = vpop.permute.xlu0 %997
      %999 = vrot.lane.b32.xlu0 %v958, 1
      %v1000 = vpop.permute.xlu0 %999
      %1001 = vrot.lane.b32.xlu0 %v967, 1
      %v1002 = vpop.permute.xlu0 %1001
      %1003 = vrot.lane.b32.xlu0 %v968, 1
      %v1004 = vpop.permute.xlu0 %1003
      %1005 = vrot.lane.b32.xlu0 %v969, 1
      %v1006 = vpop.permute.xlu0 %1005
      %1007 = vrot.lane.b32.xlu0 %v970, 1
      %v1008 = vpop.permute.xlu0 %1007
      %1009 = vrot.lane.b32.xlu0 %v975, 1
      %v1010 = vpop.permute.xlu0 %1009
      %1011 = vrot.lane.b32.xlu0 %v976, 1
      %v1012 = vpop.permute.xlu0 %1011
      %1031 = vst [vmem:[#allocation1] ss:$2 sm:$0xff] %v696
      %s1032 = scalar_lea.vmem [#allocation1], 1
      %1033 = vst [vmem:[%s1032] ss:$2 sm:$0xff] %v699
      %s1034 = scalar_lea.vmem [#allocation1], 16
      %1035 = vst [vmem:[%s1034] ss:$2 sm:$0xff] %v702
      %s1036 = scalar_lea.vmem [#allocation1], 17
      %1037 = vst [vmem:[%s1036] ss:$2 sm:$0xff] %v706
      %s1038 = scalar_lea.vmem [#allocation1], 32
      %1039 = vst [vmem:[%s1038] ss:$2 sm:$0xff] %v709
      %s1040 = scalar_lea.vmem [#allocation1], 33
      %1041 = vst [vmem:[%s1040] ss:$2 sm:$0xff] %v712
      %s1042 = scalar_lea.vmem [#allocation1], 48
      %1043 = vst [vmem:[%s1042] ss:$2 sm:$0xff] %v716
      %s1044 = scalar_lea.vmem [#allocation1], 49
      %1045 = vst [vmem:[%s1044] ss:$2 sm:$0xff] %v719
      %v1046 = vld.sshfl [vmem:[#allocation1] sm:$0xff pattern:$0x75316420]
      %v1047 = vld.sshfl [vmem:[#allocation1 + $0x10] sm:$0xff pattern:$0x75316420]
      %v1048 = vld.sshfl [vmem:[#allocation1 + $0x20] sm:$0xff pattern:$0x75316420]
      %v1049 = vld.sshfl [vmem:[#allocation1 + $0x30] sm:$0xff pattern:$0x75316420]
      %1050 = vst [vmem:[#allocation1] ss:$2 sm:$0xff] %v722
      %1051 = vst [vmem:[%s1032] ss:$2 sm:$0xff] %v726
      %1052 = vst [vmem:[%s1034] ss:$2 sm:$0xff] %v729
      %1053 = vst [vmem:[%s1036] ss:$2 sm:$0xff] %v732
      %1054 = vst [vmem:[%s1038] ss:$2 sm:$0xff] %v736
      %1055 = vst [vmem:[%s1040] ss:$2 sm:$0xff] %v739
      %1056 = vst [vmem:[%s1042] ss:$2 sm:$0xff] %v742
      %1057 = vst [vmem:[%s1044] ss:$2 sm:$0xff] %v746
      %v1058 = vld.sshfl [vmem:[#allocation1] sm:$0xff pattern:$0x75316420]
      %v1059 = vld.sshfl [vmem:[#allocation1 + $0x10] sm:$0xff pattern:$0x75316420]
      %v1060 = vld.sshfl [vmem:[#allocation1 + $0x20] sm:$0xff pattern:$0x75316420]
      %v1061 = vld.sshfl [vmem:[#allocation1 + $0x30] sm:$0xff pattern:$0x75316420]
      %1062 = vst [vmem:[#allocation1] ss:$2 sm:$0xff] %v749
      %1063 = vst [vmem:[%s1032] ss:$2 sm:$0xff] %v752
      %1064 = vst [vmem:[%s1034] ss:$2 sm:$0xff] %v756
      %1065 = vst [vmem:[%s1036] ss:$2 sm:$0xff] %v759
      %1066 = vst [vmem:[%s1038] ss:$2 sm:$0xff] %v762
      %1067 = vst [vmem:[%s1040] ss:$2 sm:$0xff] %v766
      %1068 = vst [vmem:[%s1042] ss:$2 sm:$0xff] %v769
      %1069 = vst [vmem:[%s1044] ss:$2 sm:$0xff] %v772
      %v1070 = vld.sshfl [vmem:[#allocation1] sm:$0xff pattern:$0x75316420]
      %v1071 = vld.sshfl [vmem:[#allocation1 + $0x10] sm:$0xff pattern:$0x75316420]
      %v1072 = vld.sshfl [vmem:[#allocation1 + $0x20] sm:$0xff pattern:$0x75316420]
      %v1073 = vld.sshfl [vmem:[#allocation1 + $0x30] sm:$0xff pattern:$0x75316420]
      %1074 = vst [vmem:[#allocation1] ss:$2 sm:$0xff] %v776
      %1075 = vst [vmem:[%s1032] ss:$2 sm:$0xff] %v779
      %1076 = vst [vmem:[%s1034] ss:$2 sm:$0xff] %v782
      %1077 = vst [vmem:[%s1036] ss:$2 sm:$0xff] %v786
      %1078 = vst [vmem:[%s1038] ss:$2 sm:$0xff] %v789
      %1079 = vst [vmem:[%s1040] ss:$2 sm:$0xff] %v792
      %1080 = vst [vmem:[%s1042] ss:$2 sm:$0xff] %v796
      %1081 = vst [vmem:[%s1044] ss:$2 sm:$0xff] %v799
      %v1082 = vld.sshfl [vmem:[#allocation1] sm:$0xff pattern:$0x75316420]
      %v1083 = vld.sshfl [vmem:[#allocation1 + $0x10] sm:$0xff pattern:$0x75316420]
      %v1084 = vld.sshfl [vmem:[#allocation1 + $0x20] sm:$0xff pattern:$0x75316420]
      %v1085 = vld.sshfl [vmem:[#allocation1 + $0x30] sm:$0xff pattern:$0x75316420]
      %1086 = vst [vmem:[#allocation1] ss:$2 sm:$0xff] %v802
      %1087 = vst [vmem:[%s1032] ss:$2 sm:$0xff] %v806
      %1088 = vst [vmem:[%s1034] ss:$2 sm:$0xff] %v809
      %1089 = vst [vmem:[%s1036] ss:$2 sm:$0xff] %v812
      %v1090 = vld.sshfl [vmem:[#allocation1] sm:$0xff pattern:$0x75316420]
      %v1091 = vld.sshfl [vmem:[#allocation1 + $0x10] sm:$0xff pattern:$0x75316420]
      %1092 = vrot.lane.b32.xlu0 %v1046, 2
      %v1093 = vpop.permute.xlu0 %1092
      %1094 = vrot.lane.b32.xlu0 %v1047, 2
      %v1095 = vpop.permute.xlu0 %1094
      %1096 = vrot.lane.b32.xlu0 %v1048, 2
      %v1097 = vpop.permute.xlu0 %1096
      %1098 = vrot.lane.b32.xlu0 %v1049, 2
      %v1099 = vpop.permute.xlu0 %1098
      %1100 = vrot.lane.b32.xlu0 %v1058, 2
      %v1101 = vpop.permute.xlu0 %1100
      %1102 = vrot.lane.b32.xlu0 %v1059, 2
      %v1103 = vpop.permute.xlu0 %1102
      %1104 = vrot.lane.b32.xlu0 %v1060, 2
      %v1105 = vpop.permute.xlu0 %1104
      %1106 = vrot.lane.b32.xlu0 %v1061, 2
      %v1107 = vpop.permute.xlu0 %1106
      %1108 = vrot.lane.b32.xlu0 %v1070, 2
      %v1109 = vpop.permute.xlu0 %1108
      %1110 = vrot.lane.b32.xlu0 %v1071, 2
      %v1111 = vpop.permute.xlu0 %1110
      %1112 = vrot.lane.b32.xlu0 %v1072, 2
      %v1113 = vpop.permute.xlu0 %1112
      %1114 = vrot.lane.b32.xlu0 %v1073, 2
      %v1115 = vpop.permute.xlu0 %1114
      %1116 = vrot.lane.b32.xlu0 %v1082, 2
      %v1117 = vpop.permute.xlu0 %1116
      %1118 = vrot.lane.b32.xlu0 %v1083, 2
      %v1119 = vpop.permute.xlu0 %1118
      %1120 = vrot.lane.b32.xlu0 %v1084, 2
      %v1121 = vpop.permute.xlu0 %1120
      %1122 = vrot.lane.b32.xlu0 %v1085, 2
      %v1123 = vpop.permute.xlu0 %1122
      %1124 = vrot.lane.b32.xlu0 %v1090, 2
      %v1125 = vpop.permute.xlu0 %1124
      %1126 = vrot.lane.b32.xlu0 %v1091, 2
      %v1127 = vpop.permute.xlu0 %1126
      %1146 = vst [vmem:[#allocation1] ss:$2 sm:$0xff] %v493
      %s1147 = scalar_lea.vmem [#allocation1], 1
      %1148 = vst [vmem:[%s1147] ss:$2 sm:$0xff] %v544
      %s1149 = scalar_lea.vmem [#allocation1], 16
      %1150 = vst [vmem:[%s1149] ss:$2 sm:$0xff] %v507
      %s1151 = scalar_lea.vmem [#allocation1], 17
      %1152 = vst [vmem:[%s1151] ss:$2 sm:$0xff] %v494
      %s1153 = scalar_lea.vmem [#allocation1], 32
      %1154 = vst [vmem:[%s1153] ss:$2 sm:$0xff] %v545
      %s1155 = scalar_lea.vmem [#allocation1], 33
      %1156 = vst [vmem:[%s1155] ss:$2 sm:$0xff] %v508
      %s1157 = scalar_lea.vmem [#allocation1], 48
      %1158 = vst [vmem:[%s1157] ss:$2 sm:$0xff] %v495
      %s1159 = scalar_lea.vmem [#allocation1], 49
      %1160 = vst [vmem:[%s1159] ss:$2 sm:$0xff] %v546
      %v1161 = vld.sshfl [vmem:[#allocation1] sm:$0xff pattern:$0x75316420]
      %v1162 = vld.sshfl [vmem:[#allocation1 + $0x10] sm:$0xff pattern:$0x75316420]
      %v1163 = vld.sshfl [vmem:[#allocation1 + $0x20] sm:$0xff pattern:$0x75316420]
      %v1164 = vld.sshfl [vmem:[#allocation1 + $0x30] sm:$0xff pattern:$0x75316420]
      %1165 = vst [vmem:[#allocation1] ss:$2 sm:$0xff] %v509
      %1166 = vst [vmem:[%s1147] ss:$2 sm:$0xff] %v496
      %1167 = vst [vmem:[%s1149] ss:$2 sm:$0xff] %v547
      %1168 = vst [vmem:[%s1151] ss:$2 sm:$0xff] %v510
      %1169 = vst [vmem:[%s1153] ss:$2 sm:$0xff] %v497
      %1170 = vst [vmem:[%s1155] ss:$2 sm:$0xff] %v548
      %1171 = vst [vmem:[%s1157] ss:$2 sm:$0xff] %v511
      %1172 = vst [vmem:[%s1159] ss:$2 sm:$0xff] %v498
      %v1173 = vld.sshfl [vmem:[#allocation1] sm:$0xff pattern:$0x75316420]
      %v1174 = vld.sshfl [vmem:[#allocation1 + $0x10] sm:$0xff pattern:$0x75316420]
      %v1175 = vld.sshfl [vmem:[#allocation1 + $0x20] sm:$0xff pattern:$0x75316420]
      %v1176 = vld.sshfl [vmem:[#allocation1 + $0x30] sm:$0xff pattern:$0x75316420]
      %1177 = vst [vmem:[#allocation1] ss:$2 sm:$0xff] %v549
      %1178 = vst [vmem:[%s1147] ss:$2 sm:$0xff] %v512
      %1179 = vst [vmem:[%s1149] ss:$2 sm:$0xff] %v499
      %1180 = vst [vmem:[%s1151] ss:$2 sm:$0xff] %v550
      %1181 = vst [vmem:[%s1153] ss:$2 sm:$0xff] %v513
      %1182 = vst [vmem:[%s1155] ss:$2 sm:$0xff] %v500
      %1183 = vst [vmem:[%s1157] ss:$2 sm:$0xff] %v551
      %1184 = vst [vmem:[%s1159] ss:$2 sm:$0xff] %v514
      %v1185 = vld.sshfl [vmem:[#allocation1] sm:$0xff pattern:$0x75316420]
      %v1186 = vld.sshfl [vmem:[#allocation1 + $0x10] sm:$0xff pattern:$0x75316420]
      %v1187 = vld.sshfl [vmem:[#allocation1 + $0x20] sm:$0xff pattern:$0x75316420]
      %v1188 = vld.sshfl [vmem:[#allocation1 + $0x30] sm:$0xff pattern:$0x75316420]
      %1189 = vst [vmem:[#allocation1] ss:$2 sm:$0xff] %v501
      %1190 = vst [vmem:[%s1147] ss:$2 sm:$0xff] %v552
      %1191 = vst [vmem:[%s1149] ss:$2 sm:$0xff] %v515
      %1192 = vst [vmem:[%s1151] ss:$2 sm:$0xff] %v502
      %1193 = vst [vmem:[%s1153] ss:$2 sm:$0xff] %v553
      %1194 = vst [vmem:[%s1155] ss:$2 sm:$0xff] %v516
      %1195 = vst [vmem:[%s1157] ss:$2 sm:$0xff] %v503
      %1196 = vst [vmem:[%s1159] ss:$2 sm:$0xff] %v554
      %v1197 = vld.sshfl [vmem:[#allocation1] sm:$0xff pattern:$0x75316420]
      %v1198 = vld.sshfl [vmem:[#allocation1 + $0x10] sm:$0xff pattern:$0x75316420]
      %v1199 = vld.sshfl [vmem:[#allocation1 + $0x20] sm:$0xff pattern:$0x75316420]
      %v1200 = vld.sshfl [vmem:[#allocation1 + $0x30] sm:$0xff pattern:$0x75316420]
      %1201 = vst [vmem:[#allocation1] ss:$2 sm:$0xff] %v517
      %1202 = vst [vmem:[%s1147] ss:$2 sm:$0xff] %v504
      %1203 = vst [vmem:[%s1149] ss:$2 sm:$0xff] %v815
      %1204 = vst [vmem:[%s1151] ss:$2 sm:$0xff] %v518
      %v1205 = vld.sshfl [vmem:[#allocation1] sm:$0xff pattern:$0x75316420]
      %v1206 = vld.sshfl [vmem:[#allocation1 + $0x10] sm:$0xff pattern:$0x75316420]
      %1207 = vrot.lane.b32.xlu0 %v1161, 3
      %v1208 = vpop.permute.xlu0 %1207
      %1209 = vrot.lane.b32.xlu0 %v1162, 3
      %v1210 = vpop.permute.xlu0 %1209
      %1211 = vrot.lane.b32.xlu0 %v1163, 3
      %v1212 = vpop.permute.xlu0 %1211
      %1213 = vrot.lane.b32.xlu0 %v1164, 3
      %v1214 = vpop.permute.xlu0 %1213
      %1215 = vrot.lane.b32.xlu0 %v1173, 3
      %v1216 = vpop.permute.xlu0 %1215
      %1217 = vrot.lane.b32.xlu0 %v1174, 3
      %v1218 = vpop.permute.xlu0 %1217
      %1219 = vrot.lane.b32.xlu0 %v1175, 3
      %v1220 = vpop.permute.xlu0 %1219
      %1221 = vrot.lane.b32.xlu0 %v1176, 3
      %v1222 = vpop.permute.xlu0 %1221
      %1223 = vrot.lane.b32.xlu0 %v1185, 3
      %v1224 = vpop.permute.xlu0 %1223
      %1225 = vrot.lane.b32.xlu0 %v1186, 3
      %v1226 = vpop.permute.xlu0 %1225
      %1227 = vrot.lane.b32.xlu0 %v1187, 3
      %v1228 = vpop.permute.xlu0 %1227
      %1229 = vrot.lane.b32.xlu0 %v1188, 3
      %v1230 = vpop.permute.xlu0 %1229
      %1231 = vrot.lane.b32.xlu0 %v1197, 3
      %v1232 = vpop.permute.xlu0 %1231
      %1233 = vrot.lane.b32.xlu0 %v1198, 3
      %v1234 = vpop.permute.xlu0 %1233
      %1235 = vrot.lane.b32.xlu0 %v1199, 3
      %v1236 = vpop.permute.xlu0 %1235
      %1237 = vrot.lane.b32.xlu0 %v1200, 3
      %v1238 = vpop.permute.xlu0 %1237
      %1239 = vrot.lane.b32.xlu0 %v1205, 3
      %v1240 = vpop.permute.xlu0 %1239
      %1241 = vrot.lane.b32.xlu0 %v1206, 3
      %v1242 = vpop.permute.xlu0 %1241
      %1261 = vst [vmem:[#allocation1] ss:$2 sm:$0xff] %v583
      %s1262 = scalar_lea.vmem [#allocation1], 1
      %1263 = vst [vmem:[%s1262] ss:$2 sm:$0xff] %v586
      %s1264 = scalar_lea.vmem [#allocation1], 16
      %1265 = vst [vmem:[%s1264] ss:$2 sm:$0xff] %v589
      %s1266 = scalar_lea.vmem [#allocation1], 17
      %1267 = vst [vmem:[%s1266] ss:$2 sm:$0xff] %v593
      %s1268 = scalar_lea.vmem [#allocation1], 32
      %1269 = vst [vmem:[%s1268] ss:$2 sm:$0xff] %v596
      %s1270 = scalar_lea.vmem [#allocation1], 33
      %1271 = vst [vmem:[%s1270] ss:$2 sm:$0xff] %v599
      %s1272 = scalar_lea.vmem [#allocation1], 48
      %1273 = vst [vmem:[%s1272] ss:$2 sm:$0xff] %v603
      %s1274 = scalar_lea.vmem [#allocation1], 49
      %1275 = vst [vmem:[%s1274] ss:$2 sm:$0xff] %v606
      %v1276 = vld.sshfl [vmem:[#allocation1] sm:$0xff pattern:$0x75316420]
      %v1277 = vld.sshfl [vmem:[#allocation1 + $0x10] sm:$0xff pattern:$0x75316420]
      %v1278 = vld.sshfl [vmem:[#allocation1 + $0x20] sm:$0xff pattern:$0x75316420]
      %v1279 = vld.sshfl [vmem:[#allocation1 + $0x30] sm:$0xff pattern:$0x75316420]
      %1280 = vst [vmem:[#allocation1] ss:$2 sm:$0xff] %v609
      %1281 = vst [vmem:[%s1262] ss:$2 sm:$0xff] %v613
      %1282 = vst [vmem:[%s1264] ss:$2 sm:$0xff] %v616
      %1283 = vst [vmem:[%s1266] ss:$2 sm:$0xff] %v619
      %1284 = vst [vmem:[%s1268] ss:$2 sm:$0xff] %v623
      %1285 = vst [vmem:[%s1270] ss:$2 sm:$0xff] %v626
      %1286 = vst [vmem:[%s1272] ss:$2 sm:$0xff] %v629
      %1287 = vst [vmem:[%s1274] ss:$2 sm:$0xff] %v633
      %v1288 = vld.sshfl [vmem:[#allocation1] sm:$0xff pattern:$0x75316420]
      %v1289 = vld.sshfl [vmem:[#allocation1 + $0x10] sm:$0xff pattern:$0x75316420]
      %v1290 = vld.sshfl [vmem:[#allocation1 + $0x20] sm:$0xff pattern:$0x75316420]
      %v1291 = vld.sshfl [vmem:[#allocation1 + $0x30] sm:$0xff pattern:$0x75316420]
      %1292 = vst [vmem:[#allocation1] ss:$2 sm:$0xff] %v636
      %1293 = vst [vmem:[%s1262] ss:$2 sm:$0xff] %v639
      %1294 = vst [vmem:[%s1264] ss:$2 sm:$0xff] %v643
      %1295 = vst [vmem:[%s1266] ss:$2 sm:$0xff] %v646
      %1296 = vst [vmem:[%s1268] ss:$2 sm:$0xff] %v649
      %1297 = vst [vmem:[%s1270] ss:$2 sm:$0xff] %v653
      %1298 = vst [vmem:[%s1272] ss:$2 sm:$0xff] %v656
      %1299 = vst [vmem:[%s1274] ss:$2 sm:$0xff] %v659
      %v1300 = vld.sshfl [vmem:[#allocation1] sm:$0xff pattern:$0x75316420]
      %v1301 = vld.sshfl [vmem:[#allocation1 + $0x10] sm:$0xff pattern:$0x75316420]
      %v1302 = vld.sshfl [vmem:[#allocation1 + $0x20] sm:$0xff pattern:$0x75316420]
      %v1303 = vld.sshfl [vmem:[#allocation1 + $0x30] sm:$0xff pattern:$0x75316420]
      %1304 = vst [vmem:[#allocation1] ss:$2 sm:$0xff] %v663
      %1305 = vst [vmem:[%s1262] ss:$2 sm:$0xff] %v666
      %1306 = vst [vmem:[%s1264] ss:$2 sm:$0xff] %v669
      %1307 = vst [vmem:[%s1266] ss:$2 sm:$0xff] %v673
      %1308 = vst [vmem:[%s1268] ss:$2 sm:$0xff] %v676
      %1309 = vst [vmem:[%s1270] ss:$2 sm:$0xff] %v679
      %1310 = vst [vmem:[%s1272] ss:$2 sm:$0xff] %v683
      %1311 = vst [vmem:[%s1274] ss:$2 sm:$0xff] %v686
      %v1312 = vld.sshfl [vmem:[#allocation1] sm:$0xff pattern:$0x75316420]
      %v1313 = vld.sshfl [vmem:[#allocation1 + $0x10] sm:$0xff pattern:$0x75316420]
      %v1314 = vld.sshfl [vmem:[#allocation1 + $0x20] sm:$0xff pattern:$0x75316420]
      %v1315 = vld.sshfl [vmem:[#allocation1 + $0x30] sm:$0xff pattern:$0x75316420]
      %1316 = vst [vmem:[#allocation1] ss:$2 sm:$0xff] %v689
      %1317 = vst [vmem:[%s1262] ss:$2 sm:$0xff] %v820
      %1318 = vst [vmem:[%s1264] ss:$2 sm:$0xff] %v823
      %1319 = vst [vmem:[%s1266] ss:$2 sm:$0xff] %v826
      %v1320 = vld.sshfl [vmem:[#allocation1] sm:$0xff pattern:$0x75316420]
      %v1321 = vld.sshfl [vmem:[#allocation1 + $0x10] sm:$0xff pattern:$0x75316420]
      %1322 = vrot.lane.b32.xlu0 %v1276, 4
      %v1323 = vpop.permute.xlu0 %1322
      %1324 = vrot.lane.b32.xlu0 %v1277, 4
      %v1325 = vpop.permute.xlu0 %1324
      %1326 = vrot.lane.b32.xlu0 %v1278, 4
      %v1327 = vpop.permute.xlu0 %1326
      %1328 = vrot.lane.b32.xlu0 %v1279, 4
      %v1329 = vpop.permute.xlu0 %1328
      %1330 = vrot.lane.b32.xlu0 %v1288, 4
      %v1331 = vpop.permute.xlu0 %1330
      %1332 = vrot.lane.b32.xlu0 %v1289, 4
      %v1333 = vpop.permute.xlu0 %1332
      %1334 = vrot.lane.b32.xlu0 %v1290, 4
      %v1335 = vpop.permute.xlu0 %1334
      %1336 = vrot.lane.b32.xlu0 %v1291, 4
      %v1337 = vpop.permute.xlu0 %1336
      %1338 = vrot.lane.b32.xlu0 %v1300, 4
      %v1339 = vpop.permute.xlu0 %1338
      %1340 = vrot.lane.b32.xlu0 %v1301, 4
      %v1341 = vpop.permute.xlu0 %1340
      %1342 = vrot.lane.b32.xlu0 %v1302, 4
      %v1343 = vpop.permute.xlu0 %1342
      %1344 = vrot.lane.b32.xlu0 %v1303, 4
      %v1345 = vpop.permute.xlu0 %1344
      %1346 = vrot.lane.b32.xlu0 %v1312, 4
      %v1347 = vpop.permute.xlu0 %1346
      %1348 = vrot.lane.b32.xlu0 %v1313, 4
      %v1349 = vpop.permute.xlu0 %1348
      %1350 = vrot.lane.b32.xlu0 %v1314, 4
      %v1351 = vpop.permute.xlu0 %1350
      %1352 = vrot.lane.b32.xlu0 %v1315, 4
      %v1353 = vpop.permute.xlu0 %1352
      %1354 = vrot.lane.b32.xlu0 %v1320, 4
      %v1355 = vpop.permute.xlu0 %1354
      %1356 = vrot.lane.b32.xlu0 %v1321, 4
      %v1357 = vpop.permute.xlu0 %1356
      %1376 = vst [vmem:[#allocation1] ss:$2 sm:$0xff] %v706
      %s1377 = scalar_lea.vmem [#allocation1], 1
      %1378 = vst [vmem:[%s1377] ss:$2 sm:$0xff] %v709
      %s1379 = scalar_lea.vmem [#allocation1], 16
      %1380 = vst [vmem:[%s1379] ss:$2 sm:$0xff] %v712
      %s1381 = scalar_lea.vmem [#allocation1], 17
      %1382 = vst [vmem:[%s1381] ss:$2 sm:$0xff] %v716
      %s1383 = scalar_lea.vmem [#allocation1], 32
      %1384 = vst [vmem:[%s1383] ss:$2 sm:$0xff] %v719
      %s1385 = scalar_lea.vmem [#allocation1], 33
      %1386 = vst [vmem:[%s1385] ss:$2 sm:$0xff] %v722
      %s1387 = scalar_lea.vmem [#allocation1], 48
      %1388 = vst [vmem:[%s1387] ss:$2 sm:$0xff] %v726
      %s1389 = scalar_lea.vmem [#allocation1], 49
      %1390 = vst [vmem:[%s1389] ss:$2 sm:$0xff] %v729
      %v1391 = vld.sshfl [vmem:[#allocation1] sm:$0xff pattern:$0x75316420]
      %v1392 = vld.sshfl [vmem:[#allocation1 + $0x10] sm:$0xff pattern:$0x75316420]
      %v1393 = vld.sshfl [vmem:[#allocation1 + $0x20] sm:$0xff pattern:$0x75316420]
      %v1394 = vld.sshfl [vmem:[#allocation1 + $0x30] sm:$0xff pattern:$0x75316420]
      %1395 = vst [vmem:[#allocation1] ss:$2 sm:$0xff] %v732
      %1396 = vst [vmem:[%s1377] ss:$2 sm:$0xff] %v736
      %1397 = vst [vmem:[%s1379] ss:$2 sm:$0xff] %v739
      %1398 = vst [vmem:[%s1381] ss:$2 sm:$0xff] %v742
      %1399 = vst [vmem:[%s1383] ss:$2 sm:$0xff] %v746
      %1400 = vst [vmem:[%s1385] ss:$2 sm:$0xff] %v749
      %1401 = vst [vmem:[%s1387] ss:$2 sm:$0xff] %v752
      %1402 = vst [vmem:[%s1389] ss:$2 sm:$0xff] %v756
      %v1403 = vld.sshfl [vmem:[#allocation1] sm:$0xff pattern:$0x75316420]
      %v1404 = vld.sshfl [vmem:[#allocation1 + $0x10] sm:$0xff pattern:$0x75316420]
      %v1405 = vld.sshfl [vmem:[#allocation1 + $0x20] sm:$0xff pattern:$0x75316420]
      %v1406 = vld.sshfl [vmem:[#allocation1 + $0x30] sm:$0xff pattern:$0x75316420]
      %1407 = vst [vmem:[#allocation1] ss:$2 sm:$0xff] %v759
      %1408 = vst [vmem:[%s1377] ss:$2 sm:$0xff] %v762
      %1409 = vst [vmem:[%s1379] ss:$2 sm:$0xff] %v766
      %1410 = vst [vmem:[%s1381] ss:$2 sm:$0xff] %v769
      %1411 = vst [vmem:[%s1383] ss:$2 sm:$0xff] %v772
      %1412 = vst [vmem:[%s1385] ss:$2 sm:$0xff] %v776
      %1413 = vst [vmem:[%s1387] ss:$2 sm:$0xff] %v779
      %1414 = vst [vmem:[%s1389] ss:$2 sm:$0xff] %v782
      %v1415 = vld.sshfl [vmem:[#allocation1] sm:$0xff pattern:$0x75316420]
      %v1416 = vld.sshfl [vmem:[#allocation1 + $0x10] sm:$0xff pattern:$0x75316420]
      %v1417 = vld.sshfl [vmem:[#allocation1 + $0x20] sm:$0xff pattern:$0x75316420]
      %v1418 = vld.sshfl [vmem:[#allocation1 + $0x30] sm:$0xff pattern:$0x75316420]
      %1419 = vst [vmem:[#allocation1] ss:$2 sm:$0xff] %v786
      %1420 = vst [vmem:[%s1377] ss:$2 sm:$0xff] %v789
      %1421 = vst [vmem:[%s1379] ss:$2 sm:$0xff] %v792
      %1422 = vst [vmem:[%s1381] ss:$2 sm:$0xff] %v796
      %1423 = vst [vmem:[%s1383] ss:$2 sm:$0xff] %v799
      %1424 = vst [vmem:[%s1385] ss:$2 sm:$0xff] %v802
      %1425 = vst [vmem:[%s1387] ss:$2 sm:$0xff] %v806
      %1426 = vst [vmem:[%s1389] ss:$2 sm:$0xff] %v809
      %v1427 = vld.sshfl [vmem:[#allocation1] sm:$0xff pattern:$0x75316420]
      %v1428 = vld.sshfl [vmem:[#allocation1 + $0x10] sm:$0xff pattern:$0x75316420]
      %v1429 = vld.sshfl [vmem:[#allocation1 + $0x20] sm:$0xff pattern:$0x75316420]
      %v1430 = vld.sshfl [vmem:[#allocation1 + $0x30] sm:$0xff pattern:$0x75316420]
      %1431 = vst [vmem:[#allocation1] ss:$2 sm:$0xff] %v812
      %1432 = vst [vmem:[%s1377] ss:$2 sm:$0xff] %v830
      %1433 = vst [vmem:[%s1379] ss:$2 sm:$0xff] %v833
      %1434 = vst [vmem:[%s1381] ss:$2 sm:$0xff] %v836
      %v1435 = vld.sshfl [vmem:[#allocation1] sm:$0xff pattern:$0x75316420]
      %v1436 = vld.sshfl [vmem:[#allocation1 + $0x10] sm:$0xff pattern:$0x75316420]
      %1437 = vrot.lane.b32.xlu0 %v1391, 5
      %v1438 = vpop.permute.xlu0 %1437
      %1439 = vrot.lane.b32.xlu0 %v1392, 5
      %v1440 = vpop.permute.xlu0 %1439
      %1441 = vrot.lane.b32.xlu0 %v1393, 5
      %v1442 = vpop.permute.xlu0 %1441
      %1443 = vrot.lane.b32.xlu0 %v1394, 5
      %v1444 = vpop.permute.xlu0 %1443
      %1445 = vrot.lane.b32.xlu0 %v1403, 5
      %v1446 = vpop.permute.xlu0 %1445
      %1447 = vrot.lane.b32.xlu0 %v1404, 5
      %v1448 = vpop.permute.xlu0 %1447
      %1449 = vrot.lane.b32.xlu0 %v1405, 5
      %v1450 = vpop.permute.xlu0 %1449
      %1451 = vrot.lane.b32.xlu0 %v1406, 5
      %v1452 = vpop.permute.xlu0 %1451
      %1453 = vrot.lane.b32.xlu0 %v1415, 5
      %v1454 = vpop.permute.xlu0 %1453
      %1455 = vrot.lane.b32.xlu0 %v1416, 5
      %v1456 = vpop.permute.xlu0 %1455
      %1457 = vrot.lane.b32.xlu0 %v1417, 5
      %v1458 = vpop.permute.xlu0 %1457
      %1459 = vrot.lane.b32.xlu0 %v1418, 5
      %v1460 = vpop.permute.xlu0 %1459
      %1461 = vrot.lane.b32.xlu0 %v1427, 5
      %v1462 = vpop.permute.xlu0 %1461
      %1463 = vrot.lane.b32.xlu0 %v1428, 5
      %v1464 = vpop.permute.xlu0 %1463
      %1465 = vrot.lane.b32.xlu0 %v1429, 5
      %v1466 = vpop.permute.xlu0 %1465
      %1467 = vrot.lane.b32.xlu0 %v1430, 5
      %v1468 = vpop.permute.xlu0 %1467
      %1469 = vrot.lane.b32.xlu0 %v1435, 5
      %v1470 = vpop.permute.xlu0 %1469
      %1471 = vrot.lane.b32.xlu0 %v1436, 5
      %v1472 = vpop.permute.xlu0 %1471
      %1491 = vst [vmem:[#allocation1] ss:$2 sm:$0xff] %v494
      %s1492 = scalar_lea.vmem [#allocation1], 1
      %1493 = vst [vmem:[%s1492] ss:$2 sm:$0xff] %v545
      %s1494 = scalar_lea.vmem [#allocation1], 16
      %1495 = vst [vmem:[%s1494] ss:$2 sm:$0xff] %v508
      %s1496 = scalar_lea.vmem [#allocation1], 17
      %1497 = vst [vmem:[%s1496] ss:$2 sm:$0xff] %v495
      %s1498 = scalar_lea.vmem [#allocation1], 32
      %1499 = vst [vmem:[%s1498] ss:$2 sm:$0xff] %v546
      %s1500 = scalar_lea.vmem [#allocation1], 33
      %1501 = vst [vmem:[%s1500] ss:$2 sm:$0xff] %v509
      %s1502 = scalar_lea.vmem [#allocation1], 48
      %1503 = vst [vmem:[%s1502] ss:$2 sm:$0xff] %v496
      %s1504 = scalar_lea.vmem [#allocation1], 49
      %1505 = vst [vmem:[%s1504] ss:$2 sm:$0xff] %v547
      %v1506 = vld.sshfl [vmem:[#allocation1] sm:$0xff pattern:$0x75316420]
      %v1507 = vld.sshfl [vmem:[#allocation1 + $0x10] sm:$0xff pattern:$0x75316420]
      %v1508 = vld.sshfl [vmem:[#allocation1 + $0x20] sm:$0xff pattern:$0x75316420]
      %v1509 = vld.sshfl [vmem:[#allocation1 + $0x30] sm:$0xff pattern:$0x75316420]
      %1510 = vst [vmem:[#allocation1] ss:$2 sm:$0xff] %v510
      %1511 = vst [vmem:[%s1492] ss:$2 sm:$0xff] %v497
      %1512 = vst [vmem:[%s1494] ss:$2 sm:$0xff] %v548
      %1513 = vst [vmem:[%s1496] ss:$2 sm:$0xff] %v511
      %1514 = vst [vmem:[%s1498] ss:$2 sm:$0xff] %v498
      %1515 = vst [vmem:[%s1500] ss:$2 sm:$0xff] %v549
      %1516 = vst [vmem:[%s1502] ss:$2 sm:$0xff] %v512
      %1517 = vst [vmem:[%s1504] ss:$2 sm:$0xff] %v499
      %v1518 = vld.sshfl [vmem:[#allocation1] sm:$0xff pattern:$0x75316420]
      %v1519 = vld.sshfl [vmem:[#allocation1 + $0x10] sm:$0xff pattern:$0x75316420]
      %v1520 = vld.sshfl [vmem:[#allocation1 + $0x20] sm:$0xff pattern:$0x75316420]
      %v1521 = vld.sshfl [vmem:[#allocation1 + $0x30] sm:$0xff pattern:$0x75316420]
      %1522 = vst [vmem:[#allocation1] ss:$2 sm:$0xff] %v550
      %1523 = vst [vmem:[%s1492] ss:$2 sm:$0xff] %v513
      %1524 = vst [vmem:[%s1494] ss:$2 sm:$0xff] %v500
      %1525 = vst [vmem:[%s1496] ss:$2 sm:$0xff] %v551
      %1526 = vst [vmem:[%s1498] ss:$2 sm:$0xff] %v514
      %1527 = vst [vmem:[%s1500] ss:$2 sm:$0xff] %v501
      %1528 = vst [vmem:[%s1502] ss:$2 sm:$0xff] %v552
      %1529 = vst [vmem:[%s1504] ss:$2 sm:$0xff] %v515
      %v1530 = vld.sshfl [vmem:[#allocation1] sm:$0xff pattern:$0x75316420]
      %v1531 = vld.sshfl [vmem:[#allocation1 + $0x10] sm:$0xff pattern:$0x75316420]
      %v1532 = vld.sshfl [vmem:[#allocation1 + $0x20] sm:$0xff pattern:$0x75316420]
      %v1533 = vld.sshfl [vmem:[#allocation1 + $0x30] sm:$0xff pattern:$0x75316420]
      %1534 = vst [vmem:[#allocation1] ss:$2 sm:$0xff] %v502
      %1535 = vst [vmem:[%s1492] ss:$2 sm:$0xff] %v553
      %1536 = vst [vmem:[%s1494] ss:$2 sm:$0xff] %v516
      %1537 = vst [vmem:[%s1496] ss:$2 sm:$0xff] %v503
      %1538 = vst [vmem:[%s1498] ss:$2 sm:$0xff] %v554
      %1539 = vst [vmem:[%s1500] ss:$2 sm:$0xff] %v517
      %1540 = vst [vmem:[%s1502] ss:$2 sm:$0xff] %v504
      %1541 = vst [vmem:[%s1504] ss:$2 sm:$0xff] %v815
      %v1542 = vld.sshfl [vmem:[#allocation1] sm:$0xff pattern:$0x75316420]
      %v1543 = vld.sshfl [vmem:[#allocation1 + $0x10] sm:$0xff pattern:$0x75316420]
      %v1544 = vld.sshfl [vmem:[#allocation1 + $0x20] sm:$0xff pattern:$0x75316420]
      %v1545 = vld.sshfl [vmem:[#allocation1 + $0x30] sm:$0xff pattern:$0x75316420]
      %1546 = vst [vmem:[#allocation1] ss:$2 sm:$0xff] %v518
      %1547 = vst [vmem:[%s1492] ss:$2 sm:$0xff] %v492
      %1548 = vst [vmem:[%s1494] ss:$2 sm:$0xff] %v543
      %1549 = vst [vmem:[%s1496] ss:$2 sm:$0xff] %v506
      %v1550 = vld.sshfl [vmem:[#allocation1] sm:$0xff pattern:$0x75316420]
      %v1551 = vld.sshfl [vmem:[#allocation1 + $0x10] sm:$0xff pattern:$0x75316420]
      %1552 = vrot.lane.b32.xlu0 %v1506, 6
      %v1553 = vpop.permute.xlu0 %1552
      %1554 = vrot.lane.b32.xlu0 %v1507, 6
      %v1555 = vpop.permute.xlu0 %1554
      %1556 = vrot.lane.b32.xlu0 %v1508, 6
      %v1557 = vpop.permute.xlu0 %1556
      %1558 = vrot.lane.b32.xlu0 %v1509, 6
      %v1559 = vpop.permute.xlu0 %1558
      %1560 = vrot.lane.b32.xlu0 %v1518, 6
      %v1561 = vpop.permute.xlu0 %1560
      %1562 = vrot.lane.b32.xlu0 %v1519, 6
      %v1563 = vpop.permute.xlu0 %1562
      %1564 = vrot.lane.b32.xlu0 %v1520, 6
      %v1565 = vpop.permute.xlu0 %1564
      %1566 = vrot.lane.b32.xlu0 %v1521, 6
      %v1567 = vpop.permute.xlu0 %1566
      %1568 = vrot.lane.b32.xlu0 %v1530, 6
      %v1569 = vpop.permute.xlu0 %1568
      %1570 = vrot.lane.b32.xlu0 %v1531, 6
      %v1571 = vpop.permute.xlu0 %1570
      %1572 = vrot.lane.b32.xlu0 %v1532, 6
      %v1573 = vpop.permute.xlu0 %1572
      %1574 = vrot.lane.b32.xlu0 %v1533, 6
      %v1575 = vpop.permute.xlu0 %1574
      %1576 = vrot.lane.b32.xlu0 %v1542, 6
      %v1577 = vpop.permute.xlu0 %1576
      %1578 = vrot.lane.b32.xlu0 %v1543, 6
      %v1579 = vpop.permute.xlu0 %1578
      %1580 = vrot.lane.b32.xlu0 %v1544, 6
      %v1581 = vpop.permute.xlu0 %1580
      %1582 = vrot.lane.b32.xlu0 %v1545, 6
      %v1583 = vpop.permute.xlu0 %1582
      %1584 = vrot.lane.b32.xlu0 %v1550, 6
      %v1585 = vpop.permute.xlu0 %1584
      %1586 = vrot.lane.b32.xlu0 %v1551, 6
      %v1587 = vpop.permute.xlu0 %1586
      %1606 = vst [vmem:[#allocation1] ss:$2 sm:$0xff] %v593
      %s1607 = scalar_lea.vmem [#allocation1], 1
      %1608 = vst [vmem:[%s1607] ss:$2 sm:$0xff] %v596
      %s1609 = scalar_lea.vmem [#allocation1], 16
      %1610 = vst [vmem:[%s1609] ss:$2 sm:$0xff] %v599
      %s1611 = scalar_lea.vmem [#allocation1], 17
      %1612 = vst [vmem:[%s1611] ss:$2 sm:$0xff] %v603
      %s1613 = scalar_lea.vmem [#allocation1], 32
      %1614 = vst [vmem:[%s1613] ss:$2 sm:$0xff] %v606
      %s1615 = scalar_lea.vmem [#allocation1], 33
      %1616 = vst [vmem:[%s1615] ss:$2 sm:$0xff] %v609
      %s1617 = scalar_lea.vmem [#allocation1], 48
      %1618 = vst [vmem:[%s1617] ss:$2 sm:$0xff] %v613
      %s1619 = scalar_lea.vmem [#allocation1], 49
      %1620 = vst [vmem:[%s1619] ss:$2 sm:$0xff] %v616
      %v1621 = vld.sshfl [vmem:[#allocation1] sm:$0xff pattern:$0x75316420]
      %v1622 = vld.sshfl [vmem:[#allocation1 + $0x10] sm:$0xff pattern:$0x75316420]
      %v1623 = vld.sshfl [vmem:[#allocation1 + $0x20] sm:$0xff pattern:$0x75316420]
      %v1624 = vld.sshfl [vmem:[#allocation1 + $0x30] sm:$0xff pattern:$0x75316420]
      %1625 = vst [vmem:[#allocation1] ss:$2 sm:$0xff] %v619
      %1626 = vst [vmem:[%s1607] ss:$2 sm:$0xff] %v623
      %1627 = vst [vmem:[%s1609] ss:$2 sm:$0xff] %v626
      %1628 = vst [vmem:[%s1611] ss:$2 sm:$0xff] %v629
      %1629 = vst [vmem:[%s1613] ss:$2 sm:$0xff] %v633
      %1630 = vst [vmem:[%s1615] ss:$2 sm:$0xff] %v636
      %1631 = vst [vmem:[%s1617] ss:$2 sm:$0xff] %v639
      %1632 = vst [vmem:[%s1619] ss:$2 sm:$0xff] %v643
      %v1633 = vld.sshfl [vmem:[#allocation1] sm:$0xff pattern:$0x75316420]
      %v1634 = vld.sshfl [vmem:[#allocation1 + $0x10] sm:$0xff pattern:$0x75316420]
      %v1635 = vld.sshfl [vmem:[#allocation1 + $0x20] sm:$0xff pattern:$0x75316420]
      %v1636 = vld.sshfl [vmem:[#allocation1 + $0x30] sm:$0xff pattern:$0x75316420]
      %1637 = vst [vmem:[#allocation1] ss:$2 sm:$0xff] %v646
      %1638 = vst [vmem:[%s1607] ss:$2 sm:$0xff] %v649
      %1639 = vst [vmem:[%s1609] ss:$2 sm:$0xff] %v653
      %1640 = vst [vmem:[%s1611] ss:$2 sm:$0xff] %v656
      %1641 = vst [vmem:[%s1613] ss:$2 sm:$0xff] %v659
      %1642 = vst [vmem:[%s1615] ss:$2 sm:$0xff] %v663
      %1643 = vst [vmem:[%s1617] ss:$2 sm:$0xff] %v666
      %1644 = vst [vmem:[%s1619] ss:$2 sm:$0xff] %v669
      %v1645 = vld.sshfl [vmem:[#allocation1] sm:$0xff pattern:$0x75316420]
      %v1646 = vld.sshfl [vmem:[#allocation1 + $0x10] sm:$0xff pattern:$0x75316420]
      %v1647 = vld.sshfl [vmem:[#allocation1 + $0x20] sm:$0xff pattern:$0x75316420]
      %v1648 = vld.sshfl [vmem:[#allocation1 + $0x30] sm:$0xff pattern:$0x75316420]
      %1649 = vst [vmem:[#allocation1] ss:$2 sm:$0xff] %v673
      %1650 = vst [vmem:[%s1607] ss:$2 sm:$0xff] %v676
      %1651 = vst [vmem:[%s1609] ss:$2 sm:$0xff] %v679
      %1652 = vst [vmem:[%s1611] ss:$2 sm:$0xff] %v683
      %1653 = vst [vmem:[%s1613] ss:$2 sm:$0xff] %v686
      %1654 = vst [vmem:[%s1615] ss:$2 sm:$0xff] %v689
      %1655 = vst [vmem:[%s1617] ss:$2 sm:$0xff] %v820
      %1656 = vst [vmem:[%s1619] ss:$2 sm:$0xff] %v823
      %v1657 = vld.sshfl [vmem:[#allocation1] sm:$0xff pattern:$0x75316420]
      %v1658 = vld.sshfl [vmem:[#allocation1 + $0x10] sm:$0xff pattern:$0x75316420]
      %v1659 = vld.sshfl [vmem:[#allocation1 + $0x20] sm:$0xff pattern:$0x75316420]
      %v1660 = vld.sshfl [vmem:[#allocation1 + $0x30] sm:$0xff pattern:$0x75316420]
      %1661 = vst [vmem:[#allocation1] ss:$2 sm:$0xff] %v826
      %1662 = vst [vmem:[%s1607] ss:$2 sm:$0xff] %v573
      %1663 = vst [vmem:[%s1609] ss:$2 sm:$0xff] %v576
      %1664 = vst [vmem:[%s1611] ss:$2 sm:$0xff] %v579
      %v1665 = vld.sshfl [vmem:[#allocation1] sm:$0xff pattern:$0x75316420]
      %v1666 = vld.sshfl [vmem:[#allocation1 + $0x10] sm:$0xff pattern:$0x75316420]
      %1667 = vrot.lane.b32.xlu0 %v1621, 7
      %v1668 = vpop.permute.xlu0 %1667
      %1669 = vrot.lane.b32.xlu0 %v1622, 7
      %v1670 = vpop.permute.xlu0 %1669
      %1671 = vrot.lane.b32.xlu0 %v1623, 7
      %v1672 = vpop.permute.xlu0 %1671
      %1673 = vrot.lane.b32.xlu0 %v1624, 7
      %v1674 = vpop.permute.xlu0 %1673
      %1675 = vrot.lane.b32.xlu0 %v1633, 7
      %v1676 = vpop.permute.xlu0 %1675
      %1677 = vrot.lane.b32.xlu0 %v1634, 7
      %v1678 = vpop.permute.xlu0 %1677
      %1679 = vrot.lane.b32.xlu0 %v1635, 7
      %v1680 = vpop.permute.xlu0 %1679
      %1681 = vrot.lane.b32.xlu0 %v1636, 7
      %v1682 = vpop.permute.xlu0 %1681
      %1683 = vrot.lane.b32.xlu0 %v1645, 7
      %v1684 = vpop.permute.xlu0 %1683
      %1685 = vrot.lane.b32.xlu0 %v1646, 7
      %v1686 = vpop.permute.xlu0 %1685
      %1687 = vrot.lane.b32.xlu0 %v1647, 7
      %v1688 = vpop.permute.xlu0 %1687
      %1689 = vrot.lane.b32.xlu0 %v1648, 7
      %v1690 = vpop.permute.xlu0 %1689
      %1691 = vrot.lane.b32.xlu0 %v1657, 7
      %v1692 = vpop.permute.xlu0 %1691
      %1693 = vrot.lane.b32.xlu0 %v1658, 7
      %v1694 = vpop.permute.xlu0 %1693
      %1695 = vrot.lane.b32.xlu0 %v1659, 7
      %v1696 = vpop.permute.xlu0 %1695
      %1697 = vrot.lane.b32.xlu0 %v1660, 7
      %v1698 = vpop.permute.xlu0 %1697
      %1699 = vrot.lane.b32.xlu0 %v1665, 7
      %v1700 = vpop.permute.xlu0 %1699
      %1701 = vrot.lane.b32.xlu0 %v1666, 7
      %v1702 = vpop.permute.xlu0 %1701
      %1721 = vst [vmem:[#allocation1] ss:$2 sm:$0xff] %v716
      %s1722 = scalar_lea.vmem [#allocation1], 1
      %1723 = vst [vmem:[%s1722] ss:$2 sm:$0xff] %v719
      %s1724 = scalar_lea.vmem [#allocation1], 16
      %1725 = vst [vmem:[%s1724] ss:$2 sm:$0xff] %v722
      %s1726 = scalar_lea.vmem [#allocation1], 17
      %1727 = vst [vmem:[%s1726] ss:$2 sm:$0xff] %v726
      %s1728 = scalar_lea.vmem [#allocation1], 32
      %1729 = vst [vmem:[%s1728] ss:$2 sm:$0xff] %v729
      %s1730 = scalar_lea.vmem [#allocation1], 33
      %1731 = vst [vmem:[%s1730] ss:$2 sm:$0xff] %v732
      %s1732 = scalar_lea.vmem [#allocation1], 48
      %1733 = vst [vmem:[%s1732] ss:$2 sm:$0xff] %v736
      %s1734 = scalar_lea.vmem [#allocation1], 49
      %1735 = vst [vmem:[%s1734] ss:$2 sm:$0xff] %v739
      %v1736 = vld.sshfl [vmem:[#allocation1] sm:$0xff pattern:$0x75316420]
      %v1737 = vld.sshfl [vmem:[#allocation1 + $0x10] sm:$0xff pattern:$0x75316420]
      %v1738 = vld.sshfl [vmem:[#allocation1 + $0x20] sm:$0xff pattern:$0x75316420]
      %v1739 = vld.sshfl [vmem:[#allocation1 + $0x30] sm:$0xff pattern:$0x75316420]
      %1740 = vst [vmem:[#allocation1] ss:$2 sm:$0xff] %v742
      %1741 = vst [vmem:[%s1722] ss:$2 sm:$0xff] %v746
      %1742 = vst [vmem:[%s1724] ss:$2 sm:$0xff] %v749
      %1743 = vst [vmem:[%s1726] ss:$2 sm:$0xff] %v752
      %1744 = vst [vmem:[%s1728] ss:$2 sm:$0xff] %v756
      %1745 = vst [vmem:[%s1730] ss:$2 sm:$0xff] %v759
      %1746 = vst [vmem:[%s1732] ss:$2 sm:$0xff] %v762
      %1747 = vst [vmem:[%s1734] ss:$2 sm:$0xff] %v766
      %v1748 = vld.sshfl [vmem:[#allocation1] sm:$0xff pattern:$0x75316420]
      %v1749 = vld.sshfl [vmem:[#allocation1 + $0x10] sm:$0xff pattern:$0x75316420]
      %v1750 = vld.sshfl [vmem:[#allocation1 + $0x20] sm:$0xff pattern:$0x75316420]
      %v1751 = vld.sshfl [vmem:[#allocation1 + $0x30] sm:$0xff pattern:$0x75316420]
      %1752 = vst [vmem:[#allocation1] ss:$2 sm:$0xff] %v769
      %1753 = vst [vmem:[%s1722] ss:$2 sm:$0xff] %v772
      %1754 = vst [vmem:[%s1724] ss:$2 sm:$0xff] %v776
      %1755 = vst [vmem:[%s1726] ss:$2 sm:$0xff] %v779
      %1756 = vst [vmem:[%s1728] ss:$2 sm:$0xff] %v782
      %1757 = vst [vmem:[%s1730] ss:$2 sm:$0xff] %v786
      %1758 = vst [vmem:[%s1732] ss:$2 sm:$0xff] %v789
      %1759 = vst [vmem:[%s1734] ss:$2 sm:$0xff] %v792
      %v1760 = vld.sshfl [vmem:[#allocation1] sm:$0xff pattern:$0x75316420]
      %v1761 = vld.sshfl [vmem:[#allocation1 + $0x10] sm:$0xff pattern:$0x75316420]
      %v1762 = vld.sshfl [vmem:[#allocation1 + $0x20] sm:$0xff pattern:$0x75316420]
      %v1763 = vld.sshfl [vmem:[#allocation1 + $0x30] sm:$0xff pattern:$0x75316420]
      %1764 = vst [vmem:[#allocation1] ss:$2 sm:$0xff] %v796
      %1765 = vst [vmem:[%s1722] ss:$2 sm:$0xff] %v799
      %1766 = vst [vmem:[%s1724] ss:$2 sm:$0xff] %v802
      %1767 = vst [vmem:[%s1726] ss:$2 sm:$0xff] %v806
      %1768 = vst [vmem:[%s1728] ss:$2 sm:$0xff] %v809
      %1769 = vst [vmem:[%s1730] ss:$2 sm:$0xff] %v812
      %1770 = vst [vmem:[%s1732] ss:$2 sm:$0xff] %v830
      %1771 = vst [vmem:[%s1734] ss:$2 sm:$0xff] %v833
      %v1772 = vld.sshfl [vmem:[#allocation1] sm:$0xff pattern:$0x75316420]
      %v1773 = vld.sshfl [vmem:[#allocation1 + $0x10] sm:$0xff pattern:$0x75316420]
      %v1774 = vld.sshfl [vmem:[#allocation1 + $0x20] sm:$0xff pattern:$0x75316420]
      %v1775 = vld.sshfl [vmem:[#allocation1 + $0x30] sm:$0xff pattern:$0x75316420]
      %1776 = vst [vmem:[#allocation1] ss:$2 sm:$0xff] %v836
      %1777 = vst [vmem:[%s1722] ss:$2 sm:$0xff] %v696
      %1778 = vst [vmem:[%s1724] ss:$2 sm:$0xff] %v699
      %1779 = vst [vmem:[%s1726] ss:$2 sm:$0xff] %v702
      %v1780 = vld.sshfl [vmem:[#allocation1] sm:$0xff pattern:$0x75316420]
      %v1781 = vld.sshfl [vmem:[#allocation1 + $0x10] sm:$0xff pattern:$0x75316420]
      %1782 = vrot.lane.b32.xlu0 %v1736, 8
      %v1783 = vpop.permute.xlu0 %1782
      %1784 = vrot.lane.b32.xlu0 %v1737, 8
      %v1785 = vpop.permute.xlu0 %1784
      %1786 = vrot.lane.b32.xlu0 %v1738, 8
      %v1787 = vpop.permute.xlu0 %1786
      %1788 = vrot.lane.b32.xlu0 %v1739, 8
      %v1789 = vpop.permute.xlu0 %1788
      %1790 = vrot.lane.b32.xlu0 %v1748, 8
      %v1791 = vpop.permute.xlu0 %1790
      %1792 = vrot.lane.b32.xlu0 %v1749, 8
      %v1793 = vpop.permute.xlu0 %1792
      %1794 = vrot.lane.b32.xlu0 %v1750, 8
      %v1795 = vpop.permute.xlu0 %1794
      %1796 = vrot.lane.b32.xlu0 %v1751, 8
      %v1797 = vpop.permute.xlu0 %1796
      %1798 = vrot.lane.b32.xlu0 %v1760, 8
      %v1799 = vpop.permute.xlu0 %1798
      %1800 = vrot.lane.b32.xlu0 %v1761, 8
      %v1801 = vpop.permute.xlu0 %1800
      %1802 = vrot.lane.b32.xlu0 %v1762, 8
      %v1803 = vpop.permute.xlu0 %1802
      %1804 = vrot.lane.b32.xlu0 %v1763, 8
      %v1805 = vpop.permute.xlu0 %1804
      %1806 = vrot.lane.b32.xlu0 %v1772, 8
      %v1807 = vpop.permute.xlu0 %1806
      %1808 = vrot.lane.b32.xlu0 %v1773, 8
      %v1809 = vpop.permute.xlu0 %1808
      %1810 = vrot.lane.b32.xlu0 %v1774, 8
      %v1811 = vpop.permute.xlu0 %1810
      %1812 = vrot.lane.b32.xlu0 %v1775, 8
      %v1813 = vpop.permute.xlu0 %1812
      %1814 = vrot.lane.b32.xlu0 %v1780, 8
      %v1815 = vpop.permute.xlu0 %1814
      %1816 = vrot.lane.b32.xlu0 %v1781, 8
      %v1817 = vpop.permute.xlu0 %1816
      %vm1836 = vcmask 7168
      %v1837 = vsel %vm1836, %v852, %v978
      %v1838 = vsel %vm1836, %v853, %v980
      %v1839 = vsel %vm1836, %v854, %v982
      %v1840 = vsel %vm1836, %v855, %v984
      %v1841 = vsel %vm1836, %v864, %v986
      %v1842 = vsel %vm1836, %v865, %v988
      %v1843 = vsel %vm1836, %v866, %v990
      %v1844 = vsel %vm1836, %v867, %v992
      %v1845 = vsel %vm1836, %v876, %v994
      %v1846 = vsel %vm1836, %v877, %v996
      %v1847 = vsel %vm1836, %v878, %v998
      %v1848 = vsel %vm1836, %v879, %v1000
      %v1849 = vsel %vm1836, %v888, %v1002
      %v1850 = vsel %vm1836, %v889, %v1004
      %v1851 = vsel %vm1836, %v890, %v1006
      %v1852 = vsel %vm1836, %v891, %v1008
      %v1853 = vsel %vm1836, %v896, %v1010
      %v1854 = vsel %vm1836, %v897, %v1012
      %vm1855 = vcmask 15360
      %v1856 = vsel %vm1855, %v1837, %v1093
      %v1857 = vsel %vm1855, %v1838, %v1095
      %v1858 = vsel %vm1855, %v1839, %v1097
      %v1859 = vsel %vm1855, %v1840, %v1099
      %v1860 = vsel %vm1855, %v1841, %v1101
      %v1861 = vsel %vm1855, %v1842, %v1103
      %v1862 = vsel %vm1855, %v1843, %v1105
      %v1863 = vsel %vm1855, %v1844, %v1107
      %v1864 = vsel %vm1855, %v1845, %v1109
      %v1865 = vsel %vm1855, %v1846, %v1111
      %v1866 = vsel %vm1855, %v1847, %v1113
      %v1867 = vsel %vm1855, %v1848, %v1115
      %v1868 = vsel %vm1855, %v1849, %v1117
      %v1869 = vsel %vm1855, %v1850, %v1119
      %v1870 = vsel %vm1855, %v1851, %v1121
      %v1871 = vsel %vm1855, %v1852, %v1123
      %v1872 = vsel %vm1855, %v1853, %v1125
      %v1873 = vsel %vm1855, %v1854, %v1127
      %vm1874 = vcmask 23552
      %v1875 = vsel %vm1874, %v1856, %v1208
      %v1876 = vsel %vm1874, %v1857, %v1210
      %v1877 = vsel %vm1874, %v1858, %v1212
      %v1878 = vsel %vm1874, %v1859, %v1214
      %v1879 = vsel %vm1874, %v1860, %v1216
      %v1880 = vsel %vm1874, %v1861, %v1218
      %v1881 = vsel %vm1874, %v1862, %v1220
      %v1882 = vsel %vm1874, %v1863, %v1222
      %v1883 = vsel %vm1874, %v1864, %v1224
      %v1884 = vsel %vm1874, %v1865, %v1226
      %v1885 = vsel %vm1874, %v1866, %v1228
      %v1886 = vsel %vm1874, %v1867, %v1230
      %v1887 = vsel %vm1874, %v1868, %v1232
      %v1888 = vsel %vm1874, %v1869, %v1234
      %v1889 = vsel %vm1874, %v1870, %v1236
      %v1890 = vsel %vm1874, %v1871, %v1238
      %v1891 = vsel %vm1874, %v1872, %v1240
      %v1892 = vsel %vm1874, %v1873, %v1242
      %vm1893 = vcmask 31744
      %v1894 = vsel %vm1893, %v1875, %v1323
      %v1895 = vsel %vm1893, %v1876, %v1325
      %v1896 = vsel %vm1893, %v1877, %v1327
      %v1897 = vsel %vm1893, %v1878, %v1329
      %v1898 = vsel %vm1893, %v1879, %v1331
      %v1899 = vsel %vm1893, %v1880, %v1333
      %v1900 = vsel %vm1893, %v1881, %v1335
      %v1901 = vsel %vm1893, %v1882, %v1337
      %v1902 = vsel %vm1893, %v1883, %v1339
      %v1903 = vsel %vm1893, %v1884, %v1341
      %v1904 = vsel %vm1893, %v1885, %v1343
      %v1905 = vsel %vm1893, %v1886, %v1345
      %v1906 = vsel %vm1893, %v1887, %v1347
      %v1907 = vsel %vm1893, %v1888, %v1349
      %v1908 = vsel %vm1893, %v1889, %v1351
      %v1909 = vsel %vm1893, %v1890, %v1353
      %v1910 = vsel %vm1893, %v1891, %v1355
      %v1911 = vsel %vm1893, %v1892, %v1357
      %vm1912 = vcmask 39936
      %v1913 = vsel %vm1912, %v1894, %v1438
      %v1914 = vsel %vm1912, %v1895, %v1440
      %v1915 = vsel %vm1912, %v1896, %v1442
      %v1916 = vsel %vm1912, %v1897, %v1444
      %v1917 = vsel %vm1912, %v1898, %v1446
      %v1918 = vsel %vm1912, %v1899, %v1448
      %v1919 = vsel %vm1912, %v1900, %v1450
      %v1920 = vsel %vm1912, %v1901, %v1452
      %v1921 = vsel %vm1912, %v1902, %v1454
      %v1922 = vsel %vm1912, %v1903, %v1456
      %v1923 = vsel %vm1912, %v1904, %v1458
      %v1924 = vsel %vm1912, %v1905, %v1460
      %v1925 = vsel %vm1912, %v1906, %v1462
      %v1926 = vsel %vm1912, %v1907, %v1464
      %v1927 = vsel %vm1912, %v1908, %v1466
      %v1928 = vsel %vm1912, %v1909, %v1468
      %v1929 = vsel %vm1912, %v1910, %v1470
      %v1930 = vsel %vm1912, %v1911, %v1472
      %vm1931 = vcmask 48128
      %v1932 = vsel %vm1931, %v1913, %v1553
      %v1933 = vsel %vm1931, %v1914, %v1555
      %v1934 = vsel %vm1931, %v1915, %v1557
      %v1935 = vsel %vm1931, %v1916, %v1559
      %v1936 = vsel %vm1931, %v1917, %v1561
      %v1937 = vsel %vm1931, %v1918, %v1563
      %v1938 = vsel %vm1931, %v1919, %v1565
      %v1939 = vsel %vm1931, %v1920, %v1567
      %v1940 = vsel %vm1931, %v1921, %v1569
      %v1941 = vsel %vm1931, %v1922, %v1571
      %v1942 = vsel %vm1931, %v1923, %v1573
      %v1943 = vsel %vm1931, %v1924, %v1575
      %v1944 = vsel %vm1931, %v1925, %v1577
      %v1945 = vsel %vm1931, %v1926, %v1579
      %v1946 = vsel %vm1931, %v1927, %v1581
      %v1947 = vsel %vm1931, %v1928, %v1583
      %v1948 = vsel %vm1931, %v1929, %v1585
      %v1949 = vsel %vm1931, %v1930, %v1587
      %vm1950 = vcmask 56320
      %v1951 = vsel %vm1950, %v1932, %v1668
      %v1952 = vsel %vm1950, %v1933, %v1670
      %v1953 = vsel %vm1950, %v1934, %v1672
      %v1954 = vsel %vm1950, %v1935, %v1674
      %v1955 = vsel %vm1950, %v1936, %v1676
      %v1956 = vsel %vm1950, %v1937, %v1678
      %v1957 = vsel %vm1950, %v1938, %v1680
      %v1958 = vsel %vm1950, %v1939, %v1682
      %v1959 = vsel %vm1950, %v1940, %v1684
      %v1960 = vsel %vm1950, %v1941, %v1686
      %v1961 = vsel %vm1950, %v1942, %v1688
      %v1962 = vsel %vm1950, %v1943, %v1690
      %v1963 = vsel %vm1950, %v1944, %v1692
      %v1964 = vsel %vm1950, %v1945, %v1694
      %v1965 = vsel %vm1950, %v1946, %v1696
      %v1966 = vsel %vm1950, %v1947, %v1698
      %v1967 = vsel %vm1950, %v1948, %v1700
      %v1968 = vsel %vm1950, %v1949, %v1702
      %vm1969 = vcmask 64512
      %v1970 = vsel %vm1969, %v1951, %v1783
      %v1971 = vsel %vm1969, %v1952, %v1785
      %v1972 = vsel %vm1969, %v1953, %v1787
      %v1973 = vsel %vm1969, %v1954, %v1789
      %v1974 = vsel %vm1969, %v1955, %v1791
      %v1975 = vsel %vm1969, %v1956, %v1793
      %v1976 = vsel %vm1969, %v1957, %v1795
      %v1977 = vsel %vm1969, %v1958, %v1797
      %v1978 = vsel %vm1969, %v1959, %v1799
      %v1979 = vsel %vm1969, %v1960, %v1801
      %v1980 = vsel %vm1969, %v1961, %v1803
      %v1981 = vsel %vm1969, %v1962, %v1805
      %v1982 = vsel %vm1969, %v1963, %v1807
      %v1983 = vsel %vm1969, %v1964, %v1809
      %v1984 = vsel %vm1969, %v1965, %v1811
      %v1985 = vsel %vm1969, %v1966, %v1813
      %v1986 = vsel %vm1969, %v1967, %v1815
      %v1987 = vsel %vm1969, %v1968, %v1817
      %vm1988 = vcmask 72704
      %v1990 = vsel %vm1988, %v1970, 0
      %v1993 = vsel %vm1988, %v1971, 0
      %v1996 = vsel %vm1988, %v1972, 0
      %v1999 = vsel %vm1988, %v1973, 0
      %v2002 = vsel %vm1988, %v1974, 0
      %v2005 = vsel %vm1988, %v1975, 0
      %v2008 = vsel %vm1988, %v1976, 0
      %v2011 = vsel %vm1988, %v1977, 0
      %v2014 = vsel %vm1988, %v1978, 0
      %v2017 = vsel %vm1988, %v1979, 0
      %v2020 = vsel %vm1988, %v1980, 0
      %v2023 = vsel %vm1988, %v1981, 0
      %v2026 = vsel %vm1988, %v1982, 0
      %v2029 = vsel %vm1988, %v1983, 0
      %v2032 = vsel %vm1988, %v1984, 0
      %v2035 = vsel %vm1988, %v1985, 0
      %v2038 = vsel %vm1988, %v1986, 0
      %v2041 = vsel %vm1988, %v1987, 0
      %v2044 = vsel %vm427, %v401, 0
      %2046 = vmatpush.msra.mxu0 0.0
      %2047 = vmatpush.msra.mxu0 0.0
      %2048 = vmatpush.msra.mxu0 0.0
      %2049 = vmatpush.msra.mxu0 0.0
      %2050 = vmatpush.msra.mxu0 0.0
      %2051 = vmatpush.msra.mxu0 0.0
      %2052 = vmatpush.msra.mxu0 0.0
      %2053 = vmatpush.msra.mxu0 0.0
      %2054 = vmatpush.msra.mxu0 0.0
      %2055 = vmatpush.msra.mxu0 0.0
      %2056 = vmatpush.msra.mxu0 0.0
      %2057 = vmatpush.msra.mxu0 0.0
      %2058 = vmatpush.msra.mxu0 0.0
      %2059 = vmatpush.msra.mxu0 0.0
      %2060 = vmatpush.msra.mxu0 %v2044
      %2061 = vmatpush.msra.mxu0 %v400
      %2062 = vmatmul.f32.gmra.mxu0 %v1990
      %v2063 = vpop.f32.mrf.mxu0
      %v2064 = vadd.f32 0.0, %v2063
      %2065 = vmatmul.f32.gmra.mxu0 %v1993
      %v2066 = vpop.f32.mrf.mxu0
      %v2067 = vadd.f32 0.0, %v2066
      %2068 = vmatmul.f32.gmra.mxu0 %v1996
      %v2069 = vpop.f32.mrf.mxu0
      %v2070 = vadd.f32 0.0, %v2069
      %2071 = vmatmul.f32.gmra.mxu0 %v1999
      %v2072 = vpop.f32.mrf.mxu0
      %v2073 = vadd.f32 0.0, %v2072
      %2074 = vmatmul.f32.gmra.mxu0 %v2002
      %v2075 = vpop.f32.mrf.mxu0
      %v2076 = vadd.f32 0.0, %v2075
      %2077 = vmatmul.f32.gmra.mxu0 %v2005
      %v2078 = vpop.f32.mrf.mxu0
      %v2079 = vadd.f32 0.0, %v2078
      %2080 = vmatmul.f32.gmra.mxu0 %v2008
      %v2081 = vpop.f32.mrf.mxu0
      %v2082 = vadd.f32 0.0, %v2081
      %2083 = vmatmul.f32.gmra.mxu0 %v2011
      %v2084 = vpop.f32.mrf.mxu0
      %v2085 = vadd.f32 0.0, %v2084
      %2086 = vmatmul.f32.gmra.mxu0 %v2014
      %v2087 = vpop.f32.mrf.mxu0
      %v2088 = vadd.f32 0.0, %v2087
      %2089 = vmatmul.f32.gmra.mxu0 %v2017
      %v2090 = vpop.f32.mrf.mxu0
      %v2091 = vadd.f32 0.0, %v2090
      %2092 = vmatmul.f32.gmra.mxu0 %v2020
      %v2093 = vpop.f32.mrf.mxu0
      %v2094 = vadd.f32 0.0, %v2093
      %2095 = vmatmul.f32.gmra.mxu0 %v2023
      %v2096 = vpop.f32.mrf.mxu0
      %v2097 = vadd.f32 0.0, %v2096
      %2098 = vmatmul.f32.gmra.mxu0 %v2026
      %v2099 = vpop.f32.mrf.mxu0
      %v2100 = vadd.f32 0.0, %v2099
      %2101 = vmatmul.f32.gmra.mxu0 %v2029
      %v2102 = vpop.f32.mrf.mxu0
      %v2103 = vadd.f32 0.0, %v2102
      %2104 = vmatmul.f32.gmra.mxu0 %v2032
      %v2105 = vpop.f32.mrf.mxu0
      %v2106 = vadd.f32 0.0, %v2105
      %2107 = vmatmul.f32.gmra.mxu0 %v2035
      %v2108 = vpop.f32.mrf.mxu0
      %v2109 = vadd.f32 0.0, %v2108
      %2110 = vmatmul.f32.gmra.mxu0 %v2038
      %v2111 = vpop.f32.mrf.mxu0
      %v2112 = vadd.f32 0.0, %v2111
      %2113 = vmatmul.f32.gmra.mxu0 %v2041
      %v2114 = vpop.f32.mrf.mxu0
      %v2115 = vadd.f32 0.0, %v2114
      %2116 = vdwg.mxu0
      %v2117 = vmax.f32 %v2064, 0.0
      %v2118 = vmax.f32 %v2067, 0.0
      %v2119 = vmax.f32 %v2070, 0.0
      %v2120 = vmax.f32 %v2073, 0.0
      %v2121 = vmax.f32 %v2076, 0.0
      %v2122 = vmax.f32 %v2079, 0.0
      %v2123 = vmax.f32 %v2082, 0.0
      %v2124 = vmax.f32 %v2085, 0.0
      %v2125 = vmax.f32 %v2088, 0.0
      %v2126 = vmax.f32 %v2091, 0.0
      %v2127 = vmax.f32 %v2094, 0.0
      %v2128 = vmax.f32 %v2097, 0.0
      %v2129 = vmax.f32 %v2100, 0.0
      %v2130 = vmax.f32 %v2103, 0.0
      %v2131 = vmax.f32 %v2106, 0.0
      %v2132 = vmax.f32 %v2109, 0.0
      %v2133 = vmax.f32 %v2112, 0.0
      %v2134 = vmax.f32 %v2115, 0.0
      %v2135 = vmul.f32 %v2117, 1.4142135
      %v2136 = vmul.f32 %v2118, 1.4142135
      %v2137 = vmul.f32 %v2119, 1.4142135
      %v2138 = vmul.f32 %v2120, 1.4142135
      %v2139 = vmul.f32 %v2121, 1.4142135
      %v2140 = vmul.f32 %v2122, 1.4142135
      %v2141 = vmul.f32 %v2123, 1.4142135
      %v2142 = vmul.f32 %v2124, 1.4142135
      %v2143 = vmul.f32 %v2125, 1.4142135
      %v2144 = vmul.f32 %v2126, 1.4142135
      %v2145 = vmul.f32 %v2127, 1.4142135
      %v2146 = vmul.f32 %v2128, 1.4142135
      %v2147 = vmul.f32 %v2129, 1.4142135
      %v2148 = vmul.f32 %v2130, 1.4142135
      %v2149 = vmul.f32 %v2131, 1.4142135
      %v2150 = vmul.f32 %v2132, 1.4142135
      %v2151 = vmul.f32 %v2133, 1.4142135
      %v2152 = vmul.f32 %v2134, 1.4142135
      %v2171 = vrot.slane %v2135, 4
      %v2172 = vrot.slane %v2136, 4
      %v2173 = vrot.slane %v2137, 4
      %v2174 = vrot.slane %v2138, 4
      %v2175 = vrot.slane %v2139, 4
      %v2176 = vrot.slane %v2140, 4
      %v2177 = vrot.slane %v2141, 4
      %v2178 = vrot.slane %v2142, 4
      %v2179 = vrot.slane %v2143, 4
      %v2180 = vrot.slane %v2144, 4
      %v2181 = vrot.slane %v2145, 4
      %v2182 = vrot.slane %v2146, 4
      %v2183 = vrot.slane %v2147, 4
      %v2184 = vrot.slane %v2148, 4
      %v2185 = vrot.slane %v2149, 4
      %v2186 = vrot.slane %v2150, 4
      %v2187 = vrot.slane %v2151, 4
      %v2188 = vrot.slane %v2152, 4
      %v2189 = vld [vmem:[%s3] sm:$0xff]
      %v2190 = vld [vmem:[%s3 + $0x8] sm:$0xff]
      %v2191 = vld [vmem:[%s3 + $0x10] sm:$0xff]
      %v2192 = vld [vmem:[%s3 + $0x18] sm:$0xff]
      %v2193 = vld [vmem:[%s3 + $0x20] sm:$0xff]
      %v2194 = vld [vmem:[%s3 + $0x28] sm:$0xff]
      %v2195 = vld [vmem:[%s3 + $0x30] sm:$0xff]
      %v2196 = vld [vmem:[%s3 + $0x38] sm:$0xff]
      %v2197 = vld [vmem:[%s3 + $0x40] sm:$0xff]
      %2198 = vst [vmem:[#allocation1] ss:$2 sm:$0xff] %v2135
      %s2199 = scalar_lea.vmem [#allocation1], 1
      %2200 = vst [vmem:[%s2199] ss:$2 sm:$0xff] %v2171
      %s2201 = scalar_lea.vmem [#allocation1], 16
      %2202 = vst [vmem:[%s2201] ss:$2 sm:$0xff] %v2136
      %v2203 = vld.sshfl [vmem:[#allocation1] sm:$0xff pattern:$0x75316420]
      %v2204 = vld.sshfl [vmem:[#allocation1 + $0x10] sm:$0xff pattern:$0x75316420]
      %s2205 = scalar_lea.vmem [#allocation1], 32
      %2206 = vst [vmem:[%s2205] ss:$2 sm:$0xff] %v2172
      %s2207 = scalar_lea.vmem [#allocation1], 33
      %2208 = vst [vmem:[%s2207] ss:$2 sm:$0xff] %v2137
      %s2209 = scalar_lea.vmem [#allocation1], 48
      %2210 = vst [vmem:[%s2209] ss:$2 sm:$0xff] %v2173
      %v2211 = vld.sshfl [vmem:[#allocation1 + $0x20] sm:$0xff pattern:$0x75316420]
      %v2212 = vld.sshfl [vmem:[#allocation1 + $0x30] sm:$0xff pattern:$0x75316420]
      %2213 = vst [vmem:[#allocation1] ss:$2 sm:$0xff] %v2138
      %2214 = vst [vmem:[%s2199] ss:$2 sm:$0xff] %v2174
      %2215 = vst [vmem:[%s2201] ss:$2 sm:$0xff] %v2139
      %v2216 = vld.sshfl [vmem:[#allocation1] sm:$0xff pattern:$0x75316420]
      %v2217 = vld.sshfl [vmem:[#allocation1 + $0x10] sm:$0xff pattern:$0x75316420]
      %2218 = vst [vmem:[%s2205] ss:$2 sm:$0xff] %v2175
      %2219 = vst [vmem:[%s2207] ss:$2 sm:$0xff] %v2140
      %2220 = vst [vmem:[%s2209] ss:$2 sm:$0xff] %v2176
      %v2221 = vld.sshfl [vmem:[#allocation1 + $0x20] sm:$0xff pattern:$0x75316420]
      %v2222 = vld.sshfl [vmem:[#allocation1 + $0x30] sm:$0xff pattern:$0x75316420]
      %2223 = vst [vmem:[#allocation1] ss:$2 sm:$0xff] %v2141
      %2224 = vst [vmem:[%s2199] ss:$2 sm:$0xff] %v2177
      %2225 = vst [vmem:[%s2201] ss:$2 sm:$0xff] %v2142
      %v2226 = vld.sshfl [vmem:[#allocation1] sm:$0xff pattern:$0x75316420]
      %v2227 = vld.sshfl [vmem:[#allocation1 + $0x10] sm:$0xff pattern:$0x75316420]
      %2228 = vst [vmem:[%s2205] ss:$2 sm:$0xff] %v2178
      %2229 = vst [vmem:[%s2207] ss:$2 sm:$0xff] %v2143
      %2230 = vst [vmem:[%s2209] ss:$2 sm:$0xff] %v2179
      %v2231 = vld.sshfl [vmem:[#allocation1 + $0x20] sm:$0xff pattern:$0x75316420]
      %v2232 = vld.sshfl [vmem:[#allocation1 + $0x30] sm:$0xff pattern:$0x75316420]
      %2233 = vst [vmem:[#allocation1] ss:$2 sm:$0xff] %v2144
      %2234 = vst [vmem:[%s2199] ss:$2 sm:$0xff] %v2180
      %2235 = vst [vmem:[%s2201] ss:$2 sm:$0xff] %v2145
      %v2236 = vld.sshfl [vmem:[#allocation1] sm:$0xff pattern:$0x75316420]
      %v2237 = vld.sshfl [vmem:[#allocation1 + $0x10] sm:$0xff pattern:$0x75316420]
      %2238 = vst [vmem:[%s2205] ss:$2 sm:$0xff] %v2181
      %2239 = vst [vmem:[%s2207] ss:$2 sm:$0xff] %v2146
      %2240 = vst [vmem:[%s2209] ss:$2 sm:$0xff] %v2182
      %v2241 = vld.sshfl [vmem:[#allocation1 + $0x20] sm:$0xff pattern:$0x75316420]
      %v2242 = vld.sshfl [vmem:[#allocation1 + $0x30] sm:$0xff pattern:$0x75316420]
      %2243 = vst [vmem:[#allocation1] ss:$2 sm:$0xff] %v2147
      %2244 = vst [vmem:[%s2199] ss:$2 sm:$0xff] %v2183
      %2245 = vst [vmem:[%s2201] ss:$2 sm:$0xff] %v2148
      %v2246 = vld.sshfl [vmem:[#allocation1] sm:$0xff pattern:$0x75316420]
      %v2247 = vld.sshfl [vmem:[#allocation1 + $0x10] sm:$0xff pattern:$0x75316420]
      %2248 = vst [vmem:[%s2205] ss:$2 sm:$0xff] %v2184
      %2249 = vst [vmem:[%s2207] ss:$2 sm:$0xff] %v2149
      %2250 = vst [vmem:[%s2209] ss:$2 sm:$0xff] %v2185
      %v2251 = vld.sshfl [vmem:[#allocation1 + $0x20] sm:$0xff pattern:$0x75316420]
      %v2252 = vld.sshfl [vmem:[#allocation1 + $0x30] sm:$0xff pattern:$0x75316420]
      %2253 = vst [vmem:[#allocation1] ss:$2 sm:$0xff] %v2150
      %2254 = vst [vmem:[%s2199] ss:$2 sm:$0xff] %v2186
      %2255 = vst [vmem:[%s2201] ss:$2 sm:$0xff] %v2151
      %v2256 = vld.sshfl [vmem:[#allocation1] sm:$0xff pattern:$0x75316420]
      %v2257 = vld.sshfl [vmem:[#allocation1 + $0x10] sm:$0xff pattern:$0x75316420]
      %2258 = vst [vmem:[%s2205] ss:$2 sm:$0xff] %v2187
      %2259 = vst [vmem:[%s2207] ss:$2 sm:$0xff] %v2152
      %2260 = vst [vmem:[%s2209] ss:$2 sm:$0xff] %v2188
      %v2261 = vld.sshfl [vmem:[#allocation1 + $0x20] sm:$0xff pattern:$0x75316420]
      %v2262 = vld.sshfl [vmem:[#allocation1 + $0x30] sm:$0xff pattern:$0x75316420]
      %v2263 = vrot.slane %v2203, 7
      %v2264 = vrot.slane %v2204, 7
      %v2265 = vsel %vm427, %v2263, %v2264
      %v2266 = vrot.slane %v2211, 7
      %v2267 = vrot.slane %v2212, 7
      %v2268 = vsel %vm427, %v2266, %v2267
      %v2269 = vrot.slane %v2216, 7
      %v2270 = vrot.slane %v2217, 7
      %v2271 = vsel %vm427, %v2269, %v2270
      %v2272 = vrot.slane %v2221, 7
      %v2273 = vrot.slane %v2222, 7
      %v2274 = vsel %vm427, %v2272, %v2273
      %v2275 = vrot.slane %v2226, 7
      %v2276 = vrot.slane %v2227, 7
      %v2277 = vsel %vm427, %v2275, %v2276
      %v2278 = vrot.slane %v2231, 7
      %v2279 = vrot.slane %v2232, 7
      %v2280 = vsel %vm427, %v2278, %v2279
      %v2281 = vrot.slane %v2236, 7
      %v2282 = vrot.slane %v2237, 7
      %v2283 = vsel %vm427, %v2281, %v2282
      %v2284 = vrot.slane %v2241, 7
      %v2285 = vrot.slane %v2242, 7
      %v2286 = vsel %vm427, %v2284, %v2285
      %v2287 = vrot.slane %v2246, 7
      %v2288 = vrot.slane %v2247, 7
      %v2289 = vsel %vm427, %v2287, %v2288
      %v2290 = vrot.slane %v2251, 7
      %v2291 = vrot.slane %v2252, 7
      %v2292 = vsel %vm427, %v2290, %v2291
      %v2293 = vrot.slane %v2256, 7
      %v2294 = vrot.slane %v2257, 7
      %v2295 = vsel %vm427, %v2293, %v2294
      %v2296 = vrot.slane %v2261, 7
      %v2297 = vrot.slane %v2262, 7
      %v2298 = vsel %vm427, %v2296, %v2297
      %v2323 = vsel %vm427, 0.0, %v2263
      %v2324 = vsel %vm427, 0.0, %v2266
      %v2325 = vsel %vm427, 0.0, %v2269
      %v2326 = vsel %vm427, 0.0, %v2272
      %v2327 = vsel %vm427, 0.0, %v2275
      %v2328 = vsel %vm427, 0.0, %v2278
      %v2329 = vsel %vm427, 0.0, %v2281
      %v2330 = vsel %vm427, 0.0, %v2284
      %v2331 = vsel %vm427, 0.0, %v2287
      %v2332 = vsel %vm427, 0.0, %v2290
      %v2333 = vsel %vm427, 0.0, %v2293
      %v2334 = vsel %vm427, 0.0, %v2296
      %v2335 = vsel %vm505, %v2265, 0.0
      %v2336 = vsel %vm505, %v2268, 0.0
      %v2337 = vsel %vm505, %v2271, 0.0
      %v2338 = vsel %vm505, %v2274, 0.0
      %v2339 = vsel %vm505, %v2277, 0.0
      %v2340 = vsel %vm505, %v2280, 0.0
      %v2341 = vsel %vm505, %v2283, 0.0
      %v2342 = vsel %vm505, %v2286, 0.0
      %v2343 = vsel %vm505, %v2289, 0.0
      %v2344 = vsel %vm505, %v2292, 0.0
      %v2345 = vsel %vm505, %v2295, 0.0
      %v2346 = vsel %vm505, %v2298, 0.0
      %v2369 = vrot.slane %v2323, 4
      %v2370 = vrot.slane %v2324, 4
      %v2371 = vrot.slane %v2325, 4
      %v2372 = vrot.slane %v2326, 4
      %v2373 = vrot.slane %v2327, 4
      %v2374 = vrot.slane %v2328, 4
      %v2375 = vrot.slane %v2329, 4
      %v2376 = vrot.slane %v2330, 4
      %v2377 = vrot.slane %v2331, 4
      %v2378 = vrot.slane %v2332, 4
      %v2379 = vrot.slane %v2333, 4
      %v2380 = vrot.slane %v2335, 4
      %v2381 = vrot.slane %v2336, 4
      %v2382 = vrot.slane %v2337, 4
      %v2383 = vrot.slane %v2338, 4
      %v2384 = vrot.slane %v2339, 4
      %v2385 = vrot.slane %v2340, 4
      %v2386 = vrot.slane %v2341, 4
      %v2387 = vrot.slane %v2342, 4
      %v2388 = vrot.slane %v2343, 4
      %v2389 = vrot.slane %v2344, 4
      %v2390 = vrot.slane %v2345, 4
      %v2391 = vrot.slane %v2323, 5
      %v2392 = vrot.slane %v2391, 4
      %v2393 = vrot.slane %v2369, 5
      %v2394 = vsel %vm569, %v2392, %v2393
      %v2395 = vrot.slane %v2393, 4
      %v2396 = vrot.slane %v2335, 5
      %v2397 = vsel %vm569, %v2395, %v2396
      %v2398 = vrot.slane %v2396, 4
      %v2399 = vrot.slane %v2380, 5
      %v2400 = vsel %vm569, %v2398, %v2399
      %v2401 = vrot.slane %v2324, 5
      %v2402 = vrot.slane %v2401, 4
      %v2403 = vrot.slane %v2370, 5
      %v2404 = vsel %vm569, %v2402, %v2403
      %v2405 = vrot.slane %v2403, 4
      %v2406 = vrot.slane %v2336, 5
      %v2407 = vsel %vm569, %v2405, %v2406
      %v2408 = vrot.slane %v2406, 4
      %v2409 = vrot.slane %v2381, 5
      %v2410 = vsel %vm569, %v2408, %v2409
      %v2411 = vrot.slane %v2325, 5
      %v2412 = vrot.slane %v2411, 4
      %v2413 = vrot.slane %v2371, 5
      %v2414 = vsel %vm569, %v2412, %v2413
      %v2415 = vrot.slane %v2413, 4
      %v2416 = vrot.slane %v2337, 5
      %v2417 = vsel %vm569, %v2415, %v2416
      %v2418 = vrot.slane %v2416, 4
      %v2419 = vrot.slane %v2382, 5
      %v2420 = vsel %vm569, %v2418, %v2419
      %v2421 = vrot.slane %v2326, 5
      %v2422 = vrot.slane %v2421, 4
      %v2423 = vrot.slane %v2372, 5
      %v2424 = vsel %vm569, %v2422, %v2423
      %v2425 = vrot.slane %v2423, 4
      %v2426 = vrot.slane %v2338, 5
      %v2427 = vsel %vm569, %v2425, %v2426
      %v2428 = vrot.slane %v2426, 4
      %v2429 = vrot.slane %v2383, 5
      %v2430 = vsel %vm569, %v2428, %v2429
      %v2431 = vrot.slane %v2327, 5
      %v2432 = vrot.slane %v2431, 4
      %v2433 = vrot.slane %v2373, 5
      %v2434 = vsel %vm569, %v2432, %v2433
      %v2435 = vrot.slane %v2433, 4
      %v2436 = vrot.slane %v2339, 5
      %v2437 = vsel %vm569, %v2435, %v2436
      %v2438 = vrot.slane %v2436, 4
      %v2439 = vrot.slane %v2384, 5
      %v2440 = vsel %vm569, %v2438, %v2439
      %v2441 = vrot.slane %v2328, 5
      %v2442 = vrot.slane %v2441, 4
      %v2443 = vrot.slane %v2374, 5
      %v2444 = vsel %vm569, %v2442, %v2443
      %v2445 = vrot.slane %v2443, 4
      %v2446 = vrot.slane %v2340, 5
      %v2447 = vsel %vm569, %v2445, %v2446
      %v2448 = vrot.slane %v2446, 4
      %v2449 = vrot.slane %v2385, 5
      %v2450 = vsel %vm569, %v2448, %v2449
      %v2451 = vrot.slane %v2329, 5
      %v2452 = vrot.slane %v2451, 4
      %v2453 = vrot.slane %v2375, 5
      %v2454 = vsel %vm569, %v2452, %v2453
      %v2455 = vrot.slane %v2453, 4
      %v2456 = vrot.slane %v2341, 5
      %v2457 = vsel %vm569, %v2455, %v2456
      %v2458 = vrot.slane %v2456, 4
      %v2459 = vrot.slane %v2386, 5
      %v2460 = vsel %vm569, %v2458, %v2459
      %v2461 = vrot.slane %v2330, 5
      %v2462 = vrot.slane %v2461, 4
      %v2463 = vrot.slane %v2376, 5
      %v2464 = vsel %vm569, %v2462, %v2463
      %v2465 = vrot.slane %v2463, 4
      %v2466 = vrot.slane %v2342, 5
      %v2467 = vsel %vm569, %v2465, %v2466
      %v2468 = vrot.slane %v2466, 4
      %v2469 = vrot.slane %v2387, 5
      %v2470 = vsel %vm569, %v2468, %v2469
      %v2471 = vrot.slane %v2331, 5
      %v2472 = vrot.slane %v2471, 4
      %v2473 = vrot.slane %v2377, 5
      %v2474 = vsel %vm569, %v2472, %v2473
      %v2475 = vrot.slane %v2473, 4
      %v2476 = vrot.slane %v2343, 5
      %v2477 = vsel %vm569, %v2475, %v2476
      %v2478 = vrot.slane %v2476, 4
      %v2479 = vrot.slane %v2388, 5
      %v2480 = vsel %vm569, %v2478, %v2479
      %v2481 = vrot.slane %v2332, 5
      %v2482 = vrot.slane %v2481, 4
      %v2483 = vrot.slane %v2378, 5
      %v2484 = vsel %vm569, %v2482, %v2483
      %v2485 = vrot.slane %v2483, 4
      %v2486 = vrot.slane %v2344, 5
      %v2487 = vsel %vm569, %v2485, %v2486
      %v2488 = vrot.slane %v2486, 4
      %v2489 = vrot.slane %v2389, 5
      %v2490 = vsel %vm569, %v2488, %v2489
      %v2491 = vrot.slane %v2333, 5
      %v2492 = vrot.slane %v2491, 4
      %v2493 = vrot.slane %v2379, 5
      %v2494 = vsel %vm569, %v2492, %v2493
      %v2495 = vrot.slane %v2493, 4
      %v2496 = vrot.slane %v2345, 5
      %v2497 = vsel %vm569, %v2495, %v2496
      %v2498 = vrot.slane %v2496, 4
      %v2499 = vrot.slane %v2390, 5
      %v2500 = vsel %vm569, %v2498, %v2499
      %v2501 = vrot.slane %v2323, 6
      %v2502 = vrot.slane %v2501, 4
      %v2503 = vrot.slane %v2369, 6
      %v2504 = vsel %vm692, %v2502, %v2503
      %v2505 = vrot.slane %v2503, 4
      %v2506 = vrot.slane %v2335, 6
      %v2507 = vsel %vm692, %v2505, %v2506
      %v2508 = vrot.slane %v2506, 4
      %v2509 = vrot.slane %v2380, 6
      %v2510 = vsel %vm692, %v2508, %v2509
      %v2511 = vrot.slane %v2324, 6
      %v2512 = vrot.slane %v2511, 4
      %v2513 = vrot.slane %v2370, 6
      %v2514 = vsel %vm692, %v2512, %v2513
      %v2515 = vrot.slane %v2513, 4
      %v2516 = vrot.slane %v2336, 6
      %v2517 = vsel %vm692, %v2515, %v2516
      %v2518 = vrot.slane %v2516, 4
      %v2519 = vrot.slane %v2381, 6
      %v2520 = vsel %vm692, %v2518, %v2519
      %v2521 = vrot.slane %v2325, 6
      %v2522 = vrot.slane %v2521, 4
      %v2523 = vrot.slane %v2371, 6
      %v2524 = vsel %vm692, %v2522, %v2523
      %v2525 = vrot.slane %v2523, 4
      %v2526 = vrot.slane %v2337, 6
      %v2527 = vsel %vm692, %v2525, %v2526
      %v2528 = vrot.slane %v2526, 4
      %v2529 = vrot.slane %v2382, 6
      %v2530 = vsel %vm692, %v2528, %v2529
      %v2531 = vrot.slane %v2326, 6
      %v2532 = vrot.slane %v2531, 4
      %v2533 = vrot.slane %v2372, 6
      %v2534 = vsel %vm692, %v2532, %v2533
      %v2535 = vrot.slane %v2533, 4
      %v2536 = vrot.slane %v2338, 6
      %v2537 = vsel %vm692, %v2535, %v2536
      %v2538 = vrot.slane %v2536, 4
      %v2539 = vrot.slane %v2383, 6
      %v2540 = vsel %vm692, %v2538, %v2539
      %v2541 = vrot.slane %v2327, 6
      %v2542 = vrot.slane %v2541, 4
      %v2543 = vrot.slane %v2373, 6
      %v2544 = vsel %vm692, %v2542, %v2543
      %v2545 = vrot.slane %v2543, 4
      %v2546 = vrot.slane %v2339, 6
      %v2547 = vsel %vm692, %v2545, %v2546
      %v2548 = vrot.slane %v2546, 4
      %v2549 = vrot.slane %v2384, 6
      %v2550 = vsel %vm692, %v2548, %v2549
      %v2551 = vrot.slane %v2328, 6
      %v2552 = vrot.slane %v2551, 4
      %v2553 = vrot.slane %v2374, 6
      %v2554 = vsel %vm692, %v2552, %v2553
      %v2555 = vrot.slane %v2553, 4
      %v2556 = vrot.slane %v2340, 6
      %v2557 = vsel %vm692, %v2555, %v2556
      %v2558 = vrot.slane %v2556, 4
      %v2559 = vrot.slane %v2385, 6
      %v2560 = vsel %vm692, %v2558, %v2559
      %v2561 = vrot.slane %v2329, 6
      %v2562 = vrot.slane %v2561, 4
      %v2563 = vrot.slane %v2375, 6
      %v2564 = vsel %vm692, %v2562, %v2563
      %v2565 = vrot.slane %v2563, 4
      %v2566 = vrot.slane %v2341, 6
      %v2567 = vsel %vm692, %v2565, %v2566
      %v2568 = vrot.slane %v2566, 4
      %v2569 = vrot.slane %v2386, 6
      %v2570 = vsel %vm692, %v2568, %v2569
      %v2571 = vrot.slane %v2330, 6
      %v2572 = vrot.slane %v2571, 4
      %v2573 = vrot.slane %v2376, 6
      %v2574 = vsel %vm692, %v2572, %v2573
      %v2575 = vrot.slane %v2573, 4
      %v2576 = vrot.slane %v2342, 6
      %v2577 = vsel %vm692, %v2575, %v2576
      %v2578 = vrot.slane %v2576, 4
      %v2579 = vrot.slane %v2387, 6
      %v2580 = vsel %vm692, %v2578, %v2579
      %v2581 = vrot.slane %v2331, 6
      %v2582 = vrot.slane %v2581, 4
      %v2583 = vrot.slane %v2377, 6
      %v2584 = vsel %vm692, %v2582, %v2583
      %v2585 = vrot.slane %v2583, 4
      %v2586 = vrot.slane %v2343, 6
      %v2587 = vsel %vm692, %v2585, %v2586
      %v2588 = vrot.slane %v2586, 4
      %v2589 = vrot.slane %v2388, 6
      %v2590 = vsel %vm692, %v2588, %v2589
      %v2591 = vrot.slane %v2332, 6
      %v2592 = vrot.slane %v2591, 4
      %v2593 = vrot.slane %v2378, 6
      %v2594 = vsel %vm692, %v2592, %v2593
      %v2595 = vrot.slane %v2593, 4
      %v2596 = vrot.slane %v2344, 6
      %v2597 = vsel %vm692, %v2595, %v2596
      %v2598 = vrot.slane %v2596, 4
      %v2599 = vrot.slane %v2389, 6
      %v2600 = vsel %vm692, %v2598, %v2599
      %v2601 = vrot.slane %v2333, 6
      %v2602 = vrot.slane %v2601, 4
      %v2603 = vrot.slane %v2379, 6
      %v2604 = vsel %vm692, %v2602, %v2603
      %v2605 = vrot.slane %v2603, 4
      %v2606 = vrot.slane %v2345, 6
      %v2607 = vsel %vm692, %v2605, %v2606
      %v2608 = vrot.slane %v2606, 4
      %v2609 = vrot.slane %v2390, 6
      %v2610 = vsel %vm692, %v2608, %v2609
      %v2613 = vrot.slane %v2334, 4
      %v2614 = vrot.slane %v2346, 4
      %v2615 = vrot.slane %v2334, 5
      %v2616 = vrot.slane %v2615, 4
      %v2617 = vrot.slane %v2613, 5
      %v2618 = vsel %vm569, %v2616, %v2617
      %v2619 = vrot.slane %v2617, 4
      %v2620 = vrot.slane %v2346, 5
      %v2621 = vsel %vm569, %v2619, %v2620
      %v2622 = vrot.slane %v2620, 4
      %v2623 = vrot.slane %v2614, 5
      %v2624 = vsel %vm569, %v2622, %v2623
      %v2625 = vrot.slane %v2334, 6
      %v2626 = vrot.slane %v2625, 4
      %v2627 = vrot.slane %v2613, 6
      %v2628 = vsel %vm692, %v2626, %v2627
      %v2629 = vrot.slane %v2627, 4
      %v2630 = vrot.slane %v2346, 6
      %v2631 = vsel %vm692, %v2629, %v2630
      %v2632 = vrot.slane %v2630, 4
      %v2633 = vrot.slane %v2614, 6
      %v2634 = vsel %vm692, %v2632, %v2633
      %2635 = vst [vmem:[#allocation1] ss:$2 sm:$0xff] %v492
      %s2636 = scalar_lea.vmem [#allocation1], 1
      %2637 = vst [vmem:[%s2636] ss:$2 sm:$0xff] %v543
      %s2638 = scalar_lea.vmem [#allocation1], 16
      %2639 = vst [vmem:[%s2638] ss:$2 sm:$0xff] %v506
      %s2640 = scalar_lea.vmem [#allocation1], 17
      %2641 = vst [vmem:[%s2640] ss:$2 sm:$0xff] %v2323
      %s2642 = scalar_lea.vmem [#allocation1], 32
      %2643 = vst [vmem:[%s2642] ss:$2 sm:$0xff] %v2369
      %s2644 = scalar_lea.vmem [#allocation1], 33
      %2645 = vst [vmem:[%s2644] ss:$2 sm:$0xff] %v2335
      %s2646 = scalar_lea.vmem [#allocation1], 48
      %2647 = vst [vmem:[%s2646] ss:$2 sm:$0xff] %v2324
      %s2648 = scalar_lea.vmem [#allocation1], 49
      %2649 = vst [vmem:[%s2648] ss:$2 sm:$0xff] %v2370
      %v2650 = vld.sshfl [vmem:[#allocation1] sm:$0xff pattern:$0x75316420]
      %v2651 = vld.sshfl [vmem:[#allocation1 + $0x10] sm:$0xff pattern:$0x75316420]
      %v2652 = vld.sshfl [vmem:[#allocation1 + $0x20] sm:$0xff pattern:$0x75316420]
      %v2653 = vld.sshfl [vmem:[#allocation1 + $0x30] sm:$0xff pattern:$0x75316420]
      %2654 = vst [vmem:[#allocation1] ss:$2 sm:$0xff] %v2336
      %2655 = vst [vmem:[%s2636] ss:$2 sm:$0xff] %v2325
      %2656 = vst [vmem:[%s2638] ss:$2 sm:$0xff] %v2371
      %2657 = vst [vmem:[%s2640] ss:$2 sm:$0xff] %v2337
      %2658 = vst [vmem:[%s2642] ss:$2 sm:$0xff] %v2326
      %2659 = vst [vmem:[%s2644] ss:$2 sm:$0xff] %v2372
      %2660 = vst [vmem:[%s2646] ss:$2 sm:$0xff] %v2338
      %2661 = vst [vmem:[%s2648] ss:$2 sm:$0xff] %v2327
      %v2662 = vld.sshfl [vmem:[#allocation1] sm:$0xff pattern:$0x75316420]
      %v2663 = vld.sshfl [vmem:[#allocation1 + $0x10] sm:$0xff pattern:$0x75316420]
      %v2664 = vld.sshfl [vmem:[#allocation1 + $0x20] sm:$0xff pattern:$0x75316420]
      %v2665 = vld.sshfl [vmem:[#allocation1 + $0x30] sm:$0xff pattern:$0x75316420]
      %2666 = vst [vmem:[#allocation1] ss:$2 sm:$0xff] %v2373
      %2667 = vst [vmem:[%s2636] ss:$2 sm:$0xff] %v2339
      %2668 = vst [vmem:[%s2638] ss:$2 sm:$0xff] %v2328
      %2669 = vst [vmem:[%s2640] ss:$2 sm:$0xff] %v2374
      %2670 = vst [vmem:[%s2642] ss:$2 sm:$0xff] %v2340
      %2671 = vst [vmem:[%s2644] ss:$2 sm:$0xff] %v2329
      %2672 = vst [vmem:[%s2646] ss:$2 sm:$0xff] %v2375
      %2673 = vst [vmem:[%s2648] ss:$2 sm:$0xff] %v2341
      %v2674 = vld.sshfl [vmem:[#allocation1] sm:$0xff pattern:$0x75316420]
      %v2675 = vld.sshfl [vmem:[#allocation1 + $0x10] sm:$0xff pattern:$0x75316420]
      %v2676 = vld.sshfl [vmem:[#allocation1 + $0x20] sm:$0xff pattern:$0x75316420]
      %v2677 = vld.sshfl [vmem:[#allocation1 + $0x30] sm:$0xff pattern:$0x75316420]
      %2678 = vst [vmem:[#allocation1] ss:$2 sm:$0xff] %v2330
      %2679 = vst [vmem:[%s2636] ss:$2 sm:$0xff] %v2376
      %2680 = vst [vmem:[%s2638] ss:$2 sm:$0xff] %v2342
      %2681 = vst [vmem:[%s2640] ss:$2 sm:$0xff] %v2331
      %2682 = vst [vmem:[%s2642] ss:$2 sm:$0xff] %v2377
      %2683 = vst [vmem:[%s2644] ss:$2 sm:$0xff] %v2343
      %2684 = vst [vmem:[%s2646] ss:$2 sm:$0xff] %v2332
      %2685 = vst [vmem:[%s2648] ss:$2 sm:$0xff] %v2378
      %v2686 = vld.sshfl [vmem:[#allocation1] sm:$0xff pattern:$0x75316420]
      %v2687 = vld.sshfl [vmem:[#allocation1 + $0x10] sm:$0xff pattern:$0x75316420]
      %v2688 = vld.sshfl [vmem:[#allocation1 + $0x20] sm:$0xff pattern:$0x75316420]
      %v2689 = vld.sshfl [vmem:[#allocation1 + $0x30] sm:$0xff pattern:$0x75316420]
      %2690 = vst [vmem:[#allocation1] ss:$2 sm:$0xff] %v2344
      %2691 = vst [vmem:[%s2636] ss:$2 sm:$0xff] %v2333
      %2692 = vst [vmem:[%s2638] ss:$2 sm:$0xff] %v2379
      %2693 = vst [vmem:[%s2640] ss:$2 sm:$0xff] %v2345
      %v2694 = vld.sshfl [vmem:[#allocation1] sm:$0xff pattern:$0x75316420]
      %v2695 = vld.sshfl [vmem:[#allocation1 + $0x10] sm:$0xff pattern:$0x75316420]
      %2714 = vst [vmem:[#allocation1] ss:$2 sm:$0xff] %v573
      %s2715 = scalar_lea.vmem [#allocation1], 1
      %2716 = vst [vmem:[%s2715] ss:$2 sm:$0xff] %v576
      %s2717 = scalar_lea.vmem [#allocation1], 16
      %2718 = vst [vmem:[%s2717] ss:$2 sm:$0xff] %v579
      %s2719 = scalar_lea.vmem [#allocation1], 17
      %2720 = vst [vmem:[%s2719] ss:$2 sm:$0xff] %v2394
      %s2721 = scalar_lea.vmem [#allocation1], 32
      %2722 = vst [vmem:[%s2721] ss:$2 sm:$0xff] %v2397
      %s2723 = scalar_lea.vmem [#allocation1], 33
      %2724 = vst [vmem:[%s2723] ss:$2 sm:$0xff] %v2400
      %s2725 = scalar_lea.vmem [#allocation1], 48
      %2726 = vst [vmem:[%s2725] ss:$2 sm:$0xff] %v2404
      %s2727 = scalar_lea.vmem [#allocation1], 49
      %2728 = vst [vmem:[%s2727] ss:$2 sm:$0xff] %v2407
      %v2729 = vld.sshfl [vmem:[#allocation1] sm:$0xff pattern:$0x75316420]
      %v2730 = vld.sshfl [vmem:[#allocation1 + $0x10] sm:$0xff pattern:$0x75316420]
      %v2731 = vld.sshfl [vmem:[#allocation1 + $0x20] sm:$0xff pattern:$0x75316420]
      %v2732 = vld.sshfl [vmem:[#allocation1 + $0x30] sm:$0xff pattern:$0x75316420]
      %2733 = vst [vmem:[#allocation1] ss:$2 sm:$0xff] %v2410
      %2734 = vst [vmem:[%s2715] ss:$2 sm:$0xff] %v2414
      %2735 = vst [vmem:[%s2717] ss:$2 sm:$0xff] %v2417
      %2736 = vst [vmem:[%s2719] ss:$2 sm:$0xff] %v2420
      %2737 = vst [vmem:[%s2721] ss:$2 sm:$0xff] %v2424
      %2738 = vst [vmem:[%s2723] ss:$2 sm:$0xff] %v2427
      %2739 = vst [vmem:[%s2725] ss:$2 sm:$0xff] %v2430
      %2740 = vst [vmem:[%s2727] ss:$2 sm:$0xff] %v2434
      %v2741 = vld.sshfl [vmem:[#allocation1] sm:$0xff pattern:$0x75316420]
      %v2742 = vld.sshfl [vmem:[#allocation1 + $0x10] sm:$0xff pattern:$0x75316420]
      %v2743 = vld.sshfl [vmem:[#allocation1 + $0x20] sm:$0xff pattern:$0x75316420]
      %v2744 = vld.sshfl [vmem:[#allocation1 + $0x30] sm:$0xff pattern:$0x75316420]
      %2745 = vst [vmem:[#allocation1] ss:$2 sm:$0xff] %v2437
      %2746 = vst [vmem:[%s2715] ss:$2 sm:$0xff] %v2440
      %2747 = vst [vmem:[%s2717] ss:$2 sm:$0xff] %v2444
      %2748 = vst [vmem:[%s2719] ss:$2 sm:$0xff] %v2447
      %2749 = vst [vmem:[%s2721] ss:$2 sm:$0xff] %v2450
      %2750 = vst [vmem:[%s2723] ss:$2 sm:$0xff] %v2454
      %2751 = vst [vmem:[%s2725] ss:$2 sm:$0xff] %v2457
      %2752 = vst [vmem:[%s2727] ss:$2 sm:$0xff] %v2460
      %v2753 = vld.sshfl [vmem:[#allocation1] sm:$0xff pattern:$0x75316420]
      %v2754 = vld.sshfl [vmem:[#allocation1 + $0x10] sm:$0xff pattern:$0x75316420]
      %v2755 = vld.sshfl [vmem:[#allocation1 + $0x20] sm:$0xff pattern:$0x75316420]
      %v2756 = vld.sshfl [vmem:[#allocation1 + $0x30] sm:$0xff pattern:$0x75316420]
      %2757 = vst [vmem:[#allocation1] ss:$2 sm:$0xff] %v2464
      %2758 = vst [vmem:[%s2715] ss:$2 sm:$0xff] %v2467
      %2759 = vst [vmem:[%s2717] ss:$2 sm:$0xff] %v2470
      %2760 = vst [vmem:[%s2719] ss:$2 sm:$0xff] %v2474
      %2761 = vst [vmem:[%s2721] ss:$2 sm:$0xff] %v2477
      %2762 = vst [vmem:[%s2723] ss:$2 sm:$0xff] %v2480
      %2763 = vst [vmem:[%s2725] ss:$2 sm:$0xff] %v2484
      %2764 = vst [vmem:[%s2727] ss:$2 sm:$0xff] %v2487
      %v2765 = vld.sshfl [vmem:[#allocation1] sm:$0xff pattern:$0x75316420]
      %v2766 = vld.sshfl [vmem:[#allocation1 + $0x10] sm:$0xff pattern:$0x75316420]
      %v2767 = vld.sshfl [vmem:[#allocation1 + $0x20] sm:$0xff pattern:$0x75316420]
      %v2768 = vld.sshfl [vmem:[#allocation1 + $0x30] sm:$0xff pattern:$0x75316420]
      %2769 = vst [vmem:[#allocation1] ss:$2 sm:$0xff] %v2490
      %2770 = vst [vmem:[%s2715] ss:$2 sm:$0xff] %v2494
      %2771 = vst [vmem:[%s2717] ss:$2 sm:$0xff] %v2497
      %2772 = vst [vmem:[%s2719] ss:$2 sm:$0xff] %v2500
      %v2773 = vld.sshfl [vmem:[#allocation1] sm:$0xff pattern:$0x75316420]
      %v2774 = vld.sshfl [vmem:[#allocation1 + $0x10] sm:$0xff pattern:$0x75316420]
      %2775 = vrot.lane.b32.xlu0 %v2729, 8
      %v2776 = vpop.permute.xlu0 %2775
      %2777 = vrot.lane.b32.xlu0 %v2730, 8
      %v2778 = vpop.permute.xlu0 %2777
      %2779 = vrot.lane.b32.xlu0 %v2731, 8
      %v2780 = vpop.permute.xlu0 %2779
      %2781 = vrot.lane.b32.xlu0 %v2732, 8
      %v2782 = vpop.permute.xlu0 %2781
      %2783 = vrot.lane.b32.xlu0 %v2741, 8
      %v2784 = vpop.permute.xlu0 %2783
      %2785 = vrot.lane.b32.xlu0 %v2742, 8
      %v2786 = vpop.permute.xlu0 %2785
      %2787 = vrot.lane.b32.xlu0 %v2743, 8
      %v2788 = vpop.permute.xlu0 %2787
      %2789 = vrot.lane.b32.xlu0 %v2744, 8
      %v2790 = vpop.permute.xlu0 %2789
      %2791 = vrot.lane.b32.xlu0 %v2753, 8
      %v2792 = vpop.permute.xlu0 %2791
      %2793 = vrot.lane.b32.xlu0 %v2754, 8
      %v2794 = vpop.permute.xlu0 %2793
      %2795 = vrot.lane.b32.xlu0 %v2755, 8
      %v2796 = vpop.permute.xlu0 %2795
      %2797 = vrot.lane.b32.xlu0 %v2756, 8
      %v2798 = vpop.permute.xlu0 %2797
      %2799 = vrot.lane.b32.xlu0 %v2765, 8
      %v2800 = vpop.permute.xlu0 %2799
      %2801 = vrot.lane.b32.xlu0 %v2766, 8
      %v2802 = vpop.permute.xlu0 %2801
      %2803 = vrot.lane.b32.xlu0 %v2767, 8
      %v2804 = vpop.permute.xlu0 %2803
      %2805 = vrot.lane.b32.xlu0 %v2768, 8
      %v2806 = vpop.permute.xlu0 %2805
      %2807 = vrot.lane.b32.xlu0 %v2773, 8
      %v2808 = vpop.permute.xlu0 %2807
      %2809 = vrot.lane.b32.xlu0 %v2774, 8
      %v2810 = vpop.permute.xlu0 %2809
      %2829 = vst [vmem:[#allocation1] ss:$2 sm:$0xff] %v696
      %s2830 = scalar_lea.vmem [#allocation1], 1
      %2831 = vst [vmem:[%s2830] ss:$2 sm:$0xff] %v699
      %s2832 = scalar_lea.vmem [#allocation1], 16
      %2833 = vst [vmem:[%s2832] ss:$2 sm:$0xff] %v702
      %s2834 = scalar_lea.vmem [#allocation1], 17
      %2835 = vst [vmem:[%s2834] ss:$2 sm:$0xff] %v2504
      %s2836 = scalar_lea.vmem [#allocation1], 32
      %2837 = vst [vmem:[%s2836] ss:$2 sm:$0xff] %v2507
      %s2838 = scalar_lea.vmem [#allocation1], 33
      %2839 = vst [vmem:[%s2838] ss:$2 sm:$0xff] %v2510
      %s2840 = scalar_lea.vmem [#allocation1], 48
      %2841 = vst [vmem:[%s2840] ss:$2 sm:$0xff] %v2514
      %s2842 = scalar_lea.vmem [#allocation1], 49
      %2843 = vst [vmem:[%s2842] ss:$2 sm:$0xff] %v2517
      %v2844 = vld.sshfl [vmem:[#allocation1] sm:$0xff pattern:$0x75316420]
      %v2845 = vld.sshfl [vmem:[#allocation1 + $0x10] sm:$0xff pattern:$0x75316420]
      %v2846 = vld.sshfl [vmem:[#allocation1 + $0x20] sm:$0xff pattern:$0x75316420]
      %v2847 = vld.sshfl [vmem:[#allocation1 + $0x30] sm:$0xff pattern:$0x75316420]
      %2848 = vst [vmem:[#allocation1] ss:$2 sm:$0xff] %v2520
      %2849 = vst [vmem:[%s2830] ss:$2 sm:$0xff] %v2524
      %2850 = vst [vmem:[%s2832] ss:$2 sm:$0xff] %v2527
      %2851 = vst [vmem:[%s2834] ss:$2 sm:$0xff] %v2530
      %2852 = vst [vmem:[%s2836] ss:$2 sm:$0xff] %v2534
      %2853 = vst [vmem:[%s2838] ss:$2 sm:$0xff] %v2537
      %2854 = vst [vmem:[%s2840] ss:$2 sm:$0xff] %v2540
      %2855 = vst [vmem:[%s2842] ss:$2 sm:$0xff] %v2544
      %v2856 = vld.sshfl [vmem:[#allocation1] sm:$0xff pattern:$0x75316420]
      %v2857 = vld.sshfl [vmem:[#allocation1 + $0x10] sm:$0xff pattern:$0x75316420]
      %v2858 = vld.sshfl [vmem:[#allocation1 + $0x20] sm:$0xff pattern:$0x75316420]
      %v2859 = vld.sshfl [vmem:[#allocation1 + $0x30] sm:$0xff pattern:$0x75316420]
      %2860 = vst [vmem:[#allocation1] ss:$2 sm:$0xff] %v2547
      %2861 = vst [vmem:[%s2830] ss:$2 sm:$0xff] %v2550
      %2862 = vst [vmem:[%s2832] ss:$2 sm:$0xff] %v2554
      %2863 = vst [vmem:[%s2834] ss:$2 sm:$0xff] %v2557
      %2864 = vst [vmem:[%s2836] ss:$2 sm:$0xff] %v2560
      %2865 = vst [vmem:[%s2838] ss:$2 sm:$0xff] %v2564
      %2866 = vst [vmem:[%s2840] ss:$2 sm:$0xff] %v2567
      %2867 = vst [vmem:[%s2842] ss:$2 sm:$0xff] %v2570
      %v2868 = vld.sshfl [vmem:[#allocation1] sm:$0xff pattern:$0x75316420]
      %v2869 = vld.sshfl [vmem:[#allocation1 + $0x10] sm:$0xff pattern:$0x75316420]
      %v2870 = vld.sshfl [vmem:[#allocation1 + $0x20] sm:$0xff pattern:$0x75316420]
      %v2871 = vld.sshfl [vmem:[#allocation1 + $0x30] sm:$0xff pattern:$0x75316420]
      %2872 = vst [vmem:[#allocation1] ss:$2 sm:$0xff] %v2574
      %2873 = vst [vmem:[%s2830] ss:$2 sm:$0xff] %v2577
      %2874 = vst [vmem:[%s2832] ss:$2 sm:$0xff] %v2580
      %2875 = vst [vmem:[%s2834] ss:$2 sm:$0xff] %v2584
      %2876 = vst [vmem:[%s2836] ss:$2 sm:$0xff] %v2587
      %2877 = vst [vmem:[%s2838] ss:$2 sm:$0xff] %v2590
      %2878 = vst [vmem:[%s2840] ss:$2 sm:$0xff] %v2594
      %2879 = vst [vmem:[%s2842] ss:$2 sm:$0xff] %v2597
      %v2880 = vld.sshfl [vmem:[#allocation1] sm:$0xff pattern:$0x75316420]
      %v2881 = vld.sshfl [vmem:[#allocation1 + $0x10] sm:$0xff pattern:$0x75316420]
      %v2882 = vld.sshfl [vmem:[#allocation1 + $0x20] sm:$0xff pattern:$0x75316420]
      %v2883 = vld.sshfl [vmem:[#allocation1 + $0x30] sm:$0xff pattern:$0x75316420]
      %2884 = vst [vmem:[#allocation1] ss:$2 sm:$0xff] %v2600
      %2885 = vst [vmem:[%s2830] ss:$2 sm:$0xff] %v2604
      %2886 = vst [vmem:[%s2832] ss:$2 sm:$0xff] %v2607
      %2887 = vst [vmem:[%s2834] ss:$2 sm:$0xff] %v2610
      %v2888 = vld.sshfl [vmem:[#allocation1] sm:$0xff pattern:$0x75316420]
      %v2889 = vld.sshfl [vmem:[#allocation1 + $0x10] sm:$0xff pattern:$0x75316420]
      %2890 = vrot.lane.b32.xlu0 %v2844, 16
      %v2891 = vpop.permute.xlu0 %2890
      %2892 = vrot.lane.b32.xlu0 %v2845, 16
      %v2893 = vpop.permute.xlu0 %2892
      %2894 = vrot.lane.b32.xlu0 %v2846, 16
      %v2895 = vpop.permute.xlu0 %2894
      %2896 = vrot.lane.b32.xlu0 %v2847, 16
      %v2897 = vpop.permute.xlu0 %2896
      %2898 = vrot.lane.b32.xlu0 %v2856, 16
      %v2899 = vpop.permute.xlu0 %2898
      %2900 = vrot.lane.b32.xlu0 %v2857, 16
      %v2901 = vpop.permute.xlu0 %2900
      %2902 = vrot.lane.b32.xlu0 %v2858, 16
      %v2903 = vpop.permute.xlu0 %2902
      %2904 = vrot.lane.b32.xlu0 %v2859, 16
      %v2905 = vpop.permute.xlu0 %2904
      %2906 = vrot.lane.b32.xlu0 %v2868, 16
      %v2907 = vpop.permute.xlu0 %2906
      %2908 = vrot.lane.b32.xlu0 %v2869, 16
      %v2909 = vpop.permute.xlu0 %2908
      %2910 = vrot.lane.b32.xlu0 %v2870, 16
      %v2911 = vpop.permute.xlu0 %2910
      %2912 = vrot.lane.b32.xlu0 %v2871, 16
      %v2913 = vpop.permute.xlu0 %2912
      %2914 = vrot.lane.b32.xlu0 %v2880, 16
      %v2915 = vpop.permute.xlu0 %2914
      %2916 = vrot.lane.b32.xlu0 %v2881, 16
      %v2917 = vpop.permute.xlu0 %2916
      %2918 = vrot.lane.b32.xlu0 %v2882, 16
      %v2919 = vpop.permute.xlu0 %2918
      %2920 = vrot.lane.b32.xlu0 %v2883, 16
      %v2921 = vpop.permute.xlu0 %2920
      %2922 = vrot.lane.b32.xlu0 %v2888, 16
      %v2923 = vpop.permute.xlu0 %2922
      %2924 = vrot.lane.b32.xlu0 %v2889, 16
      %v2925 = vpop.permute.xlu0 %2924
      %2944 = vst [vmem:[#allocation1] ss:$2 sm:$0xff] %v2323
      %s2945 = scalar_lea.vmem [#allocation1], 1
      %2946 = vst [vmem:[%s2945] ss:$2 sm:$0xff] %v2369
      %s2947 = scalar_lea.vmem [#allocation1], 16
      %2948 = vst [vmem:[%s2947] ss:$2 sm:$0xff] %v2335
      %s2949 = scalar_lea.vmem [#allocation1], 17
      %2950 = vst [vmem:[%s2949] ss:$2 sm:$0xff] %v2324
      %s2951 = scalar_lea.vmem [#allocation1], 32
      %2952 = vst [vmem:[%s2951] ss:$2 sm:$0xff] %v2370
      %s2953 = scalar_lea.vmem [#allocation1], 33
      %2954 = vst [vmem:[%s2953] ss:$2 sm:$0xff] %v2336
      %s2955 = scalar_lea.vmem [#allocation1], 48
      %2956 = vst [vmem:[%s2955] ss:$2 sm:$0xff] %v2325
      %s2957 = scalar_lea.vmem [#allocation1], 49
      %2958 = vst [vmem:[%s2957] ss:$2 sm:$0xff] %v2371
      %v2959 = vld.sshfl [vmem:[#allocation1] sm:$0xff pattern:$0x75316420]
      %v2960 = vld.sshfl [vmem:[#allocation1 + $0x10] sm:$0xff pattern:$0x75316420]
      %v2961 = vld.sshfl [vmem:[#allocation1 + $0x20] sm:$0xff pattern:$0x75316420]
      %v2962 = vld.sshfl [vmem:[#allocation1 + $0x30] sm:$0xff pattern:$0x75316420]
      %2963 = vst [vmem:[#allocation1] ss:$2 sm:$0xff] %v2337
      %2964 = vst [vmem:[%s2945] ss:$2 sm:$0xff] %v2326
      %2965 = vst [vmem:[%s2947] ss:$2 sm:$0xff] %v2372
      %2966 = vst [vmem:[%s2949] ss:$2 sm:$0xff] %v2338
      %2967 = vst [vmem:[%s2951] ss:$2 sm:$0xff] %v2327
      %2968 = vst [vmem:[%s2953] ss:$2 sm:$0xff] %v2373
      %2969 = vst [vmem:[%s2955] ss:$2 sm:$0xff] %v2339
      %2970 = vst [vmem:[%s2957] ss:$2 sm:$0xff] %v2328
      %v2971 = vld.sshfl [vmem:[#allocation1] sm:$0xff pattern:$0x75316420]
      %v2972 = vld.sshfl [vmem:[#allocation1 + $0x10] sm:$0xff pattern:$0x75316420]
      %v2973 = vld.sshfl [vmem:[#allocation1 + $0x20] sm:$0xff pattern:$0x75316420]
      %v2974 = vld.sshfl [vmem:[#allocation1 + $0x30] sm:$0xff pattern:$0x75316420]
      %2975 = vst [vmem:[#allocation1] ss:$2 sm:$0xff] %v2374
      %2976 = vst [vmem:[%s2945] ss:$2 sm:$0xff] %v2340
      %2977 = vst [vmem:[%s2947] ss:$2 sm:$0xff] %v2329
      %2978 = vst [vmem:[%s2949] ss:$2 sm:$0xff] %v2375
      %2979 = vst [vmem:[%s2951] ss:$2 sm:$0xff] %v2341
      %2980 = vst [vmem:[%s2953] ss:$2 sm:$0xff] %v2330
      %2981 = vst [vmem:[%s2955] ss:$2 sm:$0xff] %v2376
      %2982 = vst [vmem:[%s2957] ss:$2 sm:$0xff] %v2342
      %v2983 = vld.sshfl [vmem:[#allocation1] sm:$0xff pattern:$0x75316420]
      %v2984 = vld.sshfl [vmem:[#allocation1 + $0x10] sm:$0xff pattern:$0x75316420]
      %v2985 = vld.sshfl [vmem:[#allocation1 + $0x20] sm:$0xff pattern:$0x75316420]
      %v2986 = vld.sshfl [vmem:[#allocation1 + $0x30] sm:$0xff pattern:$0x75316420]
      %2987 = vst [vmem:[#allocation1] ss:$2 sm:$0xff] %v2331
      %2988 = vst [vmem:[%s2945] ss:$2 sm:$0xff] %v2377
      %2989 = vst [vmem:[%s2947] ss:$2 sm:$0xff] %v2343
      %2990 = vst [vmem:[%s2949] ss:$2 sm:$0xff] %v2332
      %2991 = vst [vmem:[%s2951] ss:$2 sm:$0xff] %v2378
      %2992 = vst [vmem:[%s2953] ss:$2 sm:$0xff] %v2344
      %2993 = vst [vmem:[%s2955] ss:$2 sm:$0xff] %v2333
      %2994 = vst [vmem:[%s2957] ss:$2 sm:$0xff] %v2379
      %v2995 = vld.sshfl [vmem:[#allocation1] sm:$0xff pattern:$0x75316420]
      %v2996 = vld.sshfl [vmem:[#allocation1 + $0x10] sm:$0xff pattern:$0x75316420]
      %v2997 = vld.sshfl [vmem:[#allocation1 + $0x20] sm:$0xff pattern:$0x75316420]
      %v2998 = vld.sshfl [vmem:[#allocation1 + $0x30] sm:$0xff pattern:$0x75316420]
      %2999 = vst [vmem:[#allocation1] ss:$2 sm:$0xff] %v2345
      %3000 = vst [vmem:[%s2945] ss:$2 sm:$0xff] %v2334
      %3001 = vst [vmem:[%s2947] ss:$2 sm:$0xff] %v2613
      %3002 = vst [vmem:[%s2949] ss:$2 sm:$0xff] %v2346
      %v3003 = vld.sshfl [vmem:[#allocation1] sm:$0xff pattern:$0x75316420]
      %v3004 = vld.sshfl [vmem:[#allocation1 + $0x10] sm:$0xff pattern:$0x75316420]
      %3005 = vrot.lane.b32.xlu0 %v2959, 24
      %v3006 = vpop.permute.xlu0 %3005
      %3007 = vrot.lane.b32.xlu0 %v2960, 24
      %v3008 = vpop.permute.xlu0 %3007
      %3009 = vrot.lane.b32.xlu0 %v2961, 24
      %v3010 = vpop.permute.xlu0 %3009
      %3011 = vrot.lane.b32.xlu0 %v2962, 24
      %v3012 = vpop.permute.xlu0 %3011
      %3013 = vrot.lane.b32.xlu0 %v2971, 24
      %v3014 = vpop.permute.xlu0 %3013
      %3015 = vrot.lane.b32.xlu0 %v2972, 24
      %v3016 = vpop.permute.xlu0 %3015
      %3017 = vrot.lane.b32.xlu0 %v2973, 24
      %v3018 = vpop.permute.xlu0 %3017
      %3019 = vrot.lane.b32.xlu0 %v2974, 24
      %v3020 = vpop.permute.xlu0 %3019
      %3021 = vrot.lane.b32.xlu0 %v2983, 24
      %v3022 = vpop.permute.xlu0 %3021
      %3023 = vrot.lane.b32.xlu0 %v2984, 24
      %v3024 = vpop.permute.xlu0 %3023
      %3025 = vrot.lane.b32.xlu0 %v2985, 24
      %v3026 = vpop.permute.xlu0 %3025
      %3027 = vrot.lane.b32.xlu0 %v2986, 24
      %v3028 = vpop.permute.xlu0 %3027
      %3029 = vrot.lane.b32.xlu0 %v2995, 24
      %v3030 = vpop.permute.xlu0 %3029
      %3031 = vrot.lane.b32.xlu0 %v2996, 24
      %v3032 = vpop.permute.xlu0 %3031
      %3033 = vrot.lane.b32.xlu0 %v2997, 24
      %v3034 = vpop.permute.xlu0 %3033
      %3035 = vrot.lane.b32.xlu0 %v2998, 24
      %v3036 = vpop.permute.xlu0 %3035
      %3037 = vrot.lane.b32.xlu0 %v3003, 24
      %v3038 = vpop.permute.xlu0 %3037
      %3039 = vrot.lane.b32.xlu0 %v3004, 24
      %v3040 = vpop.permute.xlu0 %3039
      %3059 = vst [vmem:[#allocation1] ss:$2 sm:$0xff] %v2394
      %s3060 = scalar_lea.vmem [#allocation1], 1
      %3061 = vst [vmem:[%s3060] ss:$2 sm:$0xff] %v2397
      %s3062 = scalar_lea.vmem [#allocation1], 16
      %3063 = vst [vmem:[%s3062] ss:$2 sm:$0xff] %v2400
      %s3064 = scalar_lea.vmem [#allocation1], 17
      %3065 = vst [vmem:[%s3064] ss:$2 sm:$0xff] %v2404
      %s3066 = scalar_lea.vmem [#allocation1], 32
      %3067 = vst [vmem:[%s3066] ss:$2 sm:$0xff] %v2407
      %s3068 = scalar_lea.vmem [#allocation1], 33
      %3069 = vst [vmem:[%s3068] ss:$2 sm:$0xff] %v2410
      %s3070 = scalar_lea.vmem [#allocation1], 48
      %3071 = vst [vmem:[%s3070] ss:$2 sm:$0xff] %v2414
      %s3072 = scalar_lea.vmem [#allocation1], 49
      %3073 = vst [vmem:[%s3072] ss:$2 sm:$0xff] %v2417
      %v3074 = vld.sshfl [vmem:[#allocation1] sm:$0xff pattern:$0x75316420]
      %v3075 = vld.sshfl [vmem:[#allocation1 + $0x10] sm:$0xff pattern:$0x75316420]
      %v3076 = vld.sshfl [vmem:[#allocation1 + $0x20] sm:$0xff pattern:$0x75316420]
      %v3077 = vld.sshfl [vmem:[#allocation1 + $0x30] sm:$0xff pattern:$0x75316420]
      %3078 = vst [vmem:[#allocation1] ss:$2 sm:$0xff] %v2420
      %3079 = vst [vmem:[%s3060] ss:$2 sm:$0xff] %v2424
      %3080 = vst [vmem:[%s3062] ss:$2 sm:$0xff] %v2427
      %3081 = vst [vmem:[%s3064] ss:$2 sm:$0xff] %v2430
      %3082 = vst [vmem:[%s3066] ss:$2 sm:$0xff] %v2434
      %3083 = vst [vmem:[%s3068] ss:$2 sm:$0xff] %v2437
      %3084 = vst [vmem:[%s3070] ss:$2 sm:$0xff] %v2440
      %3085 = vst [vmem:[%s3072] ss:$2 sm:$0xff] %v2444
      %v3086 = vld.sshfl [vmem:[#allocation1] sm:$0xff pattern:$0x75316420]
      %v3087 = vld.sshfl [vmem:[#allocation1 + $0x10] sm:$0xff pattern:$0x75316420]
      %v3088 = vld.sshfl [vmem:[#allocation1 + $0x20] sm:$0xff pattern:$0x75316420]
      %v3089 = vld.sshfl [vmem:[#allocation1 + $0x30] sm:$0xff pattern:$0x75316420]
      %3090 = vst [vmem:[#allocation1] ss:$2 sm:$0xff] %v2447
      %3091 = vst [vmem:[%s3060] ss:$2 sm:$0xff] %v2450
      %3092 = vst [vmem:[%s3062] ss:$2 sm:$0xff] %v2454
      %3093 = vst [vmem:[%s3064] ss:$2 sm:$0xff] %v2457
      %3094 = vst [vmem:[%s3066] ss:$2 sm:$0xff] %v2460
      %3095 = vst [vmem:[%s3068] ss:$2 sm:$0xff] %v2464
      %3096 = vst [vmem:[%s3070] ss:$2 sm:$0xff] %v2467
      %3097 = vst [vmem:[%s3072] ss:$2 sm:$0xff] %v2470
      %v3098 = vld.sshfl [vmem:[#allocation1] sm:$0xff pattern:$0x75316420]
      %v3099 = vld.sshfl [vmem:[#allocation1 + $0x10] sm:$0xff pattern:$0x75316420]
      %v3100 = vld.sshfl [vmem:[#allocation1 + $0x20] sm:$0xff pattern:$0x75316420]
      %v3101 = vld.sshfl [vmem:[#allocation1 + $0x30] sm:$0xff pattern:$0x75316420]
      %3102 = vst [vmem:[#allocation1] ss:$2 sm:$0xff] %v2474
      %3103 = vst [vmem:[%s3060] ss:$2 sm:$0xff] %v2477
      %3104 = vst [vmem:[%s3062] ss:$2 sm:$0xff] %v2480
      %3105 = vst [vmem:[%s3064] ss:$2 sm:$0xff] %v2484
      %3106 = vst [vmem:[%s3066] ss:$2 sm:$0xff] %v2487
      %3107 = vst [vmem:[%s3068] ss:$2 sm:$0xff] %v2490
      %3108 = vst [vmem:[%s3070] ss:$2 sm:$0xff] %v2494
      %3109 = vst [vmem:[%s3072] ss:$2 sm:$0xff] %v2497
      %v3110 = vld.sshfl [vmem:[#allocation1] sm:$0xff pattern:$0x75316420]
      %v3111 = vld.sshfl [vmem:[#allocation1 + $0x10] sm:$0xff pattern:$0x75316420]
      %v3112 = vld.sshfl [vmem:[#allocation1 + $0x20] sm:$0xff pattern:$0x75316420]
      %v3113 = vld.sshfl [vmem:[#allocation1 + $0x30] sm:$0xff pattern:$0x75316420]
      %3114 = vst [vmem:[#allocation1] ss:$2 sm:$0xff] %v2500
      %3115 = vst [vmem:[%s3060] ss:$2 sm:$0xff] %v2618
      %3116 = vst [vmem:[%s3062] ss:$2 sm:$0xff] %v2621
      %3117 = vst [vmem:[%s3064] ss:$2 sm:$0xff] %v2624
      %v3118 = vld.sshfl [vmem:[#allocation1] sm:$0xff pattern:$0x75316420]
      %v3119 = vld.sshfl [vmem:[#allocation1 + $0x10] sm:$0xff pattern:$0x75316420]
      %3120 = vrot.lane.b32.xlu0 %v3074, 32
      %v3121 = vpop.permute.xlu0 %3120
      %3122 = vrot.lane.b32.xlu0 %v3075, 32
      %v3123 = vpop.permute.xlu0 %3122
      %3124 = vrot.lane.b32.xlu0 %v3076, 32
      %v3125 = vpop.permute.xlu0 %3124
      %3126 = vrot.lane.b32.xlu0 %v3077, 32
      %v3127 = vpop.permute.xlu0 %3126
      %3128 = vrot.lane.b32.xlu0 %v3086, 32
      %v3129 = vpop.permute.xlu0 %3128
      %3130 = vrot.lane.b32.xlu0 %v3087, 32
      %v3131 = vpop.permute.xlu0 %3130
      %3132 = vrot.lane.b32.xlu0 %v3088, 32
      %v3133 = vpop.permute.xlu0 %3132
      %3134 = vrot.lane.b32.xlu0 %v3089, 32
      %v3135 = vpop.permute.xlu0 %3134
      %3136 = vrot.lane.b32.xlu0 %v3098, 32
      %v3137 = vpop.permute.xlu0 %3136
      %3138 = vrot.lane.b32.xlu0 %v3099, 32
      %v3139 = vpop.permute.xlu0 %3138
      %3140 = vrot.lane.b32.xlu0 %v3100, 32
      %v3141 = vpop.permute.xlu0 %3140
      %3142 = vrot.lane.b32.xlu0 %v3101, 32
      %v3143 = vpop.permute.xlu0 %3142
      %3144 = vrot.lane.b32.xlu0 %v3110, 32
      %v3145 = vpop.permute.xlu0 %3144
      %3146 = vrot.lane.b32.xlu0 %v3111, 32
      %v3147 = vpop.permute.xlu0 %3146
      %3148 = vrot.lane.b32.xlu0 %v3112, 32
      %v3149 = vpop.permute.xlu0 %3148
      %3150 = vrot.lane.b32.xlu0 %v3113, 32
      %v3151 = vpop.permute.xlu0 %3150
      %3152 = vrot.lane.b32.xlu0 %v3118, 32
      %v3153 = vpop.permute.xlu0 %3152
      %3154 = vrot.lane.b32.xlu0 %v3119, 32
      %v3155 = vpop.permute.xlu0 %3154
      %3174 = vst [vmem:[#allocation1] ss:$2 sm:$0xff] %v2504
      %s3175 = scalar_lea.vmem [#allocation1], 1
      %3176 = vst [vmem:[%s3175] ss:$2 sm:$0xff] %v2507
      %s3177 = scalar_lea.vmem [#allocation1], 16
      %3178 = vst [vmem:[%s3177] ss:$2 sm:$0xff] %v2510
      %s3179 = scalar_lea.vmem [#allocation1], 17
      %3180 = vst [vmem:[%s3179] ss:$2 sm:$0xff] %v2514
      %s3181 = scalar_lea.vmem [#allocation1], 32
      %3182 = vst [vmem:[%s3181] ss:$2 sm:$0xff] %v2517
      %s3183 = scalar_lea.vmem [#allocation1], 33
      %3184 = vst [vmem:[%s3183] ss:$2 sm:$0xff] %v2520
      %s3185 = scalar_lea.vmem [#allocation1], 48
      %3186 = vst [vmem:[%s3185] ss:$2 sm:$0xff] %v2524
      %s3187 = scalar_lea.vmem [#allocation1], 49
      %3188 = vst [vmem:[%s3187] ss:$2 sm:$0xff] %v2527
      %v3189 = vld.sshfl [vmem:[#allocation1] sm:$0xff pattern:$0x75316420]
      %v3190 = vld.sshfl [vmem:[#allocation1 + $0x10] sm:$0xff pattern:$0x75316420]
      %v3191 = vld.sshfl [vmem:[#allocation1 + $0x20] sm:$0xff pattern:$0x75316420]
      %v3192 = vld.sshfl [vmem:[#allocation1 + $0x30] sm:$0xff pattern:$0x75316420]
      %3193 = vst [vmem:[#allocation1] ss:$2 sm:$0xff] %v2530
      %3194 = vst [vmem:[%s3175] ss:$2 sm:$0xff] %v2534
      %3195 = vst [vmem:[%s3177] ss:$2 sm:$0xff] %v2537
      %3196 = vst [vmem:[%s3179] ss:$2 sm:$0xff] %v2540
      %3197 = vst [vmem:[%s3181] ss:$2 sm:$0xff] %v2544
      %3198 = vst [vmem:[%s3183] ss:$2 sm:$0xff] %v2547
      %3199 = vst [vmem:[%s3185] ss:$2 sm:$0xff] %v2550
      %3200 = vst [vmem:[%s3187] ss:$2 sm:$0xff] %v2554
      %v3201 = vld.sshfl [vmem:[#allocation1] sm:$0xff pattern:$0x75316420]
      %v3202 = vld.sshfl [vmem:[#allocation1 + $0x10] sm:$0xff pattern:$0x75316420]
      %v3203 = vld.sshfl [vmem:[#allocation1 + $0x20] sm:$0xff pattern:$0x75316420]
      %v3204 = vld.sshfl [vmem:[#allocation1 + $0x30] sm:$0xff pattern:$0x75316420]
      %3205 = vst [vmem:[#allocation1] ss:$2 sm:$0xff] %v2557
      %3206 = vst [vmem:[%s3175] ss:$2 sm:$0xff] %v2560
      %3207 = vst [vmem:[%s3177] ss:$2 sm:$0xff] %v2564
      %3208 = vst [vmem:[%s3179] ss:$2 sm:$0xff] %v2567
      %3209 = vst [vmem:[%s3181] ss:$2 sm:$0xff] %v2570
      %3210 = vst [vmem:[%s3183] ss:$2 sm:$0xff] %v2574
      %3211 = vst [vmem:[%s3185] ss:$2 sm:$0xff] %v2577
      %3212 = vst [vmem:[%s3187] ss:$2 sm:$0xff] %v2580
      %v3213 = vld.sshfl [vmem:[#allocation1] sm:$0xff pattern:$0x75316420]
      %v3214 = vld.sshfl [vmem:[#allocation1 + $0x10] sm:$0xff pattern:$0x75316420]
      %v3215 = vld.sshfl [vmem:[#allocation1 + $0x20] sm:$0xff pattern:$0x75316420]
      %v3216 = vld.sshfl [vmem:[#allocation1 + $0x30] sm:$0xff pattern:$0x75316420]
      %3217 = vst [vmem:[#allocation1] ss:$2 sm:$0xff] %v2584
      %3218 = vst [vmem:[%s3175] ss:$2 sm:$0xff] %v2587
      %3219 = vst [vmem:[%s3177] ss:$2 sm:$0xff] %v2590
      %3220 = vst [vmem:[%s3179] ss:$2 sm:$0xff] %v2594
      %3221 = vst [vmem:[%s3181] ss:$2 sm:$0xff] %v2597
      %3222 = vst [vmem:[%s3183] ss:$2 sm:$0xff] %v2600
      %3223 = vst [vmem:[%s3185] ss:$2 sm:$0xff] %v2604
      %3224 = vst [vmem:[%s3187] ss:$2 sm:$0xff] %v2607
      %v3225 = vld.sshfl [vmem:[#allocation1] sm:$0xff pattern:$0x75316420]
      %v3226 = vld.sshfl [vmem:[#allocation1 + $0x10] sm:$0xff pattern:$0x75316420]
      %v3227 = vld.sshfl [vmem:[#allocation1 + $0x20] sm:$0xff pattern:$0x75316420]
      %v3228 = vld.sshfl [vmem:[#allocation1 + $0x30] sm:$0xff pattern:$0x75316420]
      %3229 = vst [vmem:[#allocation1] ss:$2 sm:$0xff] %v2610
      %3230 = vst [vmem:[%s3175] ss:$2 sm:$0xff] %v2628
      %3231 = vst [vmem:[%s3177] ss:$2 sm:$0xff] %v2631
      %3232 = vst [vmem:[%s3179] ss:$2 sm:$0xff] %v2634
      %v3233 = vld.sshfl [vmem:[#allocation1] sm:$0xff pattern:$0x75316420]
      %v3234 = vld.sshfl [vmem:[#allocation1 + $0x10] sm:$0xff pattern:$0x75316420]
      %3235 = vrot.lane.b32.xlu0 %v3189, 40
      %v3236 = vpop.permute.xlu0 %3235
      %3237 = vrot.lane.b32.xlu0 %v3190, 40
      %v3238 = vpop.permute.xlu0 %3237
      %3239 = vrot.lane.b32.xlu0 %v3191, 40
      %v3240 = vpop.permute.xlu0 %3239
      %3241 = vrot.lane.b32.xlu0 %v3192, 40
      %v3242 = vpop.permute.xlu0 %3241
      %3243 = vrot.lane.b32.xlu0 %v3201, 40
      %v3244 = vpop.permute.xlu0 %3243
      %3245 = vrot.lane.b32.xlu0 %v3202, 40
      %v3246 = vpop.permute.xlu0 %3245
      %3247 = vrot.lane.b32.xlu0 %v3203, 40
      %v3248 = vpop.permute.xlu0 %3247
      %3249 = vrot.lane.b32.xlu0 %v3204, 40
      %v3250 = vpop.permute.xlu0 %3249
      %3251 = vrot.lane.b32.xlu0 %v3213, 40
      %v3252 = vpop.permute.xlu0 %3251
      %3253 = vrot.lane.b32.xlu0 %v3214, 40
      %v3254 = vpop.permute.xlu0 %3253
      %3255 = vrot.lane.b32.xlu0 %v3215, 40
      %v3256 = vpop.permute.xlu0 %3255
      %3257 = vrot.lane.b32.xlu0 %v3216, 40
      %v3258 = vpop.permute.xlu0 %3257
      %3259 = vrot.lane.b32.xlu0 %v3225, 40
      %v3260 = vpop.permute.xlu0 %3259
      %3261 = vrot.lane.b32.xlu0 %v3226, 40
      %v3262 = vpop.permute.xlu0 %3261
      %3263 = vrot.lane.b32.xlu0 %v3227, 40
      %v3264 = vpop.permute.xlu0 %3263
      %3265 = vrot.lane.b32.xlu0 %v3228, 40
      %v3266 = vpop.permute.xlu0 %3265
      %3267 = vrot.lane.b32.xlu0 %v3233, 40
      %v3268 = vpop.permute.xlu0 %3267
      %3269 = vrot.lane.b32.xlu0 %v3234, 40
      %v3270 = vpop.permute.xlu0 %3269
      %3289 = vst [vmem:[#allocation1] ss:$2 sm:$0xff] %v2324
      %s3290 = scalar_lea.vmem [#allocation1], 1
      %3291 = vst [vmem:[%s3290] ss:$2 sm:$0xff] %v2370
      %s3292 = scalar_lea.vmem [#allocation1], 16
      %3293 = vst [vmem:[%s3292] ss:$2 sm:$0xff] %v2336
      %s3294 = scalar_lea.vmem [#allocation1], 17
      %3295 = vst [vmem:[%s3294] ss:$2 sm:$0xff] %v2325
      %s3296 = scalar_lea.vmem [#allocation1], 32
      %3297 = vst [vmem:[%s3296] ss:$2 sm:$0xff] %v2371
      %s3298 = scalar_lea.vmem [#allocation1], 33
      %3299 = vst [vmem:[%s3298] ss:$2 sm:$0xff] %v2337
      %s3300 = scalar_lea.vmem [#allocation1], 48
      %3301 = vst [vmem:[%s3300] ss:$2 sm:$0xff] %v2326
      %s3302 = scalar_lea.vmem [#allocation1], 49
      %3303 = vst [vmem:[%s3302] ss:$2 sm:$0xff] %v2372
      %v3304 = vld.sshfl [vmem:[#allocation1] sm:$0xff pattern:$0x75316420]
      %v3305 = vld.sshfl [vmem:[#allocation1 + $0x10] sm:$0xff pattern:$0x75316420]
      %v3306 = vld.sshfl [vmem:[#allocation1 + $0x20] sm:$0xff pattern:$0x75316420]
      %v3307 = vld.sshfl [vmem:[#allocation1 + $0x30] sm:$0xff pattern:$0x75316420]
      %3308 = vst [vmem:[#allocation1] ss:$2 sm:$0xff] %v2338
      %3309 = vst [vmem:[%s3290] ss:$2 sm:$0xff] %v2327
      %3310 = vst [vmem:[%s3292] ss:$2 sm:$0xff] %v2373
      %3311 = vst [vmem:[%s3294] ss:$2 sm:$0xff] %v2339
      %3312 = vst [vmem:[%s3296] ss:$2 sm:$0xff] %v2328
      %3313 = vst [vmem:[%s3298] ss:$2 sm:$0xff] %v2374
      %3314 = vst [vmem:[%s3300] ss:$2 sm:$0xff] %v2340
      %3315 = vst [vmem:[%s3302] ss:$2 sm:$0xff] %v2329
      %v3316 = vld.sshfl [vmem:[#allocation1] sm:$0xff pattern:$0x75316420]
      %v3317 = vld.sshfl [vmem:[#allocation1 + $0x10] sm:$0xff pattern:$0x75316420]
      %v3318 = vld.sshfl [vmem:[#allocation1 + $0x20] sm:$0xff pattern:$0x75316420]
      %v3319 = vld.sshfl [vmem:[#allocation1 + $0x30] sm:$0xff pattern:$0x75316420]
      %3320 = vst [vmem:[#allocation1] ss:$2 sm:$0xff] %v2375
      %3321 = vst [vmem:[%s3290] ss:$2 sm:$0xff] %v2341
      %3322 = vst [vmem:[%s3292] ss:$2 sm:$0xff] %v2330
      %3323 = vst [vmem:[%s3294] ss:$2 sm:$0xff] %v2376
      %3324 = vst [vmem:[%s3296] ss:$2 sm:$0xff] %v2342
      %3325 = vst [vmem:[%s3298] ss:$2 sm:$0xff] %v2331
      %3326 = vst [vmem:[%s3300] ss:$2 sm:$0xff] %v2377
      %3327 = vst [vmem:[%s3302] ss:$2 sm:$0xff] %v2343
      %v3328 = vld.sshfl [vmem:[#allocation1] sm:$0xff pattern:$0x75316420]
      %v3329 = vld.sshfl [vmem:[#allocation1 + $0x10] sm:$0xff pattern:$0x75316420]
      %v3330 = vld.sshfl [vmem:[#allocation1 + $0x20] sm:$0xff pattern:$0x75316420]
      %v3331 = vld.sshfl [vmem:[#allocation1 + $0x30] sm:$0xff pattern:$0x75316420]
      %3332 = vst [vmem:[#allocation1] ss:$2 sm:$0xff] %v2332
      %3333 = vst [vmem:[%s3290] ss:$2 sm:$0xff] %v2378
      %3334 = vst [vmem:[%s3292] ss:$2 sm:$0xff] %v2344
      %3335 = vst [vmem:[%s3294] ss:$2 sm:$0xff] %v2333
      %3336 = vst [vmem:[%s3296] ss:$2 sm:$0xff] %v2379
      %3337 = vst [vmem:[%s3298] ss:$2 sm:$0xff] %v2345
      %3338 = vst [vmem:[%s3300] ss:$2 sm:$0xff] %v2334
      %3339 = vst [vmem:[%s3302] ss:$2 sm:$0xff] %v2613
      %v3340 = vld.sshfl [vmem:[#allocation1] sm:$0xff pattern:$0x75316420]
      %v3341 = vld.sshfl [vmem:[#allocation1 + $0x10] sm:$0xff pattern:$0x75316420]
      %v3342 = vld.sshfl [vmem:[#allocation1 + $0x20] sm:$0xff pattern:$0x75316420]
      %v3343 = vld.sshfl [vmem:[#allocation1 + $0x30] sm:$0xff pattern:$0x75316420]
      %3344 = vst [vmem:[#allocation1] ss:$2 sm:$0xff] %v2346
      %3345 = vst [vmem:[%s3290] ss:$2 sm:$0xff] %v492
      %3346 = vst [vmem:[%s3292] ss:$2 sm:$0xff] %v543
      %3347 = vst [vmem:[%s3294] ss:$2 sm:$0xff] %v506
      %v3348 = vld.sshfl [vmem:[#allocation1] sm:$0xff pattern:$0x75316420]
      %v3349 = vld.sshfl [vmem:[#allocation1 + $0x10] sm:$0xff pattern:$0x75316420]
      %3350 = vrot.lane.b32.xlu0 %v3304, 48
      %v3351 = vpop.permute.xlu0 %3350
      %3352 = vrot.lane.b32.xlu0 %v3305, 48
      %v3353 = vpop.permute.xlu0 %3352
      %3354 = vrot.lane.b32.xlu0 %v3306, 48
      %v3355 = vpop.permute.xlu0 %3354
      %3356 = vrot.lane.b32.xlu0 %v3307, 48
      %v3357 = vpop.permute.xlu0 %3356
      %3358 = vrot.lane.b32.xlu0 %v3316, 48
      %v3359 = vpop.permute.xlu0 %3358
      %3360 = vrot.lane.b32.xlu0 %v3317, 48
      %v3361 = vpop.permute.xlu0 %3360
      %3362 = vrot.lane.b32.xlu0 %v3318, 48
      %v3363 = vpop.permute.xlu0 %3362
      %3364 = vrot.lane.b32.xlu0 %v3319, 48
      %v3365 = vpop.permute.xlu0 %3364
      %3366 = vrot.lane.b32.xlu0 %v3328, 48
      %v3367 = vpop.permute.xlu0 %3366
      %3368 = vrot.lane.b32.xlu0 %v3329, 48
      %v3369 = vpop.permute.xlu0 %3368
      %3370 = vrot.lane.b32.xlu0 %v3330, 48
      %v3371 = vpop.permute.xlu0 %3370
      %3372 = vrot.lane.b32.xlu0 %v3331, 48
      %v3373 = vpop.permute.xlu0 %3372
      %3374 = vrot.lane.b32.xlu0 %v3340, 48
      %v3375 = vpop.permute.xlu0 %3374
      %3376 = vrot.lane.b32.xlu0 %v3341, 48
      %v3377 = vpop.permute.xlu0 %3376
      %3378 = vrot.lane.b32.xlu0 %v3342, 48
      %v3379 = vpop.permute.xlu0 %3378
      %3380 = vrot.lane.b32.xlu0 %v3343, 48
      %v3381 = vpop.permute.xlu0 %3380
      %3382 = vrot.lane.b32.xlu0 %v3348, 48
      %v3383 = vpop.permute.xlu0 %3382
      %3384 = vrot.lane.b32.xlu0 %v3349, 48
      %v3385 = vpop.permute.xlu0 %3384
      %3404 = vst [vmem:[#allocation1] ss:$2 sm:$0xff] %v2404
      %s3405 = scalar_lea.vmem [#allocation1], 1
      %3406 = vst [vmem:[%s3405] ss:$2 sm:$0xff] %v2407
      %s3407 = scalar_lea.vmem [#allocation1], 16
      %3408 = vst [vmem:[%s3407] ss:$2 sm:$0xff] %v2410
      %s3409 = scalar_lea.vmem [#allocation1], 17
      %3410 = vst [vmem:[%s3409] ss:$2 sm:$0xff] %v2414
      %s3411 = scalar_lea.vmem [#allocation1], 32
      %3412 = vst [vmem:[%s3411] ss:$2 sm:$0xff] %v2417
      %s3413 = scalar_lea.vmem [#allocation1], 33
      %3414 = vst [vmem:[%s3413] ss:$2 sm:$0xff] %v2420
      %s3415 = scalar_lea.vmem [#allocation1], 48
      %3416 = vst [vmem:[%s3415] ss:$2 sm:$0xff] %v2424
      %s3417 = scalar_lea.vmem [#allocation1], 49
      %3418 = vst [vmem:[%s3417] ss:$2 sm:$0xff] %v2427
      %v3419 = vld.sshfl [vmem:[#allocation1] sm:$0xff pattern:$0x75316420]
      %v3420 = vld.sshfl [vmem:[#allocation1 + $0x10] sm:$0xff pattern:$0x75316420]
      %v3421 = vld.sshfl [vmem:[#allocation1 + $0x20] sm:$0xff pattern:$0x75316420]
      %v3422 = vld.sshfl [vmem:[#allocation1 + $0x30] sm:$0xff pattern:$0x75316420]
      %3423 = vst [vmem:[#allocation1] ss:$2 sm:$0xff] %v2430
      %3424 = vst [vmem:[%s3405] ss:$2 sm:$0xff] %v2434
      %3425 = vst [vmem:[%s3407] ss:$2 sm:$0xff] %v2437
      %3426 = vst [vmem:[%s3409] ss:$2 sm:$0xff] %v2440
      %3427 = vst [vmem:[%s3411] ss:$2 sm:$0xff] %v2444
      %3428 = vst [vmem:[%s3413] ss:$2 sm:$0xff] %v2447
      %3429 = vst [vmem:[%s3415] ss:$2 sm:$0xff] %v2450
      %3430 = vst [vmem:[%s3417] ss:$2 sm:$0xff] %v2454
      %v3431 = vld.sshfl [vmem:[#allocation1] sm:$0xff pattern:$0x75316420]
      %v3432 = vld.sshfl [vmem:[#allocation1 + $0x10] sm:$0xff pattern:$0x75316420]
      %v3433 = vld.sshfl [vmem:[#allocation1 + $0x20] sm:$0xff pattern:$0x75316420]
      %v3434 = vld.sshfl [vmem:[#allocation1 + $0x30] sm:$0xff pattern:$0x75316420]
      %3435 = vst [vmem:[#allocation1] ss:$2 sm:$0xff] %v2457
      %3436 = vst [vmem:[%s3405] ss:$2 sm:$0xff] %v2460
      %3437 = vst [vmem:[%s3407] ss:$2 sm:$0xff] %v2464
      %3438 = vst [vmem:[%s3409] ss:$2 sm:$0xff] %v2467
      %3439 = vst [vmem:[%s3411] ss:$2 sm:$0xff] %v2470
      %3440 = vst [vmem:[%s3413] ss:$2 sm:$0xff] %v2474
      %3441 = vst [vmem:[%s3415] ss:$2 sm:$0xff] %v2477
      %3442 = vst [vmem:[%s3417] ss:$2 sm:$0xff] %v2480
      %v3443 = vld.sshfl [vmem:[#allocation1] sm:$0xff pattern:$0x75316420]
      %v3444 = vld.sshfl [vmem:[#allocation1 + $0x10] sm:$0xff pattern:$0x75316420]
      %v3445 = vld.sshfl [vmem:[#allocation1 + $0x20] sm:$0xff pattern:$0x75316420]
      %v3446 = vld.sshfl [vmem:[#allocation1 + $0x30] sm:$0xff pattern:$0x75316420]
      %3447 = vst [vmem:[#allocation1] ss:$2 sm:$0xff] %v2484
      %3448 = vst [vmem:[%s3405] ss:$2 sm:$0xff] %v2487
      %3449 = vst [vmem:[%s3407] ss:$2 sm:$0xff] %v2490
      %3450 = vst [vmem:[%s3409] ss:$2 sm:$0xff] %v2494
      %3451 = vst [vmem:[%s3411] ss:$2 sm:$0xff] %v2497
      %3452 = vst [vmem:[%s3413] ss:$2 sm:$0xff] %v2500
      %3453 = vst [vmem:[%s3415] ss:$2 sm:$0xff] %v2618
      %3454 = vst [vmem:[%s3417] ss:$2 sm:$0xff] %v2621
      %v3455 = vld.sshfl [vmem:[#allocation1] sm:$0xff pattern:$0x75316420]
      %v3456 = vld.sshfl [vmem:[#allocation1 + $0x10] sm:$0xff pattern:$0x75316420]
      %v3457 = vld.sshfl [vmem:[#allocation1 + $0x20] sm:$0xff pattern:$0x75316420]
      %v3458 = vld.sshfl [vmem:[#allocation1 + $0x30] sm:$0xff pattern:$0x75316420]
      %3459 = vst [vmem:[#allocation1] ss:$2 sm:$0xff] %v2624
      %3460 = vst [vmem:[%s3405] ss:$2 sm:$0xff] %v573
      %3461 = vst [vmem:[%s3407] ss:$2 sm:$0xff] %v576
      %3462 = vst [vmem:[%s3409] ss:$2 sm:$0xff] %v579
      %v3463 = vld.sshfl [vmem:[#allocation1] sm:$0xff pattern:$0x75316420]
      %v3464 = vld.sshfl [vmem:[#allocation1 + $0x10] sm:$0xff pattern:$0x75316420]
      %3465 = vrot.lane.b32.xlu0 %v3419, 56
      %v3466 = vpop.permute.xlu0 %3465
      %3467 = vrot.lane.b32.xlu0 %v3420, 56
      %v3468 = vpop.permute.xlu0 %3467
      %3469 = vrot.lane.b32.xlu0 %v3421, 56
      %v3470 = vpop.permute.xlu0 %3469
      %3471 = vrot.lane.b32.xlu0 %v3422, 56
      %v3472 = vpop.permute.xlu0 %3471
      %3473 = vrot.lane.b32.xlu0 %v3431, 56
      %v3474 = vpop.permute.xlu0 %3473
      %3475 = vrot.lane.b32.xlu0 %v3432, 56
      %v3476 = vpop.permute.xlu0 %3475
      %3477 = vrot.lane.b32.xlu0 %v3433, 56
      %v3478 = vpop.permute.xlu0 %3477
      %3479 = vrot.lane.b32.xlu0 %v3434, 56
      %v3480 = vpop.permute.xlu0 %3479
      %3481 = vrot.lane.b32.xlu0 %v3443, 56
      %v3482 = vpop.permute.xlu0 %3481
      %3483 = vrot.lane.b32.xlu0 %v3444, 56
      %v3484 = vpop.permute.xlu0 %3483
      %3485 = vrot.lane.b32.xlu0 %v3445, 56
      %v3486 = vpop.permute.xlu0 %3485
      %3487 = vrot.lane.b32.xlu0 %v3446, 56
      %v3488 = vpop.permute.xlu0 %3487
      %3489 = vrot.lane.b32.xlu0 %v3455, 56
      %v3490 = vpop.permute.xlu0 %3489
      %3491 = vrot.lane.b32.xlu0 %v3456, 56
      %v3492 = vpop.permute.xlu0 %3491
      %3493 = vrot.lane.b32.xlu0 %v3457, 56
      %v3494 = vpop.permute.xlu0 %3493
      %3495 = vrot.lane.b32.xlu0 %v3458, 56
      %v3496 = vpop.permute.xlu0 %3495
      %3497 = vrot.lane.b32.xlu0 %v3463, 56
      %v3498 = vpop.permute.xlu0 %3497
      %3499 = vrot.lane.b32.xlu0 %v3464, 56
      %v3500 = vpop.permute.xlu0 %3499
      %3519 = vst [vmem:[#allocation1] ss:$2 sm:$0xff] %v2514
      %s3520 = scalar_lea.vmem [#allocation1], 1
      %3521 = vst [vmem:[%s3520] ss:$2 sm:$0xff] %v2517
      %s3522 = scalar_lea.vmem [#allocation1], 16
      %3523 = vst [vmem:[%s3522] ss:$2 sm:$0xff] %v2520
      %s3524 = scalar_lea.vmem [#allocation1], 17
      %3525 = vst [vmem:[%s3524] ss:$2 sm:$0xff] %v2524
      %s3526 = scalar_lea.vmem [#allocation1], 32
      %3527 = vst [vmem:[%s3526] ss:$2 sm:$0xff] %v2527
      %s3528 = scalar_lea.vmem [#allocation1], 33
      %3529 = vst [vmem:[%s3528] ss:$2 sm:$0xff] %v2530
      %s3530 = scalar_lea.vmem [#allocation1], 48
      %3531 = vst [vmem:[%s3530] ss:$2 sm:$0xff] %v2534
      %s3532 = scalar_lea.vmem [#allocation1], 49
      %3533 = vst [vmem:[%s3532] ss:$2 sm:$0xff] %v2537
      %v3534 = vld.sshfl [vmem:[#allocation1] sm:$0xff pattern:$0x75316420]
      %v3535 = vld.sshfl [vmem:[#allocation1 + $0x10] sm:$0xff pattern:$0x75316420]
      %v3536 = vld.sshfl [vmem:[#allocation1 + $0x20] sm:$0xff pattern:$0x75316420]
      %v3537 = vld.sshfl [vmem:[#allocation1 + $0x30] sm:$0xff pattern:$0x75316420]
      %3538 = vst [vmem:[#allocation1] ss:$2 sm:$0xff] %v2540
      %3539 = vst [vmem:[%s3520] ss:$2 sm:$0xff] %v2544
      %3540 = vst [vmem:[%s3522] ss:$2 sm:$0xff] %v2547
      %3541 = vst [vmem:[%s3524] ss:$2 sm:$0xff] %v2550
      %3542 = vst [vmem:[%s3526] ss:$2 sm:$0xff] %v2554
      %3543 = vst [vmem:[%s3528] ss:$2 sm:$0xff] %v2557
      %3544 = vst [vmem:[%s3530] ss:$2 sm:$0xff] %v2560
      %3545 = vst [vmem:[%s3532] ss:$2 sm:$0xff] %v2564
      %v3546 = vld.sshfl [vmem:[#allocation1] sm:$0xff pattern:$0x75316420]
      %v3547 = vld.sshfl [vmem:[#allocation1 + $0x10] sm:$0xff pattern:$0x75316420]
      %v3548 = vld.sshfl [vmem:[#allocation1 + $0x20] sm:$0xff pattern:$0x75316420]
      %v3549 = vld.sshfl [vmem:[#allocation1 + $0x30] sm:$0xff pattern:$0x75316420]
      %3550 = vst [vmem:[#allocation1] ss:$2 sm:$0xff] %v2567
      %3551 = vst [vmem:[%s3520] ss:$2 sm:$0xff] %v2570
      %3552 = vst [vmem:[%s3522] ss:$2 sm:$0xff] %v2574
      %3553 = vst [vmem:[%s3524] ss:$2 sm:$0xff] %v2577
      %3554 = vst [vmem:[%s3526] ss:$2 sm:$0xff] %v2580
      %3555 = vst [vmem:[%s3528] ss:$2 sm:$0xff] %v2584
      %3556 = vst [vmem:[%s3530] ss:$2 sm:$0xff] %v2587
      %3557 = vst [vmem:[%s3532] ss:$2 sm:$0xff] %v2590
      %v3558 = vld.sshfl [vmem:[#allocation1] sm:$0xff pattern:$0x75316420]
      %v3559 = vld.sshfl [vmem:[#allocation1 + $0x10] sm:$0xff pattern:$0x75316420]
      %v3560 = vld.sshfl [vmem:[#allocation1 + $0x20] sm:$0xff pattern:$0x75316420]
      %v3561 = vld.sshfl [vmem:[#allocation1 + $0x30] sm:$0xff pattern:$0x75316420]
      %3562 = vst [vmem:[#allocation1] ss:$2 sm:$0xff] %v2594
      %3563 = vst [vmem:[%s3520] ss:$2 sm:$0xff] %v2597
      %3564 = vst [vmem:[%s3522] ss:$2 sm:$0xff] %v2600
      %3565 = vst [vmem:[%s3524] ss:$2 sm:$0xff] %v2604
      %3566 = vst [vmem:[%s3526] ss:$2 sm:$0xff] %v2607
      %3567 = vst [vmem:[%s3528] ss:$2 sm:$0xff] %v2610
      %3568 = vst [vmem:[%s3530] ss:$2 sm:$0xff] %v2628
      %3569 = vst [vmem:[%s3532] ss:$2 sm:$0xff] %v2631
      %v3570 = vld.sshfl [vmem:[#allocation1] sm:$0xff pattern:$0x75316420]
      %v3571 = vld.sshfl [vmem:[#allocation1 + $0x10] sm:$0xff pattern:$0x75316420]
      %v3572 = vld.sshfl [vmem:[#allocation1 + $0x20] sm:$0xff pattern:$0x75316420]
      %v3573 = vld.sshfl [vmem:[#allocation1 + $0x30] sm:$0xff pattern:$0x75316420]
      %3574 = vst [vmem:[#allocation1] ss:$2 sm:$0xff] %v2634
      %3575 = vst [vmem:[%s3520] ss:$2 sm:$0xff] %v696
      %3576 = vst [vmem:[%s3522] ss:$2 sm:$0xff] %v699
      %3577 = vst [vmem:[%s3524] ss:$2 sm:$0xff] %v702
      %v3578 = vld.sshfl [vmem:[#allocation1] sm:$0xff pattern:$0x75316420]
      %v3579 = vld.sshfl [vmem:[#allocation1 + $0x10] sm:$0xff pattern:$0x75316420]
      %3580 = vrot.lane.b32.xlu0 %v3534, 64
      %v3581 = vpop.permute.xlu0 %3580
      %3582 = vrot.lane.b32.xlu0 %v3535, 64
      %v3583 = vpop.permute.xlu0 %3582
      %3584 = vrot.lane.b32.xlu0 %v3536, 64
      %v3585 = vpop.permute.xlu0 %3584
      %3586 = vrot.lane.b32.xlu0 %v3537, 64
      %v3587 = vpop.permute.xlu0 %3586
      %3588 = vrot.lane.b32.xlu0 %v3546, 64
      %v3589 = vpop.permute.xlu0 %3588
      %3590 = vrot.lane.b32.xlu0 %v3547, 64
      %v3591 = vpop.permute.xlu0 %3590
      %3592 = vrot.lane.b32.xlu0 %v3548, 64
      %v3593 = vpop.permute.xlu0 %3592
      %3594 = vrot.lane.b32.xlu0 %v3549, 64
      %v3595 = vpop.permute.xlu0 %3594
      %3596 = vrot.lane.b32.xlu0 %v3558, 64
      %v3597 = vpop.permute.xlu0 %3596
      %3598 = vrot.lane.b32.xlu0 %v3559, 64
      %v3599 = vpop.permute.xlu0 %3598
      %3600 = vrot.lane.b32.xlu0 %v3560, 64
      %v3601 = vpop.permute.xlu0 %3600
      %3602 = vrot.lane.b32.xlu0 %v3561, 64
      %v3603 = vpop.permute.xlu0 %3602
      %3604 = vrot.lane.b32.xlu0 %v3570, 64
      %v3605 = vpop.permute.xlu0 %3604
      %3606 = vrot.lane.b32.xlu0 %v3571, 64
      %v3607 = vpop.permute.xlu0 %3606
      %3608 = vrot.lane.b32.xlu0 %v3572, 64
      %v3609 = vpop.permute.xlu0 %3608
      %3610 = vrot.lane.b32.xlu0 %v3573, 64
      %v3611 = vpop.permute.xlu0 %3610
      %3612 = vrot.lane.b32.xlu0 %v3578, 64
      %v3613 = vpop.permute.xlu0 %3612
      %3614 = vrot.lane.b32.xlu0 %v3579, 64
      %v3615 = vpop.permute.xlu0 %3614
      %v3634 = vsel %vm1969, %v2650, %v2776
      %v3635 = vsel %vm1969, %v2651, %v2778
      %v3636 = vsel %vm1969, %v2652, %v2780
      %v3637 = vsel %vm1969, %v2653, %v2782
      %v3638 = vsel %vm1969, %v2662, %v2784
      %v3639 = vsel %vm1969, %v2663, %v2786
      %v3640 = vsel %vm1969, %v2664, %v2788
      %v3641 = vsel %vm1969, %v2665, %v2790
      %v3642 = vsel %vm1969, %v2674, %v2792
      %v3643 = vsel %vm1969, %v2675, %v2794
      %v3644 = vsel %vm1969, %v2676, %v2796
      %v3645 = vsel %vm1969, %v2677, %v2798
      %v3646 = vsel %vm1969, %v2686, %v2800
      %v3647 = vsel %vm1969, %v2687, %v2802
      %v3648 = vsel %vm1969, %v2688, %v2804
      %v3649 = vsel %vm1969, %v2689, %v2806
      %v3650 = vsel %vm1969, %v2694, %v2808
      %v3651 = vsel %vm1969, %v2695, %v2810
      %vm3652 = vcmask 130048
      %v3653 = vsel %vm3652, %v3634, %v2891
      %v3654 = vsel %vm3652, %v3635, %v2893
      %v3655 = vsel %vm3652, %v3636, %v2895
      %v3656 = vsel %vm3652, %v3637, %v2897
      %v3657 = vsel %vm3652, %v3638, %v2899
      %v3658 = vsel %vm3652, %v3639, %v2901
      %v3659 = vsel %vm3652, %v3640, %v2903
      %v3660 = vsel %vm3652, %v3641, %v2905
      %v3661 = vsel %vm3652, %v3642, %v2907
      %v3662 = vsel %vm3652, %v3643, %v2909
      %v3663 = vsel %vm3652, %v3644, %v2911
      %v3664 = vsel %vm3652, %v3645, %v2913
      %v3665 = vsel %vm3652, %v3646, %v2915
      %v3666 = vsel %vm3652, %v3647, %v2917
      %v3667 = vsel %vm3652, %v3648, %v2919
      %v3668 = vsel %vm3652, %v3649, %v2921
      %v3669 = vsel %vm3652, %v3650, %v2923
      %v3670 = vsel %vm3652, %v3651, %v2925
      %vm3671 = vcmask 195584
      %v3672 = vsel %vm3671, %v3653, %v3006
      %v3673 = vsel %vm3671, %v3654, %v3008
      %v3674 = vsel %vm3671, %v3655, %v3010
      %v3675 = vsel %vm3671, %v3656, %v3012
      %v3676 = vsel %vm3671, %v3657, %v3014
      %v3677 = vsel %vm3671, %v3658, %v3016
      %v3678 = vsel %vm3671, %v3659, %v3018
      %v3679 = vsel %vm3671, %v3660, %v3020
      %v3680 = vsel %vm3671, %v3661, %v3022
      %v3681 = vsel %vm3671, %v3662, %v3024
      %v3682 = vsel %vm3671, %v3663, %v3026
      %v3683 = vsel %vm3671, %v3664, %v3028
      %v3684 = vsel %vm3671, %v3665, %v3030
      %v3685 = vsel %vm3671, %v3666, %v3032
      %v3686 = vsel %vm3671, %v3667, %v3034
      %v3687 = vsel %vm3671, %v3668, %v3036
      %v3688 = vsel %vm3671, %v3669, %v3038
      %v3689 = vsel %vm3671, %v3670, %v3040
      %vm3690 = vcmask 261120
      %v3691 = vsel %vm3690, %v3672, %v3121
      %v3692 = vsel %vm3690, %v3673, %v3123
      %v3693 = vsel %vm3690, %v3674, %v3125
      %v3694 = vsel %vm3690, %v3675, %v3127
      %v3695 = vsel %vm3690, %v3676, %v3129
      %v3696 = vsel %vm3690, %v3677, %v3131
      %v3697 = vsel %vm3690, %v3678, %v3133
      %v3698 = vsel %vm3690, %v3679, %v3135
      %v3699 = vsel %vm3690, %v3680, %v3137
      %v3700 = vsel %vm3690, %v3681, %v3139
      %v3701 = vsel %vm3690, %v3682, %v3141
      %v3702 = vsel %vm3690, %v3683, %v3143
      %v3703 = vsel %vm3690, %v3684, %v3145
      %v3704 = vsel %vm3690, %v3685, %v3147
      %v3705 = vsel %vm3690, %v3686, %v3149
      %v3706 = vsel %vm3690, %v3687, %v3151
      %v3707 = vsel %vm3690, %v3688, %v3153
      %v3708 = vsel %vm3690, %v3689, %v3155
      %vm3709 = vcmask 326656
      %v3710 = vsel %vm3709, %v3691, %v3236
      %v3711 = vsel %vm3709, %v3692, %v3238
      %v3712 = vsel %vm3709, %v3693, %v3240
      %v3713 = vsel %vm3709, %v3694, %v3242
      %v3714 = vsel %vm3709, %v3695, %v3244
      %v3715 = vsel %vm3709, %v3696, %v3246
      %v3716 = vsel %vm3709, %v3697, %v3248
      %v3717 = vsel %vm3709, %v3698, %v3250
      %v3718 = vsel %vm3709, %v3699, %v3252
      %v3719 = vsel %vm3709, %v3700, %v3254
      %v3720 = vsel %vm3709, %v3701, %v3256
      %v3721 = vsel %vm3709, %v3702, %v3258
      %v3722 = vsel %vm3709, %v3703, %v3260
      %v3723 = vsel %vm3709, %v3704, %v3262
      %v3724 = vsel %vm3709, %v3705, %v3264
      %v3725 = vsel %vm3709, %v3706, %v3266
      %v3726 = vsel %vm3709, %v3707, %v3268
      %v3727 = vsel %vm3709, %v3708, %v3270
      %vm3728 = vcmask 392192
      %v3729 = vsel %vm3728, %v3710, %v3351
      %v3730 = vsel %vm3728, %v3711, %v3353
      %v3731 = vsel %vm3728, %v3712, %v3355
      %v3732 = vsel %vm3728, %v3713, %v3357
      %v3733 = vsel %vm3728, %v3714, %v3359
      %v3734 = vsel %vm3728, %v3715, %v3361
      %v3735 = vsel %vm3728, %v3716, %v3363
      %v3736 = vsel %vm3728, %v3717, %v3365
      %v3737 = vsel %vm3728, %v3718, %v3367
      %v3738 = vsel %vm3728, %v3719, %v3369
      %v3739 = vsel %vm3728, %v3720, %v3371
      %v3740 = vsel %vm3728, %v3721, %v3373
      %v3741 = vsel %vm3728, %v3722, %v3375
      %v3742 = vsel %vm3728, %v3723, %v3377
      %v3743 = vsel %vm3728, %v3724, %v3379
      %v3744 = vsel %vm3728, %v3725, %v3381
      %v3745 = vsel %vm3728, %v3726, %v3383
      %v3746 = vsel %vm3728, %v3727, %v3385
      %vm3747 = vcmask 457728
      %v3748 = vsel %vm3747, %v3729, %v3466
      %v3749 = vsel %vm3747, %v3730, %v3468
      %v3750 = vsel %vm3747, %v3731, %v3470
      %v3751 = vsel %vm3747, %v3732, %v3472
      %v3752 = vsel %vm3747, %v3733, %v3474
      %v3753 = vsel %vm3747, %v3734, %v3476
      %v3754 = vsel %vm3747, %v3735, %v3478
      %v3755 = vsel %vm3747, %v3736, %v3480
      %v3756 = vsel %vm3747, %v3737, %v3482
      %v3757 = vsel %vm3747, %v3738, %v3484
      %v3758 = vsel %vm3747, %v3739, %v3486
      %v3759 = vsel %vm3747, %v3740, %v3488
      %v3760 = vsel %vm3747, %v3741, %v3490
      %v3761 = vsel %vm3747, %v3742, %v3492
      %v3762 = vsel %vm3747, %v3743, %v3494
      %v3763 = vsel %vm3747, %v3744, %v3496
      %v3764 = vsel %vm3747, %v3745, %v3498
      %v3765 = vsel %vm3747, %v3746, %v3500
      %vm3766 = vcmask 523264
      %v3767 = vsel %vm3766, %v3748, %v3581
      %v3768 = vsel %vm3766, %v3749, %v3583
      %v3769 = vsel %vm3766, %v3750, %v3585
      %v3770 = vsel %vm3766, %v3751, %v3587
      %v3771 = vsel %vm3766, %v3752, %v3589
      %v3772 = vsel %vm3766, %v3753, %v3591
      %v3773 = vsel %vm3766, %v3754, %v3593
      %v3774 = vsel %vm3766, %v3755, %v3595
      %v3775 = vsel %vm3766, %v3756, %v3597
      %v3776 = vsel %vm3766, %v3757, %v3599
      %v3777 = vsel %vm3766, %v3758, %v3601
      %v3778 = vsel %vm3766, %v3759, %v3603
      %v3779 = vsel %vm3766, %v3760, %v3605
      %v3780 = vsel %vm3766, %v3761, %v3607
      %v3781 = vsel %vm3766, %v3762, %v3609
      %v3782 = vsel %vm3766, %v3763, %v3611
      %v3783 = vsel %vm3766, %v3764, %v3613
      %v3784 = vsel %vm3766, %v3765, %v3615
      %vm3785 = vcmask 588800
      %v3787 = vsel %vm3785, %v3767, 0
      %v3790 = vsel %vm3785, %v3768, 0
      %v3793 = vsel %vm3785, %v3769, 0
      %v3796 = vsel %vm3785, %v3770, 0
      %v3799 = vsel %vm3785, %v3771, 0
      %v3802 = vsel %vm3785, %v3772, 0
      %v3805 = vsel %vm3785, %v3773, 0
      %v3808 = vsel %vm3785, %v3774, 0
      %v3811 = vsel %vm3785, %v3775, 0
      %v3814 = vsel %vm3785, %v3776, 0
      %v3817 = vsel %vm3785, %v3777, 0
      %v3820 = vsel %vm3785, %v3778, 0
      %v3823 = vsel %vm3785, %v3779, 0
      %v3826 = vsel %vm3785, %v3780, 0
      %v3829 = vsel %vm3785, %v3781, 0
      %v3832 = vsel %vm3785, %v3782, 0
      %v3835 = vsel %vm3785, %v3783, 0
      %v3838 = vsel %vm3785, %v3784, 0
      %3840 = vmatpush.msra.mxu0 0.0
      %3841 = vmatpush.msra.mxu0 0.0
      %3842 = vmatpush.msra.mxu0 0.0
      %3843 = vmatpush.msra.mxu0 0.0
      %3844 = vmatpush.msra.mxu0 0.0
      %3845 = vmatpush.msra.mxu0 0.0
      %3846 = vmatpush.msra.mxu0 0.0
      %3847 = vmatpush.msra.mxu0 %v2197
      %3848 = vmatpush.msra.mxu0 %v2196
      %3849 = vmatpush.msra.mxu0 %v2195
      %3850 = vmatpush.msra.mxu0 %v2194
      %3851 = vmatpush.msra.mxu0 %v2193
      %3852 = vmatpush.msra.mxu0 %v2192
      %3853 = vmatpush.msra.mxu0 %v2191
      %3854 = vmatpush.msra.mxu0 %v2190
      %3855 = vmatpush.msra.mxu0 %v2189
      %3856 = vmatmul.f32.gmra.mxu0 %v3787
      %v3857 = vpop.f32.mrf.mxu0
      %v3858 = vadd.f32 0.0, %v3857
      %3859 = vmatmul.f32.gmra.mxu0 %v3790
      %v3860 = vpop.f32.mrf.mxu0
      %v3861 = vadd.f32 0.0, %v3860
      %3862 = vmatmul.f32.gmra.mxu0 %v3793
      %v3863 = vpop.f32.mrf.mxu0
      %v3864 = vadd.f32 0.0, %v3863
      %3865 = vmatmul.f32.gmra.mxu0 %v3796
      %v3866 = vpop.f32.mrf.mxu0
      %v3867 = vadd.f32 0.0, %v3866
      %3868 = vmatmul.f32.gmra.mxu0 %v3799
      %v3869 = vpop.f32.mrf.mxu0
      %v3870 = vadd.f32 0.0, %v3869
      %3871 = vmatmul.f32.gmra.mxu0 %v3802
      %v3872 = vpop.f32.mrf.mxu0
      %v3873 = vadd.f32 0.0, %v3872
      %3874 = vmatmul.f32.gmra.mxu0 %v3805
      %v3875 = vpop.f32.mrf.mxu0
      %v3876 = vadd.f32 0.0, %v3875
      %3877 = vmatmul.f32.gmra.mxu0 %v3808
      %v3878 = vpop.f32.mrf.mxu0
      %v3879 = vadd.f32 0.0, %v3878
      %3880 = vmatmul.f32.gmra.mxu0 %v3811
      %v3881 = vpop.f32.mrf.mxu0
      %v3882 = vadd.f32 0.0, %v3881
      %3883 = vmatmul.f32.gmra.mxu0 %v3814
      %v3884 = vpop.f32.mrf.mxu0
      %v3885 = vadd.f32 0.0, %v3884
      %3886 = vmatmul.f32.gmra.mxu0 %v3817
      %v3887 = vpop.f32.mrf.mxu0
      %v3888 = vadd.f32 0.0, %v3887
      %3889 = vmatmul.f32.gmra.mxu0 %v3820
      %v3890 = vpop.f32.mrf.mxu0
      %v3891 = vadd.f32 0.0, %v3890
      %3892 = vmatmul.f32.gmra.mxu0 %v3823
      %v3893 = vpop.f32.mrf.mxu0
      %v3894 = vadd.f32 0.0, %v3893
      %3895 = vmatmul.f32.gmra.mxu0 %v3826
      %v3896 = vpop.f32.mrf.mxu0
      %v3897 = vadd.f32 0.0, %v3896
      %3898 = vmatmul.f32.gmra.mxu0 %v3829
      %v3899 = vpop.f32.mrf.mxu0
      %v3900 = vadd.f32 0.0, %v3899
      %3901 = vmatmul.f32.gmra.mxu0 %v3832
      %v3902 = vpop.f32.mrf.mxu0
      %v3903 = vadd.f32 0.0, %v3902
      %3904 = vmatmul.f32.gmra.mxu0 %v3835
      %v3905 = vpop.f32.mrf.mxu0
      %v3906 = vadd.f32 0.0, %v3905
      %3907 = vmatmul.f32.gmra.mxu0 %v3838
      %v3908 = vpop.f32.mrf.mxu0
      %v3909 = vadd.f32 0.0, %v3908
      %3910 = vdwg.mxu0
      %v3911 = vmax.f32 %v3858, 0.0
      %v3912 = vmax.f32 %v3861, 0.0
      %v3913 = vmax.f32 %v3864, 0.0
      %v3914 = vmax.f32 %v3867, 0.0
      %v3915 = vmax.f32 %v3870, 0.0
      %v3916 = vmax.f32 %v3873, 0.0
      %v3917 = vmax.f32 %v3876, 0.0
      %v3918 = vmax.f32 %v3879, 0.0
      %v3919 = vmax.f32 %v3882, 0.0
      %v3920 = vmax.f32 %v3885, 0.0
      %v3921 = vmax.f32 %v3888, 0.0
      %v3922 = vmax.f32 %v3891, 0.0
      %v3923 = vmax.f32 %v3894, 0.0
      %v3924 = vmax.f32 %v3897, 0.0
      %v3925 = vmax.f32 %v3900, 0.0
      %v3926 = vmax.f32 %v3903, 0.0
      %v3927 = vmax.f32 %v3906, 0.0
      %v3928 = vmax.f32 %v3909, 0.0
      %v3929 = vmul.f32 %v3911, 1.4142135
      %v3930 = vmul.f32 %v3912, 1.4142135
      %v3931 = vmul.f32 %v3913, 1.4142135
      %v3932 = vmul.f32 %v3914, 1.4142135
      %v3933 = vmul.f32 %v3915, 1.4142135
      %v3934 = vmul.f32 %v3916, 1.4142135
      %v3935 = vmul.f32 %v3917, 1.4142135
      %v3936 = vmul.f32 %v3918, 1.4142135
      %v3937 = vmul.f32 %v3919, 1.4142135
      %v3938 = vmul.f32 %v3920, 1.4142135
      %v3939 = vmul.f32 %v3921, 1.4142135
      %v3940 = vmul.f32 %v3922, 1.4142135
      %v3941 = vmul.f32 %v3923, 1.4142135
      %v3942 = vmul.f32 %v3924, 1.4142135
      %v3943 = vmul.f32 %v3925, 1.4142135
      %v3944 = vmul.f32 %v3926, 1.4142135
      %v3945 = vmul.f32 %v3927, 1.4142135
      %v3946 = vmul.f32 %v3928, 1.4142135
      %v3965 = vrot.slane %v3929, 4
      %v3966 = vrot.slane %v3930, 4
      %v3967 = vrot.slane %v3931, 4
      %v3968 = vrot.slane %v3932, 4
      %v3969 = vrot.slane %v3933, 4
      %v3970 = vrot.slane %v3934, 4
      %v3971 = vrot.slane %v3935, 4
      %v3972 = vrot.slane %v3936, 4
      %v3973 = vrot.slane %v3937, 4
      %v3974 = vrot.slane %v3938, 4
      %v3975 = vrot.slane %v3939, 4
      %v3976 = vrot.slane %v3940, 4
      %v3977 = vrot.slane %v3941, 4
      %v3978 = vrot.slane %v3942, 4
      %v3979 = vrot.slane %v3943, 4
      %v3980 = vrot.slane %v3944, 4
      %v3981 = vrot.slane %v3945, 4
      %v3982 = vrot.slane %v3946, 4
      %v3983 = vld [vmem:[%s4] sm:$0xff]
      %v3984 = vld [vmem:[%s4 + $0x8] sm:$0xff]
      %v3985 = vld [vmem:[%s4 + $0x10] sm:$0xff]
      %v3986 = vld [vmem:[%s4 + $0x18] sm:$0xff]
      %v3987 = vld [vmem:[%s4 + $0x20] sm:$0xff]
      %v3988 = vld [vmem:[%s4 + $0x28] sm:$0xff]
      %v3989 = vld [vmem:[%s4 + $0x30] sm:$0xff]
      %v3990 = vld [vmem:[%s4 + $0x38] sm:$0xff]
      %v3991 = vld [vmem:[%s4 + $0x40] sm:$0xff]
      %3992 = vst [vmem:[#allocation1] ss:$2 sm:$0xff] %v3929
      %s3993 = scalar_lea.vmem [#allocation1], 1
      %3994 = vst [vmem:[%s3993] ss:$2 sm:$0xff] %v3965
      %s3995 = scalar_lea.vmem [#allocation1], 16
      %3996 = vst [vmem:[%s3995] ss:$2 sm:$0xff] %v3930
      %v3997 = vld.sshfl [vmem:[#allocation1] sm:$0xff pattern:$0x75316420]
      %v3998 = vld.sshfl [vmem:[#allocation1 + $0x10] sm:$0xff pattern:$0x75316420]
      %s3999 = scalar_lea.vmem [#allocation1], 32
      %4000 = vst [vmem:[%s3999] ss:$2 sm:$0xff] %v3966
      %s4001 = scalar_lea.vmem [#allocation1], 33
      %4002 = vst [vmem:[%s4001] ss:$2 sm:$0xff] %v3931
      %s4003 = scalar_lea.vmem [#allocation1], 48
      %4004 = vst [vmem:[%s4003] ss:$2 sm:$0xff] %v3967
      %v4005 = vld.sshfl [vmem:[#allocation1 + $0x20] sm:$0xff pattern:$0x75316420]
      %v4006 = vld.sshfl [vmem:[#allocation1 + $0x30] sm:$0xff pattern:$0x75316420]
      %4007 = vst [vmem:[#allocation1] ss:$2 sm:$0xff] %v3932
      %4008 = vst [vmem:[%s3993] ss:$2 sm:$0xff] %v3968
      %4009 = vst [vmem:[%s3995] ss:$2 sm:$0xff] %v3933
      %v4010 = vld.sshfl [vmem:[#allocation1] sm:$0xff pattern:$0x75316420]
      %v4011 = vld.sshfl [vmem:[#allocation1 + $0x10] sm:$0xff pattern:$0x75316420]
      %4012 = vst [vmem:[%s3999] ss:$2 sm:$0xff] %v3969
      %4013 = vst [vmem:[%s4001] ss:$2 sm:$0xff] %v3934
      %4014 = vst [vmem:[%s4003] ss:$2 sm:$0xff] %v3970
      %v4015 = vld.sshfl [vmem:[#allocation1 + $0x20] sm:$0xff pattern:$0x75316420]
      %v4016 = vld.sshfl [vmem:[#allocation1 + $0x30] sm:$0xff pattern:$0x75316420]
      %4017 = vst [vmem:[#allocation1] ss:$2 sm:$0xff] %v3935
      %4018 = vst [vmem:[%s3993] ss:$2 sm:$0xff] %v3971
      %4019 = vst [vmem:[%s3995] ss:$2 sm:$0xff] %v3936
      %v4020 = vld.sshfl [vmem:[#allocation1] sm:$0xff pattern:$0x75316420]
      %v4021 = vld.sshfl [vmem:[#allocation1 + $0x10] sm:$0xff pattern:$0x75316420]
      %4022 = vst [vmem:[%s3999] ss:$2 sm:$0xff] %v3972
      %4023 = vst [vmem:[%s4001] ss:$2 sm:$0xff] %v3937
      %4024 = vst [vmem:[%s4003] ss:$2 sm:$0xff] %v3973
      %v4025 = vld.sshfl [vmem:[#allocation1 + $0x20] sm:$0xff pattern:$0x75316420]
      %v4026 = vld.sshfl [vmem:[#allocation1 + $0x30] sm:$0xff pattern:$0x75316420]
      %4027 = vst [vmem:[#allocation1] ss:$2 sm:$0xff] %v3938
      %4028 = vst [vmem:[%s3993] ss:$2 sm:$0xff] %v3974
      %4029 = vst [vmem:[%s3995] ss:$2 sm:$0xff] %v3939
      %v4030 = vld.sshfl [vmem:[#allocation1] sm:$0xff pattern:$0x75316420]
      %v4031 = vld.sshfl [vmem:[#allocation1 + $0x10] sm:$0xff pattern:$0x75316420]
      %4032 = vst [vmem:[%s3999] ss:$2 sm:$0xff] %v3975
      %4033 = vst [vmem:[%s4001] ss:$2 sm:$0xff] %v3940
      %4034 = vst [vmem:[%s4003] ss:$2 sm:$0xff] %v3976
      %v4035 = vld.sshfl [vmem:[#allocation1 + $0x20] sm:$0xff pattern:$0x75316420]
      %v4036 = vld.sshfl [vmem:[#allocation1 + $0x30] sm:$0xff pattern:$0x75316420]
      %4037 = vst [vmem:[#allocation1] ss:$2 sm:$0xff] %v3941
      %4038 = vst [vmem:[%s3993] ss:$2 sm:$0xff] %v3977
      %4039 = vst [vmem:[%s3995] ss:$2 sm:$0xff] %v3942
      %v4040 = vld.sshfl [vmem:[#allocation1] sm:$0xff pattern:$0x75316420]
      %v4041 = vld.sshfl [vmem:[#allocation1 + $0x10] sm:$0xff pattern:$0x75316420]
      %4042 = vst [vmem:[%s3999] ss:$2 sm:$0xff] %v3978
      %4043 = vst [vmem:[%s4001] ss:$2 sm:$0xff] %v3943
      %4044 = vst [vmem:[%s4003] ss:$2 sm:$0xff] %v3979
      %v4045 = vld.sshfl [vmem:[#allocation1 + $0x20] sm:$0xff pattern:$0x75316420]
      %v4046 = vld.sshfl [vmem:[#allocation1 + $0x30] sm:$0xff pattern:$0x75316420]
      %4047 = vst [vmem:[#allocation1] ss:$2 sm:$0xff] %v3944
      %4048 = vst [vmem:[%s3993] ss:$2 sm:$0xff] %v3980
      %4049 = vst [vmem:[%s3995] ss:$2 sm:$0xff] %v3945
      %v4050 = vld.sshfl [vmem:[#allocation1] sm:$0xff pattern:$0x75316420]
      %v4051 = vld.sshfl [vmem:[#allocation1 + $0x10] sm:$0xff pattern:$0x75316420]
      %4052 = vst [vmem:[%s3999] ss:$2 sm:$0xff] %v3981
      %4053 = vst [vmem:[%s4001] ss:$2 sm:$0xff] %v3946
      %4054 = vst [vmem:[%s4003] ss:$2 sm:$0xff] %v3982
      %v4055 = vld.sshfl [vmem:[#allocation1 + $0x20] sm:$0xff pattern:$0x75316420]
      %v4056 = vld.sshfl [vmem:[#allocation1 + $0x30] sm:$0xff pattern:$0x75316420]
      %4057 = vst [vmem:[#allocation1] ss:$2 sm:$0xff] 0.0
      %4058 = vst [vmem:[%s3993] ss:$2 sm:$0xff] 0.0
      %4059 = vst [vmem:[%s3995] ss:$2 sm:$0xff] 0.0
      %4060 = vst [vmem:[%s3999] ss:$2 sm:$0xff] 0.0
      %4061 = vst [vmem:[%s4001] ss:$2 sm:$0xff] 0.0
      %4062 = vst [vmem:[%s4003] ss:$2 sm:$0xff] 0.0
      %vm4075 = vcmask 1043456
      %v4076 = vsel %vm4075, %v3998, 0.0
      %v4077 = vsel %vm4075, %v4006, 0.0
      %v4078 = vsel %vm4075, %v4011, 0.0
      %v4079 = vsel %vm4075, %v4016, 0.0
      %v4080 = vsel %vm4075, %v4021, 0.0
      %v4081 = vsel %vm4075, %v4026, 0.0
      %v4082 = vsel %vm4075, %v4031, 0.0
      %v4083 = vsel %vm4075, %v4036, 0.0
      %v4084 = vsel %vm4075, %v4041, 0.0
      %v4085 = vsel %vm4075, %v4046, 0.0
      %v4086 = vsel %vm4075, %v4051, 0.0
      %v4087 = vsel %vm4075, %v4056, 0.0
      %v4092 = vrot.slane %v3997, 3
      %v4093 = vrot.slane %v3997, 6
      %v4094 = vrot.slane %v4076, 1
      %v4095 = vrot.slane %v4015, 3
      %v4096 = vrot.slane %v4015, 6
      %v4097 = vrot.slane %v4079, 1
      %v4098 = vrot.slane %v4030, 3
      %v4099 = vrot.slane %v4030, 6
      %v4100 = vrot.slane %v4082, 1
      %v4101 = vrot.slane %v4045, 3
      %v4102 = vrot.slane %v4045, 6
      %v4103 = vrot.slane %v4085, 1
      %4104 = vst [vmem:[#allocation1] sm:$0xff] %v3997
      %s4105 = scalar_lea.vmem [#allocation1], 1
      %v4106 = vld [vmem:[%s4105] ss:$9 sm:$0xff]
      %s4107 = scalar_lea.vmem [#allocation1], 4
      %v4108 = vld [vmem:[%s4107] ss:$9 sm:$0xff]
      %s4109 = scalar_lea.vmem [#allocation1], 7
      %v4110 = vld [vmem:[%s4109] ss:$9 sm:$0xff]
      %4111 = vst [vmem:[#allocation1] sm:$0xff] %v4076
      %s4112 = scalar_lea.vmem [#allocation1], 2
      %v4113 = vld [vmem:[%s4112] ss:$9 sm:$0xff]
      %4114 = vst [vmem:[#allocation1] sm:$0xff] %v4015
      %v4115 = vld [vmem:[%s4105] ss:$9 sm:$0xff]
      %v4116 = vld [vmem:[%s4107] ss:$9 sm:$0xff]
      %v4117 = vld [vmem:[%s4109] ss:$9 sm:$0xff]
      %4118 = vst [vmem:[#allocation1] sm:$0xff] %v4079
      %v4119 = vld [vmem:[%s4112] ss:$9 sm:$0xff]
      %4120 = vst [vmem:[#allocation1] sm:$0xff] %v4030
      %v4121 = vld [vmem:[%s4105] ss:$9 sm:$0xff]
      %v4122 = vld [vmem:[%s4107] ss:$9 sm:$0xff]
      %v4123 = vld [vmem:[%s4109] ss:$9 sm:$0xff]
      %4124 = vst [vmem:[#allocation1] sm:$0xff] %v4082
      %v4125 = vld [vmem:[%s4112] ss:$9 sm:$0xff]
      %4126 = vst [vmem:[#allocation1] sm:$0xff] %v4045
      %v4127 = vld [vmem:[%s4105] ss:$9 sm:$0xff]
      %v4128 = vld [vmem:[%s4107] ss:$9 sm:$0xff]
      %v4129 = vld [vmem:[%s4109] ss:$9 sm:$0xff]
      %4130 = vst [vmem:[#allocation1] sm:$0xff] %v4085
      %v4131 = vld [vmem:[%s4112] ss:$9 sm:$0xff]
      %4132 = vst [vmem:[#allocation1] sm:$0xff] %v3997
      %s4133 = scalar_lea.vmem [#allocation1], 2
      %v4134 = vld [vmem:[%s4133] ss:$9 sm:$0xff]
      %s4135 = scalar_lea.vmem [#allocation1], 5
      %v4136 = vld [vmem:[%s4135] ss:$9 sm:$0xff]
      %4137 = vst [vmem:[#allocation1] sm:$0xff] %v4076
      %v4138 = vld [vmem:[#allocation1] ss:$9 sm:$0xff]
      %s4139 = scalar_lea.vmem [#allocation1], 3
      %v4140 = vld [vmem:[%s4139] ss:$9 sm:$0xff]
      %4141 = vst [vmem:[#allocation1] sm:$0xff] %v4015
      %v4142 = vld [vmem:[%s4133] ss:$9 sm:$0xff]
      %v4143 = vld [vmem:[%s4135] ss:$9 sm:$0xff]
      %4144 = vst [vmem:[#allocation1] sm:$0xff] %v4079
      %v4145 = vld [vmem:[#allocation1] ss:$9 sm:$0xff]
      %v4146 = vld [vmem:[%s4139] ss:$9 sm:$0xff]
      %4147 = vst [vmem:[#allocation1] sm:$0xff] %v4030
      %v4148 = vld [vmem:[%s4133] ss:$9 sm:$0xff]
      %v4149 = vld [vmem:[%s4135] ss:$9 sm:$0xff]
      %4150 = vst [vmem:[#allocation1] sm:$0xff] %v4082
      %v4151 = vld [vmem:[#allocation1] ss:$9 sm:$0xff]
      %v4152 = vld [vmem:[%s4139] ss:$9 sm:$0xff]
      %4153 = vst [vmem:[#allocation1] sm:$0xff] %v4045
      %v4154 = vld [vmem:[%s4133] ss:$9 sm:$0xff]
      %v4155 = vld [vmem:[%s4135] ss:$9 sm:$0xff]
      %4156 = vst [vmem:[#allocation1] sm:$0xff] %v4085
      %v4157 = vld [vmem:[#allocation1] ss:$9 sm:$0xff]
      %v4158 = vld [vmem:[%s4139] ss:$9 sm:$0xff]
      %v4163 = vrot.slane %v4005, 3
      %v4164 = vrot.slane %v4005, 6
      %v4165 = vrot.slane %v4077, 1
      %v4166 = vrot.slane %v4020, 3
      %v4167 = vrot.slane %v4020, 6
      %v4168 = vrot.slane %v4080, 1
      %v4169 = vrot.slane %v4035, 3
      %v4170 = vrot.slane %v4035, 6
      %v4171 = vrot.slane %v4083, 1
      %v4172 = vrot.slane %v4050, 3
      %v4173 = vrot.slane %v4050, 6
      %v4174 = vrot.slane %v4086, 1
      %4175 = vst [vmem:[#allocation1] sm:$0xff] %v4005
      %s4176 = scalar_lea.vmem [#allocation1], 1
      %v4177 = vld [vmem:[%s4176] ss:$9 sm:$0xff]
      %s4178 = scalar_lea.vmem [#allocation1], 4
      %v4179 = vld [vmem:[%s4178] ss:$9 sm:$0xff]
      %s4180 = scalar_lea.vmem [#allocation1], 7
      %v4181 = vld [vmem:[%s4180] ss:$9 sm:$0xff]
      %4182 = vst [vmem:[#allocation1] sm:$0xff] %v4077
      %s4183 = scalar_lea.vmem [#allocation1], 2
      %v4184 = vld [vmem:[%s4183] ss:$9 sm:$0xff]
      %4185 = vst [vmem:[#allocation1] sm:$0xff] %v4020
      %v4186 = vld [vmem:[%s4176] ss:$9 sm:$0xff]
      %v4187 = vld [vmem:[%s4178] ss:$9 sm:$0xff]
      %v4188 = vld [vmem:[%s4180] ss:$9 sm:$0xff]
      %4189 = vst [vmem:[#allocation1] sm:$0xff] %v4080
      %v4190 = vld [vmem:[%s4183] ss:$9 sm:$0xff]
      %4191 = vst [vmem:[#allocation1] sm:$0xff] %v4035
      %v4192 = vld [vmem:[%s4176] ss:$9 sm:$0xff]
      %v4193 = vld [vmem:[%s4178] ss:$9 sm:$0xff]
      %v4194 = vld [vmem:[%s4180] ss:$9 sm:$0xff]
      %4195 = vst [vmem:[#allocation1] sm:$0xff] %v4083
      %v4196 = vld [vmem:[%s4183] ss:$9 sm:$0xff]
      %4197 = vst [vmem:[#allocation1] sm:$0xff] %v4050
      %v4198 = vld [vmem:[%s4176] ss:$9 sm:$0xff]
      %v4199 = vld [vmem:[%s4178] ss:$9 sm:$0xff]
      %v4200 = vld [vmem:[%s4180] ss:$9 sm:$0xff]
      %4201 = vst [vmem:[#allocation1] sm:$0xff] %v4086
      %v4202 = vld [vmem:[%s4183] ss:$9 sm:$0xff]
      %4203 = vst [vmem:[#allocation1] sm:$0xff] %v4005
      %s4204 = scalar_lea.vmem [#allocation1], 2
      %v4205 = vld [vmem:[%s4204] ss:$9 sm:$0xff]
      %s4206 = scalar_lea.vmem [#allocation1], 5
      %v4207 = vld [vmem:[%s4206] ss:$9 sm:$0xff]
      %4208 = vst [vmem:[#allocation1] sm:$0xff] %v4077
      %v4209 = vld [vmem:[#allocation1] ss:$9 sm:$0xff]
      %s4210 = scalar_lea.vmem [#allocation1], 3
      %v4211 = vld [vmem:[%s4210] ss:$9 sm:$0xff]
      %4212 = vst [vmem:[#allocation1] sm:$0xff] %v4020
      %v4213 = vld [vmem:[%s4204] ss:$9 sm:$0xff]
      %v4214 = vld [vmem:[%s4206] ss:$9 sm:$0xff]
      %4215 = vst [vmem:[#allocation1] sm:$0xff] %v4080
      %v4216 = vld [vmem:[#allocation1] ss:$9 sm:$0xff]
      %v4217 = vld [vmem:[%s4210] ss:$9 sm:$0xff]
      %4218 = vst [vmem:[#allocation1] sm:$0xff] %v4035
      %v4219 = vld [vmem:[%s4204] ss:$9 sm:$0xff]
      %v4220 = vld [vmem:[%s4206] ss:$9 sm:$0xff]
      %4221 = vst [vmem:[#allocation1] sm:$0xff] %v4083
      %v4222 = vld [vmem:[#allocation1] ss:$9 sm:$0xff]
      %v4223 = vld [vmem:[%s4210] ss:$9 sm:$0xff]
      %4224 = vst [vmem:[#allocation1] sm:$0xff] %v4050
      %v4225 = vld [vmem:[%s4204] ss:$9 sm:$0xff]
      %v4226 = vld [vmem:[%s4206] ss:$9 sm:$0xff]
      %4227 = vst [vmem:[#allocation1] sm:$0xff] %v4086
      %v4228 = vld [vmem:[#allocation1] ss:$9 sm:$0xff]
      %v4229 = vld [vmem:[%s4210] ss:$9 sm:$0xff]
      %v4234 = vrot.slane %v4010, 3
      %v4235 = vrot.slane %v4010, 6
      %v4236 = vrot.slane %v4078, 1
      %v4237 = vrot.slane %v4025, 3
      %v4238 = vrot.slane %v4025, 6
      %v4239 = vrot.slane %v4081, 1
      %v4240 = vrot.slane %v4040, 3
      %v4241 = vrot.slane %v4040, 6
      %v4242 = vrot.slane %v4084, 1
      %v4243 = vrot.slane %v4055, 3
      %v4244 = vrot.slane %v4055, 6
      %v4245 = vrot.slane %v4087, 1
      %4246 = vst [vmem:[#allocation1] sm:$0xff] %v4010
      %s4247 = scalar_lea.vmem [#allocation1], 1
      %v4248 = vld [vmem:[%s4247] ss:$9 sm:$0xff]
      %s4249 = scalar_lea.vmem [#allocation1], 4
      %v4250 = vld [vmem:[%s4249] ss:$9 sm:$0xff]
      %s4251 = scalar_lea.vmem [#allocation1], 7
      %v4252 = vld [vmem:[%s4251] ss:$9 sm:$0xff]
      %4253 = vst [vmem:[#allocation1] sm:$0xff] %v4078
      %s4254 = scalar_lea.vmem [#allocation1], 2
      %v4255 = vld [vmem:[%s4254] ss:$9 sm:$0xff]
      %4256 = vst [vmem:[#allocation1] sm:$0xff] %v4025
      %v4257 = vld [vmem:[%s4247] ss:$9 sm:$0xff]
      %v4258 = vld [vmem:[%s4249] ss:$9 sm:$0xff]
      %v4259 = vld [vmem:[%s4251] ss:$9 sm:$0xff]
      %4260 = vst [vmem:[#allocation1] sm:$0xff] %v4081
      %v4261 = vld [vmem:[%s4254] ss:$9 sm:$0xff]
      %4262 = vst [vmem:[#allocation1] sm:$0xff] %v4040
      %v4263 = vld [vmem:[%s4247] ss:$9 sm:$0xff]
      %v4264 = vld [vmem:[%s4249] ss:$9 sm:$0xff]
      %v4265 = vld [vmem:[%s4251] ss:$9 sm:$0xff]
      %4266 = vst [vmem:[#allocation1] sm:$0xff] %v4084
      %v4267 = vld [vmem:[%s4254] ss:$9 sm:$0xff]
      %4268 = vst [vmem:[#allocation1] sm:$0xff] %v4055
      %v4269 = vld [vmem:[%s4247] ss:$9 sm:$0xff]
      %v4270 = vld [vmem:[%s4249] ss:$9 sm:$0xff]
      %v4271 = vld [vmem:[%s4251] ss:$9 sm:$0xff]
      %4272 = vst [vmem:[#allocation1] sm:$0xff] %v4087
      %v4273 = vld [vmem:[%s4254] ss:$9 sm:$0xff]
      %4274 = vst [vmem:[#allocation1] sm:$0xff] %v4010
      %s4275 = scalar_lea.vmem [#allocation1], 2
      %v4276 = vld [vmem:[%s4275] ss:$9 sm:$0xff]
      %s4277 = scalar_lea.vmem [#allocation1], 5
      %v4278 = vld [vmem:[%s4277] ss:$9 sm:$0xff]
      %4279 = vst [vmem:[#allocation1] sm:$0xff] %v4078
      %v4280 = vld [vmem:[#allocation1] ss:$9 sm:$0xff]
      %s4281 = scalar_lea.vmem [#allocation1], 3
      %v4282 = vld [vmem:[%s4281] ss:$9 sm:$0xff]
      %4283 = vst [vmem:[#allocation1] sm:$0xff] %v4025
      %v4284 = vld [vmem:[%s4275] ss:$9 sm:$0xff]
      %v4285 = vld [vmem:[%s4277] ss:$9 sm:$0xff]
      %4286 = vst [vmem:[#allocation1] sm:$0xff] %v4081
      %v4287 = vld [vmem:[#allocation1] ss:$9 sm:$0xff]
      %v4288 = vld [vmem:[%s4281] ss:$9 sm:$0xff]
      %4289 = vst [vmem:[#allocation1] sm:$0xff] %v4040
      %v4290 = vld [vmem:[%s4275] ss:$9 sm:$0xff]
      %v4291 = vld [vmem:[%s4277] ss:$9 sm:$0xff]
      %4292 = vst [vmem:[#allocation1] sm:$0xff] %v4084
      %v4293 = vld [vmem:[#allocation1] ss:$9 sm:$0xff]
      %v4294 = vld [vmem:[%s4281] ss:$9 sm:$0xff]
      %4295 = vst [vmem:[#allocation1] sm:$0xff] %v4055
      %v4296 = vld [vmem:[%s4275] ss:$9 sm:$0xff]
      %v4297 = vld [vmem:[%s4277] ss:$9 sm:$0xff]
      %4298 = vst [vmem:[#allocation1] sm:$0xff] %v4087
      %v4299 = vld [vmem:[#allocation1] ss:$9 sm:$0xff]
      %v4300 = vld [vmem:[%s4281] ss:$9 sm:$0xff]
      %4301 = vst [vmem:[#allocation1] ss:$9 sm:$0xff] %v3997
      %s4302 = scalar_lea.vmem [#allocation1], 1
      %4303 = vst [vmem:[%s4302] ss:$9 sm:$0xff] %v4092
      %s4304 = scalar_lea.vmem [#allocation1], 2
      %4305 = vst [vmem:[%s4304] ss:$9 sm:$0xff] %v4093
      %s4306 = scalar_lea.vmem [#allocation1], 3
      %4307 = vst [vmem:[%s4306] ss:$9 sm:$0xff] %v4094
      %s4308 = scalar_lea.vmem [#allocation1], 4
      %4309 = vst [vmem:[%s4308] ss:$9 sm:$0xff] %v4015
      %s4310 = scalar_lea.vmem [#allocation1], 5
      %4311 = vst [vmem:[%s4310] ss:$9 sm:$0xff] %v4095
      %s4312 = scalar_lea.vmem [#allocation1], 6
      %4313 = vst [vmem:[%s4312] ss:$9 sm:$0xff] %v4096
      %s4314 = scalar_lea.vmem [#allocation1], 7
      %4315 = vst [vmem:[%s4314] ss:$9 sm:$0xff] %v4097
      %v4316 = vld [vmem:[#allocation1] sm:$0xff]
      %4317 = vst [vmem:[#allocation1] ss:$9 sm:$0xff] %v4030
      %4318 = vst [vmem:[%s4302] ss:$9 sm:$0xff] %v4098
      %4319 = vst [vmem:[%s4304] ss:$9 sm:$0xff] %v4099
      %4320 = vst [vmem:[%s4306] ss:$9 sm:$0xff] %v4100
      %4321 = vst [vmem:[%s4308] ss:$9 sm:$0xff] %v4045
      %4322 = vst [vmem:[%s4310] ss:$9 sm:$0xff] %v4101
      %4323 = vst [vmem:[%s4312] ss:$9 sm:$0xff] %v4102
      %4324 = vst [vmem:[%s4314] ss:$9 sm:$0xff] %v4103
      %v4325 = vld [vmem:[#allocation1] sm:$0xff]
      %4328 = vst [vmem:[#allocation1] ss:$9 sm:$0xff] %v4106
      %s4329 = scalar_lea.vmem [#allocation1], 1
      %4330 = vst [vmem:[%s4329] ss:$9 sm:$0xff] %v4108
      %s4331 = scalar_lea.vmem [#allocation1], 2
      %4332 = vst [vmem:[%s4331] ss:$9 sm:$0xff] %v4110
      %s4333 = scalar_lea.vmem [#allocation1], 3
      %4334 = vst [vmem:[%s4333] ss:$9 sm:$0xff] %v4113
      %s4335 = scalar_lea.vmem [#allocation1], 4
      %4336 = vst [vmem:[%s4335] ss:$9 sm:$0xff] %v4115
      %s4337 = scalar_lea.vmem [#allocation1], 5
      %4338 = vst [vmem:[%s4337] ss:$9 sm:$0xff] %v4116
      %s4339 = scalar_lea.vmem [#allocation1], 6
      %4340 = vst [vmem:[%s4339] ss:$9 sm:$0xff] %v4117
      %s4341 = scalar_lea.vmem [#allocation1], 7
      %4342 = vst [vmem:[%s4341] ss:$9 sm:$0xff] %v4119
      %v4343 = vld [vmem:[#allocation1] sm:$0xff]
      %4344 = vst [vmem:[#allocation1] ss:$9 sm:$0xff] %v4121
      %4345 = vst [vmem:[%s4329] ss:$9 sm:$0xff] %v4122
      %4346 = vst [vmem:[%s4331] ss:$9 sm:$0xff] %v4123
      %4347 = vst [vmem:[%s4333] ss:$9 sm:$0xff] %v4125
      %4348 = vst [vmem:[%s4335] ss:$9 sm:$0xff] %v4127
      %4349 = vst [vmem:[%s4337] ss:$9 sm:$0xff] %v4128
      %4350 = vst [vmem:[%s4339] ss:$9 sm:$0xff] %v4129
      %4351 = vst [vmem:[%s4341] ss:$9 sm:$0xff] %v4131
      %v4352 = vld [vmem:[#allocation1] sm:$0xff]
      %4353 = vrot.lane.b32.xlu0 %v4343, 8
      %v4354 = vpop.permute.xlu0 %4353
      %4355 = vrot.lane.b32.xlu0 %v4352, 8
      %v4356 = vpop.permute.xlu0 %4355
      %4359 = vst [vmem:[#allocation1] ss:$9 sm:$0xff] %v4134
      %s4360 = scalar_lea.vmem [#allocation1], 1
      %4361 = vst [vmem:[%s4360] ss:$9 sm:$0xff] %v4136
      %s4362 = scalar_lea.vmem [#allocation1], 2
      %4363 = vst [vmem:[%s4362] ss:$9 sm:$0xff] %v4138
      %s4364 = scalar_lea.vmem [#allocation1], 3
      %4365 = vst [vmem:[%s4364] ss:$9 sm:$0xff] %v4140
      %s4366 = scalar_lea.vmem [#allocation1], 4
      %4367 = vst [vmem:[%s4366] ss:$9 sm:$0xff] %v4142
      %s4368 = scalar_lea.vmem [#allocation1], 5
      %4369 = vst [vmem:[%s4368] ss:$9 sm:$0xff] %v4143
      %s4370 = scalar_lea.vmem [#allocation1], 6
      %4371 = vst [vmem:[%s4370] ss:$9 sm:$0xff] %v4145
      %s4372 = scalar_lea.vmem [#allocation1], 7
      %4373 = vst [vmem:[%s4372] ss:$9 sm:$0xff] %v4146
      %v4374 = vld [vmem:[#allocation1] sm:$0xff]
      %4375 = vst [vmem:[#allocation1] ss:$9 sm:$0xff] %v4148
      %4376 = vst [vmem:[%s4360] ss:$9 sm:$0xff] %v4149
      %4377 = vst [vmem:[%s4362] ss:$9 sm:$0xff] %v4151
      %4378 = vst [vmem:[%s4364] ss:$9 sm:$0xff] %v4152
      %4379 = vst [vmem:[%s4366] ss:$9 sm:$0xff] %v4154
      %4380 = vst [vmem:[%s4368] ss:$9 sm:$0xff] %v4155
      %4381 = vst [vmem:[%s4370] ss:$9 sm:$0xff] %v4157
      %4382 = vst [vmem:[%s4372] ss:$9 sm:$0xff] %v4158
      %v4383 = vld [vmem:[#allocation1] sm:$0xff]
      %4384 = vrot.lane.b32.xlu0 %v4374, 16
      %v4385 = vpop.permute.xlu0 %4384
      %4386 = vrot.lane.b32.xlu0 %v4383, 16
      %v4387 = vpop.permute.xlu0 %4386
      %4390 = vst [vmem:[#allocation1] ss:$9 sm:$0xff] %v4005
      %s4391 = scalar_lea.vmem [#allocation1], 1
      %4392 = vst [vmem:[%s4391] ss:$9 sm:$0xff] %v4163
      %s4393 = scalar_lea.vmem [#allocation1], 2
      %4394 = vst [vmem:[%s4393] ss:$9 sm:$0xff] %v4164
      %s4395 = scalar_lea.vmem [#allocation1], 3
      %4396 = vst [vmem:[%s4395] ss:$9 sm:$0xff] %v4165
      %s4397 = scalar_lea.vmem [#allocation1], 4
      %4398 = vst [vmem:[%s4397] ss:$9 sm:$0xff] %v4020
      %s4399 = scalar_lea.vmem [#allocation1], 5
      %4400 = vst [vmem:[%s4399] ss:$9 sm:$0xff] %v4166
      %s4401 = scalar_lea.vmem [#allocation1], 6
      %4402 = vst [vmem:[%s4401] ss:$9 sm:$0xff] %v4167
      %s4403 = scalar_lea.vmem [#allocation1], 7
      %4404 = vst [vmem:[%s4403] ss:$9 sm:$0xff] %v4168
      %v4405 = vld [vmem:[#allocation1] sm:$0xff]
      %4406 = vst [vmem:[#allocation1] ss:$9 sm:$0xff] %v4035
      %4407 = vst [vmem:[%s4391] ss:$9 sm:$0xff] %v4169
      %4408 = vst [vmem:[%s4393] ss:$9 sm:$0xff] %v4170
      %4409 = vst [vmem:[%s4395] ss:$9 sm:$0xff] %v4171
      %4410 = vst [vmem:[%s4397] ss:$9 sm:$0xff] %v4050
      %4411 = vst [vmem:[%s4399] ss:$9 sm:$0xff] %v4172
      %4412 = vst [vmem:[%s4401] ss:$9 sm:$0xff] %v4173
      %4413 = vst [vmem:[%s4403] ss:$9 sm:$0xff] %v4174
      %v4414 = vld [vmem:[#allocation1] sm:$0xff]
      %4415 = vrot.lane.b32.xlu0 %v4405, 24
      %v4416 = vpop.permute.xlu0 %4415
      %4417 = vrot.lane.b32.xlu0 %v4414, 24
      %v4418 = vpop.permute.xlu0 %4417
      %4421 = vst [vmem:[#allocation1] ss:$9 sm:$0xff] %v4177
      %s4422 = scalar_lea.vmem [#allocation1], 1
      %4423 = vst [vmem:[%s4422] ss:$9 sm:$0xff] %v4179
      %s4424 = scalar_lea.vmem [#allocation1], 2
      %4425 = vst [vmem:[%s4424] ss:$9 sm:$0xff] %v4181
      %s4426 = scalar_lea.vmem [#allocation1], 3
      %4427 = vst [vmem:[%s4426] ss:$9 sm:$0xff] %v4184
      %s4428 = scalar_lea.vmem [#allocation1], 4
      %4429 = vst [vmem:[%s4428] ss:$9 sm:$0xff] %v4186
      %s4430 = scalar_lea.vmem [#allocation1], 5
      %4431 = vst [vmem:[%s4430] ss:$9 sm:$0xff] %v4187
      %s4432 = scalar_lea.vmem [#allocation1], 6
      %4433 = vst [vmem:[%s4432] ss:$9 sm:$0xff] %v4188
      %s4434 = scalar_lea.vmem [#allocation1], 7
      %4435 = vst [vmem:[%s4434] ss:$9 sm:$0xff] %v4190
      %v4436 = vld [vmem:[#allocation1] sm:$0xff]
      %4437 = vst [vmem:[#allocation1] ss:$9 sm:$0xff] %v4192
      %4438 = vst [vmem:[%s4422] ss:$9 sm:$0xff] %v4193
      %4439 = vst [vmem:[%s4424] ss:$9 sm:$0xff] %v4194
      %4440 = vst [vmem:[%s4426] ss:$9 sm:$0xff] %v4196
      %4441 = vst [vmem:[%s4428] ss:$9 sm:$0xff] %v4198
      %4442 = vst [vmem:[%s4430] ss:$9 sm:$0xff] %v4199
      %4443 = vst [vmem:[%s4432] ss:$9 sm:$0xff] %v4200
      %4444 = vst [vmem:[%s4434] ss:$9 sm:$0xff] %v4202
      %v4445 = vld [vmem:[#allocation1] sm:$0xff]
      %4446 = vrot.lane.b32.xlu0 %v4436, 32
      %v4447 = vpop.permute.xlu0 %4446
      %4448 = vrot.lane.b32.xlu0 %v4445, 32
      %v4449 = vpop.permute.xlu0 %4448
      %4452 = vst [vmem:[#allocation1] ss:$9 sm:$0xff] %v4205
      %s4453 = scalar_lea.vmem [#allocation1], 1
      %4454 = vst [vmem:[%s4453] ss:$9 sm:$0xff] %v4207
      %s4455 = scalar_lea.vmem [#allocation1], 2
      %4456 = vst [vmem:[%s4455] ss:$9 sm:$0xff] %v4209
      %s4457 = scalar_lea.vmem [#allocation1], 3
      %4458 = vst [vmem:[%s4457] ss:$9 sm:$0xff] %v4211
      %s4459 = scalar_lea.vmem [#allocation1], 4
      %4460 = vst [vmem:[%s4459] ss:$9 sm:$0xff] %v4213
      %s4461 = scalar_lea.vmem [#allocation1], 5
      %4462 = vst [vmem:[%s4461] ss:$9 sm:$0xff] %v4214
      %s4463 = scalar_lea.vmem [#allocation1], 6
      %4464 = vst [vmem:[%s4463] ss:$9 sm:$0xff] %v4216
      %s4465 = scalar_lea.vmem [#allocation1], 7
      %4466 = vst [vmem:[%s4465] ss:$9 sm:$0xff] %v4217
      %v4467 = vld [vmem:[#allocation1] sm:$0xff]
      %4468 = vst [vmem:[#allocation1] ss:$9 sm:$0xff] %v4219
      %4469 = vst [vmem:[%s4453] ss:$9 sm:$0xff] %v4220
      %4470 = vst [vmem:[%s4455] ss:$9 sm:$0xff] %v4222
      %4471 = vst [vmem:[%s4457] ss:$9 sm:$0xff] %v4223
      %4472 = vst [vmem:[%s4459] ss:$9 sm:$0xff] %v4225
      %4473 = vst [vmem:[%s4461] ss:$9 sm:$0xff] %v4226
      %4474 = vst [vmem:[%s4463] ss:$9 sm:$0xff] %v4228
      %4475 = vst [vmem:[%s4465] ss:$9 sm:$0xff] %v4229
      %v4476 = vld [vmem:[#allocation1] sm:$0xff]
      %4477 = vrot.lane.b32.xlu0 %v4467, 40
      %v4478 = vpop.permute.xlu0 %4477
      %4479 = vrot.lane.b32.xlu0 %v4476, 40
      %v4480 = vpop.permute.xlu0 %4479
      %4483 = vst [vmem:[#allocation1] ss:$9 sm:$0xff] %v4010
      %s4484 = scalar_lea.vmem [#allocation1], 1
      %4485 = vst [vmem:[%s4484] ss:$9 sm:$0xff] %v4234
      %s4486 = scalar_lea.vmem [#allocation1], 2
      %4487 = vst [vmem:[%s4486] ss:$9 sm:$0xff] %v4235
      %s4488 = scalar_lea.vmem [#allocation1], 3
      %4489 = vst [vmem:[%s4488] ss:$9 sm:$0xff] %v4236
      %s4490 = scalar_lea.vmem [#allocation1], 4
      %4491 = vst [vmem:[%s4490] ss:$9 sm:$0xff] %v4025
      %s4492 = scalar_lea.vmem [#allocation1], 5
      %4493 = vst [vmem:[%s4492] ss:$9 sm:$0xff] %v4237
      %s4494 = scalar_lea.vmem [#allocation1], 6
      %4495 = vst [vmem:[%s4494] ss:$9 sm:$0xff] %v4238
      %s4496 = scalar_lea.vmem [#allocation1], 7
      %4497 = vst [vmem:[%s4496] ss:$9 sm:$0xff] %v4239
      %v4498 = vld [vmem:[#allocation1] sm:$0xff]
      %4499 = vst [vmem:[#allocation1] ss:$9 sm:$0xff] %v4040
      %4500 = vst [vmem:[%s4484] ss:$9 sm:$0xff] %v4240
      %4501 = vst [vmem:[%s4486] ss:$9 sm:$0xff] %v4241
      %4502 = vst [vmem:[%s4488] ss:$9 sm:$0xff] %v4242
      %4503 = vst [vmem:[%s4490] ss:$9 sm:$0xff] %v4055
      %4504 = vst [vmem:[%s4492] ss:$9 sm:$0xff] %v4243
      %4505 = vst [vmem:[%s4494] ss:$9 sm:$0xff] %v4244
      %4506 = vst [vmem:[%s4496] ss:$9 sm:$0xff] %v4245
      %v4507 = vld [vmem:[#allocation1] sm:$0xff]
      %4508 = vrot.lane.b32.xlu0 %v4498, 48
      %v4509 = vpop.permute.xlu0 %4508
      %4510 = vrot.lane.b32.xlu0 %v4507, 48
      %v4511 = vpop.permute.xlu0 %4510
      %4514 = vst [vmem:[#allocation1] ss:$9 sm:$0xff] %v4248
      %s4515 = scalar_lea.vmem [#allocation1], 1
      %4516 = vst [vmem:[%s4515] ss:$9 sm:$0xff] %v4250
      %s4517 = scalar_lea.vmem [#allocation1], 2
      %4518 = vst [vmem:[%s4517] ss:$9 sm:$0xff] %v4252
      %s4519 = scalar_lea.vmem [#allocation1], 3
      %4520 = vst [vmem:[%s4519] ss:$9 sm:$0xff] %v4255
      %s4521 = scalar_lea.vmem [#allocation1], 4
      %4522 = vst [vmem:[%s4521] ss:$9 sm:$0xff] %v4257
      %s4523 = scalar_lea.vmem [#allocation1], 5
      %4524 = vst [vmem:[%s4523] ss:$9 sm:$0xff] %v4258
      %s4525 = scalar_lea.vmem [#allocation1], 6
      %4526 = vst [vmem:[%s4525] ss:$9 sm:$0xff] %v4259
      %s4527 = scalar_lea.vmem [#allocation1], 7
      %4528 = vst [vmem:[%s4527] ss:$9 sm:$0xff] %v4261
      %v4529 = vld [vmem:[#allocation1] sm:$0xff]
      %4530 = vst [vmem:[#allocation1] ss:$9 sm:$0xff] %v4263
      %4531 = vst [vmem:[%s4515] ss:$9 sm:$0xff] %v4264
      %4532 = vst [vmem:[%s4517] ss:$9 sm:$0xff] %v4265
      %4533 = vst [vmem:[%s4519] ss:$9 sm:$0xff] %v4267
      %4534 = vst [vmem:[%s4521] ss:$9 sm:$0xff] %v4269
      %4535 = vst [vmem:[%s4523] ss:$9 sm:$0xff] %v4270
      %4536 = vst [vmem:[%s4525] ss:$9 sm:$0xff] %v4271
      %4537 = vst [vmem:[%s4527] ss:$9 sm:$0xff] %v4273
      %v4538 = vld [vmem:[#allocation1] sm:$0xff]
      %4539 = vrot.lane.b32.xlu0 %v4529, 56
      %v4540 = vpop.permute.xlu0 %4539
      %4541 = vrot.lane.b32.xlu0 %v4538, 56
      %v4542 = vpop.permute.xlu0 %4541
      %4545 = vst [vmem:[#allocation1] ss:$9 sm:$0xff] %v4276
      %s4546 = scalar_lea.vmem [#allocation1], 1
      %4547 = vst [vmem:[%s4546] ss:$9 sm:$0xff] %v4278
      %s4548 = scalar_lea.vmem [#allocation1], 2
      %4549 = vst [vmem:[%s4548] ss:$9 sm:$0xff] %v4280
      %s4550 = scalar_lea.vmem [#allocation1], 3
      %4551 = vst [vmem:[%s4550] ss:$9 sm:$0xff] %v4282
      %s4552 = scalar_lea.vmem [#allocation1], 4
      %4553 = vst [vmem:[%s4552] ss:$9 sm:$0xff] %v4284
      %s4554 = scalar_lea.vmem [#allocation1], 5
      %4555 = vst [vmem:[%s4554] ss:$9 sm:$0xff] %v4285
      %s4556 = scalar_lea.vmem [#allocation1], 6
      %4557 = vst [vmem:[%s4556] ss:$9 sm:$0xff] %v4287
      %s4558 = scalar_lea.vmem [#allocation1], 7
      %4559 = vst [vmem:[%s4558] ss:$9 sm:$0xff] %v4288
      %v4560 = vld [vmem:[#allocation1] sm:$0xff]
      %4561 = vst [vmem:[#allocation1] ss:$9 sm:$0xff] %v4290
      %4562 = vst [vmem:[%s4546] ss:$9 sm:$0xff] %v4291
      %4563 = vst [vmem:[%s4548] ss:$9 sm:$0xff] %v4293
      %4564 = vst [vmem:[%s4550] ss:$9 sm:$0xff] %v4294
      %4565 = vst [vmem:[%s4552] ss:$9 sm:$0xff] %v4296
      %4566 = vst [vmem:[%s4554] ss:$9 sm:$0xff] %v4297
      %4567 = vst [vmem:[%s4556] ss:$9 sm:$0xff] %v4299
      %4568 = vst [vmem:[%s4558] ss:$9 sm:$0xff] %v4300
      %v4569 = vld [vmem:[#allocation1] sm:$0xff]
      %4570 = vrot.lane.b32.xlu0 %v4560, 64
      %v4571 = vpop.permute.xlu0 %4570
      %4572 = vrot.lane.b32.xlu0 %v4569, 64
      %v4573 = vpop.permute.xlu0 %4572
      %v4576 = vsel %vm1969, %v4316, %v4354
      %v4577 = vsel %vm1969, %v4325, %v4356
      %v4578 = vsel %vm3652, %v4576, %v4385
      %v4579 = vsel %vm3652, %v4577, %v4387
      %v4580 = vsel %vm3671, %v4578, %v4416
      %v4581 = vsel %vm3671, %v4579, %v4418
      %v4582 = vsel %vm3690, %v4580, %v4447
      %v4583 = vsel %vm3690, %v4581, %v4449
      %v4584 = vsel %vm3709, %v4582, %v4478
      %v4585 = vsel %vm3709, %v4583, %v4480
      %v4586 = vsel %vm3728, %v4584, %v4509
      %v4587 = vsel %vm3728, %v4585, %v4511
      %v4588 = vsel %vm3747, %v4586, %v4540
      %v4589 = vsel %vm3747, %v4587, %v4542
      %v4590 = vsel %vm3766, %v4588, %v4571
      %v4591 = vsel %vm3766, %v4589, %v4573
      %v4593 = vsel %vm3785, %v4590, 0
      %v4596 = vsel %vm3785, %v4591, 0
      %4598 = vmatpush.msra.mxu0 0.0
      %4599 = vmatpush.msra.mxu0 0.0
      %4600 = vmatpush.msra.mxu0 0.0
      %4601 = vmatpush.msra.mxu0 0.0
      %4602 = vmatpush.msra.mxu0 0.0
      %4603 = vmatpush.msra.mxu0 0.0
      %4604 = vmatpush.msra.mxu0 0.0
      %4605 = vmatpush.msra.mxu0 %v3991
      %4606 = vmatpush.msra.mxu0 %v3990
      %4607 = vmatpush.msra.mxu0 %v3989
      %4608 = vmatpush.msra.mxu0 %v3988
      %4609 = vmatpush.msra.mxu0 %v3987
      %4610 = vmatpush.msra.mxu0 %v3986
      %4611 = vmatpush.msra.mxu0 %v3985
      %4612 = vmatpush.msra.mxu0 %v3984
      %4613 = vmatpush.msra.mxu0 %v3983
      %4614 = vmatmul.f32.gmra.mxu0 %v4593
      %v4615 = vpop.f32.mrf.mxu0
      %v4616 = vadd.f32 0.0, %v4615
      %4617 = vmatmul.f32.gmra.mxu0 %v4596
      %v4618 = vpop.f32.mrf.mxu0
      %v4619 = vadd.f32 0.0, %v4618
      %4620 = vdwg.mxu0
      %v4621 = vmax.f32 %v4616, 0.0
      %v4622 = vmax.f32 %v4619, 0.0
      %v4623 = vmul.f32 %v4621, 1.4142135
      %v4624 = vmul.f32 %v4622, 1.4142135
      %v4627 = vrot.slane %v4623, 4
      %v4628 = vrot.slane %v4624, 4
      %v4631 = vld [vmem:[%s372] sm:$0xf]
      %v4632 = vld [vmem:[%s372 + $0x4] sm:$0xf]
      %v4633 = vld [vmem:[%s372 + $0x8] sm:$0xf]
      %v4634 = vld [vmem:[%s372 + $0xc] sm:$0xf]
      %4639 = vrot.lane.b32.xlu0 %v4631, 8
      %v4640 = vpop.permute.xlu0 %4639
      %4641 = vrot.lane.b32.xlu0 %v4632, 8
      %v4642 = vpop.permute.xlu0 %4641
      %4643 = vrot.lane.b32.xlu0 %v4633, 8
      %v4644 = vpop.permute.xlu0 %4643
      %4645 = vrot.lane.b32.xlu0 %v4634, 8
      %v4646 = vpop.permute.xlu0 %4645
      %v4651 = vsel %vm1969, %v4623, %v4640
      %v4652 = vsel %vm1969, %v4627, %v4642
      %v4653 = vsel %vm1969, %v4624, %v4644
      %v4654 = vsel %vm1969, %v4628, %v4646
      %v4655 = vld [vmem:[%s5] sm:$0xff]
      %v4656 = vld [vmem:[%s5 + $0x8] sm:$0xff]
      %v4657 = vld [vmem:[%s5 + $0x10] sm:$0xff]
      %v4658 = vld [vmem:[%s5 + $0x18] sm:$0xff]
      %v4659 = vld [vmem:[%s5 + $0x20] sm:$0xff]
      %v4660 = vld [vmem:[%s5 + $0x28] sm:$0xff]
      %v4661 = vld [vmem:[%s5 + $0x30] sm:$0xff]
      %v4662 = vld [vmem:[%s5 + $0x38] sm:$0xff]
      %v4663 = vld [vmem:[%s5 + $0x40] sm:$0xff]
      %v4664 = vld [vmem:[%s5 + $0x48] sm:$0xff]
      %v4665 = vld [vmem:[%s5 + $0x50] sm:$0xff]
      %v4666 = vld [vmem:[%s5 + $0x58] sm:$0xff]
      %v4667 = vld [vmem:[%s5 + $0x60] sm:$0x7]
      %v4672 = vrot.slane %v4651, 7
      %v4673 = vrot.slane %v4652, 7
      %v4674 = vrot.slane %v4653, 7
      %v4675 = vrot.slane %v4654, 7
      %v4680 = vsel %vm427, 0.0, %v4672
      %v4681 = vsel %vm427, 0.0, %v4673
      %v4682 = vsel %vm427, 0.0, %v4674
      %v4683 = vsel %vm427, 0.0, %v4675
      %v4684 = vsel %vm505, %v492, 0.0
      %v4685 = vsel %vm505, %v4680, 0.0
      %v4686 = vsel %vm505, %v4681, 0.0
      %v4687 = vsel %vm505, %v4682, 0.0
      %v4688 = vsel %vm505, %v4683, 0.0
      %v4693 = vrot.slane %v4684, 4
      %v4694 = vrot.slane %v4685, 4
      %v4695 = vrot.slane %v4686, 4
      %v4696 = vrot.slane %v4687, 4
      %v4697 = vrot.slane %v4684, 5
      %v4698 = vrot.slane %v4697, 4
      %v4699 = vrot.slane %v4693, 5
      %v4700 = vsel %vm569, %v4698, %v4699
      %v4701 = vrot.slane %v4685, 5
      %v4702 = vrot.slane %v4701, 4
      %v4703 = vrot.slane %v4694, 5
      %v4704 = vsel %vm569, %v4702, %v4703
      %v4705 = vrot.slane %v4686, 5
      %v4706 = vrot.slane %v4705, 4
      %v4707 = vrot.slane %v4695, 5
      %v4708 = vsel %vm569, %v4706, %v4707
      %v4709 = vrot.slane %v4687, 5
      %v4710 = vrot.slane %v4709, 4
      %v4711 = vrot.slane %v4696, 5
      %v4712 = vsel %vm569, %v4710, %v4711
      %v4713 = vrot.slane %v4684, 6
      %v4714 = vrot.slane %v4713, 4
      %v4715 = vrot.slane %v4693, 6
      %v4716 = vsel %vm692, %v4714, %v4715
      %v4717 = vrot.slane %v4685, 6
      %v4718 = vrot.slane %v4717, 4
      %v4719 = vrot.slane %v4694, 6
      %v4720 = vsel %vm692, %v4718, %v4719
      %v4721 = vrot.slane %v4686, 6
      %v4722 = vrot.slane %v4721, 4
      %v4723 = vrot.slane %v4695, 6
      %v4724 = vsel %vm692, %v4722, %v4723
      %v4725 = vrot.slane %v4687, 6
      %v4726 = vrot.slane %v4725, 4
      %v4727 = vrot.slane %v4696, 6
      %v4728 = vsel %vm692, %v4726, %v4727
      %v4730 = vrot.slane %v4688, 4
      %v4731 = vrot.slane %v4688, 5
      %v4732 = vrot.slane %v4731, 4
      %v4733 = vrot.slane %v4730, 5
      %v4734 = vsel %vm569, %v4732, %v4733
      %v4735 = vrot.slane %v4688, 6
      %v4736 = vrot.slane %v4735, 4
      %v4737 = vrot.slane %v4730, 6
      %v4738 = vsel %vm692, %v4736, %v4737
      %4739 = vst [vmem:[#allocation1] ss:$2 sm:$0xff] %v4684
      %s4740 = scalar_lea.vmem [#allocation1], 1
      %4741 = vst [vmem:[%s4740] ss:$2 sm:$0xff] %v4685
      %s4742 = scalar_lea.vmem [#allocation1], 16
      %4743 = vst [vmem:[%s4742] ss:$2 sm:$0xff] %v4686
      %s4744 = scalar_lea.vmem [#allocation1], 17
      %4745 = vst [vmem:[%s4744] ss:$2 sm:$0xff] %v4687
      %v4746 = vld.sshfl [vmem:[#allocation1] sm:$0xff pattern:$0x75316420]
      %v4747 = vld.sshfl [vmem:[#allocation1 + $0x10] sm:$0xff pattern:$0x75316420]
      %4750 = vst [vmem:[#allocation1] ss:$2 sm:$0xff] %v4700
      %s4751 = scalar_lea.vmem [#allocation1], 1
      %4752 = vst [vmem:[%s4751] ss:$2 sm:$0xff] %v4704
      %s4753 = scalar_lea.vmem [#allocation1], 16
      %4754 = vst [vmem:[%s4753] ss:$2 sm:$0xff] %v4708
      %s4755 = scalar_lea.vmem [#allocation1], 17
      %4756 = vst [vmem:[%s4755] ss:$2 sm:$0xff] %v4712
      %v4757 = vld.sshfl [vmem:[#allocation1] sm:$0xff pattern:$0x75316420]
      %v4758 = vld.sshfl [vmem:[#allocation1 + $0x10] sm:$0xff pattern:$0x75316420]
      %4759 = vrot.lane.b32.xlu0 %v4757, 11
      %v4760 = vpop.permute.xlu0 %4759
      %4761 = vrot.lane.b32.xlu0 %v4758, 11
      %v4762 = vpop.permute.xlu0 %4761
      %4765 = vst [vmem:[#allocation1] ss:$2 sm:$0xff] %v4716
      %s4766 = scalar_lea.vmem [#allocation1], 1
      %4767 = vst [vmem:[%s4766] ss:$2 sm:$0xff] %v4720
      %s4768 = scalar_lea.vmem [#allocation1], 16
      %4769 = vst [vmem:[%s4768] ss:$2 sm:$0xff] %v4724
      %s4770 = scalar_lea.vmem [#allocation1], 17
      %4771 = vst [vmem:[%s4770] ss:$2 sm:$0xff] %v4728
      %v4772 = vld.sshfl [vmem:[#allocation1] sm:$0xff pattern:$0x75316420]
      %v4773 = vld.sshfl [vmem:[#allocation1 + $0x10] sm:$0xff pattern:$0x75316420]
      %4774 = vrot.lane.b32.xlu0 %v4772, 22
      %v4775 = vpop.permute.xlu0 %4774
      %4776 = vrot.lane.b32.xlu0 %v4773, 22
      %v4777 = vpop.permute.xlu0 %4776
      %4780 = vst [vmem:[#allocation1] ss:$2 sm:$0xff] %v4685
      %s4781 = scalar_lea.vmem [#allocation1], 1
      %4782 = vst [vmem:[%s4781] ss:$2 sm:$0xff] %v4686
      %s4783 = scalar_lea.vmem [#allocation1], 16
      %4784 = vst [vmem:[%s4783] ss:$2 sm:$0xff] %v4687
      %s4785 = scalar_lea.vmem [#allocation1], 17
      %4786 = vst [vmem:[%s4785] ss:$2 sm:$0xff] %v4688
      %v4787 = vld.sshfl [vmem:[#allocation1] sm:$0xff pattern:$0x75316420]
      %v4788 = vld.sshfl [vmem:[#allocation1 + $0x10] sm:$0xff pattern:$0x75316420]
      %4789 = vrot.lane.b32.xlu0 %v4787, 33
      %v4790 = vpop.permute.xlu0 %4789
      %4791 = vrot.lane.b32.xlu0 %v4788, 33
      %v4792 = vpop.permute.xlu0 %4791
      %4795 = vst [vmem:[#allocation1] ss:$2 sm:$0xff] %v4704
      %s4796 = scalar_lea.vmem [#allocation1], 1
      %4797 = vst [vmem:[%s4796] ss:$2 sm:$0xff] %v4708
      %s4798 = scalar_lea.vmem [#allocation1], 16
      %4799 = vst [vmem:[%s4798] ss:$2 sm:$0xff] %v4712
      %s4800 = scalar_lea.vmem [#allocation1], 17
      %4801 = vst [vmem:[%s4800] ss:$2 sm:$0xff] %v4734
      %v4802 = vld.sshfl [vmem:[#allocation1] sm:$0xff pattern:$0x75316420]
      %v4803 = vld.sshfl [vmem:[#allocation1 + $0x10] sm:$0xff pattern:$0x75316420]
      %4804 = vrot.lane.b32.xlu0 %v4802, 44
      %v4805 = vpop.permute.xlu0 %4804
      %4806 = vrot.lane.b32.xlu0 %v4803, 44
      %v4807 = vpop.permute.xlu0 %4806
      %4810 = vst [vmem:[#allocation1] ss:$2 sm:$0xff] %v4720
      %s4811 = scalar_lea.vmem [#allocation1], 1
      %4812 = vst [vmem:[%s4811] ss:$2 sm:$0xff] %v4724
      %s4813 = scalar_lea.vmem [#allocation1], 16
      %4814 = vst [vmem:[%s4813] ss:$2 sm:$0xff] %v4728
      %s4815 = scalar_lea.vmem [#allocation1], 17
      %4816 = vst [vmem:[%s4815] ss:$2 sm:$0xff] %v4738
      %v4817 = vld.sshfl [vmem:[#allocation1] sm:$0xff pattern:$0x75316420]
      %v4818 = vld.sshfl [vmem:[#allocation1 + $0x10] sm:$0xff pattern:$0x75316420]
      %4819 = vrot.lane.b32.xlu0 %v4817, 55
      %v4820 = vpop.permute.xlu0 %4819
      %4821 = vrot.lane.b32.xlu0 %v4818, 55
      %v4822 = vpop.permute.xlu0 %4821
      %4825 = vst [vmem:[#allocation1] ss:$2 sm:$0xff] %v4686
      %s4826 = scalar_lea.vmem [#allocation1], 1
      %4827 = vst [vmem:[%s4826] ss:$2 sm:$0xff] %v4687
      %s4828 = scalar_lea.vmem [#allocation1], 16
      %4829 = vst [vmem:[%s4828] ss:$2 sm:$0xff] %v4688
      %s4830 = scalar_lea.vmem [#allocation1], 17
      %4831 = vst [vmem:[%s4830] ss:$2 sm:$0xff] %v4684
      %v4832 = vld.sshfl [vmem:[#allocation1] sm:$0xff pattern:$0x75316420]
      %v4833 = vld.sshfl [vmem:[#allocation1 + $0x10] sm:$0xff pattern:$0x75316420]
      %4834 = vrot.lane.b32.xlu0 %v4832, 66
      %v4835 = vpop.permute.xlu0 %4834
      %4836 = vrot.lane.b32.xlu0 %v4833, 66
      %v4837 = vpop.permute.xlu0 %4836
      %4840 = vst [vmem:[#allocation1] ss:$2 sm:$0xff] %v4708
      %s4841 = scalar_lea.vmem [#allocation1], 1
      %4842 = vst [vmem:[%s4841] ss:$2 sm:$0xff] %v4712
      %s4843 = scalar_lea.vmem [#allocation1], 16
      %4844 = vst [vmem:[%s4843] ss:$2 sm:$0xff] %v4734
      %s4845 = scalar_lea.vmem [#allocation1], 17
      %4846 = vst [vmem:[%s4845] ss:$2 sm:$0xff] %v4700
      %v4847 = vld.sshfl [vmem:[#allocation1] sm:$0xff pattern:$0x75316420]
      %v4848 = vld.sshfl [vmem:[#allocation1 + $0x10] sm:$0xff pattern:$0x75316420]
      %4849 = vrot.lane.b32.xlu0 %v4847, 77
      %v4850 = vpop.permute.xlu0 %4849
      %4851 = vrot.lane.b32.xlu0 %v4848, 77
      %v4852 = vpop.permute.xlu0 %4851
      %4855 = vst [vmem:[#allocation1] ss:$2 sm:$0xff] %v4724
      %s4856 = scalar_lea.vmem [#allocation1], 1
      %4857 = vst [vmem:[%s4856] ss:$2 sm:$0xff] %v4728
      %s4858 = scalar_lea.vmem [#allocation1], 16
      %4859 = vst [vmem:[%s4858] ss:$2 sm:$0xff] %v4738
      %s4860 = scalar_lea.vmem [#allocation1], 17
      %4861 = vst [vmem:[%s4860] ss:$2 sm:$0xff] %v4716
      %v4862 = vld.sshfl [vmem:[#allocation1] sm:$0xff pattern:$0x75316420]
      %v4863 = vld.sshfl [vmem:[#allocation1 + $0x10] sm:$0xff pattern:$0x75316420]
      %4864 = vrot.lane.b32.xlu0 %v4862, 88
      %v4865 = vpop.permute.xlu0 %4864
      %4866 = vrot.lane.b32.xlu0 %v4863, 88
      %v4867 = vpop.permute.xlu0 %4866
      %vm4870 = vcmask 89088
      %v4871 = vsel %vm4870, %v4746, %v4760
      %v4872 = vsel %vm4870, %v4747, %v4762
      %vm4873 = vcmask 179200
      %v4874 = vsel %vm4873, %v4871, %v4775
      %v4875 = vsel %vm4873, %v4872, %v4777
      %vm4876 = vcmask 269312
      %v4877 = vsel %vm4876, %v4874, %v4790
      %v4878 = vsel %vm4876, %v4875, %v4792
      %vm4879 = vcmask 359424
      %v4880 = vsel %vm4879, %v4877, %v4805
      %v4881 = vsel %vm4879, %v4878, %v4807
      %vm4882 = vcmask 449536
      %v4883 = vsel %vm4882, %v4880, %v4820
      %v4884 = vsel %vm4882, %v4881, %v4822
      %vm4885 = vcmask 539648
      %v4886 = vsel %vm4885, %v4883, %v4835
      %v4887 = vsel %vm4885, %v4884, %v4837
      %vm4888 = vcmask 629760
      %v4889 = vsel %vm4888, %v4886, %v4850
      %v4890 = vsel %vm4888, %v4887, %v4852
      %vm4891 = vcmask 719872
      %v4892 = vsel %vm4891, %v4889, %v4865
      %v4893 = vsel %vm4891, %v4890, %v4867
      %vm4894 = vcmask 809984
      %v4896 = vsel %vm4894, %v4892, 0
      %v4899 = vsel %vm4894, %v4893, 0
      %v4902 = vsel %vm567, %v4667, 0
      %4904 = vmatpush.msra.mxu0 0.0
      %4905 = vmatpush.msra.mxu0 0.0
      %4906 = vmatpush.msra.mxu0 0.0
      %4907 = vmatpush.msra.mxu0 %v4902
      %4908 = vmatpush.msra.mxu0 %v4666
      %4909 = vmatpush.msra.mxu0 %v4665
      %4910 = vmatpush.msra.mxu0 %v4664
      %4911 = vmatpush.msra.mxu0 %v4663
      %4912 = vmatpush.msra.mxu0 %v4662
      %4913 = vmatpush.msra.mxu0 %v4661
      %4914 = vmatpush.msra.mxu0 %v4660
      %4915 = vmatpush.msra.mxu0 %v4659
      %4916 = vmatpush.msra.mxu0 %v4658
      %4917 = vmatpush.msra.mxu0 %v4657
      %4918 = vmatpush.msra.mxu0 %v4656
      %4919 = vmatpush.msra.mxu0 %v4655
      %4920 = vmatmul.f32.gmra.mxu0 %v4896
      %v4921 = vpop.f32.mrf.mxu0
      %v4922 = vadd.f32 0.0, %v4921
      %4923 = vmatmul.f32.gmra.mxu0 %v4899
      %v4924 = vpop.f32.mrf.mxu0
      %v4925 = vadd.f32 0.0, %v4924
      %4926 = vdwg.mxu0
      %v4927 = vmax.f32 %v4922, 0.0
      %v4928 = vmax.f32 %v4925, 0.0
      %v4929 = vmul.f32 %v4927, 1.4142135
      %v4930 = vmul.f32 %v4928, 1.4142135
      %v4933 = vrot.slane %v4929, 4
      %v4934 = vrot.slane %v4930, 4
      %v4935 = vld [vmem:[%s6] sm:$0xff]
      %v4936 = vld [vmem:[%s6 + $0x8] sm:$0xff]
      %v4937 = vld [vmem:[%s6 + $0x10] sm:$0xff]
      %v4938 = vld [vmem:[%s6 + $0x18] sm:$0xff]
      %v4939 = vld [vmem:[%s6 + $0x20] sm:$0xff]
      %v4940 = vld [vmem:[%s6 + $0x28] sm:$0xff]
      %v4941 = vld [vmem:[%s6 + $0x30] sm:$0xff]
      %v4942 = vld [vmem:[%s6 + $0x38] sm:$0xff]
      %v4943 = vld [vmem:[%s6 + $0x40] sm:$0xff]
      %v4944 = vrot.slane %v4929, 7
      %v4945 = vrot.slane %v4933, 7
      %v4946 = vrot.slane %v4930, 7
      %v4947 = vrot.slane %v4934, 7
      %v4952 = vsel %vm427, 0.0, %v4944
      %v4953 = vsel %vm427, 0.0, %v4945
      %v4954 = vsel %vm427, 0.0, %v4946
      %v4955 = vsel %vm427, 0.0, %v4947
      %v4956 = vsel %vm505, %v4952, 0.0
      %v4957 = vsel %vm505, %v4953, 0.0
      %v4958 = vsel %vm505, %v4954, 0.0
      %v4959 = vsel %vm505, %v4955, 0.0
      %v4961 = vrot.slane %v4684, 2
      %v4962 = vrot.slane %v4957, 2
      %v4963 = vrot.slane %v4957, 4
      %vm4964 = vcmask 1042434
      %vm4965 = vmor %vm427, %vm4964
      %vm4966 = vcmask 1044484
      %vm4967 = vmor %vm4965, %vm4966
      %vm4968 = vcmask 1046534
      %vm4969 = vmor %vm4967, %vm4968
      %v4970 = vrot.slane %v4684, 7
      %v4971 = vrot.slane %v4970, 2
      %v4972 = vrot.slane %v4961, 7
      %v4973 = vsel %vm4969, %v4971, %v4972
      %v4974 = vrot.slane %v4972, 2
      %v4975 = vrot.slane %v4693, 7
      %v4976 = vsel %vm4969, %v4974, %v4975
      %v4977 = vrot.slane %v4957, 7
      %v4978 = vrot.slane %v4977, 2
      %v4979 = vrot.slane %v4962, 7
      %v4980 = vsel %vm4969, %v4978, %v4979
      %v4981 = vrot.slane %v4979, 2
      %v4982 = vrot.slane %v4963, 7
      %v4983 = vsel %vm4969, %v4981, %v4982
      %4984 = vst.sshfl [vmem:[#allocation1] sm:$0xff pattern:$0x73625140] %v4684
      %s4985 = scalar_lea.vmem [#allocation1], 1
      %v4986 = vld [vmem:[%s4985] ss:$4 sm:$0xff]
      %s4987 = scalar_lea.vmem [#allocation1], 2
      %v4988 = vld [vmem:[%s4987] ss:$4 sm:$0xff]
      %4989 = vst.sshfl [vmem:[#allocation1 + $0x20] sm:$0xff pattern:$0x73625140] %v4957
      %s4990 = scalar_lea.vmem [#allocation1], 33
      %v4991 = vld [vmem:[%s4990] ss:$4 sm:$0xff]
      %s4992 = scalar_lea.vmem [#allocation1], 34
      %v4993 = vld [vmem:[%s4992] ss:$4 sm:$0xff]
      %v4996 = vrot.slane %v4956, 2
      %v4997 = vrot.slane %v4958, 2
      %v4998 = vrot.slane %v4956, 4
      %v4999 = vrot.slane %v4958, 4
      %v5000 = vrot.slane %v4956, 7
      %v5001 = vrot.slane %v5000, 2
      %v5002 = vrot.slane %v4996, 7
      %v5003 = vsel %vm4969, %v5001, %v5002
      %v5004 = vrot.slane %v5002, 2
      %v5005 = vrot.slane %v4998, 7
      %v5006 = vsel %vm4969, %v5004, %v5005
      %v5007 = vrot.slane %v4958, 7
      %v5008 = vrot.slane %v5007, 2
      %v5009 = vrot.slane %v4997, 7
      %v5010 = vsel %vm4969, %v5008, %v5009
      %v5011 = vrot.slane %v5009, 2
      %v5012 = vrot.slane %v4999, 7
      %v5013 = vsel %vm4969, %v5011, %v5012
      %5014 = vst.sshfl [vmem:[#allocation1] sm:$0xff pattern:$0x73625140] %v4956
      %s5015 = scalar_lea.vmem [#allocation1], 1
      %v5016 = vld [vmem:[%s5015] ss:$4 sm:$0xff]
      %s5017 = scalar_lea.vmem [#allocation1], 2
      %v5018 = vld [vmem:[%s5017] ss:$4 sm:$0xff]
      %5019 = vst.sshfl [vmem:[#allocation1 + $0x20] sm:$0xff pattern:$0x73625140] %v4958
      %s5020 = scalar_lea.vmem [#allocation1], 33
      %v5021 = vld [vmem:[%s5020] ss:$4 sm:$0xff]
      %s5022 = scalar_lea.vmem [#allocation1], 34
      %v5023 = vld [vmem:[%s5022] ss:$4 sm:$0xff]
      %v5025 = vrot.slane %v4959, 2
      %v5026 = vrot.slane %v4959, 4
      %v5027 = vrot.slane %v4959, 7
      %v5028 = vrot.slane %v5027, 2
      %v5029 = vrot.slane %v5025, 7
      %v5030 = vsel %vm4969, %v5028, %v5029
      %v5031 = vrot.slane %v5029, 2
      %v5032 = vrot.slane %v5026, 7
      %v5033 = vsel %vm4969, %v5031, %v5032
      %5034 = vst.sshfl [vmem:[#allocation1] sm:$0xff pattern:$0x73625140] %v4957
      %s5035 = scalar_lea.vmem [#allocation1], 1
      %v5036 = vld [vmem:[%s5035] ss:$4 sm:$0xff]
      %s5037 = scalar_lea.vmem [#allocation1], 2
      %v5038 = vld [vmem:[%s5037] ss:$4 sm:$0xff]
      %5039 = vst.sshfl [vmem:[#allocation1 + $0x20] sm:$0xff pattern:$0x73625140] %v4959
      %s5040 = scalar_lea.vmem [#allocation1], 33
      %v5041 = vld [vmem:[%s5040] ss:$4 sm:$0xff]
      %s5042 = scalar_lea.vmem [#allocation1], 34
      %v5043 = vld [vmem:[%s5042] ss:$4 sm:$0xff]
      %v5044 = vperm.slane %v4684, 0
      %v5045 = vperm.slane %v4961, 0
      %v5046 = vperm.slane %v4957, 0
      %v5047 = vperm.slane %v4962, 0
      %vm5048 = vcmask 1041409
      %v5049 = vsel %vm5048, %v5045, %v5044
      %v5050 = vsel %vm4964, %v5046, %v5049
      %vm5051 = vcmask 1043459
      %v5052 = vsel %vm5051, %v5047, %v5050
      %v5054 = vperm.slane %v4973, 0
      %v5055 = vperm.slane %v4976, 0
      %v5056 = vperm.slane %v4980, 0
      %v5057 = vperm.slane %v4983, 0
      %v5058 = vsel %vm5048, %v5055, %v5054
      %v5059 = vsel %vm4964, %v5056, %v5058
      %v5060 = vsel %vm5051, %v5057, %v5059
      %5061 = vrot.lane.b32.xlu0 %v5060, 8
      %v5062 = vpop.permute.xlu0 %5061
      %v5064 = vperm.slane %v4986, 0
      %v5065 = vperm.slane %v4988, 0
      %v5066 = vperm.slane %v4991, 0
      %v5067 = vperm.slane %v4993, 0
      %v5068 = vsel %vm5048, %v5065, %v5064
      %v5069 = vsel %vm4964, %v5066, %v5068
      %v5070 = vsel %vm5051, %v5067, %v5069
      %5071 = vrot.lane.b32.xlu0 %v5070, 16
      %v5072 = vpop.permute.xlu0 %5071
      %v5074 = vperm.slane %v4956, 0
      %v5075 = vperm.slane %v4996, 0
      %v5076 = vperm.slane %v4958, 0
      %v5077 = vperm.slane %v4997, 0
      %v5078 = vsel %vm5048, %v5075, %v5074
      %v5079 = vsel %vm4964, %v5076, %v5078
      %v5080 = vsel %vm5051, %v5077, %v5079
      %5081 = vrot.lane.b32.xlu0 %v5080, 24
      %v5082 = vpop.permute.xlu0 %5081
      %v5084 = vperm.slane %v5003, 0
      %v5085 = vperm.slane %v5006, 0
      %v5086 = vperm.slane %v5010, 0
      %v5087 = vperm.slane %v5013, 0
      %v5088 = vsel %vm5048, %v5085, %v5084
      %v5089 = vsel %vm4964, %v5086, %v5088
      %v5090 = vsel %vm5051, %v5087, %v5089
      %5091 = vrot.lane.b32.xlu0 %v5090, 32
      %v5092 = vpop.permute.xlu0 %5091
      %v5094 = vperm.slane %v5016, 0
      %v5095 = vperm.slane %v5018, 0
      %v5096 = vperm.slane %v5021, 0
      %v5097 = vperm.slane %v5023, 0
      %v5098 = vsel %vm5048, %v5095, %v5094
      %v5099 = vsel %vm4964, %v5096, %v5098
      %v5100 = vsel %vm5051, %v5097, %v5099
      %5101 = vrot.lane.b32.xlu0 %v5100, 40
      %v5102 = vpop.permute.xlu0 %5101
      %v5104 = vperm.slane %v4959, 0
      %v5105 = vperm.slane %v5025, 0
      %v5106 = vsel %vm5048, %v5047, %v5046
      %v5107 = vsel %vm4964, %v5104, %v5106
      %v5108 = vsel %vm5051, %v5105, %v5107
      %5109 = vrot.lane.b32.xlu0 %v5108, 48
      %v5110 = vpop.permute.xlu0 %5109
      %v5112 = vperm.slane %v5030, 0
      %v5113 = vperm.slane %v5033, 0
      %v5114 = vsel %vm5048, %v5057, %v5056
      %v5115 = vsel %vm4964, %v5112, %v5114
      %v5116 = vsel %vm5051, %v5113, %v5115
      %5117 = vrot.lane.b32.xlu0 %v5116, 56
      %v5118 = vpop.permute.xlu0 %5117
      %v5120 = vperm.slane %v5036, 0
      %v5121 = vperm.slane %v5038, 0
      %v5122 = vperm.slane %v5041, 0
      %v5123 = vperm.slane %v5043, 0
      %v5124 = vsel %vm5048, %v5121, %v5120
      %v5125 = vsel %vm4964, %v5122, %v5124
      %v5126 = vsel %vm5051, %v5123, %v5125
      %5127 = vrot.lane.b32.xlu0 %v5126, 64
      %v5128 = vpop.permute.xlu0 %5127
      %v5130 = vsel %vm1969, %v5052, %v5062
      %v5131 = vsel %vm3652, %v5130, %v5072
      %v5132 = vsel %vm3671, %v5131, %v5082
      %v5133 = vsel %vm3690, %v5132, %v5092
      %v5134 = vsel %vm3709, %v5133, %v5102
      %v5135 = vsel %vm3728, %v5134, %v5110
      %v5136 = vsel %vm3747, %v5135, %v5118
      %v5137 = vsel %vm3766, %v5136, %v5128
      %v5139 = vsel %vm3785, %v5137, 0
      %5141 = vmatpush.msra.mxu0 0.0
      %5142 = vmatpush.msra.mxu0 0.0
      %5143 = vmatpush.msra.mxu0 0.0
      %5144 = vmatpush.msra.mxu0 0.0
      %5145 = vmatpush.msra.mxu0 0.0
      %5146 = vmatpush.msra.mxu0 0.0
      %5147 = vmatpush.msra.mxu0 0.0
      %5148 = vmatpush.msra.mxu0 %v4943
      %5149 = vmatpush.msra.mxu0 %v4942
      %5150 = vmatpush.msra.mxu0 %v4941
      %5151 = vmatpush.msra.mxu0 %v4940
      %5152 = vmatpush.msra.mxu0 %v4939
      %5153 = vmatpush.msra.mxu0 %v4938
      %5154 = vmatpush.msra.mxu0 %v4937
      %5155 = vmatpush.msra.mxu0 %v4936
      %5156 = vmatpush.msra.mxu0 %v4935
      %5157 = vmatmul.f32.gmra.mxu0 %v5139
      %v5158 = vpop.f32.mrf.mxu0
      %v5159 = vadd.f32 0.0, %v5158
      %5160 = vdwg.mxu0
      %v5161 = vmax.f32 %v5159, 0.0
      %v5162 = vmul.f32 %v5161, 1.4142135
      %v5164 = vrot.slane %v5162, 2
      %v5165 = vld [vmem:[%s7] sm:$0xff]
      %v5166 = vld [vmem:[%s7 + $0x8] sm:$0xff]
      %v5167 = vld [vmem:[%s7 + $0x10] sm:$0xff]
      %v5168 = vld [vmem:[%s7 + $0x18] sm:$0xff]
      %v5169 = vld [vmem:[%s7 + $0x20] sm:$0xff]
      %v5170 = vld [vmem:[%s7 + $0x28] sm:$0xff]
      %v5171 = vld [vmem:[%s7 + $0x30] sm:$0xff]
      %v5172 = vld [vmem:[%s7 + $0x38] sm:$0xff]
      %v5173 = vld [vmem:[%s7 + $0x40] sm:$0xff]
      %v5174 = vrot.slane %v5162, 7
      %v5175 = vrot.slane %v5164, 7
      %v5178 = vsel %vm427, 0.0, %v5174
      %v5179 = vsel %vm427, 0.0, %v5175
      %v5180 = vsel %vm567, %v492, 0.0
      %v5181 = vsel %vm567, %v5178, 0.0
      %v5182 = vsel %vm567, %v5179, 0.0
      %v5185 = vrot.slane %v5180, 2
      %v5186 = vrot.slane %v5181, 2
      %v5187 = vrot.slane %v5180, 7
      %v5188 = vrot.slane %v5187, 2
      %v5189 = vrot.slane %v5185, 7
      %v5190 = vsel %vm4969, %v5188, %v5189
      %v5191 = vrot.slane %v5181, 7
      %v5192 = vrot.slane %v5191, 2
      %v5193 = vrot.slane %v5186, 7
      %v5194 = vsel %vm4969, %v5192, %v5193
      %5195 = vst.sshfl [vmem:[#allocation1] sm:$0xff pattern:$0x73625140] %v5180
      %s5196 = scalar_lea.vmem [#allocation1], 1
      %v5197 = vld [vmem:[%s5196] ss:$4 sm:$0xff]
      %5198 = vst.sshfl [vmem:[#allocation1 + $0x20] sm:$0xff pattern:$0x73625140] %v5181
      %s5199 = scalar_lea.vmem [#allocation1], 33
      %v5200 = vld [vmem:[%s5199] ss:$4 sm:$0xff]
      %v5202 = vrot.slane %v5182, 2
      %v5203 = vrot.slane %v5182, 7
      %v5204 = vrot.slane %v5203, 2
      %v5205 = vrot.slane %v5202, 7
      %v5206 = vsel %vm4969, %v5204, %v5205
      %5207 = vst.sshfl [vmem:[#allocation1] sm:$0xff pattern:$0x73625140] %v5181
      %s5208 = scalar_lea.vmem [#allocation1], 1
      %v5209 = vld [vmem:[%s5208] ss:$4 sm:$0xff]
      %5210 = vst.sshfl [vmem:[#allocation1 + $0x20] sm:$0xff pattern:$0x73625140] %v5182
      %s5211 = scalar_lea.vmem [#allocation1], 33
      %v5212 = vld [vmem:[%s5211] ss:$4 sm:$0xff]
      %5213 = vst.sshfl [vmem:[#allocation1] sm:$0xff pattern:$0x73625140] %v5182
      %s5214 = scalar_lea.vmem [#allocation1], 1
      %v5215 = vld [vmem:[%s5214] ss:$4 sm:$0xff]
      %5216 = vst.sshfl [vmem:[#allocation1 + $0x20] sm:$0xff pattern:$0x73625140] %v5180
      %s5217 = scalar_lea.vmem [#allocation1], 33
      %v5218 = vld [vmem:[%s5217] ss:$4 sm:$0xff]
      %5219 = vst [vmem:[#allocation1] ss:$4 sm:$0xff] %v5180
      %s5220 = scalar_lea.vmem [#allocation1], 1
      %5221 = vst [vmem:[%s5220] ss:$4 sm:$0xff] %v5181
      %v5222 = vld.sshfl [vmem:[#allocation1] sm:$0xff pattern:$0x73625140]
      %5224 = vst [vmem:[#allocation1] ss:$4 sm:$0xff] %v5190
      %s5225 = scalar_lea.vmem [#allocation1], 1
      %5226 = vst [vmem:[%s5225] ss:$4 sm:$0xff] %v5194
      %v5227 = vld.sshfl [vmem:[#allocation1] sm:$0xff pattern:$0x73625140]
      %5228 = vrot.lane.b32.xlu0 %v5227, 8
      %v5229 = vpop.permute.xlu0 %5228
      %5231 = vst [vmem:[#allocation1] ss:$4 sm:$0xff] %v5197
      %s5232 = scalar_lea.vmem [#allocation1], 1
      %5233 = vst [vmem:[%s5232] ss:$4 sm:$0xff] %v5200
      %v5234 = vld.sshfl [vmem:[#allocation1] sm:$0xff pattern:$0x73625140]
      %5235 = vrot.lane.b32.xlu0 %v5234, 16
      %v5236 = vpop.permute.xlu0 %5235
      %5238 = vst [vmem:[#allocation1] ss:$4 sm:$0xff] %v5181
      %s5239 = scalar_lea.vmem [#allocation1], 1
      %5240 = vst [vmem:[%s5239] ss:$4 sm:$0xff] %v5182
      %v5241 = vld.sshfl [vmem:[#allocation1] sm:$0xff pattern:$0x73625140]
      %5242 = vrot.lane.b32.xlu0 %v5241, 24
      %v5243 = vpop.permute.xlu0 %5242
      %5245 = vst [vmem:[#allocation1] ss:$4 sm:$0xff] %v5194
      %s5246 = scalar_lea.vmem [#allocation1], 1
      %5247 = vst [vmem:[%s5246] ss:$4 sm:$0xff] %v5206
      %v5248 = vld.sshfl [vmem:[#allocation1] sm:$0xff pattern:$0x73625140]
      %5249 = vrot.lane.b32.xlu0 %v5248, 32
      %v5250 = vpop.permute.xlu0 %5249
      %5252 = vst [vmem:[#allocation1] ss:$4 sm:$0xff] %v5209
      %s5253 = scalar_lea.vmem [#allocation1], 1
      %5254 = vst [vmem:[%s5253] ss:$4 sm:$0xff] %v5212
      %v5255 = vld.sshfl [vmem:[#allocation1] sm:$0xff pattern:$0x73625140]
      %5256 = vrot.lane.b32.xlu0 %v5255, 40
      %v5257 = vpop.permute.xlu0 %5256
      %5259 = vst [vmem:[#allocation1] ss:$4 sm:$0xff] %v5182
      %s5260 = scalar_lea.vmem [#allocation1], 1
      %5261 = vst [vmem:[%s5260] ss:$4 sm:$0xff] %v5180
      %v5262 = vld.sshfl [vmem:[#allocation1] sm:$0xff pattern:$0x73625140]
      %5263 = vrot.lane.b32.xlu0 %v5262, 48
      %v5264 = vpop.permute.xlu0 %5263
      %5266 = vst [vmem:[#allocation1] ss:$4 sm:$0xff] %v5206
      %s5267 = scalar_lea.vmem [#allocation1], 1
      %5268 = vst [vmem:[%s5267] ss:$4 sm:$0xff] %v5190
      %v5269 = vld.sshfl [vmem:[#allocation1] sm:$0xff pattern:$0x73625140]
      %5270 = vrot.lane.b32.xlu0 %v5269, 56
      %v5271 = vpop.permute.xlu0 %5270
      %5273 = vst [vmem:[#allocation1] ss:$4 sm:$0xff] %v5215
      %s5274 = scalar_lea.vmem [#allocation1], 1
      %5275 = vst [vmem:[%s5274] ss:$4 sm:$0xff] %v5218
      %v5276 = vld.sshfl [vmem:[#allocation1] sm:$0xff pattern:$0x73625140]
      %5277 = vrot.lane.b32.xlu0 %v5276, 64
      %v5278 = vpop.permute.xlu0 %5277
      %v5280 = vsel %vm1969, %v5222, %v5229
      %v5281 = vsel %vm3652, %v5280, %v5236
      %v5282 = vsel %vm3671, %v5281, %v5243
      %v5283 = vsel %vm3690, %v5282, %v5250
      %v5284 = vsel %vm3709, %v5283, %v5257
      %v5285 = vsel %vm3728, %v5284, %v5264
      %v5286 = vsel %vm3747, %v5285, %v5271
      %v5287 = vsel %vm3766, %v5286, %v5278
      %v5289 = vsel %vm3785, %v5287, 0
      %5291 = vmatpush.msra.mxu0 0.0
      %5292 = vmatpush.msra.mxu0 0.0
      %5293 = vmatpush.msra.mxu0 0.0
      %5294 = vmatpush.msra.mxu0 0.0
      %5295 = vmatpush.msra.mxu0 0.0
      %5296 = vmatpush.msra.mxu0 0.0
      %5297 = vmatpush.msra.mxu0 0.0
      %5298 = vmatpush.msra.mxu0 %v5173
      %5299 = vmatpush.msra.mxu0 %v5172
      %5300 = vmatpush.msra.mxu0 %v5171
      %5301 = vmatpush.msra.mxu0 %v5170
      %5302 = vmatpush.msra.mxu0 %v5169
      %5303 = vmatpush.msra.mxu0 %v5168
      %5304 = vmatpush.msra.mxu0 %v5167
      %5305 = vmatpush.msra.mxu0 %v5166
      %5306 = vmatpush.msra.mxu0 %v5165
      %5307 = vmatmul.f32.gmra.mxu0 %v5289
      %v5308 = vpop.f32.mrf.mxu0
      %v5309 = vadd.f32 0.0, %v5308
      %5310 = vdwg.mxu0
      %v5311 = vmax.f32 %v5309, 0.0
      %v5312 = vmul.f32 %v5311, 1.4142135
      %v5314 = vrot.slane %v5312, 2
      %v5315 = vld [vmem:[%s8] sm:$0xff]
      %v5316 = vld [vmem:[%s8 + $0x8] sm:$0xff]
      %v5317 = vld [vmem:[%s8 + $0x10] sm:$0xff]
      %v5318 = vld [vmem:[%s8 + $0x18] sm:$0xff]
      %v5319 = vld [vmem:[%s8 + $0x20] sm:$0xff]
      %v5320 = vld [vmem:[%s8 + $0x28] sm:$0xff]
      %v5321 = vld [vmem:[%s8 + $0x30] sm:$0xff]
      %v5322 = vld [vmem:[%s8 + $0x38] sm:$0xff]
      %v5323 = vld [vmem:[%s8 + $0x40] sm:$0xff]
      %v5324 = vrot.slane %v5312, 7
      %v5325 = vrot.slane %v5314, 7
      %v5328 = vsel %vm427, 0.0, %v5324
      %v5329 = vsel %vm427, 0.0, %v5325
      %v5330 = vsel %vm567, %v5328, 0.0
      %v5331 = vsel %vm567, %v5329, 0.0
      %v5332 = vrot.slane %v5180, 1
      %5333 = vrot.lane.b32.xlu0 %v5332, 8
      %v5334 = vpop.permute.xlu0 %5333
      %5336 = vrot.lane.b32.xlu0 %v5185, 16
      %v5337 = vpop.permute.xlu0 %5336
      %5340 = vrot.lane.b32.xlu0 %v5330, 24
      %v5341 = vpop.permute.xlu0 %5340
      %v5343 = vrot.slane %v5330, 1
      %5344 = vrot.lane.b32.xlu0 %v5343, 32
      %v5345 = vpop.permute.xlu0 %5344
      %v5347 = vrot.slane %v5330, 2
      %5348 = vrot.lane.b32.xlu0 %v5347, 40
      %v5349 = vpop.permute.xlu0 %5348
      %5352 = vrot.lane.b32.xlu0 %v5331, 48
      %v5353 = vpop.permute.xlu0 %5352
      %v5355 = vrot.slane %v5331, 1
      %5356 = vrot.lane.b32.xlu0 %v5355, 56
      %v5357 = vpop.permute.xlu0 %5356
      %v5359 = vrot.slane %v5331, 2
      %5360 = vrot.lane.b32.xlu0 %v5359, 64
      %v5361 = vpop.permute.xlu0 %5360
      %v5363 = vsel %vm1969, %v5180, %v5334
      %v5364 = vsel %vm3652, %v5363, %v5337
      %v5365 = vsel %vm3671, %v5364, %v5341
      %v5366 = vsel %vm3690, %v5365, %v5345
      %v5367 = vsel %vm3709, %v5366, %v5349
      %v5368 = vsel %vm3728, %v5367, %v5353
      %v5369 = vsel %vm3747, %v5368, %v5357
      %v5370 = vsel %vm3766, %v5369, %v5361
      %v5372 = vsel %vm3785, %v5370, 0
      %5374 = vmatpush.msra.mxu0 0.0
      %5375 = vmatpush.msra.mxu0 0.0
      %5376 = vmatpush.msra.mxu0 0.0
      %5377 = vmatpush.msra.mxu0 0.0
      %5378 = vmatpush.msra.mxu0 0.0
      %5379 = vmatpush.msra.mxu0 0.0
      %5380 = vmatpush.msra.mxu0 0.0
      %5381 = vmatpush.msra.mxu0 %v5323
      %5382 = vmatpush.msra.mxu0 %v5322
      %5383 = vmatpush.msra.mxu0 %v5321
      %5384 = vmatpush.msra.mxu0 %v5320
      %5385 = vmatpush.msra.mxu0 %v5319
      %5386 = vmatpush.msra.mxu0 %v5318
      %5387 = vmatpush.msra.mxu0 %v5317
      %5388 = vmatpush.msra.mxu0 %v5316
      %5389 = vmatpush.msra.mxu0 %v5315
      %5390 = vmatmul.f32.gmra.mxu0 %v5372
      %v5391 = vpop.f32.mrf.mxu0
      %v5392 = vadd.f32 0.0, %v5391
      %5393 = vdwg.mxu0
      %v5394 = vmax.f32 %v5392, 0.0
      %v5395 = vmul.f32 %v5394, 1.4142135
      %v5396 = vadd.f32 %v5395, 0.0
      %v5397 = vld [vmem:[%s9] sm:$0x1]
      %v5398 = vmul.f32 %v5396, %v5397
      %vm5399 = vcmask 57344
      %v5400 = vsel %vm5399, %v5398, 0.0
      %5401 = vadd.xlane.f32.xlu0 %v5400
      %v5402 = vpop.xlane.xlu0 %5401
      %5403 = vst [vmem:[%s375] sm:$0x1] %v5402
      %p5404 = scmp.lt.s32.totalorder %s21, 1
      %s5405 = scalar_select %p5404, %s21, 1
      %s5406 = scalar_lea.vmem %s10, %s5405
      // Predicated region
      $region61: #{forward.1} parent=59 // pred_check
        %p5407 = pneg %p259
      $region62: #{forward.1} parent=59 // pred_check_branch
        %5409 = sbr.rel (%p5407) target = $region64
      $region63: #{forward.1} parent=59 // pred_region
        _
      $region64: #{forward.1} parent=59 // pred_fallthru
        _
    $region60: #{forward.1} parent=5 // pred_fallthru
      _
    %p5410 = scmp.le.s32.totalorder 2, %s16
    // Predicated region
    $region65: #{forward.1} parent=5 // pred_check
      %p5411 = pneg %p5410
    $region66: #{forward.1} parent=5 // pred_check_branch
      %5413 = sbr.rel (%p5411) target = $region68
    $region67: #{forward.1} parent=5 // pred_region
      %s5414 = ssub.s32 %s16, 2
      // Predicated region
      $region69: #{forward.1} parent=67 // pred_check
        %p5415 = pneg %p265
      $region70: #{forward.1} parent=67 // pred_check_branch
        %5417 = sbr.rel (%p5415) target = $region72
      $region71: #{forward.1} parent=67 // pred_region
        %p5418 = scmp.lt.s32.totalorder %s22, 1
        %s5419 = scalar_select %p5418, %s22, 1
        %s5420 = scalar_lea.vmem %s10, %s5419
      $region72: #{forward.1} parent=67 // pred_fallthru
        _
    $region68: #{forward.1} parent=5 // pred_fallthru
      _
  $region6: #{forward.1} parent=0 // loop_footer
    %s20 = sadd.s32 1, %s16
  $region7: #{forward.1} parent=0 // loop_footer_branch
    %15 = sbr.rel target = $region3
  $region8: #{forward.1} parent=0 // loop_exit
    _

</llo_original>
